<compile_context>
chip_gen: v5e
topology: v5e:2x2
jax: 0.10.0
libtpu: 0.0.40
codegen_flags: <defaults>
</compile_context>

<pallas_src>
import functools

import jax
import jax.numpy as jnp
from jax import lax
from jax.experimental import pallas as pl
from jax.experimental.pallas import tpu as pltpu

# Keep XLA-side conv/matmul at full f32 so the reference matches the kernel.
jax.config.update("jax_default_matmul_precision", "highest")


def _round_up(v, m):
    return ((v + m - 1) // m) * m


# --------------------------------------------------------------------------
# Pallas kernel: fused (dynamic 3x3 group convs as block-diag matmul) + 1x1 conv
# --------------------------------------------------------------------------
def _fused_group_conv_kernel(xs_ref, dwblk_ref, wout_ref, bout_ref, o_ref):
    # xs_ref block:    (1, 540, T)   im2col patches for one batch elem / HW tile
    # dwblk_ref block: (60, 540)     block-diagonal dynamic conv weights
    # wout_ref block:  (60, 60)      conv_out 1x1 weight
    # bout_ref block:  (60, 1)       conv_out bias
    patches = xs_ref[0]                                                  # (540, T)
    # Three 3x3 group convs == one block-diagonal matmul over (channel x tap).
    y = jnp.dot(dwblk_ref[...], patches,
                preferred_element_type=jnp.float32)                      # (60, T)
    # conv_out: 1x1 conv == per-pixel matmul + bias.
    out = jnp.dot(wout_ref[...], y,
                  preferred_element_type=jnp.float32) + bout_ref[...]    # (60, T)
    o_ref[0] = out.astype(o_ref.dtype)


# --------------------------------------------------------------------------
# Tiny weight-generation branch (plain JAX by design: negligible FLOPs,
# recommended by the perf review to stay out of the streaming loop).
# --------------------------------------------------------------------------
def _adaptive_avg_pool_3x3(x):
    """PyTorch AdaptiveAvgPool2d((3,3)) semantics (handles H, W not divisible by 3)."""
    B, C, H, W = x.shape
    rows = []
    for i in range(3):
        h0, h1 = (i * H) // 3, -((-(i + 1) * H) // 3)
        cols = []
        for j in range(3):
            w0, w1 = (j * W) // 3, -((-(j + 1) * W) // 3)
            cols.append(jnp.mean(x[:, :, h0:h1, w0:w1], axis=(2, 3)))
        rows.append(jnp.stack(cols, axis=-1))
    return jnp.stack(rows, axis=-2)                                      # (B, C, 3, 3)


def _dynamic_kernels(x, params):
    """x_gap path: pool(3,3) -> three 1x1 convs -> *para -> tanh. Returns the three
    dynamically generated (B, 20, 3, 3) conv weights (module requires B == 20)."""
    B = x.shape[0]
    x_gap = _adaptive_avg_pool_3x3(x)                                    # (B, 60, 3, 3)
    gap2 = x_gap.reshape(B, 60, 9)
    dyn = []
    for wg, bg, para in (
        (params["w_gave1"], params["b_gave1"], params["para1"]),
        (params["w_gave2"], params["b_gave2"], params["para2"]),
        (params["w_gave3"], params["b_gave3"], params["para3"]),
    ):
        y = jnp.einsum("oc,bcp->bop", wg, gap2) + bg[None, :, None]      # (B, 20, 9)
        dyn.append(jnp.tanh(y * para).reshape(B, 20, 3, 3))
    return dyn


# --------------------------------------------------------------------------
# Forward pass: wrapper (layout plumbing) + Pallas kernel (all conv FLOPs)
# --------------------------------------------------------------------------
def sam_forward(x, params, *, max_tile=1024):
    B, C, H, W = x.shape
    if B != 20 or C != 60:
        raise ValueError("SAM requires batch=20 and 60 channels (3*20 == conv_out in-channels).")
    HW = H * W

    dw1, dw2, dw3 = _dynamic_kernels(x, params)                          # (20, 20, 3, 3) each

    # Block-diagonal (60, 540) weight: group g owns rows/cols [20g:20g+20, 180g:180g+180].
    dwblk = jnp.zeros((60, 540), jnp.float32)
    dwblk = dwblk.at[0:20, 0:180].set(dw1.reshape(20, 180))
    dwblk = dwblk.at[20:40, 180:360].set(dw2.reshape(20, 180))
    dwblk = dwblk.at[40:60, 360:540].set(dw3.reshape(20, 180))
    wout = params["w_out"].reshape(60, 60).astype(jnp.float32)
    bout = params["b_out"].reshape(60, 1).astype(jnp.float32)

    # im2col: 9 zero-padded shifted copies, ordered (channel, tap) -> 540 rows.
    xp = jnp.pad(x, ((0, 0), (0, 0), (1, 1), (1, 1)))
    taps = [xp[:, :, ky:ky + H, kx:kx + W] for ky in range(3) for kx in range(3)]
    xs = jnp.stack(taps, axis=2).reshape(B, 9 * C, HW).astype(jnp.float32)

    # Lane-dense spatial tiling: tile is a multiple of 128, HW padded to a multiple of tile.
    tile = min(max_tile, _round_up(HW, 128))
    hwp = _round_up(HW, tile)
    if hwp != HW:
        xs = jnp.pad(xs, ((0, 0), (0, 0), (0, hwp - HW)))

    grid = (B, hwp // tile)
    out = pl.pallas_call(
        _fused_group_conv_kernel,
        out_shape=jax.ShapeDtypeStruct((B, C, hwp), jnp.float32),
        grid_spec=pltpu.PrefetchScalarGridSpec(
            num_scalar_prefetch=0,
            grid=grid,
            in_specs=[
                pl.BlockSpec((1, 9 * C, tile), lambda b, t: (b, 0, t)),   # patches
                pl.BlockSpec((C, 9 * C), lambda b, t: (0, 0)),            # block-diag dyn weights
                pl.BlockSpec((C, C), lambda b, t: (0, 0)),                # conv_out weight
                pl.BlockSpec((C, 1), lambda b, t: (0, 0)),                # conv_out bias
            ],
            out_specs=pl.BlockSpec((1, C, tile), lambda b, t: (b, 0, t)),
        ),
        compiler_params=pltpu.CompilerParams(
            dimension_semantics=("parallel", "parallel"),
            vmem_limit_bytes=32 * 1024 * 1024,
        ),
    )(xs, dwblk, wout, bout)

    return out[:, :, :HW].reshape(B, C, H, W)


# --------------------------------------------------------------------------
# Pure-JAX reference (uses lax.conv for the group convs) for correctness.
# --------------------------------------------------------------------------
def sam_reference(x, params):
    B, C, H, W = x.shape
    dw1, dw2, dw3 = _dynamic_kernels(x, params)

    def conv3x3(inp, w):
        return lax.conv_general_dilated(
            inp, w, window_strides=(1, 1), padding=((1, 1), (1, 1)),
            dimension_numbers=("NCHW", "OIHW", "NCHW"))

    x1 = conv3x3(x[:, 0:20], dw1)
    x2 = conv3x3(x[:, 20:40], dw2)
    x3 = conv3x3(x[:, 40:60], dw3)
    xcat = jnp.concatenate([x1, x2, x3], axis=1)                         # (B, 60, H, W)
    out = jnp.einsum("oc,bchw->bohw", params["w_out"].reshape(60, 60), xcat)
    return out + params["b_out"][None, :, None, None]


if __name__ == "__main__":
    # Shapes implied by the module: batch MUST be 20, channels MUST be 60.
    B, C, H, W = 20, 60, 12, 12

    key = jax.random.PRNGKey(0)
    ks = jax.random.split(key, 9)
    x = jax.random.normal(ks[0], (B, C, H, W), dtype=jnp.float32)
    params = dict(
        w_gave1=jax.random.normal(ks[1], (20, 60), dtype=jnp.float32) * 0.1,
        b_gave1=jax.random.normal(ks[2], (20,), dtype=jnp.float32) * 0.1,
        w_gave2=jax.random.normal(ks[3], (20, 60), dtype=jnp.float32) * 0.1,
        b_gave2=jax.random.normal(ks[4], (20,), dtype=jnp.float32) * 0.1,
        w_gave3=jax.random.normal(ks[5], (20, 60), dtype=jnp.float32) * 0.1,
        b_gave3=jax.random.normal(ks[6], (20,), dtype=jnp.float32) * 0.1,
        para1=jnp.float32(0.8),
        para2=jnp.float32(1.0),
        para3=jnp.float32(1.2),
        w_out=jax.random.normal(ks[7], (60, 60), dtype=jnp.float32) * 0.1,
        b_out=jax.random.normal(ks[8], (60,), dtype=jnp.float32) * 0.1,
    )

    out = jax.block_until_ready(jax.jit(sam_forward)(x, params))
    ref = jax.block_until_ready(sam_reference(x, params))

    assert out.shape == (B, C, H, W)
    max_err = float(jnp.max(jnp.abs(out - ref)))
    assert jnp.allclose(out, ref, atol=1e-2, rtol=1e-2), f"mismatch vs reference: {max_err}"

    print("KERNEL_OK")
</pallas_src>

<mosaic_0001>
module attributes {stable_mosaic.version = 11 : i64} {
  func.func @_fused_group_conv_kernel(%arg0: i32, %arg1: i32, %arg2: memref<1x540x256xf32, #tpu.memory_space<vmem>>, %arg3: memref<60x540xf32, #tpu.memory_space<vmem>>, %arg4: memref<60x60xf32, #tpu.memory_space<vmem>>, %arg5: memref<60x1xf32, #tpu.memory_space<vmem>>, %arg6: memref<1x60x256xf32, #tpu.memory_space<vmem>>) attributes {dimension_semantics = [#tpu.dimension_semantics<parallel>, #tpu.dimension_semantics<parallel>], iteration_bounds = array<i64: 20, 1>, scalar_prefetch = 0 : i64, scratch_operands = 0 : i64, tpu.core_type = #tpu.core_type<tc>, window_params = [{transform_indices = @transform_0, window_bounds = array<i64: 1, 540, 256>}, {pipeline_mode = #tpu.pipeline_mode<synchronous>, transform_indices = @transform_1, window_bounds = array<i64: 60, 540>}, {pipeline_mode = #tpu.pipeline_mode<synchronous>, transform_indices = @transform_2, window_bounds = array<i64: 60, 60>}, {pipeline_mode = #tpu.pipeline_mode<synchronous>, transform_indices = @transform_3, window_bounds = array<i64: 60, 1>}, {transform_indices = @transform_4, window_bounds = array<i64: 1, 60, 256>}]} {
    %c0 = arith.constant 0 : index
    %c0_0 = arith.constant 0 : index
    %c0_1 = arith.constant 0 : index
    %0 = vector.load %arg2[%c0, %c0_0, %c0_1] : memref<1x540x256xf32, #tpu.memory_space<vmem>>, vector<1x540x256xf32>
    %1 = vector.shape_cast %0 : vector<1x540x256xf32> to vector<540x256xf32>
    %c0_2 = arith.constant 0 : index
    %c0_3 = arith.constant 0 : index
    %2 = vector.load %arg3[%c0_2, %c0_3] : memref<60x540xf32, #tpu.memory_space<vmem>>, vector<60x540xf32>
    %cst = arith.constant dense<0.000000e+00> : vector<60x256xf32>
    %3 = tpu.matmul %2, %1, %cst {dimension_numbers = #tpu.dot_dimension_numbers<[1], [0], [0], [1], [0, 0, 1, 1], [], []>, precision = #tpu.contract_precision<fp32>} : vector<60x540xf32>, vector<540x256xf32>, vector<60x256xf32> -> vector<60x256xf32>
    %c0_4 = arith.constant 0 : index
    %c0_5 = arith.constant 0 : index
    %4 = vector.load %arg4[%c0_4, %c0_5] : memref<60x60xf32, #tpu.memory_space<vmem>>, vector<60x60xf32>
    %cst_6 = arith.constant dense<0.000000e+00> : vector<60x256xf32>
    %5 = tpu.matmul %4, %3, %cst_6 {dimension_numbers = #tpu.dot_dimension_numbers<[1], [0], [0], [1], [0, 0, 1, 1], [], []>, precision = #tpu.contract_precision<fp32>} : vector<60x60xf32>, vector<60x256xf32>, vector<60x256xf32> -> vector<60x256xf32>
    %c0_7 = arith.constant 0 : index
    %c0_8 = arith.constant 0 : index
    %6 = vector.load %arg5[%c0_7, %c0_8] : memref<60x1xf32, #tpu.memory_space<vmem>>, vector<60x1xf32>
    %7 = vector.broadcast %6 : vector<60x1xf32> to vector<60x256xf32>
    %8 = arith.addf %5, %7 : vector<60x256xf32>
    %c0_9 = arith.constant 0 : index
    %c0_10 = arith.constant 0 : index
    %c0_11 = arith.constant 0 : index
    %9 = vector.load %arg6[%c0_9, %c0_10, %c0_11] : memref<1x60x256xf32, #tpu.memory_space<vmem>>, vector<1x60x256xf32>
    %10 = vector.shape_cast %9 : vector<1x60x256xf32> to vector<60x256xf32>
    %11 = vector.shape_cast %8 : vector<60x256xf32> to vector<1x60x256xf32>
    tpu.vector_store %arg6[%c0_9, %c0_10, %c0_11], %11 {strides = array<i32>} : memref<1x60x256xf32, #tpu.memory_space<vmem>>, vector<1x60x256xf32>,
    return
  }
  func.func @transform_0(%arg0: i32, %arg1: i32) -> (i32, i32, i32) {
    %c0_i32 = arith.constant 0 : i32
    %c0_i32_0 = arith.constant 0 : i32
    return %arg0, %c0_i32, %arg1 : i32, i32, i32
  }
  func.func @transform_1(%arg0: i32, %arg1: i32) -> (i32, i32) {
    %c0_i32 = arith.constant 0 : i32
    %c0_i32_0 = arith.constant 0 : i32
    %c0_i32_1 = arith.constant 0 : i32
    return %c0_i32, %c0_i32_0 : i32, i32
  }
  func.func @transform_2(%arg0: i32, %arg1: i32) -> (i32, i32) {
    %c0_i32 = arith.constant 0 : i32
    %c0_i32_0 = arith.constant 0 : i32
    %c0_i32_1 = arith.constant 0 : i32
    return %c0_i32, %c0_i32_0 : i32, i32
  }
  func.func @transform_3(%arg0: i32, %arg1: i32) -> (i32, i32) {
    %c0_i32 = arith.constant 0 : i32
    %c0_i32_0 = arith.constant 0 : i32
    %c0_i32_1 = arith.constant 0 : i32
    return %c0_i32, %c0_i32_0 : i32, i32
  }
  func.func @transform_4(%arg0: i32, %arg1: i32) -> (i32, i32, i32) {
    %c0_i32 = arith.constant 0 : i32
    %c0_i32_0 = arith.constant 0 : i32
    return %arg0, %c0_i32, %arg1 : i32, i32, i32
  }
}

</mosaic_0001>

<llo_original>
// kernel: sam_forward.1
$region0: #{sam_forward.1}
  #allocation0 [shape = 'u32[]', space=smem, size = 0x4, offset = 0x4, fixed_abs, tag = 'smem constant byte address 0x4 - core index']
  #allocation1 [shape = 'u32[72,128]{1,0:T(1,128)}', space=vmem, size = 0x9000, scoped, tag = 'internal scratch']
  %s0 = inlined_call_operand.vmem [shape: f32[20,540,256], index: 0, kind: input, shape index: {}]
  %s1 = inlined_call_operand.vmem [shape: f32[60,540], index: 1, kind: input, shape index: {}]
  %s2 = inlined_call_operand.vmem [shape: f32[60,60], index: 2, kind: input, shape index: {}]
  %s3 = inlined_call_operand.vmem [shape: f32[60,1], index: 3, kind: input, shape index: {}]
  %s4 = inlined_call_operand.vmem [shape: f32[20,60,256], index: 4, kind: output, shape index: {}]
  %s5 = sld [smem:[#allocation0]]
  $region49: #{sam_forward.1} parent=0
    _
  %s7 = ssub.s32 1, %s5
  %s8 = scalar_select 0, %s7, %s5
  loop: start=0, step=1, limit=22
  $region2: #{sam_forward.1} parent=0 // loop_pre_header
    _
  $region3: #{sam_forward.1} parent=0 // loop_header
    %s10 = sphi 0, %s14
    %p11 = scmp.ge.s32.totalorder %s10, 22
    %s17 = sphi 0, %s29
    %s18 = sphi 0, %s25
    %s19 = sphi 0, %s17
    %s20 = sphi 0, %s18
    %s21 = sphi 0, %s19
    %s22 = sphi 0, %s20
    %s34 = sphi 0, %s36
    %s37 = sphi 0, %s34
    %s38 = sphi 0, %s37
    %s54 = sphi 0, %s38
    %s58 = sphi 0, %s58
    %s60 = sphi 0, %s58
    %s61 = sphi 0, %s60
    %s75 = sphi 0, %s61
    %s79 = sphi 0, %s79
    %s81 = sphi 0, %s79
    %s82 = sphi 0, %s81
    %s96 = sphi 0, %s82
    %s100 = sphi 0, %s100
    %s102 = sphi 0, %s100
    %s103 = sphi 0, %s102
    %s117 = sphi 0, %s103
    %s125 = sphi 0, %s127
    %s128 = sphi 0, %s125
    %s129 = sphi 0, %s128
    %s145 = sphi 0, %s129
  $region4: #{sam_forward.1} parent=0 // loop_header_branch
    %13 = sbr.rel (%p11) target = $region8
  $region5: #{sam_forward.1} parent=0 // loop_body
    %s15 = ssub.s32 %s10, 1
    %s16 = ssub.s32 %s10, 2
    %s23 = sadd.s32 1, %s18
    %p24 = scmp.ge.s32.totalorder %s23, 1
    %s25 = scalar_select %p24, 0, %s23
    %s26 = sadd.s32 1, %s17
    %s27 = scalar_select %p24, %s26, %s17
    %p28 = scmp.ge.s32.totalorder %s27, 20
    %s29 = scalar_select %p28, 0, %s27
    %s30 = ssub.s32 %s17, %s29
    %s31 = ssub.s32 %s18, %s25
    %s32 = sor.u32 %s30, %s31
    %p33 = scmp.eq.s32.totalorder %s32, 0
    %s35 = sadd.s32 %s34, 1
    %s36 = scalar_select %p33, %s34, %s35
    %p39 = pneg %p33
    %p40 = scmp.eq.s32.totalorder %s10, 19
    %p41 = por %p39, %p40
    %p42 = scmp.ne.s32.totalorder %s34, %s37
    %p43 = scmp.eq.s32.totalorder %s10, 0
    %p44 = por %p42, %p43
    %p45 = scmp.ne.s32.totalorder %s34, %s37
    %p46 = scmp.eq.s32.totalorder %s15, 19
    %p47 = por %p45, %p46
    %p48 = scmp.ne.s32.totalorder %s37, %s38
    %p49 = scmp.eq.s32.totalorder %s15, 0
    %p50 = por %p48, %p49
    %p51 = scmp.ne.s32.totalorder %s37, %s38
    %p52 = scmp.eq.s32.totalorder %s16, 19
    %p53 = por %p51, %p52
    %p55 = scmp.ne.s32.totalorder %s38, %s54
    %p56 = scmp.eq.s32.totalorder %s16, 0
    %p57 = por %p55, %p56
    %s59 = sadd.s32 %s58, 1
    %p62 = scmp.eq.s32.totalorder %s10, 19
    %p63 = scmp.ne.s32.totalorder %s58, %s60
    %p64 = scmp.eq.s32.totalorder %s10, 0
    %p65 = por %p63, %p64
    %p66 = scmp.ne.s32.totalorder %s58, %s60
    %p67 = scmp.eq.s32.totalorder %s15, 19
    %p68 = por %p66, %p67
    %p69 = scmp.ne.s32.totalorder %s60, %s61
    %p70 = scmp.eq.s32.totalorder %s15, 0
    %p71 = por %p69, %p70
    %p72 = scmp.ne.s32.totalorder %s60, %s61
    %p73 = scmp.eq.s32.totalorder %s16, 19
    %p74 = por %p72, %p73
    %p76 = scmp.ne.s32.totalorder %s61, %s75
    %p77 = scmp.eq.s32.totalorder %s16, 0
    %p78 = por %p76, %p77
    %s80 = sadd.s32 %s79, 1
    %p83 = scmp.eq.s32.totalorder %s10, 19
    %p84 = scmp.ne.s32.totalorder %s79, %s81
    %p85 = scmp.eq.s32.totalorder %s10, 0
    %p86 = por %p84, %p85
    %p87 = scmp.ne.s32.totalorder %s79, %s81
    %p88 = scmp.eq.s32.totalorder %s15, 19
    %p89 = por %p87, %p88
    %p90 = scmp.ne.s32.totalorder %s81, %s82
    %p91 = scmp.eq.s32.totalorder %s15, 0
    %p92 = por %p90, %p91
    %p93 = scmp.ne.s32.totalorder %s81, %s82
    %p94 = scmp.eq.s32.totalorder %s16, 19
    %p95 = por %p93, %p94
    %p97 = scmp.ne.s32.totalorder %s82, %s96
    %p98 = scmp.eq.s32.totalorder %s16, 0
    %p99 = por %p97, %p98
    %s101 = sadd.s32 %s100, 1
    %p104 = scmp.eq.s32.totalorder %s10, 19
    %p105 = scmp.ne.s32.totalorder %s100, %s102
    %p106 = scmp.eq.s32.totalorder %s10, 0
    %p107 = por %p105, %p106
    %p108 = scmp.ne.s32.totalorder %s100, %s102
    %p109 = scmp.eq.s32.totalorder %s15, 19
    %p110 = por %p108, %p109
    %p111 = scmp.ne.s32.totalorder %s102, %s103
    %p112 = scmp.eq.s32.totalorder %s15, 0
    %p113 = por %p111, %p112
    %p114 = scmp.ne.s32.totalorder %s102, %s103
    %p115 = scmp.eq.s32.totalorder %s16, 19
    %p116 = por %p114, %p115
    %p118 = scmp.ne.s32.totalorder %s103, %s117
    %p119 = scmp.eq.s32.totalorder %s16, 0
    %p120 = por %p118, %p119
    %s121 = ssub.s32 %s17, %s29
    %s122 = ssub.s32 %s18, %s25
    %s123 = sor.u32 %s121, %s122
    %p124 = scmp.eq.s32.totalorder %s123, 0
    %s126 = sadd.s32 %s125, 1
    %s127 = scalar_select %p124, %s125, %s126
    %p130 = pneg %p124
    %p131 = scmp.eq.s32.totalorder %s10, 19
    %p132 = por %p130, %p131
    %p133 = scmp.ne.s32.totalorder %s125, %s128
    %p134 = scmp.eq.s32.totalorder %s10, 0
    %p135 = por %p133, %p134
    %p136 = scmp.ne.s32.totalorder %s125, %s128
    %p137 = scmp.eq.s32.totalorder %s15, 19
    %p138 = por %p136, %p137
    %p139 = scmp.ne.s32.totalorder %s128, %s129
    %p140 = scmp.eq.s32.totalorder %s15, 0
    %p141 = por %p139, %p140
    %p142 = scmp.ne.s32.totalorder %s128, %s129
    %p143 = scmp.eq.s32.totalorder %s16, 19
    %p144 = por %p142, %p143
    %p146 = scmp.ne.s32.totalorder %s129, %s145
    %p147 = scmp.eq.s32.totalorder %s16, 0
    %p148 = por %p146, %p147
    %p149 = scmp.le.s32.totalorder 1, %s10
    %p150 = scmp.lt.s32.totalorder %s10, 21
    %p151 = pnand %p149, %p150
    %p152 = pneg %p151
    // Predicated region
    $region9: #{sam_forward.1} parent=5 // pred_check
      _
    $region10: #{sam_forward.1} parent=5 // pred_check_branch
      %154 = sbr.rel (%p151) target = $region12
    $region11: #{sam_forward.1} parent=5 // pred_region
      %s155 = ssub.s32 %s10, 1
      // Predicated region
      $region13: #{sam_forward.1} parent=11 // pred_check
        %p156 = pneg %p71
      $region14: #{sam_forward.1} parent=11 // pred_check_branch
        %158 = sbr.rel (%p156) target = $region16
      $region15: #{sam_forward.1} parent=11 // pred_region
        _
      $region16: #{sam_forward.1} parent=11 // pred_fallthru
        _
      // Predicated region
      $region17: #{sam_forward.1} parent=11 // pred_check
        %p159 = pneg %p92
      $region18: #{sam_forward.1} parent=11 // pred_check_branch
        %161 = sbr.rel (%p159) target = $region20
      $region19: #{sam_forward.1} parent=11 // pred_region
        _
      $region20: #{sam_forward.1} parent=11 // pred_fallthru
        _
      // Predicated region
      $region21: #{sam_forward.1} parent=11 // pred_check
        %p162 = pneg %p113
      $region22: #{sam_forward.1} parent=11 // pred_check_branch
        %164 = sbr.rel (%p162) target = $region24
      $region23: #{sam_forward.1} parent=11 // pred_region
        _
      $region24: #{sam_forward.1} parent=11 // pred_fallthru
        _
    $region12: #{sam_forward.1} parent=5 // pred_fallthru
      _
    %p165 = scmp.lt.s32.totalorder %s10, 20
    // Predicated region
    $region25: #{sam_forward.1} parent=5 // pred_check
      %p166 = pneg %p165
    $region26: #{sam_forward.1} parent=5 // pred_check_branch
      %168 = sbr.rel (%p166) target = $region28
    $region27: #{sam_forward.1} parent=5 // pred_region
      // Predicated region
      $region29: #{sam_forward.1} parent=27 // pred_check
        %p169 = pneg %p44
      $region30: #{sam_forward.1} parent=27 // pred_check_branch
        %171 = sbr.rel (%p169) target = $region32
      $region31: #{sam_forward.1} parent=27 // pred_region
        %s172 = smul.u32 2, %s18
        %p173 = scmp.lt.s32.totalorder %s17, 19
        %s174 = scalar_select %p173, %s17, 19
        %p175 = scmp.lt.s32.totalorder %s172, 1
        %s176 = scalar_select %p175, %s172, 1
        %s177 = smul.addr %s174, 136
        %s178 = sadd.s32 %s176, %s177
        %s179 = smul.addr %s178, 8
        %s180 = scalar_lea.vmem %s0, %s179
        %s181 = smul.u32 2, %s18
      $region32: #{sam_forward.1} parent=27 // pred_fallthru
        _
    $region28: #{sam_forward.1} parent=5 // pred_fallthru
      _
    %p182 = scmp.le.s32.totalorder 1, %s10
    %p183 = scmp.lt.s32.totalorder %s10, 21
    %p184 = pnand %p182, %p183
    %p185 = pneg %p184
    // Predicated region
    $region33: #{sam_forward.1} parent=5 // pred_check
      _
    $region34: #{sam_forward.1} parent=5 // pred_check_branch
      %187 = sbr.rel (%p184) target = $region36
    $region35: #{sam_forward.1} parent=5 // pred_region
      %s188 = ssub.s32 %s10, 1
      %s189 = smul.u32 2, %s20
      %p190 = scmp.lt.s32.totalorder %s19, 19
      %s191 = scalar_select %p190, %s19, 19
      %p192 = scmp.lt.s32.totalorder %s189, 1
      %s193 = scalar_select %p192, %s189, 1
      %s194 = smul.addr %s191, 136
      %s195 = sadd.s32 %s193, %s194
      %s196 = smul.addr %s195, 8
      %s197 = scalar_lea.vmem %s0, %s196
      %p198 = pneg %p50
      %p199 = pneg %p47
      %p200 = pneg %p71
      %p201 = pneg %p68
      %p202 = pneg %p92
      %p203 = pneg %p89
      %p204 = pneg %p113
      %p205 = pneg %p110
      %p206 = pneg %p141
      %p207 = pneg %p138
      %s208 = smul.u32 2, %s20
      %p209 = scmp.lt.s32.totalorder %s19, 19
      %s210 = scalar_select %p209, %s19, 19
      %p211 = scmp.lt.s32.totalorder %s208, 1
      %s212 = scalar_select %p211, %s208, 1
      %s213 = smul.addr %s210, 16
      %s214 = sadd.s32 %s212, %s213
      %s215 = smul.addr %s214, 8
      %s216 = scalar_lea.vmem %s4, %s215
      %s217 = smul.u32 2, %s20
      %p218 = scmp.lt.s32.totalorder %s19, 19
      %s219 = scalar_select %p218, %s19, 19
      %p220 = scmp.lt.s32.totalorder %s217, 1
      %s221 = scalar_select %p220, %s217, 1
      %s222 = smul.addr %s219, 136
      %s223 = sadd.s32 %s221, %s222
      %s224 = smul.addr %s223, 8
      %s225 = scalar_lea.vmem %s0, %s224
      %s226 = smul.u32 2, %s20
      %s227 = smul.u32 2, %s20
      %p228 = scmp.lt.s32.totalorder %s19, 19
      %s229 = scalar_select %p228, %s19, 19
      %p230 = scmp.lt.s32.totalorder %s227, 1
      %s231 = scalar_select %p230, %s227, 1
      %s232 = smul.addr %s229, 16
      %s233 = sadd.s32 %s231, %s232
      %s234 = smul.addr %s233, 8
      %s235 = scalar_lea.vmem %s4, %s234
      %s236 = smul.u32 2, %s20
      %v237 = vld [vmem:[%s225] sm:$0xff]
      %v238 = vld [vmem:[%s225 + $0x8] sm:$0xff]
      %v239 = vld [vmem:[%s225 + $0x10] sm:$0xff]
      %v240 = vld [vmem:[%s225 + $0x18] sm:$0xff]
      %v241 = vld [vmem:[%s225 + $0x20] sm:$0xff]
      %v242 = vld [vmem:[%s225 + $0x28] sm:$0xff]
      %v243 = vld [vmem:[%s225 + $0x30] sm:$0xff]
      %v244 = vld [vmem:[%s225 + $0x38] sm:$0xff]
      %v245 = vld [vmem:[%s225 + $0x40] sm:$0xff]
      %v246 = vld [vmem:[%s225 + $0x48] sm:$0xff]
      %v247 = vld [vmem:[%s225 + $0x50] sm:$0xff]
      %v248 = vld [vmem:[%s225 + $0x58] sm:$0xff]
      %v249 = vld [vmem:[%s225 + $0x60] sm:$0xff]
      %v250 = vld [vmem:[%s225 + $0x68] sm:$0xff]
      %v251 = vld [vmem:[%s225 + $0x70] sm:$0xff]
      %v252 = vld [vmem:[%s225 + $0x78] sm:$0xff]
      %v253 = vld [vmem:[%s225 + $0x80] sm:$0xff]
      %v254 = vld [vmem:[%s225 + $0x88] sm:$0xff]
      %v255 = vld [vmem:[%s225 + $0x90] sm:$0xff]
      %v256 = vld [vmem:[%s225 + $0x98] sm:$0xff]
      %v257 = vld [vmem:[%s225 + $0xa0] sm:$0xff]
      %v258 = vld [vmem:[%s225 + $0xa8] sm:$0xff]
      %v259 = vld [vmem:[%s225 + $0xb0] sm:$0xff]
      %v260 = vld [vmem:[%s225 + $0xb8] sm:$0xff]
      %v261 = vld [vmem:[%s225 + $0xc0] sm:$0xff]
      %v262 = vld [vmem:[%s225 + $0xc8] sm:$0xff]
      %v263 = vld [vmem:[%s225 + $0xd0] sm:$0xff]
      %v264 = vld [vmem:[%s225 + $0xd8] sm:$0xff]
      %v265 = vld [vmem:[%s225 + $0xe0] sm:$0xff]
      %v266 = vld [vmem:[%s225 + $0xe8] sm:$0xff]
      %v267 = vld [vmem:[%s225 + $0xf0] sm:$0xff]
      %v268 = vld [vmem:[%s225 + $0xf8] sm:$0xff]
      %v269 = vld [vmem:[%s225 + $0x100] sm:$0xff]
      %v270 = vld [vmem:[%s225 + $0x108] sm:$0xff]
      %v271 = vld [vmem:[%s225 + $0x110] sm:$0xff]
      %v272 = vld [vmem:[%s225 + $0x118] sm:$0xff]
      %v273 = vld [vmem:[%s225 + $0x120] sm:$0xff]
      %v274 = vld [vmem:[%s225 + $0x128] sm:$0xff]
      %v275 = vld [vmem:[%s225 + $0x130] sm:$0xff]
      %v276 = vld [vmem:[%s225 + $0x138] sm:$0xff]
      %v277 = vld [vmem:[%s225 + $0x140] sm:$0xff]
      %v278 = vld [vmem:[%s225 + $0x148] sm:$0xff]
      %v279 = vld [vmem:[%s225 + $0x150] sm:$0xff]
      %v280 = vld [vmem:[%s225 + $0x158] sm:$0xff]
      %v281 = vld [vmem:[%s225 + $0x160] sm:$0xff]
      %v282 = vld [vmem:[%s225 + $0x168] sm:$0xff]
      %v283 = vld [vmem:[%s225 + $0x170] sm:$0xff]
      %v284 = vld [vmem:[%s225 + $0x178] sm:$0xff]
      %v285 = vld [vmem:[%s225 + $0x180] sm:$0xff]
      %v286 = vld [vmem:[%s225 + $0x188] sm:$0xff]
      %v287 = vld [vmem:[%s225 + $0x190] sm:$0xff]
      %v288 = vld [vmem:[%s225 + $0x198] sm:$0xff]
      %v289 = vld [vmem:[%s225 + $0x1a0] sm:$0xff]
      %v290 = vld [vmem:[%s225 + $0x1a8] sm:$0xff]
      %v291 = vld [vmem:[%s225 + $0x1b0] sm:$0xff]
      %v292 = vld [vmem:[%s225 + $0x1b8] sm:$0xff]
      %v293 = vld [vmem:[%s225 + $0x1c0] sm:$0xff]
      %v294 = vld [vmem:[%s225 + $0x1c8] sm:$0xff]
      %v295 = vld [vmem:[%s225 + $0x1d0] sm:$0xff]
      %v296 = vld [vmem:[%s225 + $0x1d8] sm:$0xff]
      %v297 = vld [vmem:[%s225 + $0x1e0] sm:$0xff]
      %v298 = vld [vmem:[%s225 + $0x1e8] sm:$0xff]
      %v299 = vld [vmem:[%s225 + $0x1f0] sm:$0xff]
      %v300 = vld [vmem:[%s225 + $0x1f8] sm:$0xff]
      %v301 = vld [vmem:[%s225 + $0x200] sm:$0xff]
      %v302 = vld [vmem:[%s225 + $0x208] sm:$0xff]
      %v303 = vld [vmem:[%s225 + $0x210] sm:$0xff]
      %v304 = vld [vmem:[%s225 + $0x218] sm:$0xff]
      %v305 = vld [vmem:[%s225 + $0x220] sm:$0xff]
      %v306 = vld [vmem:[%s225 + $0x228] sm:$0xff]
      %v307 = vld [vmem:[%s225 + $0x230] sm:$0xff]
      %v308 = vld [vmem:[%s225 + $0x238] sm:$0xff]
      %v309 = vld [vmem:[%s225 + $0x240] sm:$0xff]
      %v310 = vld [vmem:[%s225 + $0x248] sm:$0xff]
      %v311 = vld [vmem:[%s225 + $0x250] sm:$0xff]
      %v312 = vld [vmem:[%s225 + $0x258] sm:$0xff]
      %v313 = vld [vmem:[%s225 + $0x260] sm:$0xff]
      %v314 = vld [vmem:[%s225 + $0x268] sm:$0xff]
      %v315 = vld [vmem:[%s225 + $0x270] sm:$0xff]
      %v316 = vld [vmem:[%s225 + $0x278] sm:$0xff]
      %v317 = vld [vmem:[%s225 + $0x280] sm:$0xff]
      %v318 = vld [vmem:[%s225 + $0x288] sm:$0xff]
      %v319 = vld [vmem:[%s225 + $0x290] sm:$0xff]
      %v320 = vld [vmem:[%s225 + $0x298] sm:$0xff]
      %v321 = vld [vmem:[%s225 + $0x2a0] sm:$0xff]
      %v322 = vld [vmem:[%s225 + $0x2a8] sm:$0xff]
      %v323 = vld [vmem:[%s225 + $0x2b0] sm:$0xff]
      %v324 = vld [vmem:[%s225 + $0x2b8] sm:$0xff]
      %v325 = vld [vmem:[%s225 + $0x2c0] sm:$0xff]
      %v326 = vld [vmem:[%s225 + $0x2c8] sm:$0xff]
      %v327 = vld [vmem:[%s225 + $0x2d0] sm:$0xff]
      %v328 = vld [vmem:[%s225 + $0x2d8] sm:$0xff]
      %v329 = vld [vmem:[%s225 + $0x2e0] sm:$0xff]
      %v330 = vld [vmem:[%s225 + $0x2e8] sm:$0xff]
      %v331 = vld [vmem:[%s225 + $0x2f0] sm:$0xff]
      %v332 = vld [vmem:[%s225 + $0x2f8] sm:$0xff]
      %v333 = vld [vmem:[%s225 + $0x300] sm:$0xff]
      %v334 = vld [vmem:[%s225 + $0x308] sm:$0xff]
      %v335 = vld [vmem:[%s225 + $0x310] sm:$0xff]
      %v336 = vld [vmem:[%s225 + $0x318] sm:$0xff]
      %v337 = vld [vmem:[%s225 + $0x320] sm:$0xff]
      %v338 = vld [vmem:[%s225 + $0x328] sm:$0xff]
      %v339 = vld [vmem:[%s225 + $0x330] sm:$0xff]
      %v340 = vld [vmem:[%s225 + $0x338] sm:$0xff]
      %v341 = vld [vmem:[%s225 + $0x340] sm:$0xff]
      %v342 = vld [vmem:[%s225 + $0x348] sm:$0xff]
      %v343 = vld [vmem:[%s225 + $0x350] sm:$0xff]
      %v344 = vld [vmem:[%s225 + $0x358] sm:$0xff]
      %v345 = vld [vmem:[%s225 + $0x360] sm:$0xff]
      %v346 = vld [vmem:[%s225 + $0x368] sm:$0xff]
      %v347 = vld [vmem:[%s225 + $0x370] sm:$0xff]
      %v348 = vld [vmem:[%s225 + $0x378] sm:$0xff]
      %v349 = vld [vmem:[%s225 + $0x380] sm:$0xff]
      %v350 = vld [vmem:[%s225 + $0x388] sm:$0xff]
      %v351 = vld [vmem:[%s225 + $0x390] sm:$0xff]
      %v352 = vld [vmem:[%s225 + $0x398] sm:$0xff]
      %v353 = vld [vmem:[%s225 + $0x3a0] sm:$0xff]
      %v354 = vld [vmem:[%s225 + $0x3a8] sm:$0xff]
      %v355 = vld [vmem:[%s225 + $0x3b0] sm:$0xff]
      %v356 = vld [vmem:[%s225 + $0x3b8] sm:$0xff]
      %v357 = vld [vmem:[%s225 + $0x3c0] sm:$0xff]
      %v358 = vld [vmem:[%s225 + $0x3c8] sm:$0xff]
      %v359 = vld [vmem:[%s225 + $0x3d0] sm:$0xff]
      %v360 = vld [vmem:[%s225 + $0x3d8] sm:$0xff]
      %v361 = vld [vmem:[%s225 + $0x3e0] sm:$0xff]
      %v362 = vld [vmem:[%s225 + $0x3e8] sm:$0xff]
      %v363 = vld [vmem:[%s225 + $0x3f0] sm:$0xff]
      %v364 = vld [vmem:[%s225 + $0x3f8] sm:$0xff]
      %v365 = vld [vmem:[%s225 + $0x400] sm:$0xff]
      %v366 = vld [vmem:[%s225 + $0x408] sm:$0xff]
      %v367 = vld [vmem:[%s225 + $0x410] sm:$0xff]
      %v368 = vld [vmem:[%s225 + $0x418] sm:$0xff]
      %v369 = vld [vmem:[%s225 + $0x420] sm:$0xff]
      %v370 = vld [vmem:[%s225 + $0x428] sm:$0xff]
      %v371 = vld [vmem:[%s225 + $0x430] sm:$0xf]
      %v372 = vld [vmem:[%s225 + $0x438] sm:$0xf]
      %v373 = vld [vmem:[%s1] sm:$0xff]
      %v374 = vld [vmem:[%s1 + $0x8] sm:$0xff]
      %v375 = vld [vmem:[%s1 + $0x10] sm:$0xff]
      %v376 = vld [vmem:[%s1 + $0x18] sm:$0xff]
      %v377 = vld [vmem:[%s1 + $0x20] sm:$0xff]
      %v378 = vld [vmem:[%s1 + $0x28] sm:$0xff]
      %v379 = vld [vmem:[%s1 + $0x30] sm:$0xff]
      %v380 = vld [vmem:[%s1 + $0x38] sm:$0xff]
      %v381 = vld [vmem:[%s1 + $0x40] sm:$0xff]
      %v382 = vld [vmem:[%s1 + $0x48] sm:$0xff]
      %v383 = vld [vmem:[%s1 + $0x50] sm:$0xff]
      %v384 = vld [vmem:[%s1 + $0x58] sm:$0xff]
      %v385 = vld [vmem:[%s1 + $0x60] sm:$0xff]
      %v386 = vld [vmem:[%s1 + $0x68] sm:$0xff]
      %v387 = vld [vmem:[%s1 + $0x70] sm:$0xff]
      %v388 = vld [vmem:[%s1 + $0x78] sm:$0xff]
      %v389 = vld [vmem:[%s1 + $0x80] sm:$0xff]
      %v390 = vld [vmem:[%s1 + $0x88] sm:$0xff]
      %v391 = vld [vmem:[%s1 + $0x90] sm:$0xff]
      %v392 = vld [vmem:[%s1 + $0x98] sm:$0xff]
      %v393 = vld [vmem:[%s1 + $0xa0] sm:$0xff]
      %v394 = vld [vmem:[%s1 + $0xa8] sm:$0xff]
      %v395 = vld [vmem:[%s1 + $0xb0] sm:$0xff]
      %v396 = vld [vmem:[%s1 + $0xb8] sm:$0xff]
      %v397 = vld [vmem:[%s1 + $0xc0] sm:$0xff]
      %v398 = vld [vmem:[%s1 + $0xc8] sm:$0xff]
      %v399 = vld [vmem:[%s1 + $0xd0] sm:$0xff]
      %v400 = vld [vmem:[%s1 + $0xd8] sm:$0xff]
      %v401 = vld [vmem:[%s1 + $0xe0] sm:$0xff]
      %v402 = vld [vmem:[%s1 + $0xe8] sm:$0xff]
      %v403 = vld [vmem:[%s1 + $0xf0] sm:$0xff]
      %v404 = vld [vmem:[%s1 + $0xf8] sm:$0xff]
      %v405 = vld [vmem:[%s1 + $0x100] sm:$0xff]
      %v406 = vld [vmem:[%s1 + $0x108] sm:$0xff]
      %v407 = vld [vmem:[%s1 + $0x110] sm:$0xff]
      %v408 = vld [vmem:[%s1 + $0x118] sm:$0xf]
      %v409 = vld [vmem:[%s1 + $0x120] sm:$0xf]
      %v410 = vld [vmem:[%s1 + $0x128] sm:$0xf]
      %v411 = vld [vmem:[%s1 + $0x130] sm:$0xf]
      %v412 = vld [vmem:[%s1 + $0x138] sm:$0xf]
      %vm413 = vcmask 228352
      %v415 = vsel %vm413, %v377, 0
      %v418 = vsel %vm413, %v382, 0
      %v421 = vsel %vm413, %v387, 0
      %v424 = vsel %vm413, %v392, 0
      %v427 = vsel %vm413, %v397, 0
      %v430 = vsel %vm413, %v402, 0
      %v433 = vsel %vm413, %v407, 0
      %v436 = vsel %vm413, %v412, 0
      %vm438 = vcmask 1043456
      %v440 = vsel %vm438, %v371, 0
      %v443 = vsel %vm438, %v372, 0
      %v445 = vand.u32 %v267, 4294901760
      %446 = vmatpush.msra.mxu0 %v445
      %v447 = vand.u32 %v265, 4294901760
      %448 = vmatpush.msra.mxu0 %v447
      %v449 = vand.u32 %v263, 4294901760
      %450 = vmatpush.msra.mxu0 %v449
      %v451 = vand.u32 %v261, 4294901760
      %452 = vmatpush.msra.mxu0 %v451
      %v453 = vand.u32 %v259, 4294901760
      %454 = vmatpush.msra.mxu0 %v453
      %v455 = vand.u32 %v257, 4294901760
      %456 = vmatpush.msra.mxu0 %v455
      %v457 = vand.u32 %v255, 4294901760
      %458 = vmatpush.msra.mxu0 %v457
      %v459 = vand.u32 %v253, 4294901760
      %460 = vmatpush.msra.mxu0 %v459
      %v461 = vand.u32 %v251, 4294901760
      %462 = vmatpush.msra.mxu0 %v461
      %v463 = vand.u32 %v249, 4294901760
      %464 = vmatpush.msra.mxu0 %v463
      %v465 = vand.u32 %v247, 4294901760
      %466 = vmatpush.msra.mxu0 %v465
      %v467 = vand.u32 %v245, 4294901760
      %468 = vmatpush.msra.mxu0 %v467
      %v469 = vand.u32 %v243, 4294901760
      %470 = vmatpush.msra.mxu0 %v469
      %v471 = vand.u32 %v241, 4294901760
      %472 = vmatpush.msra.mxu0 %v471
      %v473 = vand.u32 %v239, 4294901760
      %474 = vmatpush.msra.mxu0 %v473
      %v475 = vand.u32 %v237, 4294901760
      %476 = vmatpush.msra.mxu0 %v475
      %v477 = vand.u32 %v373, 4294901760
      %v478 = vsub.f32 %v373, %v477
      %v479 = vand.u32 %v478, 4294901760
      %v480 = vsub.f32 %v478, %v479
      %v481 = vand.u32 %v480, 4294901760
      %482 = vmatmul.f32.gmra.mxu0 %v481
      %v483 = vpop.f32.mrf.mxu0
      %v484 = vadd.f32 0.0, %v483
      %v485 = vand.u32 %v378, 4294901760
      %v486 = vsub.f32 %v378, %v485
      %v487 = vand.u32 %v486, 4294901760
      %v488 = vsub.f32 %v486, %v487
      %v489 = vand.u32 %v488, 4294901760
      %490 = vmatmul.f32.gmra.mxu0 %v489
      %v491 = vpop.f32.mrf.mxu0
      %v492 = vadd.f32 0.0, %v491
      %v493 = vand.u32 %v383, 4294901760
      %v494 = vsub.f32 %v383, %v493
      %v495 = vand.u32 %v494, 4294901760
      %v496 = vsub.f32 %v494, %v495
      %v497 = vand.u32 %v496, 4294901760
      %498 = vmatmul.f32.gmra.mxu0 %v497
      %v499 = vpop.f32.mrf.mxu0
      %v500 = vadd.f32 0.0, %v499
      %v501 = vand.u32 %v388, 4294901760
      %v502 = vsub.f32 %v388, %v501
      %v503 = vand.u32 %v502, 4294901760
      %v504 = vsub.f32 %v502, %v503
      %v505 = vand.u32 %v504, 4294901760
      %506 = vmatmul.f32.gmra.mxu0 %v505
      %v507 = vpop.f32.mrf.mxu0
      %v508 = vadd.f32 0.0, %v507
      %v509 = vand.u32 %v393, 4294901760
      %v510 = vsub.f32 %v393, %v509
      %v511 = vand.u32 %v510, 4294901760
      %v512 = vsub.f32 %v510, %v511
      %v513 = vand.u32 %v512, 4294901760
      %514 = vmatmul.f32.gmra.mxu0 %v513
      %v515 = vpop.f32.mrf.mxu0
      %v516 = vadd.f32 0.0, %v515
      %v517 = vand.u32 %v398, 4294901760
      %v518 = vsub.f32 %v398, %v517
      %v519 = vand.u32 %v518, 4294901760
      %v520 = vsub.f32 %v518, %v519
      %v521 = vand.u32 %v520, 4294901760
      %522 = vmatmul.f32.gmra.mxu0 %v521
      %v523 = vpop.f32.mrf.mxu0
      %v524 = vadd.f32 0.0, %v523
      %v525 = vand.u32 %v403, 4294901760
      %v526 = vsub.f32 %v403, %v525
      %v527 = vand.u32 %v526, 4294901760
      %v528 = vsub.f32 %v526, %v527
      %v529 = vand.u32 %v528, 4294901760
      %530 = vmatmul.f32.gmra.mxu0 %v529
      %v531 = vpop.f32.mrf.mxu0
      %v532 = vadd.f32 0.0, %v531
      %v533 = vand.u32 %v408, 4294901760
      %v534 = vsub.f32 %v408, %v533
      %v535 = vand.u32 %v534, 4294901760
      %v536 = vsub.f32 %v534, %v535
      %v537 = vand.u32 %v536, 4294901760
      %538 = vmatmul.f32.gmra.mxu0 %v537
      %v539 = vpop.f32.mrf.mxu0
      %v540 = vadd.f32 0.0, %v539
      %541 = vdwg.mxu0
      %v542 = vand.u32 %v267, 4294901760
      %v543 = vsub.f32 %v267, %v542
      %v544 = vand.u32 %v543, 4294901760
      %v545 = vsub.f32 %v543, %v544
      %v546 = vand.u32 %v545, 4294901760
      %547 = vmatpush.msra.mxu0 %v546
      %v548 = vand.u32 %v265, 4294901760
      %v549 = vsub.f32 %v265, %v548
      %v550 = vand.u32 %v549, 4294901760
      %v551 = vsub.f32 %v549, %v550
      %v552 = vand.u32 %v551, 4294901760
      %553 = vmatpush.msra.mxu0 %v552
      %v554 = vand.u32 %v263, 4294901760
      %v555 = vsub.f32 %v263, %v554
      %v556 = vand.u32 %v555, 4294901760
      %v557 = vsub.f32 %v555, %v556
      %v558 = vand.u32 %v557, 4294901760
      %559 = vmatpush.msra.mxu0 %v558
      %v560 = vand.u32 %v261, 4294901760
      %v561 = vsub.f32 %v261, %v560
      %v562 = vand.u32 %v561, 4294901760
      %v563 = vsub.f32 %v561, %v562
      %v564 = vand.u32 %v563, 4294901760
      %565 = vmatpush.msra.mxu0 %v564
      %v566 = vand.u32 %v259, 4294901760
      %v567 = vsub.f32 %v259, %v566
      %v568 = vand.u32 %v567, 4294901760
      %v569 = vsub.f32 %v567, %v568
      %v570 = vand.u32 %v569, 4294901760
      %571 = vmatpush.msra.mxu0 %v570
      %v572 = vand.u32 %v257, 4294901760
      %v573 = vsub.f32 %v257, %v572
      %v574 = vand.u32 %v573, 4294901760
      %v575 = vsub.f32 %v573, %v574
      %v576 = vand.u32 %v575, 4294901760
      %577 = vmatpush.msra.mxu0 %v576
      %v578 = vand.u32 %v255, 4294901760
      %v579 = vsub.f32 %v255, %v578
      %v580 = vand.u32 %v579, 4294901760
      %v581 = vsub.f32 %v579, %v580
      %v582 = vand.u32 %v581, 4294901760
      %583 = vmatpush.msra.mxu0 %v582
      %v584 = vand.u32 %v253, 4294901760
      %v585 = vsub.f32 %v253, %v584
      %v586 = vand.u32 %v585, 4294901760
      %v587 = vsub.f32 %v585, %v586
      %v588 = vand.u32 %v587, 4294901760
      %589 = vmatpush.msra.mxu0 %v588
      %v590 = vand.u32 %v251, 4294901760
      %v591 = vsub.f32 %v251, %v590
      %v592 = vand.u32 %v591, 4294901760
      %v593 = vsub.f32 %v591, %v592
      %v594 = vand.u32 %v593, 4294901760
      %595 = vmatpush.msra.mxu0 %v594
      %v596 = vand.u32 %v249, 4294901760
      %v597 = vsub.f32 %v249, %v596
      %v598 = vand.u32 %v597, 4294901760
      %v599 = vsub.f32 %v597, %v598
      %v600 = vand.u32 %v599, 4294901760
      %601 = vmatpush.msra.mxu0 %v600
      %v602 = vand.u32 %v247, 4294901760
      %v603 = vsub.f32 %v247, %v602
      %v604 = vand.u32 %v603, 4294901760
      %v605 = vsub.f32 %v603, %v604
      %v606 = vand.u32 %v605, 4294901760
      %607 = vmatpush.msra.mxu0 %v606
      %v608 = vand.u32 %v245, 4294901760
      %v609 = vsub.f32 %v245, %v608
      %v610 = vand.u32 %v609, 4294901760
      %v611 = vsub.f32 %v609, %v610
      %v612 = vand.u32 %v611, 4294901760
      %613 = vmatpush.msra.mxu0 %v612
      %v614 = vand.u32 %v243, 4294901760
      %v615 = vsub.f32 %v243, %v614
      %v616 = vand.u32 %v615, 4294901760
      %v617 = vsub.f32 %v615, %v616
      %v618 = vand.u32 %v617, 4294901760
      %619 = vmatpush.msra.mxu0 %v618
      %v620 = vand.u32 %v241, 4294901760
      %v621 = vsub.f32 %v241, %v620
      %v622 = vand.u32 %v621, 4294901760
      %v623 = vsub.f32 %v621, %v622
      %v624 = vand.u32 %v623, 4294901760
      %625 = vmatpush.msra.mxu0 %v624
      %v626 = vand.u32 %v239, 4294901760
      %v627 = vsub.f32 %v239, %v626
      %v628 = vand.u32 %v627, 4294901760
      %v629 = vsub.f32 %v627, %v628
      %v630 = vand.u32 %v629, 4294901760
      %631 = vmatpush.msra.mxu0 %v630
      %v632 = vand.u32 %v237, 4294901760
      %v633 = vsub.f32 %v237, %v632
      %v634 = vand.u32 %v633, 4294901760
      %v635 = vsub.f32 %v633, %v634
      %v636 = vand.u32 %v635, 4294901760
      %637 = vmatpush.msra.mxu0 %v636
      %v638 = vand.u32 %v373, 4294901760
      %639 = vmatmul.f32.gmra.mxu0 %v638
      %v640 = vpop.f32.mrf.mxu0
      %v641 = vadd.f32 %v484, %v640
      %v642 = vand.u32 %v378, 4294901760
      %643 = vmatmul.f32.gmra.mxu0 %v642
      %v644 = vpop.f32.mrf.mxu0
      %v645 = vadd.f32 %v492, %v644
      %v646 = vand.u32 %v383, 4294901760
      %647 = vmatmul.f32.gmra.mxu0 %v646
      %v648 = vpop.f32.mrf.mxu0
      %v649 = vadd.f32 %v500, %v648
      %v650 = vand.u32 %v388, 4294901760
      %651 = vmatmul.f32.gmra.mxu0 %v650
      %v652 = vpop.f32.mrf.mxu0
      %v653 = vadd.f32 %v508, %v652
      %v654 = vand.u32 %v393, 4294901760
      %655 = vmatmul.f32.gmra.mxu0 %v654
      %v656 = vpop.f32.mrf.mxu0
      %v657 = vadd.f32 %v516, %v656
      %v658 = vand.u32 %v398, 4294901760
      %659 = vmatmul.f32.gmra.mxu0 %v658
      %v660 = vpop.f32.mrf.mxu0
      %v661 = vadd.f32 %v524, %v660
      %v662 = vand.u32 %v403, 4294901760
      %663 = vmatmul.f32.gmra.mxu0 %v662
      %v664 = vpop.f32.mrf.mxu0
      %v665 = vadd.f32 %v532, %v664
      %v666 = vand.u32 %v408, 4294901760
      %667 = vmatmul.f32.gmra.mxu0 %v666
      %v668 = vpop.f32.mrf.mxu0
      %v669 = vadd.f32 %v540, %v668
      %670 = vdwg.mxu0
      %v671 = vand.u32 %v267, 4294901760
      %v672 = vsub.f32 %v267, %v671
      %673 = vmatpush.msra.mxu0 %v672
      %v674 = vand.u32 %v265, 4294901760
      %v675 = vsub.f32 %v265, %v674
      %676 = vmatpush.msra.mxu0 %v675
      %v677 = vand.u32 %v263, 4294901760
      %v678 = vsub.f32 %v263, %v677
      %679 = vmatpush.msra.mxu0 %v678
      %v680 = vand.u32 %v261, 4294901760
      %v681 = vsub.f32 %v261, %v680
      %682 = vmatpush.msra.mxu0 %v681
      %v683 = vand.u32 %v259, 4294901760
      %v684 = vsub.f32 %v259, %v683
      %685 = vmatpush.msra.mxu0 %v684
      %v686 = vand.u32 %v257, 4294901760
      %v687 = vsub.f32 %v257, %v686
      %688 = vmatpush.msra.mxu0 %v687
      %v689 = vand.u32 %v255, 4294901760
      %v690 = vsub.f32 %v255, %v689
      %691 = vmatpush.msra.mxu0 %v690
      %v692 = vand.u32 %v253, 4294901760
      %v693 = vsub.f32 %v253, %v692
      %694 = vmatpush.msra.mxu0 %v693
      %v695 = vand.u32 %v251, 4294901760
      %v696 = vsub.f32 %v251, %v695
      %697 = vmatpush.msra.mxu0 %v696
      %v698 = vand.u32 %v249, 4294901760
      %v699 = vsub.f32 %v249, %v698
      %700 = vmatpush.msra.mxu0 %v699
      %v701 = vand.u32 %v247, 4294901760
      %v702 = vsub.f32 %v247, %v701
      %703 = vmatpush.msra.mxu0 %v702
      %v704 = vand.u32 %v245, 4294901760
      %v705 = vsub.f32 %v245, %v704
      %706 = vmatpush.msra.mxu0 %v705
      %v707 = vand.u32 %v243, 4294901760
      %v708 = vsub.f32 %v243, %v707
      %709 = vmatpush.msra.mxu0 %v708
      %v710 = vand.u32 %v241, 4294901760
      %v711 = vsub.f32 %v241, %v710
      %712 = vmatpush.msra.mxu0 %v711
      %v713 = vand.u32 %v239, 4294901760
      %v714 = vsub.f32 %v239, %v713
      %715 = vmatpush.msra.mxu0 %v714
      %v716 = vand.u32 %v237, 4294901760
      %v717 = vsub.f32 %v237, %v716
      %718 = vmatpush.msra.mxu0 %v717
      %v719 = vand.u32 %v373, 4294901760
      %v720 = vsub.f32 %v373, %v719
      %721 = vmatmul.f32.gmra.mxu0 %v720
      %v722 = vpop.f32.mrf.mxu0
      %v723 = vadd.f32 %v641, %v722
      %v724 = vand.u32 %v378, 4294901760
      %v725 = vsub.f32 %v378, %v724
      %726 = vmatmul.f32.gmra.mxu0 %v725
      %v727 = vpop.f32.mrf.mxu0
      %v728 = vadd.f32 %v645, %v727
      %v729 = vand.u32 %v383, 4294901760
      %v730 = vsub.f32 %v383, %v729
      %731 = vmatmul.f32.gmra.mxu0 %v730
      %v732 = vpop.f32.mrf.mxu0
      %v733 = vadd.f32 %v649, %v732
      %v734 = vand.u32 %v388, 4294901760
      %v735 = vsub.f32 %v388, %v734
      %736 = vmatmul.f32.gmra.mxu0 %v735
      %v737 = vpop.f32.mrf.mxu0
      %v738 = vadd.f32 %v653, %v737
      %v739 = vand.u32 %v393, 4294901760
      %v740 = vsub.f32 %v393, %v739
      %741 = vmatmul.f32.gmra.mxu0 %v740
      %v742 = vpop.f32.mrf.mxu0
      %v743 = vadd.f32 %v657, %v742
      %v744 = vand.u32 %v398, 4294901760
      %v745 = vsub.f32 %v398, %v744
      %746 = vmatmul.f32.gmra.mxu0 %v745
      %v747 = vpop.f32.mrf.mxu0
      %v748 = vadd.f32 %v661, %v747
      %v749 = vand.u32 %v403, 4294901760
      %v750 = vsub.f32 %v403, %v749
      %751 = vmatmul.f32.gmra.mxu0 %v750
      %v752 = vpop.f32.mrf.mxu0
      %v753 = vadd.f32 %v665, %v752
      %v754 = vand.u32 %v408, 4294901760
      %v755 = vsub.f32 %v408, %v754
      %756 = vmatmul.f32.gmra.mxu0 %v755
      %v757 = vpop.f32.mrf.mxu0
      %v758 = vadd.f32 %v669, %v757
      %759 = vdwg.mxu0
      %v760 = vand.u32 %v267, 4294901760
      %761 = vmatpush.msra.mxu0 %v760
      %v762 = vand.u32 %v265, 4294901760
      %763 = vmatpush.msra.mxu0 %v762
      %v764 = vand.u32 %v263, 4294901760
      %765 = vmatpush.msra.mxu0 %v764
      %v766 = vand.u32 %v261, 4294901760
      %767 = vmatpush.msra.mxu0 %v766
      %v768 = vand.u32 %v259, 4294901760
      %769 = vmatpush.msra.mxu0 %v768
      %v770 = vand.u32 %v257, 4294901760
      %771 = vmatpush.msra.mxu0 %v770
      %v772 = vand.u32 %v255, 4294901760
      %773 = vmatpush.msra.mxu0 %v772
      %v774 = vand.u32 %v253, 4294901760
      %775 = vmatpush.msra.mxu0 %v774
      %v776 = vand.u32 %v251, 4294901760
      %777 = vmatpush.msra.mxu0 %v776
      %v778 = vand.u32 %v249, 4294901760
      %779 = vmatpush.msra.mxu0 %v778
      %v780 = vand.u32 %v247, 4294901760
      %781 = vmatpush.msra.mxu0 %v780
      %v782 = vand.u32 %v245, 4294901760
      %783 = vmatpush.msra.mxu0 %v782
      %v784 = vand.u32 %v243, 4294901760
      %785 = vmatpush.msra.mxu0 %v784
      %v786 = vand.u32 %v241, 4294901760
      %787 = vmatpush.msra.mxu0 %v786
      %v788 = vand.u32 %v239, 4294901760
      %789 = vmatpush.msra.mxu0 %v788
      %v790 = vand.u32 %v237, 4294901760
      %791 = vmatpush.msra.mxu0 %v790
      %v792 = vand.u32 %v373, 4294901760
      %v793 = vsub.f32 %v373, %v792
      %v794 = vand.u32 %v793, 4294901760
      %795 = vmatmul.f32.gmra.mxu0 %v794
      %v796 = vpop.f32.mrf.mxu0
      %v797 = vadd.f32 %v723, %v796
      %v798 = vand.u32 %v378, 4294901760
      %v799 = vsub.f32 %v378, %v798
      %v800 = vand.u32 %v799, 4294901760
      %801 = vmatmul.f32.gmra.mxu0 %v800
      %v802 = vpop.f32.mrf.mxu0
      %v803 = vadd.f32 %v728, %v802
      %v804 = vand.u32 %v383, 4294901760
      %v805 = vsub.f32 %v383, %v804
      %v806 = vand.u32 %v805, 4294901760
      %807 = vmatmul.f32.gmra.mxu0 %v806
      %v808 = vpop.f32.mrf.mxu0
      %v809 = vadd.f32 %v733, %v808
      %v810 = vand.u32 %v388, 4294901760
      %v811 = vsub.f32 %v388, %v810
      %v812 = vand.u32 %v811, 4294901760
      %813 = vmatmul.f32.gmra.mxu0 %v812
      %v814 = vpop.f32.mrf.mxu0
      %v815 = vadd.f32 %v738, %v814
      %v816 = vand.u32 %v393, 4294901760
      %v817 = vsub.f32 %v393, %v816
      %v818 = vand.u32 %v817, 4294901760
      %819 = vmatmul.f32.gmra.mxu0 %v818
      %v820 = vpop.f32.mrf.mxu0
      %v821 = vadd.f32 %v743, %v820
      %v822 = vand.u32 %v398, 4294901760
      %v823 = vsub.f32 %v398, %v822
      %v824 = vand.u32 %v823, 4294901760
      %825 = vmatmul.f32.gmra.mxu0 %v824
      %v826 = vpop.f32.mrf.mxu0
      %v827 = vadd.f32 %v748, %v826
      %v828 = vand.u32 %v403, 4294901760
      %v829 = vsub.f32 %v403, %v828
      %v830 = vand.u32 %v829, 4294901760
      %831 = vmatmul.f32.gmra.mxu0 %v830
      %v832 = vpop.f32.mrf.mxu0
      %v833 = vadd.f32 %v753, %v832
      %v834 = vand.u32 %v408, 4294901760
      %v835 = vsub.f32 %v408, %v834
      %v836 = vand.u32 %v835, 4294901760
      %837 = vmatmul.f32.gmra.mxu0 %v836
      %v838 = vpop.f32.mrf.mxu0
      %v839 = vadd.f32 %v758, %v838
      %840 = vdwg.mxu0
      %v841 = vand.u32 %v267, 4294901760
      %v842 = vsub.f32 %v267, %v841
      %v843 = vand.u32 %v842, 4294901760
      %844 = vmatpush.msra.mxu0 %v843
      %v845 = vand.u32 %v265, 4294901760
      %v846 = vsub.f32 %v265, %v845
      %v847 = vand.u32 %v846, 4294901760
      %848 = vmatpush.msra.mxu0 %v847
      %v849 = vand.u32 %v263, 4294901760
      %v850 = vsub.f32 %v263, %v849
      %v851 = vand.u32 %v850, 4294901760
      %852 = vmatpush.msra.mxu0 %v851
      %v853 = vand.u32 %v261, 4294901760
      %v854 = vsub.f32 %v261, %v853
      %v855 = vand.u32 %v854, 4294901760
      %856 = vmatpush.msra.mxu0 %v855
      %v857 = vand.u32 %v259, 4294901760
      %v858 = vsub.f32 %v259, %v857
      %v859 = vand.u32 %v858, 4294901760
      %860 = vmatpush.msra.mxu0 %v859
      %v861 = vand.u32 %v257, 4294901760
      %v862 = vsub.f32 %v257, %v861
      %v863 = vand.u32 %v862, 4294901760
      %864 = vmatpush.msra.mxu0 %v863
      %v865 = vand.u32 %v255, 4294901760
      %v866 = vsub.f32 %v255, %v865
      %v867 = vand.u32 %v866, 4294901760
      %868 = vmatpush.msra.mxu0 %v867
      %v869 = vand.u32 %v253, 4294901760
      %v870 = vsub.f32 %v253, %v869
      %v871 = vand.u32 %v870, 4294901760
      %872 = vmatpush.msra.mxu0 %v871
      %v873 = vand.u32 %v251, 4294901760
      %v874 = vsub.f32 %v251, %v873
      %v875 = vand.u32 %v874, 4294901760
      %876 = vmatpush.msra.mxu0 %v875
      %v877 = vand.u32 %v249, 4294901760
      %v878 = vsub.f32 %v249, %v877
      %v879 = vand.u32 %v878, 4294901760
      %880 = vmatpush.msra.mxu0 %v879
      %v881 = vand.u32 %v247, 4294901760
      %v882 = vsub.f32 %v247, %v881
      %v883 = vand.u32 %v882, 4294901760
      %884 = vmatpush.msra.mxu0 %v883
      %v885 = vand.u32 %v245, 4294901760
      %v886 = vsub.f32 %v245, %v885
      %v887 = vand.u32 %v886, 4294901760
      %888 = vmatpush.msra.mxu0 %v887
      %v889 = vand.u32 %v243, 4294901760
      %v890 = vsub.f32 %v243, %v889
      %v891 = vand.u32 %v890, 4294901760
      %892 = vmatpush.msra.mxu0 %v891
      %v893 = vand.u32 %v241, 4294901760
      %v894 = vsub.f32 %v241, %v893
      %v895 = vand.u32 %v894, 4294901760
      %896 = vmatpush.msra.mxu0 %v895
      %v897 = vand.u32 %v239, 4294901760
      %v898 = vsub.f32 %v239, %v897
      %v899 = vand.u32 %v898, 4294901760
      %900 = vmatpush.msra.mxu0 %v899
      %v901 = vand.u32 %v237, 4294901760
      %v902 = vsub.f32 %v237, %v901
      %v903 = vand.u32 %v902, 4294901760
      %904 = vmatpush.msra.mxu0 %v903
      %v905 = vand.u32 %v373, 4294901760
      %906 = vmatmul.f32.gmra.mxu0 %v905
      %v907 = vpop.f32.mrf.mxu0
      %v908 = vadd.f32 %v797, %v907
      %v909 = vand.u32 %v378, 4294901760
      %910 = vmatmul.f32.gmra.mxu0 %v909
      %v911 = vpop.f32.mrf.mxu0
      %v912 = vadd.f32 %v803, %v911
      %v913 = vand.u32 %v383, 4294901760
      %914 = vmatmul.f32.gmra.mxu0 %v913
      %v915 = vpop.f32.mrf.mxu0
      %v916 = vadd.f32 %v809, %v915
      %v917 = vand.u32 %v388, 4294901760
      %918 = vmatmul.f32.gmra.mxu0 %v917
      %v919 = vpop.f32.mrf.mxu0
      %v920 = vadd.f32 %v815, %v919
      %v921 = vand.u32 %v393, 4294901760
      %922 = vmatmul.f32.gmra.mxu0 %v921
      %v923 = vpop.f32.mrf.mxu0
      %v924 = vadd.f32 %v821, %v923
      %v925 = vand.u32 %v398, 4294901760
      %926 = vmatmul.f32.gmra.mxu0 %v925
      %v927 = vpop.f32.mrf.mxu0
      %v928 = vadd.f32 %v827, %v927
      %v929 = vand.u32 %v403, 4294901760
      %930 = vmatmul.f32.gmra.mxu0 %v929
      %v931 = vpop.f32.mrf.mxu0
      %v932 = vadd.f32 %v833, %v931
      %v933 = vand.u32 %v408, 4294901760
      %934 = vmatmul.f32.gmra.mxu0 %v933
      %v935 = vpop.f32.mrf.mxu0
      %v936 = vadd.f32 %v839, %v935
      %937 = vdwg.mxu0
      %v938 = vand.u32 %v267, 4294901760
      %939 = vmatpush.msra.mxu0 %v938
      %v940 = vand.u32 %v265, 4294901760
      %941 = vmatpush.msra.mxu0 %v940
      %v942 = vand.u32 %v263, 4294901760
      %943 = vmatpush.msra.mxu0 %v942
      %v944 = vand.u32 %v261, 4294901760
      %945 = vmatpush.msra.mxu0 %v944
      %v946 = vand.u32 %v259, 4294901760
      %947 = vmatpush.msra.mxu0 %v946
      %v948 = vand.u32 %v257, 4294901760
      %949 = vmatpush.msra.mxu0 %v948
      %v950 = vand.u32 %v255, 4294901760
      %951 = vmatpush.msra.mxu0 %v950
      %v952 = vand.u32 %v253, 4294901760
      %953 = vmatpush.msra.mxu0 %v952
      %v954 = vand.u32 %v251, 4294901760
      %955 = vmatpush.msra.mxu0 %v954
      %v956 = vand.u32 %v249, 4294901760
      %957 = vmatpush.msra.mxu0 %v956
      %v958 = vand.u32 %v247, 4294901760
      %959 = vmatpush.msra.mxu0 %v958
      %v960 = vand.u32 %v245, 4294901760
      %961 = vmatpush.msra.mxu0 %v960
      %v962 = vand.u32 %v243, 4294901760
      %963 = vmatpush.msra.mxu0 %v962
      %v964 = vand.u32 %v241, 4294901760
      %965 = vmatpush.msra.mxu0 %v964
      %v966 = vand.u32 %v239, 4294901760
      %967 = vmatpush.msra.mxu0 %v966
      %v968 = vand.u32 %v237, 4294901760
      %969 = vmatpush.msra.mxu0 %v968
      %v970 = vand.u32 %v373, 4294901760
      %971 = vmatmul.f32.gmra.mxu0 %v970
      %v972 = vpop.f32.mrf.mxu0
      %v973 = vadd.f32 %v908, %v972
      %v974 = vand.u32 %v378, 4294901760
      %975 = vmatmul.f32.gmra.mxu0 %v974
      %v976 = vpop.f32.mrf.mxu0
      %v977 = vadd.f32 %v912, %v976
      %v978 = vand.u32 %v383, 4294901760
      %979 = vmatmul.f32.gmra.mxu0 %v978
      %v980 = vpop.f32.mrf.mxu0
      %v981 = vadd.f32 %v916, %v980
      %v982 = vand.u32 %v388, 4294901760
      %983 = vmatmul.f32.gmra.mxu0 %v982
      %v984 = vpop.f32.mrf.mxu0
      %v985 = vadd.f32 %v920, %v984
      %v986 = vand.u32 %v393, 4294901760
      %987 = vmatmul.f32.gmra.mxu0 %v986
      %v988 = vpop.f32.mrf.mxu0
      %v989 = vadd.f32 %v924, %v988
      %v990 = vand.u32 %v398, 4294901760
      %991 = vmatmul.f32.gmra.mxu0 %v990
      %v992 = vpop.f32.mrf.mxu0
      %v993 = vadd.f32 %v928, %v992
      %v994 = vand.u32 %v403, 4294901760
      %995 = vmatmul.f32.gmra.mxu0 %v994
      %v996 = vpop.f32.mrf.mxu0
      %v997 = vadd.f32 %v932, %v996
      %v998 = vand.u32 %v408, 4294901760
      %999 = vmatmul.f32.gmra.mxu0 %v998
      %v1000 = vpop.f32.mrf.mxu0
      %v1001 = vadd.f32 %v936, %v1000
      %1002 = vdwg.mxu0
      %v1003 = vand.u32 %v299, 4294901760
      %1004 = vmatpush.msra.mxu0 %v1003
      %v1005 = vand.u32 %v297, 4294901760
      %1006 = vmatpush.msra.mxu0 %v1005
      %v1007 = vand.u32 %v295, 4294901760
      %1008 = vmatpush.msra.mxu0 %v1007
      %v1009 = vand.u32 %v293, 4294901760
      %1010 = vmatpush.msra.mxu0 %v1009
      %v1011 = vand.u32 %v291, 4294901760
      %1012 = vmatpush.msra.mxu0 %v1011
      %v1013 = vand.u32 %v289, 4294901760
      %1014 = vmatpush.msra.mxu0 %v1013
      %v1015 = vand.u32 %v287, 4294901760
      %1016 = vmatpush.msra.mxu0 %v1015
      %v1017 = vand.u32 %v285, 4294901760
      %1018 = vmatpush.msra.mxu0 %v1017
      %v1019 = vand.u32 %v283, 4294901760
      %1020 = vmatpush.msra.mxu0 %v1019
      %v1021 = vand.u32 %v281, 4294901760
      %1022 = vmatpush.msra.mxu0 %v1021
      %v1023 = vand.u32 %v279, 4294901760
      %1024 = vmatpush.msra.mxu0 %v1023
      %v1025 = vand.u32 %v277, 4294901760
      %1026 = vmatpush.msra.mxu0 %v1025
      %v1027 = vand.u32 %v275, 4294901760
      %1028 = vmatpush.msra.mxu0 %v1027
      %v1029 = vand.u32 %v273, 4294901760
      %1030 = vmatpush.msra.mxu0 %v1029
      %v1031 = vand.u32 %v271, 4294901760
      %1032 = vmatpush.msra.mxu0 %v1031
      %v1033 = vand.u32 %v269, 4294901760
      %1034 = vmatpush.msra.mxu0 %v1033
      %v1035 = vand.u32 %v374, 4294901760
      %v1036 = vsub.f32 %v374, %v1035
      %v1037 = vand.u32 %v1036, 4294901760
      %v1038 = vsub.f32 %v1036, %v1037
      %v1039 = vand.u32 %v1038, 4294901760
      %1040 = vmatmul.f32.gmra.mxu0 %v1039
      %v1041 = vpop.f32.mrf.mxu0
      %v1042 = vadd.f32 %v973, %v1041
      %v1043 = vand.u32 %v379, 4294901760
      %v1044 = vsub.f32 %v379, %v1043
      %v1045 = vand.u32 %v1044, 4294901760
      %v1046 = vsub.f32 %v1044, %v1045
      %v1047 = vand.u32 %v1046, 4294901760
      %1048 = vmatmul.f32.gmra.mxu0 %v1047
      %v1049 = vpop.f32.mrf.mxu0
      %v1050 = vadd.f32 %v977, %v1049
      %v1051 = vand.u32 %v384, 4294901760
      %v1052 = vsub.f32 %v384, %v1051
      %v1053 = vand.u32 %v1052, 4294901760
      %v1054 = vsub.f32 %v1052, %v1053
      %v1055 = vand.u32 %v1054, 4294901760
      %1056 = vmatmul.f32.gmra.mxu0 %v1055
      %v1057 = vpop.f32.mrf.mxu0
      %v1058 = vadd.f32 %v981, %v1057
      %v1059 = vand.u32 %v389, 4294901760
      %v1060 = vsub.f32 %v389, %v1059
      %v1061 = vand.u32 %v1060, 4294901760
      %v1062 = vsub.f32 %v1060, %v1061
      %v1063 = vand.u32 %v1062, 4294901760
      %1064 = vmatmul.f32.gmra.mxu0 %v1063
      %v1065 = vpop.f32.mrf.mxu0
      %v1066 = vadd.f32 %v985, %v1065
      %v1067 = vand.u32 %v394, 4294901760
      %v1068 = vsub.f32 %v394, %v1067
      %v1069 = vand.u32 %v1068, 4294901760
      %v1070 = vsub.f32 %v1068, %v1069
      %v1071 = vand.u32 %v1070, 4294901760
      %1072 = vmatmul.f32.gmra.mxu0 %v1071
      %v1073 = vpop.f32.mrf.mxu0
      %v1074 = vadd.f32 %v989, %v1073
      %v1075 = vand.u32 %v399, 4294901760
      %v1076 = vsub.f32 %v399, %v1075
      %v1077 = vand.u32 %v1076, 4294901760
      %v1078 = vsub.f32 %v1076, %v1077
      %v1079 = vand.u32 %v1078, 4294901760
      %1080 = vmatmul.f32.gmra.mxu0 %v1079
      %v1081 = vpop.f32.mrf.mxu0
      %v1082 = vadd.f32 %v993, %v1081
      %v1083 = vand.u32 %v404, 4294901760
      %v1084 = vsub.f32 %v404, %v1083
      %v1085 = vand.u32 %v1084, 4294901760
      %v1086 = vsub.f32 %v1084, %v1085
      %v1087 = vand.u32 %v1086, 4294901760
      %1088 = vmatmul.f32.gmra.mxu0 %v1087
      %v1089 = vpop.f32.mrf.mxu0
      %v1090 = vadd.f32 %v997, %v1089
      %v1091 = vand.u32 %v409, 4294901760
      %v1092 = vsub.f32 %v409, %v1091
      %v1093 = vand.u32 %v1092, 4294901760
      %v1094 = vsub.f32 %v1092, %v1093
      %v1095 = vand.u32 %v1094, 4294901760
      %1096 = vmatmul.f32.gmra.mxu0 %v1095
      %v1097 = vpop.f32.mrf.mxu0
      %v1098 = vadd.f32 %v1001, %v1097
      %1099 = vdwg.mxu0
      %v1100 = vand.u32 %v299, 4294901760
      %v1101 = vsub.f32 %v299, %v1100
      %v1102 = vand.u32 %v1101, 4294901760
      %v1103 = vsub.f32 %v1101, %v1102
      %v1104 = vand.u32 %v1103, 4294901760
      %1105 = vmatpush.msra.mxu0 %v1104
      %v1106 = vand.u32 %v297, 4294901760
      %v1107 = vsub.f32 %v297, %v1106
      %v1108 = vand.u32 %v1107, 4294901760
      %v1109 = vsub.f32 %v1107, %v1108
      %v1110 = vand.u32 %v1109, 4294901760
      %1111 = vmatpush.msra.mxu0 %v1110
      %v1112 = vand.u32 %v295, 4294901760
      %v1113 = vsub.f32 %v295, %v1112
      %v1114 = vand.u32 %v1113, 4294901760
      %v1115 = vsub.f32 %v1113, %v1114
      %v1116 = vand.u32 %v1115, 4294901760
      %1117 = vmatpush.msra.mxu0 %v1116
      %v1118 = vand.u32 %v293, 4294901760
      %v1119 = vsub.f32 %v293, %v1118
      %v1120 = vand.u32 %v1119, 4294901760
      %v1121 = vsub.f32 %v1119, %v1120
      %v1122 = vand.u32 %v1121, 4294901760
      %1123 = vmatpush.msra.mxu0 %v1122
      %v1124 = vand.u32 %v291, 4294901760
      %v1125 = vsub.f32 %v291, %v1124
      %v1126 = vand.u32 %v1125, 4294901760
      %v1127 = vsub.f32 %v1125, %v1126
      %v1128 = vand.u32 %v1127, 4294901760
      %1129 = vmatpush.msra.mxu0 %v1128
      %v1130 = vand.u32 %v289, 4294901760
      %v1131 = vsub.f32 %v289, %v1130
      %v1132 = vand.u32 %v1131, 4294901760
      %v1133 = vsub.f32 %v1131, %v1132
      %v1134 = vand.u32 %v1133, 4294901760
      %1135 = vmatpush.msra.mxu0 %v1134
      %v1136 = vand.u32 %v287, 4294901760
      %v1137 = vsub.f32 %v287, %v1136
      %v1138 = vand.u32 %v1137, 4294901760
      %v1139 = vsub.f32 %v1137, %v1138
      %v1140 = vand.u32 %v1139, 4294901760
      %1141 = vmatpush.msra.mxu0 %v1140
      %v1142 = vand.u32 %v285, 4294901760
      %v1143 = vsub.f32 %v285, %v1142
      %v1144 = vand.u32 %v1143, 4294901760
      %v1145 = vsub.f32 %v1143, %v1144
      %v1146 = vand.u32 %v1145, 4294901760
      %1147 = vmatpush.msra.mxu0 %v1146
      %v1148 = vand.u32 %v283, 4294901760
      %v1149 = vsub.f32 %v283, %v1148
      %v1150 = vand.u32 %v1149, 4294901760
      %v1151 = vsub.f32 %v1149, %v1150
      %v1152 = vand.u32 %v1151, 4294901760
      %1153 = vmatpush.msra.mxu0 %v1152
      %v1154 = vand.u32 %v281, 4294901760
      %v1155 = vsub.f32 %v281, %v1154
      %v1156 = vand.u32 %v1155, 4294901760
      %v1157 = vsub.f32 %v1155, %v1156
      %v1158 = vand.u32 %v1157, 4294901760
      %1159 = vmatpush.msra.mxu0 %v1158
      %v1160 = vand.u32 %v279, 4294901760
      %v1161 = vsub.f32 %v279, %v1160
      %v1162 = vand.u32 %v1161, 4294901760
      %v1163 = vsub.f32 %v1161, %v1162
      %v1164 = vand.u32 %v1163, 4294901760
      %1165 = vmatpush.msra.mxu0 %v1164
      %v1166 = vand.u32 %v277, 4294901760
      %v1167 = vsub.f32 %v277, %v1166
      %v1168 = vand.u32 %v1167, 4294901760
      %v1169 = vsub.f32 %v1167, %v1168
      %v1170 = vand.u32 %v1169, 4294901760
      %1171 = vmatpush.msra.mxu0 %v1170
      %v1172 = vand.u32 %v275, 4294901760
      %v1173 = vsub.f32 %v275, %v1172
      %v1174 = vand.u32 %v1173, 4294901760
      %v1175 = vsub.f32 %v1173, %v1174
      %v1176 = vand.u32 %v1175, 4294901760
      %1177 = vmatpush.msra.mxu0 %v1176
      %v1178 = vand.u32 %v273, 4294901760
      %v1179 = vsub.f32 %v273, %v1178
      %v1180 = vand.u32 %v1179, 4294901760
      %v1181 = vsub.f32 %v1179, %v1180
      %v1182 = vand.u32 %v1181, 4294901760
      %1183 = vmatpush.msra.mxu0 %v1182
      %v1184 = vand.u32 %v271, 4294901760
      %v1185 = vsub.f32 %v271, %v1184
      %v1186 = vand.u32 %v1185, 4294901760
      %v1187 = vsub.f32 %v1185, %v1186
      %v1188 = vand.u32 %v1187, 4294901760
      %1189 = vmatpush.msra.mxu0 %v1188
      %v1190 = vand.u32 %v269, 4294901760
      %v1191 = vsub.f32 %v269, %v1190
      %v1192 = vand.u32 %v1191, 4294901760
      %v1193 = vsub.f32 %v1191, %v1192
      %v1194 = vand.u32 %v1193, 4294901760
      %1195 = vmatpush.msra.mxu0 %v1194
      %v1196 = vand.u32 %v374, 4294901760
      %1197 = vmatmul.f32.gmra.mxu0 %v1196
      %v1198 = vpop.f32.mrf.mxu0
      %v1199 = vadd.f32 %v1042, %v1198
      %v1200 = vand.u32 %v379, 4294901760
      %1201 = vmatmul.f32.gmra.mxu0 %v1200
      %v1202 = vpop.f32.mrf.mxu0
      %v1203 = vadd.f32 %v1050, %v1202
      %v1204 = vand.u32 %v384, 4294901760
      %1205 = vmatmul.f32.gmra.mxu0 %v1204
      %v1206 = vpop.f32.mrf.mxu0
      %v1207 = vadd.f32 %v1058, %v1206
      %v1208 = vand.u32 %v389, 4294901760
      %1209 = vmatmul.f32.gmra.mxu0 %v1208
      %v1210 = vpop.f32.mrf.mxu0
      %v1211 = vadd.f32 %v1066, %v1210
      %v1212 = vand.u32 %v394, 4294901760
      %1213 = vmatmul.f32.gmra.mxu0 %v1212
      %v1214 = vpop.f32.mrf.mxu0
      %v1215 = vadd.f32 %v1074, %v1214
      %v1216 = vand.u32 %v399, 4294901760
      %1217 = vmatmul.f32.gmra.mxu0 %v1216
      %v1218 = vpop.f32.mrf.mxu0
      %v1219 = vadd.f32 %v1082, %v1218
      %v1220 = vand.u32 %v404, 4294901760
      %1221 = vmatmul.f32.gmra.mxu0 %v1220
      %v1222 = vpop.f32.mrf.mxu0
      %v1223 = vadd.f32 %v1090, %v1222
      %v1224 = vand.u32 %v409, 4294901760
      %1225 = vmatmul.f32.gmra.mxu0 %v1224
      %v1226 = vpop.f32.mrf.mxu0
      %v1227 = vadd.f32 %v1098, %v1226
      %1228 = vdwg.mxu0
      %v1229 = vand.u32 %v299, 4294901760
      %v1230 = vsub.f32 %v299, %v1229
      %1231 = vmatpush.msra.mxu0 %v1230
      %v1232 = vand.u32 %v297, 4294901760
      %v1233 = vsub.f32 %v297, %v1232
      %1234 = vmatpush.msra.mxu0 %v1233
      %v1235 = vand.u32 %v295, 4294901760
      %v1236 = vsub.f32 %v295, %v1235
      %1237 = vmatpush.msra.mxu0 %v1236
      %v1238 = vand.u32 %v293, 4294901760
      %v1239 = vsub.f32 %v293, %v1238
      %1240 = vmatpush.msra.mxu0 %v1239
      %v1241 = vand.u32 %v291, 4294901760
      %v1242 = vsub.f32 %v291, %v1241
      %1243 = vmatpush.msra.mxu0 %v1242
      %v1244 = vand.u32 %v289, 4294901760
      %v1245 = vsub.f32 %v289, %v1244
      %1246 = vmatpush.msra.mxu0 %v1245
      %v1247 = vand.u32 %v287, 4294901760
      %v1248 = vsub.f32 %v287, %v1247
      %1249 = vmatpush.msra.mxu0 %v1248
      %v1250 = vand.u32 %v285, 4294901760
      %v1251 = vsub.f32 %v285, %v1250
      %1252 = vmatpush.msra.mxu0 %v1251
      %v1253 = vand.u32 %v283, 4294901760
      %v1254 = vsub.f32 %v283, %v1253
      %1255 = vmatpush.msra.mxu0 %v1254
      %v1256 = vand.u32 %v281, 4294901760
      %v1257 = vsub.f32 %v281, %v1256
      %1258 = vmatpush.msra.mxu0 %v1257
      %v1259 = vand.u32 %v279, 4294901760
      %v1260 = vsub.f32 %v279, %v1259
      %1261 = vmatpush.msra.mxu0 %v1260
      %v1262 = vand.u32 %v277, 4294901760
      %v1263 = vsub.f32 %v277, %v1262
      %1264 = vmatpush.msra.mxu0 %v1263
      %v1265 = vand.u32 %v275, 4294901760
      %v1266 = vsub.f32 %v275, %v1265
      %1267 = vmatpush.msra.mxu0 %v1266
      %v1268 = vand.u32 %v273, 4294901760
      %v1269 = vsub.f32 %v273, %v1268
      %1270 = vmatpush.msra.mxu0 %v1269
      %v1271 = vand.u32 %v271, 4294901760
      %v1272 = vsub.f32 %v271, %v1271
      %1273 = vmatpush.msra.mxu0 %v1272
      %v1274 = vand.u32 %v269, 4294901760
      %v1275 = vsub.f32 %v269, %v1274
      %1276 = vmatpush.msra.mxu0 %v1275
      %v1277 = vand.u32 %v374, 4294901760
      %v1278 = vsub.f32 %v374, %v1277
      %1279 = vmatmul.f32.gmra.mxu0 %v1278
      %v1280 = vpop.f32.mrf.mxu0
      %v1281 = vadd.f32 %v1199, %v1280
      %v1282 = vand.u32 %v379, 4294901760
      %v1283 = vsub.f32 %v379, %v1282
      %1284 = vmatmul.f32.gmra.mxu0 %v1283
      %v1285 = vpop.f32.mrf.mxu0
      %v1286 = vadd.f32 %v1203, %v1285
      %v1287 = vand.u32 %v384, 4294901760
      %v1288 = vsub.f32 %v384, %v1287
      %1289 = vmatmul.f32.gmra.mxu0 %v1288
      %v1290 = vpop.f32.mrf.mxu0
      %v1291 = vadd.f32 %v1207, %v1290
      %v1292 = vand.u32 %v389, 4294901760
      %v1293 = vsub.f32 %v389, %v1292
      %1294 = vmatmul.f32.gmra.mxu0 %v1293
      %v1295 = vpop.f32.mrf.mxu0
      %v1296 = vadd.f32 %v1211, %v1295
      %v1297 = vand.u32 %v394, 4294901760
      %v1298 = vsub.f32 %v394, %v1297
      %1299 = vmatmul.f32.gmra.mxu0 %v1298
      %v1300 = vpop.f32.mrf.mxu0
      %v1301 = vadd.f32 %v1215, %v1300
      %v1302 = vand.u32 %v399, 4294901760
      %v1303 = vsub.f32 %v399, %v1302
      %1304 = vmatmul.f32.gmra.mxu0 %v1303
      %v1305 = vpop.f32.mrf.mxu0
      %v1306 = vadd.f32 %v1219, %v1305
      %v1307 = vand.u32 %v404, 4294901760
      %v1308 = vsub.f32 %v404, %v1307
      %1309 = vmatmul.f32.gmra.mxu0 %v1308
      %v1310 = vpop.f32.mrf.mxu0
      %v1311 = vadd.f32 %v1223, %v1310
      %v1312 = vand.u32 %v409, 4294901760
      %v1313 = vsub.f32 %v409, %v1312
      %1314 = vmatmul.f32.gmra.mxu0 %v1313
      %v1315 = vpop.f32.mrf.mxu0
      %v1316 = vadd.f32 %v1227, %v1315
      %1317 = vdwg.mxu0
      %v1318 = vand.u32 %v299, 4294901760
      %1319 = vmatpush.msra.mxu0 %v1318
      %v1320 = vand.u32 %v297, 4294901760
      %1321 = vmatpush.msra.mxu0 %v1320
      %v1322 = vand.u32 %v295, 4294901760
      %1323 = vmatpush.msra.mxu0 %v1322
      %v1324 = vand.u32 %v293, 4294901760
      %1325 = vmatpush.msra.mxu0 %v1324
      %v1326 = vand.u32 %v291, 4294901760
      %1327 = vmatpush.msra.mxu0 %v1326
      %v1328 = vand.u32 %v289, 4294901760
      %1329 = vmatpush.msra.mxu0 %v1328
      %v1330 = vand.u32 %v287, 4294901760
      %1331 = vmatpush.msra.mxu0 %v1330
      %v1332 = vand.u32 %v285, 4294901760
      %1333 = vmatpush.msra.mxu0 %v1332
      %v1334 = vand.u32 %v283, 4294901760
      %1335 = vmatpush.msra.mxu0 %v1334
      %v1336 = vand.u32 %v281, 4294901760
      %1337 = vmatpush.msra.mxu0 %v1336
      %v1338 = vand.u32 %v279, 4294901760
      %1339 = vmatpush.msra.mxu0 %v1338
      %v1340 = vand.u32 %v277, 4294901760
      %1341 = vmatpush.msra.mxu0 %v1340
      %v1342 = vand.u32 %v275, 4294901760
      %1343 = vmatpush.msra.mxu0 %v1342
      %v1344 = vand.u32 %v273, 4294901760
      %1345 = vmatpush.msra.mxu0 %v1344
      %v1346 = vand.u32 %v271, 4294901760
      %1347 = vmatpush.msra.mxu0 %v1346
      %v1348 = vand.u32 %v269, 4294901760
      %1349 = vmatpush.msra.mxu0 %v1348
      %v1350 = vand.u32 %v374, 4294901760
      %v1351 = vsub.f32 %v374, %v1350
      %v1352 = vand.u32 %v1351, 4294901760
      %1353 = vmatmul.f32.gmra.mxu0 %v1352
      %v1354 = vpop.f32.mrf.mxu0
      %v1355 = vadd.f32 %v1281, %v1354
      %v1356 = vand.u32 %v379, 4294901760
      %v1357 = vsub.f32 %v379, %v1356
      %v1358 = vand.u32 %v1357, 4294901760
      %1359 = vmatmul.f32.gmra.mxu0 %v1358
      %v1360 = vpop.f32.mrf.mxu0
      %v1361 = vadd.f32 %v1286, %v1360
      %v1362 = vand.u32 %v384, 4294901760
      %v1363 = vsub.f32 %v384, %v1362
      %v1364 = vand.u32 %v1363, 4294901760
      %1365 = vmatmul.f32.gmra.mxu0 %v1364
      %v1366 = vpop.f32.mrf.mxu0
      %v1367 = vadd.f32 %v1291, %v1366
      %v1368 = vand.u32 %v389, 4294901760
      %v1369 = vsub.f32 %v389, %v1368
      %v1370 = vand.u32 %v1369, 4294901760
      %1371 = vmatmul.f32.gmra.mxu0 %v1370
      %v1372 = vpop.f32.mrf.mxu0
      %v1373 = vadd.f32 %v1296, %v1372
      %v1374 = vand.u32 %v394, 4294901760
      %v1375 = vsub.f32 %v394, %v1374
      %v1376 = vand.u32 %v1375, 4294901760
      %1377 = vmatmul.f32.gmra.mxu0 %v1376
      %v1378 = vpop.f32.mrf.mxu0
      %v1379 = vadd.f32 %v1301, %v1378
      %v1380 = vand.u32 %v399, 4294901760
      %v1381 = vsub.f32 %v399, %v1380
      %v1382 = vand.u32 %v1381, 4294901760
      %1383 = vmatmul.f32.gmra.mxu0 %v1382
      %v1384 = vpop.f32.mrf.mxu0
      %v1385 = vadd.f32 %v1306, %v1384
      %v1386 = vand.u32 %v404, 4294901760
      %v1387 = vsub.f32 %v404, %v1386
      %v1388 = vand.u32 %v1387, 4294901760
      %1389 = vmatmul.f32.gmra.mxu0 %v1388
      %v1390 = vpop.f32.mrf.mxu0
      %v1391 = vadd.f32 %v1311, %v1390
      %v1392 = vand.u32 %v409, 4294901760
      %v1393 = vsub.f32 %v409, %v1392
      %v1394 = vand.u32 %v1393, 4294901760
      %1395 = vmatmul.f32.gmra.mxu0 %v1394
      %v1396 = vpop.f32.mrf.mxu0
      %v1397 = vadd.f32 %v1316, %v1396
      %1398 = vdwg.mxu0
      %v1399 = vand.u32 %v299, 4294901760
      %v1400 = vsub.f32 %v299, %v1399
      %v1401 = vand.u32 %v1400, 4294901760
      %1402 = vmatpush.msra.mxu0 %v1401
      %v1403 = vand.u32 %v297, 4294901760
      %v1404 = vsub.f32 %v297, %v1403
      %v1405 = vand.u32 %v1404, 4294901760
      %1406 = vmatpush.msra.mxu0 %v1405
      %v1407 = vand.u32 %v295, 4294901760
      %v1408 = vsub.f32 %v295, %v1407
      %v1409 = vand.u32 %v1408, 4294901760
      %1410 = vmatpush.msra.mxu0 %v1409
      %v1411 = vand.u32 %v293, 4294901760
      %v1412 = vsub.f32 %v293, %v1411
      %v1413 = vand.u32 %v1412, 4294901760
      %1414 = vmatpush.msra.mxu0 %v1413
      %v1415 = vand.u32 %v291, 4294901760
      %v1416 = vsub.f32 %v291, %v1415
      %v1417 = vand.u32 %v1416, 4294901760
      %1418 = vmatpush.msra.mxu0 %v1417
      %v1419 = vand.u32 %v289, 4294901760
      %v1420 = vsub.f32 %v289, %v1419
      %v1421 = vand.u32 %v1420, 4294901760
      %1422 = vmatpush.msra.mxu0 %v1421
      %v1423 = vand.u32 %v287, 4294901760
      %v1424 = vsub.f32 %v287, %v1423
      %v1425 = vand.u32 %v1424, 4294901760
      %1426 = vmatpush.msra.mxu0 %v1425
      %v1427 = vand.u32 %v285, 4294901760
      %v1428 = vsub.f32 %v285, %v1427
      %v1429 = vand.u32 %v1428, 4294901760
      %1430 = vmatpush.msra.mxu0 %v1429
      %v1431 = vand.u32 %v283, 4294901760
      %v1432 = vsub.f32 %v283, %v1431
      %v1433 = vand.u32 %v1432, 4294901760
      %1434 = vmatpush.msra.mxu0 %v1433
      %v1435 = vand.u32 %v281, 4294901760
      %v1436 = vsub.f32 %v281, %v1435
      %v1437 = vand.u32 %v1436, 4294901760
      %1438 = vmatpush.msra.mxu0 %v1437
      %v1439 = vand.u32 %v279, 4294901760
      %v1440 = vsub.f32 %v279, %v1439
      %v1441 = vand.u32 %v1440, 4294901760
      %1442 = vmatpush.msra.mxu0 %v1441
      %v1443 = vand.u32 %v277, 4294901760
      %v1444 = vsub.f32 %v277, %v1443
      %v1445 = vand.u32 %v1444, 4294901760
      %1446 = vmatpush.msra.mxu0 %v1445
      %v1447 = vand.u32 %v275, 4294901760
      %v1448 = vsub.f32 %v275, %v1447
      %v1449 = vand.u32 %v1448, 4294901760
      %1450 = vmatpush.msra.mxu0 %v1449
      %v1451 = vand.u32 %v273, 4294901760
      %v1452 = vsub.f32 %v273, %v1451
      %v1453 = vand.u32 %v1452, 4294901760
      %1454 = vmatpush.msra.mxu0 %v1453
      %v1455 = vand.u32 %v271, 4294901760
      %v1456 = vsub.f32 %v271, %v1455
      %v1457 = vand.u32 %v1456, 4294901760
      %1458 = vmatpush.msra.mxu0 %v1457
      %v1459 = vand.u32 %v269, 4294901760
      %v1460 = vsub.f32 %v269, %v1459
      %v1461 = vand.u32 %v1460, 4294901760
      %1462 = vmatpush.msra.mxu0 %v1461
      %v1463 = vand.u32 %v374, 4294901760
      %1464 = vmatmul.f32.gmra.mxu0 %v1463
      %v1465 = vpop.f32.mrf.mxu0
      %v1466 = vadd.f32 %v1355, %v1465
      %v1467 = vand.u32 %v379, 4294901760
      %1468 = vmatmul.f32.gmra.mxu0 %v1467
      %v1469 = vpop.f32.mrf.mxu0
      %v1470 = vadd.f32 %v1361, %v1469
      %v1471 = vand.u32 %v384, 4294901760
      %1472 = vmatmul.f32.gmra.mxu0 %v1471
      %v1473 = vpop.f32.mrf.mxu0
      %v1474 = vadd.f32 %v1367, %v1473
      %v1475 = vand.u32 %v389, 4294901760
      %1476 = vmatmul.f32.gmra.mxu0 %v1475
      %v1477 = vpop.f32.mrf.mxu0
      %v1478 = vadd.f32 %v1373, %v1477
      %v1479 = vand.u32 %v394, 4294901760
      %1480 = vmatmul.f32.gmra.mxu0 %v1479
      %v1481 = vpop.f32.mrf.mxu0
      %v1482 = vadd.f32 %v1379, %v1481
      %v1483 = vand.u32 %v399, 4294901760
      %1484 = vmatmul.f32.gmra.mxu0 %v1483
      %v1485 = vpop.f32.mrf.mxu0
      %v1486 = vadd.f32 %v1385, %v1485
      %v1487 = vand.u32 %v404, 4294901760
      %1488 = vmatmul.f32.gmra.mxu0 %v1487
      %v1489 = vpop.f32.mrf.mxu0
      %v1490 = vadd.f32 %v1391, %v1489
      %v1491 = vand.u32 %v409, 4294901760
      %1492 = vmatmul.f32.gmra.mxu0 %v1491
      %v1493 = vpop.f32.mrf.mxu0
      %v1494 = vadd.f32 %v1397, %v1493
      %1495 = vdwg.mxu0
      %v1496 = vand.u32 %v299, 4294901760
      %1497 = vmatpush.msra.mxu0 %v1496
      %v1498 = vand.u32 %v297, 4294901760
      %1499 = vmatpush.msra.mxu0 %v1498
      %v1500 = vand.u32 %v295, 4294901760
      %1501 = vmatpush.msra.mxu0 %v1500
      %v1502 = vand.u32 %v293, 4294901760
      %1503 = vmatpush.msra.mxu0 %v1502
      %v1504 = vand.u32 %v291, 4294901760
      %1505 = vmatpush.msra.mxu0 %v1504
      %v1506 = vand.u32 %v289, 4294901760
      %1507 = vmatpush.msra.mxu0 %v1506
      %v1508 = vand.u32 %v287, 4294901760
      %1509 = vmatpush.msra.mxu0 %v1508
      %v1510 = vand.u32 %v285, 4294901760
      %1511 = vmatpush.msra.mxu0 %v1510
      %v1512 = vand.u32 %v283, 4294901760
      %1513 = vmatpush.msra.mxu0 %v1512
      %v1514 = vand.u32 %v281, 4294901760
      %1515 = vmatpush.msra.mxu0 %v1514
      %v1516 = vand.u32 %v279, 4294901760
      %1517 = vmatpush.msra.mxu0 %v1516
      %v1518 = vand.u32 %v277, 4294901760
      %1519 = vmatpush.msra.mxu0 %v1518
      %v1520 = vand.u32 %v275, 4294901760
      %1521 = vmatpush.msra.mxu0 %v1520
      %v1522 = vand.u32 %v273, 4294901760
      %1523 = vmatpush.msra.mxu0 %v1522
      %v1524 = vand.u32 %v271, 4294901760
      %1525 = vmatpush.msra.mxu0 %v1524
      %v1526 = vand.u32 %v269, 4294901760
      %1527 = vmatpush.msra.mxu0 %v1526
      %v1528 = vand.u32 %v374, 4294901760
      %1529 = vmatmul.f32.gmra.mxu0 %v1528
      %v1530 = vpop.f32.mrf.mxu0
      %v1531 = vadd.f32 %v1466, %v1530
      %v1532 = vand.u32 %v379, 4294901760
      %1533 = vmatmul.f32.gmra.mxu0 %v1532
      %v1534 = vpop.f32.mrf.mxu0
      %v1535 = vadd.f32 %v1470, %v1534
      %v1536 = vand.u32 %v384, 4294901760
      %1537 = vmatmul.f32.gmra.mxu0 %v1536
      %v1538 = vpop.f32.mrf.mxu0
      %v1539 = vadd.f32 %v1474, %v1538
      %v1540 = vand.u32 %v389, 4294901760
      %1541 = vmatmul.f32.gmra.mxu0 %v1540
      %v1542 = vpop.f32.mrf.mxu0
      %v1543 = vadd.f32 %v1478, %v1542
      %v1544 = vand.u32 %v394, 4294901760
      %1545 = vmatmul.f32.gmra.mxu0 %v1544
      %v1546 = vpop.f32.mrf.mxu0
      %v1547 = vadd.f32 %v1482, %v1546
      %v1548 = vand.u32 %v399, 4294901760
      %1549 = vmatmul.f32.gmra.mxu0 %v1548
      %v1550 = vpop.f32.mrf.mxu0
      %v1551 = vadd.f32 %v1486, %v1550
      %v1552 = vand.u32 %v404, 4294901760
      %1553 = vmatmul.f32.gmra.mxu0 %v1552
      %v1554 = vpop.f32.mrf.mxu0
      %v1555 = vadd.f32 %v1490, %v1554
      %v1556 = vand.u32 %v409, 4294901760
      %1557 = vmatmul.f32.gmra.mxu0 %v1556
      %v1558 = vpop.f32.mrf.mxu0
      %v1559 = vadd.f32 %v1494, %v1558
      %1560 = vdwg.mxu0
      %v1561 = vand.u32 %v331, 4294901760
      %1562 = vmatpush.msra.mxu0 %v1561
      %v1563 = vand.u32 %v329, 4294901760
      %1564 = vmatpush.msra.mxu0 %v1563
      %v1565 = vand.u32 %v327, 4294901760
      %1566 = vmatpush.msra.mxu0 %v1565
      %v1567 = vand.u32 %v325, 4294901760
      %1568 = vmatpush.msra.mxu0 %v1567
      %v1569 = vand.u32 %v323, 4294901760
      %1570 = vmatpush.msra.mxu0 %v1569
      %v1571 = vand.u32 %v321, 4294901760
      %1572 = vmatpush.msra.mxu0 %v1571
      %v1573 = vand.u32 %v319, 4294901760
      %1574 = vmatpush.msra.mxu0 %v1573
      %v1575 = vand.u32 %v317, 4294901760
      %1576 = vmatpush.msra.mxu0 %v1575
      %v1577 = vand.u32 %v315, 4294901760
      %1578 = vmatpush.msra.mxu0 %v1577
      %v1579 = vand.u32 %v313, 4294901760
      %1580 = vmatpush.msra.mxu0 %v1579
      %v1581 = vand.u32 %v311, 4294901760
      %1582 = vmatpush.msra.mxu0 %v1581
      %v1583 = vand.u32 %v309, 4294901760
      %1584 = vmatpush.msra.mxu0 %v1583
      %v1585 = vand.u32 %v307, 4294901760
      %1586 = vmatpush.msra.mxu0 %v1585
      %v1587 = vand.u32 %v305, 4294901760
      %1588 = vmatpush.msra.mxu0 %v1587
      %v1589 = vand.u32 %v303, 4294901760
      %1590 = vmatpush.msra.mxu0 %v1589
      %v1591 = vand.u32 %v301, 4294901760
      %1592 = vmatpush.msra.mxu0 %v1591
      %v1593 = vand.u32 %v375, 4294901760
      %v1594 = vsub.f32 %v375, %v1593
      %v1595 = vand.u32 %v1594, 4294901760
      %v1596 = vsub.f32 %v1594, %v1595
      %v1597 = vand.u32 %v1596, 4294901760
      %1598 = vmatmul.f32.gmra.mxu0 %v1597
      %v1599 = vpop.f32.mrf.mxu0
      %v1600 = vadd.f32 %v1531, %v1599
      %v1601 = vand.u32 %v380, 4294901760
      %v1602 = vsub.f32 %v380, %v1601
      %v1603 = vand.u32 %v1602, 4294901760
      %v1604 = vsub.f32 %v1602, %v1603
      %v1605 = vand.u32 %v1604, 4294901760
      %1606 = vmatmul.f32.gmra.mxu0 %v1605
      %v1607 = vpop.f32.mrf.mxu0
      %v1608 = vadd.f32 %v1535, %v1607
      %v1609 = vand.u32 %v385, 4294901760
      %v1610 = vsub.f32 %v385, %v1609
      %v1611 = vand.u32 %v1610, 4294901760
      %v1612 = vsub.f32 %v1610, %v1611
      %v1613 = vand.u32 %v1612, 4294901760
      %1614 = vmatmul.f32.gmra.mxu0 %v1613
      %v1615 = vpop.f32.mrf.mxu0
      %v1616 = vadd.f32 %v1539, %v1615
      %v1617 = vand.u32 %v390, 4294901760
      %v1618 = vsub.f32 %v390, %v1617
      %v1619 = vand.u32 %v1618, 4294901760
      %v1620 = vsub.f32 %v1618, %v1619
      %v1621 = vand.u32 %v1620, 4294901760
      %1622 = vmatmul.f32.gmra.mxu0 %v1621
      %v1623 = vpop.f32.mrf.mxu0
      %v1624 = vadd.f32 %v1543, %v1623
      %v1625 = vand.u32 %v395, 4294901760
      %v1626 = vsub.f32 %v395, %v1625
      %v1627 = vand.u32 %v1626, 4294901760
      %v1628 = vsub.f32 %v1626, %v1627
      %v1629 = vand.u32 %v1628, 4294901760
      %1630 = vmatmul.f32.gmra.mxu0 %v1629
      %v1631 = vpop.f32.mrf.mxu0
      %v1632 = vadd.f32 %v1547, %v1631
      %v1633 = vand.u32 %v400, 4294901760
      %v1634 = vsub.f32 %v400, %v1633
      %v1635 = vand.u32 %v1634, 4294901760
      %v1636 = vsub.f32 %v1634, %v1635
      %v1637 = vand.u32 %v1636, 4294901760
      %1638 = vmatmul.f32.gmra.mxu0 %v1637
      %v1639 = vpop.f32.mrf.mxu0
      %v1640 = vadd.f32 %v1551, %v1639
      %v1641 = vand.u32 %v405, 4294901760
      %v1642 = vsub.f32 %v405, %v1641
      %v1643 = vand.u32 %v1642, 4294901760
      %v1644 = vsub.f32 %v1642, %v1643
      %v1645 = vand.u32 %v1644, 4294901760
      %1646 = vmatmul.f32.gmra.mxu0 %v1645
      %v1647 = vpop.f32.mrf.mxu0
      %v1648 = vadd.f32 %v1555, %v1647
      %v1649 = vand.u32 %v410, 4294901760
      %v1650 = vsub.f32 %v410, %v1649
      %v1651 = vand.u32 %v1650, 4294901760
      %v1652 = vsub.f32 %v1650, %v1651
      %v1653 = vand.u32 %v1652, 4294901760
      %1654 = vmatmul.f32.gmra.mxu0 %v1653
      %v1655 = vpop.f32.mrf.mxu0
      %v1656 = vadd.f32 %v1559, %v1655
      %1657 = vdwg.mxu0
      %v1658 = vand.u32 %v331, 4294901760
      %v1659 = vsub.f32 %v331, %v1658
      %v1660 = vand.u32 %v1659, 4294901760
      %v1661 = vsub.f32 %v1659, %v1660
      %v1662 = vand.u32 %v1661, 4294901760
      %1663 = vmatpush.msra.mxu0 %v1662
      %v1664 = vand.u32 %v329, 4294901760
      %v1665 = vsub.f32 %v329, %v1664
      %v1666 = vand.u32 %v1665, 4294901760
      %v1667 = vsub.f32 %v1665, %v1666
      %v1668 = vand.u32 %v1667, 4294901760
      %1669 = vmatpush.msra.mxu0 %v1668
      %v1670 = vand.u32 %v327, 4294901760
      %v1671 = vsub.f32 %v327, %v1670
      %v1672 = vand.u32 %v1671, 4294901760
      %v1673 = vsub.f32 %v1671, %v1672
      %v1674 = vand.u32 %v1673, 4294901760
      %1675 = vmatpush.msra.mxu0 %v1674
      %v1676 = vand.u32 %v325, 4294901760
      %v1677 = vsub.f32 %v325, %v1676
      %v1678 = vand.u32 %v1677, 4294901760
      %v1679 = vsub.f32 %v1677, %v1678
      %v1680 = vand.u32 %v1679, 4294901760
      %1681 = vmatpush.msra.mxu0 %v1680
      %v1682 = vand.u32 %v323, 4294901760
      %v1683 = vsub.f32 %v323, %v1682
      %v1684 = vand.u32 %v1683, 4294901760
      %v1685 = vsub.f32 %v1683, %v1684
      %v1686 = vand.u32 %v1685, 4294901760
      %1687 = vmatpush.msra.mxu0 %v1686
      %v1688 = vand.u32 %v321, 4294901760
      %v1689 = vsub.f32 %v321, %v1688
      %v1690 = vand.u32 %v1689, 4294901760
      %v1691 = vsub.f32 %v1689, %v1690
      %v1692 = vand.u32 %v1691, 4294901760
      %1693 = vmatpush.msra.mxu0 %v1692
      %v1694 = vand.u32 %v319, 4294901760
      %v1695 = vsub.f32 %v319, %v1694
      %v1696 = vand.u32 %v1695, 4294901760
      %v1697 = vsub.f32 %v1695, %v1696
      %v1698 = vand.u32 %v1697, 4294901760
      %1699 = vmatpush.msra.mxu0 %v1698
      %v1700 = vand.u32 %v317, 4294901760
      %v1701 = vsub.f32 %v317, %v1700
      %v1702 = vand.u32 %v1701, 4294901760
      %v1703 = vsub.f32 %v1701, %v1702
      %v1704 = vand.u32 %v1703, 4294901760
      %1705 = vmatpush.msra.mxu0 %v1704
      %v1706 = vand.u32 %v315, 4294901760
      %v1707 = vsub.f32 %v315, %v1706
      %v1708 = vand.u32 %v1707, 4294901760
      %v1709 = vsub.f32 %v1707, %v1708
      %v1710 = vand.u32 %v1709, 4294901760
      %1711 = vmatpush.msra.mxu0 %v1710
      %v1712 = vand.u32 %v313, 4294901760
      %v1713 = vsub.f32 %v313, %v1712
      %v1714 = vand.u32 %v1713, 4294901760
      %v1715 = vsub.f32 %v1713, %v1714
      %v1716 = vand.u32 %v1715, 4294901760
      %1717 = vmatpush.msra.mxu0 %v1716
      %v1718 = vand.u32 %v311, 4294901760
      %v1719 = vsub.f32 %v311, %v1718
      %v1720 = vand.u32 %v1719, 4294901760
      %v1721 = vsub.f32 %v1719, %v1720
      %v1722 = vand.u32 %v1721, 4294901760
      %1723 = vmatpush.msra.mxu0 %v1722
      %v1724 = vand.u32 %v309, 4294901760
      %v1725 = vsub.f32 %v309, %v1724
      %v1726 = vand.u32 %v1725, 4294901760
      %v1727 = vsub.f32 %v1725, %v1726
      %v1728 = vand.u32 %v1727, 4294901760
      %1729 = vmatpush.msra.mxu0 %v1728
      %v1730 = vand.u32 %v307, 4294901760
      %v1731 = vsub.f32 %v307, %v1730
      %v1732 = vand.u32 %v1731, 4294901760
      %v1733 = vsub.f32 %v1731, %v1732
      %v1734 = vand.u32 %v1733, 4294901760
      %1735 = vmatpush.msra.mxu0 %v1734
      %v1736 = vand.u32 %v305, 4294901760
      %v1737 = vsub.f32 %v305, %v1736
      %v1738 = vand.u32 %v1737, 4294901760
      %v1739 = vsub.f32 %v1737, %v1738
      %v1740 = vand.u32 %v1739, 4294901760
      %1741 = vmatpush.msra.mxu0 %v1740
      %v1742 = vand.u32 %v303, 4294901760
      %v1743 = vsub.f32 %v303, %v1742
      %v1744 = vand.u32 %v1743, 4294901760
      %v1745 = vsub.f32 %v1743, %v1744
      %v1746 = vand.u32 %v1745, 4294901760
      %1747 = vmatpush.msra.mxu0 %v1746
      %v1748 = vand.u32 %v301, 4294901760
      %v1749 = vsub.f32 %v301, %v1748
      %v1750 = vand.u32 %v1749, 4294901760
      %v1751 = vsub.f32 %v1749, %v1750
      %v1752 = vand.u32 %v1751, 4294901760
      %1753 = vmatpush.msra.mxu0 %v1752
      %v1754 = vand.u32 %v375, 4294901760
      %1755 = vmatmul.f32.gmra.mxu0 %v1754
      %v1756 = vpop.f32.mrf.mxu0
      %v1757 = vadd.f32 %v1600, %v1756
      %v1758 = vand.u32 %v380, 4294901760
      %1759 = vmatmul.f32.gmra.mxu0 %v1758
      %v1760 = vpop.f32.mrf.mxu0
      %v1761 = vadd.f32 %v1608, %v1760
      %v1762 = vand.u32 %v385, 4294901760
      %1763 = vmatmul.f32.gmra.mxu0 %v1762
      %v1764 = vpop.f32.mrf.mxu0
      %v1765 = vadd.f32 %v1616, %v1764
      %v1766 = vand.u32 %v390, 4294901760
      %1767 = vmatmul.f32.gmra.mxu0 %v1766
      %v1768 = vpop.f32.mrf.mxu0
      %v1769 = vadd.f32 %v1624, %v1768
      %v1770 = vand.u32 %v395, 4294901760
      %1771 = vmatmul.f32.gmra.mxu0 %v1770
      %v1772 = vpop.f32.mrf.mxu0
      %v1773 = vadd.f32 %v1632, %v1772
      %v1774 = vand.u32 %v400, 4294901760
      %1775 = vmatmul.f32.gmra.mxu0 %v1774
      %v1776 = vpop.f32.mrf.mxu0
      %v1777 = vadd.f32 %v1640, %v1776
      %v1778 = vand.u32 %v405, 4294901760
      %1779 = vmatmul.f32.gmra.mxu0 %v1778
      %v1780 = vpop.f32.mrf.mxu0
      %v1781 = vadd.f32 %v1648, %v1780
      %v1782 = vand.u32 %v410, 4294901760
      %1783 = vmatmul.f32.gmra.mxu0 %v1782
      %v1784 = vpop.f32.mrf.mxu0
      %v1785 = vadd.f32 %v1656, %v1784
      %1786 = vdwg.mxu0
      %v1787 = vand.u32 %v331, 4294901760
      %v1788 = vsub.f32 %v331, %v1787
      %1789 = vmatpush.msra.mxu0 %v1788
      %v1790 = vand.u32 %v329, 4294901760
      %v1791 = vsub.f32 %v329, %v1790
      %1792 = vmatpush.msra.mxu0 %v1791
      %v1793 = vand.u32 %v327, 4294901760
      %v1794 = vsub.f32 %v327, %v1793
      %1795 = vmatpush.msra.mxu0 %v1794
      %v1796 = vand.u32 %v325, 4294901760
      %v1797 = vsub.f32 %v325, %v1796
      %1798 = vmatpush.msra.mxu0 %v1797
      %v1799 = vand.u32 %v323, 4294901760
      %v1800 = vsub.f32 %v323, %v1799
      %1801 = vmatpush.msra.mxu0 %v1800
      %v1802 = vand.u32 %v321, 4294901760
      %v1803 = vsub.f32 %v321, %v1802
      %1804 = vmatpush.msra.mxu0 %v1803
      %v1805 = vand.u32 %v319, 4294901760
      %v1806 = vsub.f32 %v319, %v1805
      %1807 = vmatpush.msra.mxu0 %v1806
      %v1808 = vand.u32 %v317, 4294901760
      %v1809 = vsub.f32 %v317, %v1808
      %1810 = vmatpush.msra.mxu0 %v1809
      %v1811 = vand.u32 %v315, 4294901760
      %v1812 = vsub.f32 %v315, %v1811
      %1813 = vmatpush.msra.mxu0 %v1812
      %v1814 = vand.u32 %v313, 4294901760
      %v1815 = vsub.f32 %v313, %v1814
      %1816 = vmatpush.msra.mxu0 %v1815
      %v1817 = vand.u32 %v311, 4294901760
      %v1818 = vsub.f32 %v311, %v1817
      %1819 = vmatpush.msra.mxu0 %v1818
      %v1820 = vand.u32 %v309, 4294901760
      %v1821 = vsub.f32 %v309, %v1820
      %1822 = vmatpush.msra.mxu0 %v1821
      %v1823 = vand.u32 %v307, 4294901760
      %v1824 = vsub.f32 %v307, %v1823
      %1825 = vmatpush.msra.mxu0 %v1824
      %v1826 = vand.u32 %v305, 4294901760
      %v1827 = vsub.f32 %v305, %v1826
      %1828 = vmatpush.msra.mxu0 %v1827
      %v1829 = vand.u32 %v303, 4294901760
      %v1830 = vsub.f32 %v303, %v1829
      %1831 = vmatpush.msra.mxu0 %v1830
      %v1832 = vand.u32 %v301, 4294901760
      %v1833 = vsub.f32 %v301, %v1832
      %1834 = vmatpush.msra.mxu0 %v1833
      %v1835 = vand.u32 %v375, 4294901760
      %v1836 = vsub.f32 %v375, %v1835
      %1837 = vmatmul.f32.gmra.mxu0 %v1836
      %v1838 = vpop.f32.mrf.mxu0
      %v1839 = vadd.f32 %v1757, %v1838
      %v1840 = vand.u32 %v380, 4294901760
      %v1841 = vsub.f32 %v380, %v1840
      %1842 = vmatmul.f32.gmra.mxu0 %v1841
      %v1843 = vpop.f32.mrf.mxu0
      %v1844 = vadd.f32 %v1761, %v1843
      %v1845 = vand.u32 %v385, 4294901760
      %v1846 = vsub.f32 %v385, %v1845
      %1847 = vmatmul.f32.gmra.mxu0 %v1846
      %v1848 = vpop.f32.mrf.mxu0
      %v1849 = vadd.f32 %v1765, %v1848
      %v1850 = vand.u32 %v390, 4294901760
      %v1851 = vsub.f32 %v390, %v1850
      %1852 = vmatmul.f32.gmra.mxu0 %v1851
      %v1853 = vpop.f32.mrf.mxu0
      %v1854 = vadd.f32 %v1769, %v1853
      %v1855 = vand.u32 %v395, 4294901760
      %v1856 = vsub.f32 %v395, %v1855
      %1857 = vmatmul.f32.gmra.mxu0 %v1856
      %v1858 = vpop.f32.mrf.mxu0
      %v1859 = vadd.f32 %v1773, %v1858
      %v1860 = vand.u32 %v400, 4294901760
      %v1861 = vsub.f32 %v400, %v1860
      %1862 = vmatmul.f32.gmra.mxu0 %v1861
      %v1863 = vpop.f32.mrf.mxu0
      %v1864 = vadd.f32 %v1777, %v1863
      %v1865 = vand.u32 %v405, 4294901760
      %v1866 = vsub.f32 %v405, %v1865
      %1867 = vmatmul.f32.gmra.mxu0 %v1866
      %v1868 = vpop.f32.mrf.mxu0
      %v1869 = vadd.f32 %v1781, %v1868
      %v1870 = vand.u32 %v410, 4294901760
      %v1871 = vsub.f32 %v410, %v1870
      %1872 = vmatmul.f32.gmra.mxu0 %v1871
      %v1873 = vpop.f32.mrf.mxu0
      %v1874 = vadd.f32 %v1785, %v1873
      %1875 = vdwg.mxu0
      %v1876 = vand.u32 %v331, 4294901760
      %1877 = vmatpush.msra.mxu0 %v1876
      %v1878 = vand.u32 %v329, 4294901760
      %1879 = vmatpush.msra.mxu0 %v1878
      %v1880 = vand.u32 %v327, 4294901760
      %1881 = vmatpush.msra.mxu0 %v1880
      %v1882 = vand.u32 %v325, 4294901760
      %1883 = vmatpush.msra.mxu0 %v1882
      %v1884 = vand.u32 %v323, 4294901760
      %1885 = vmatpush.msra.mxu0 %v1884
      %v1886 = vand.u32 %v321, 4294901760
      %1887 = vmatpush.msra.mxu0 %v1886
      %v1888 = vand.u32 %v319, 4294901760
      %1889 = vmatpush.msra.mxu0 %v1888
      %v1890 = vand.u32 %v317, 4294901760
      %1891 = vmatpush.msra.mxu0 %v1890
      %v1892 = vand.u32 %v315, 4294901760
      %1893 = vmatpush.msra.mxu0 %v1892
      %v1894 = vand.u32 %v313, 4294901760
      %1895 = vmatpush.msra.mxu0 %v1894
      %v1896 = vand.u32 %v311, 4294901760
      %1897 = vmatpush.msra.mxu0 %v1896
      %v1898 = vand.u32 %v309, 4294901760
      %1899 = vmatpush.msra.mxu0 %v1898
      %v1900 = vand.u32 %v307, 4294901760
      %1901 = vmatpush.msra.mxu0 %v1900
      %v1902 = vand.u32 %v305, 4294901760
      %1903 = vmatpush.msra.mxu0 %v1902
      %v1904 = vand.u32 %v303, 4294901760
      %1905 = vmatpush.msra.mxu0 %v1904
      %v1906 = vand.u32 %v301, 4294901760
      %1907 = vmatpush.msra.mxu0 %v1906
      %v1908 = vand.u32 %v375, 4294901760
      %v1909 = vsub.f32 %v375, %v1908
      %v1910 = vand.u32 %v1909, 4294901760
      %1911 = vmatmul.f32.gmra.mxu0 %v1910
      %v1912 = vpop.f32.mrf.mxu0
      %v1913 = vadd.f32 %v1839, %v1912
      %v1914 = vand.u32 %v380, 4294901760
      %v1915 = vsub.f32 %v380, %v1914
      %v1916 = vand.u32 %v1915, 4294901760
      %1917 = vmatmul.f32.gmra.mxu0 %v1916
      %v1918 = vpop.f32.mrf.mxu0
      %v1919 = vadd.f32 %v1844, %v1918
      %v1920 = vand.u32 %v385, 4294901760
      %v1921 = vsub.f32 %v385, %v1920
      %v1922 = vand.u32 %v1921, 4294901760
      %1923 = vmatmul.f32.gmra.mxu0 %v1922
      %v1924 = vpop.f32.mrf.mxu0
      %v1925 = vadd.f32 %v1849, %v1924
      %v1926 = vand.u32 %v390, 4294901760
      %v1927 = vsub.f32 %v390, %v1926
      %v1928 = vand.u32 %v1927, 4294901760
      %1929 = vmatmul.f32.gmra.mxu0 %v1928
      %v1930 = vpop.f32.mrf.mxu0
      %v1931 = vadd.f32 %v1854, %v1930
      %v1932 = vand.u32 %v395, 4294901760
      %v1933 = vsub.f32 %v395, %v1932
      %v1934 = vand.u32 %v1933, 4294901760
      %1935 = vmatmul.f32.gmra.mxu0 %v1934
      %v1936 = vpop.f32.mrf.mxu0
      %v1937 = vadd.f32 %v1859, %v1936
      %v1938 = vand.u32 %v400, 4294901760
      %v1939 = vsub.f32 %v400, %v1938
      %v1940 = vand.u32 %v1939, 4294901760
      %1941 = vmatmul.f32.gmra.mxu0 %v1940
      %v1942 = vpop.f32.mrf.mxu0
      %v1943 = vadd.f32 %v1864, %v1942
      %v1944 = vand.u32 %v405, 4294901760
      %v1945 = vsub.f32 %v405, %v1944
      %v1946 = vand.u32 %v1945, 4294901760
      %1947 = vmatmul.f32.gmra.mxu0 %v1946
      %v1948 = vpop.f32.mrf.mxu0
      %v1949 = vadd.f32 %v1869, %v1948
      %v1950 = vand.u32 %v410, 4294901760
      %v1951 = vsub.f32 %v410, %v1950
      %v1952 = vand.u32 %v1951, 4294901760
      %1953 = vmatmul.f32.gmra.mxu0 %v1952
      %v1954 = vpop.f32.mrf.mxu0
      %v1955 = vadd.f32 %v1874, %v1954
      %1956 = vdwg.mxu0
      %v1957 = vand.u32 %v331, 4294901760
      %v1958 = vsub.f32 %v331, %v1957
      %v1959 = vand.u32 %v1958, 4294901760
      %1960 = vmatpush.msra.mxu0 %v1959
      %v1961 = vand.u32 %v329, 4294901760
      %v1962 = vsub.f32 %v329, %v1961
      %v1963 = vand.u32 %v1962, 4294901760
      %1964 = vmatpush.msra.mxu0 %v1963
      %v1965 = vand.u32 %v327, 4294901760
      %v1966 = vsub.f32 %v327, %v1965
      %v1967 = vand.u32 %v1966, 4294901760
      %1968 = vmatpush.msra.mxu0 %v1967
      %v1969 = vand.u32 %v325, 4294901760
      %v1970 = vsub.f32 %v325, %v1969
      %v1971 = vand.u32 %v1970, 4294901760
      %1972 = vmatpush.msra.mxu0 %v1971
      %v1973 = vand.u32 %v323, 4294901760
      %v1974 = vsub.f32 %v323, %v1973
      %v1975 = vand.u32 %v1974, 4294901760
      %1976 = vmatpush.msra.mxu0 %v1975
      %v1977 = vand.u32 %v321, 4294901760
      %v1978 = vsub.f32 %v321, %v1977
      %v1979 = vand.u32 %v1978, 4294901760
      %1980 = vmatpush.msra.mxu0 %v1979
      %v1981 = vand.u32 %v319, 4294901760
      %v1982 = vsub.f32 %v319, %v1981
      %v1983 = vand.u32 %v1982, 4294901760
      %1984 = vmatpush.msra.mxu0 %v1983
      %v1985 = vand.u32 %v317, 4294901760
      %v1986 = vsub.f32 %v317, %v1985
      %v1987 = vand.u32 %v1986, 4294901760
      %1988 = vmatpush.msra.mxu0 %v1987
      %v1989 = vand.u32 %v315, 4294901760
      %v1990 = vsub.f32 %v315, %v1989
      %v1991 = vand.u32 %v1990, 4294901760
      %1992 = vmatpush.msra.mxu0 %v1991
      %v1993 = vand.u32 %v313, 4294901760
      %v1994 = vsub.f32 %v313, %v1993
      %v1995 = vand.u32 %v1994, 4294901760
      %1996 = vmatpush.msra.mxu0 %v1995
      %v1997 = vand.u32 %v311, 4294901760
      %v1998 = vsub.f32 %v311, %v1997
      %v1999 = vand.u32 %v1998, 4294901760
      %2000 = vmatpush.msra.mxu0 %v1999
      %v2001 = vand.u32 %v309, 4294901760
      %v2002 = vsub.f32 %v309, %v2001
      %v2003 = vand.u32 %v2002, 4294901760
      %2004 = vmatpush.msra.mxu0 %v2003
      %v2005 = vand.u32 %v307, 4294901760
      %v2006 = vsub.f32 %v307, %v2005
      %v2007 = vand.u32 %v2006, 4294901760
      %2008 = vmatpush.msra.mxu0 %v2007
      %v2009 = vand.u32 %v305, 4294901760
      %v2010 = vsub.f32 %v305, %v2009
      %v2011 = vand.u32 %v2010, 4294901760
      %2012 = vmatpush.msra.mxu0 %v2011
      %v2013 = vand.u32 %v303, 4294901760
      %v2014 = vsub.f32 %v303, %v2013
      %v2015 = vand.u32 %v2014, 4294901760
      %2016 = vmatpush.msra.mxu0 %v2015
      %v2017 = vand.u32 %v301, 4294901760
      %v2018 = vsub.f32 %v301, %v2017
      %v2019 = vand.u32 %v2018, 4294901760
      %2020 = vmatpush.msra.mxu0 %v2019
      %v2021 = vand.u32 %v375, 4294901760
      %2022 = vmatmul.f32.gmra.mxu0 %v2021
      %v2023 = vpop.f32.mrf.mxu0
      %v2024 = vadd.f32 %v1913, %v2023
      %v2025 = vand.u32 %v380, 4294901760
      %2026 = vmatmul.f32.gmra.mxu0 %v2025
      %v2027 = vpop.f32.mrf.mxu0
      %v2028 = vadd.f32 %v1919, %v2027
      %v2029 = vand.u32 %v385, 4294901760
      %2030 = vmatmul.f32.gmra.mxu0 %v2029
      %v2031 = vpop.f32.mrf.mxu0
      %v2032 = vadd.f32 %v1925, %v2031
      %v2033 = vand.u32 %v390, 4294901760
      %2034 = vmatmul.f32.gmra.mxu0 %v2033
      %v2035 = vpop.f32.mrf.mxu0
      %v2036 = vadd.f32 %v1931, %v2035
      %v2037 = vand.u32 %v395, 4294901760
      %2038 = vmatmul.f32.gmra.mxu0 %v2037
      %v2039 = vpop.f32.mrf.mxu0
      %v2040 = vadd.f32 %v1937, %v2039
      %v2041 = vand.u32 %v400, 4294901760
      %2042 = vmatmul.f32.gmra.mxu0 %v2041
      %v2043 = vpop.f32.mrf.mxu0
      %v2044 = vadd.f32 %v1943, %v2043
      %v2045 = vand.u32 %v405, 4294901760
      %2046 = vmatmul.f32.gmra.mxu0 %v2045
      %v2047 = vpop.f32.mrf.mxu0
      %v2048 = vadd.f32 %v1949, %v2047
      %v2049 = vand.u32 %v410, 4294901760
      %2050 = vmatmul.f32.gmra.mxu0 %v2049
      %v2051 = vpop.f32.mrf.mxu0
      %v2052 = vadd.f32 %v1955, %v2051
      %2053 = vdwg.mxu0
      %v2054 = vand.u32 %v331, 4294901760
      %2055 = vmatpush.msra.mxu0 %v2054
      %v2056 = vand.u32 %v329, 4294901760
      %2057 = vmatpush.msra.mxu0 %v2056
      %v2058 = vand.u32 %v327, 4294901760
      %2059 = vmatpush.msra.mxu0 %v2058
      %v2060 = vand.u32 %v325, 4294901760
      %2061 = vmatpush.msra.mxu0 %v2060
      %v2062 = vand.u32 %v323, 4294901760
      %2063 = vmatpush.msra.mxu0 %v2062
      %v2064 = vand.u32 %v321, 4294901760
      %2065 = vmatpush.msra.mxu0 %v2064
      %v2066 = vand.u32 %v319, 4294901760
      %2067 = vmatpush.msra.mxu0 %v2066
      %v2068 = vand.u32 %v317, 4294901760
      %2069 = vmatpush.msra.mxu0 %v2068
      %v2070 = vand.u32 %v315, 4294901760
      %2071 = vmatpush.msra.mxu0 %v2070
      %v2072 = vand.u32 %v313, 4294901760
      %2073 = vmatpush.msra.mxu0 %v2072
      %v2074 = vand.u32 %v311, 4294901760
      %2075 = vmatpush.msra.mxu0 %v2074
      %v2076 = vand.u32 %v309, 4294901760
      %2077 = vmatpush.msra.mxu0 %v2076
      %v2078 = vand.u32 %v307, 4294901760
      %2079 = vmatpush.msra.mxu0 %v2078
      %v2080 = vand.u32 %v305, 4294901760
      %2081 = vmatpush.msra.mxu0 %v2080
      %v2082 = vand.u32 %v303, 4294901760
      %2083 = vmatpush.msra.mxu0 %v2082
      %v2084 = vand.u32 %v301, 4294901760
      %2085 = vmatpush.msra.mxu0 %v2084
      %v2086 = vand.u32 %v375, 4294901760
      %2087 = vmatmul.f32.gmra.mxu0 %v2086
      %v2088 = vpop.f32.mrf.mxu0
      %v2089 = vadd.f32 %v2024, %v2088
      %v2090 = vand.u32 %v380, 4294901760
      %2091 = vmatmul.f32.gmra.mxu0 %v2090
      %v2092 = vpop.f32.mrf.mxu0
      %v2093 = vadd.f32 %v2028, %v2092
      %v2094 = vand.u32 %v385, 4294901760
      %2095 = vmatmul.f32.gmra.mxu0 %v2094
      %v2096 = vpop.f32.mrf.mxu0
      %v2097 = vadd.f32 %v2032, %v2096
      %v2098 = vand.u32 %v390, 4294901760
      %2099 = vmatmul.f32.gmra.mxu0 %v2098
      %v2100 = vpop.f32.mrf.mxu0
      %v2101 = vadd.f32 %v2036, %v2100
      %v2102 = vand.u32 %v395, 4294901760
      %2103 = vmatmul.f32.gmra.mxu0 %v2102
      %v2104 = vpop.f32.mrf.mxu0
      %v2105 = vadd.f32 %v2040, %v2104
      %v2106 = vand.u32 %v400, 4294901760
      %2107 = vmatmul.f32.gmra.mxu0 %v2106
      %v2108 = vpop.f32.mrf.mxu0
      %v2109 = vadd.f32 %v2044, %v2108
      %v2110 = vand.u32 %v405, 4294901760
      %2111 = vmatmul.f32.gmra.mxu0 %v2110
      %v2112 = vpop.f32.mrf.mxu0
      %v2113 = vadd.f32 %v2048, %v2112
      %v2114 = vand.u32 %v410, 4294901760
      %2115 = vmatmul.f32.gmra.mxu0 %v2114
      %v2116 = vpop.f32.mrf.mxu0
      %v2117 = vadd.f32 %v2052, %v2116
      %2118 = vdwg.mxu0
      %v2119 = vand.u32 %v363, 4294901760
      %2120 = vmatpush.msra.mxu0 %v2119
      %v2121 = vand.u32 %v361, 4294901760
      %2122 = vmatpush.msra.mxu0 %v2121
      %v2123 = vand.u32 %v359, 4294901760
      %2124 = vmatpush.msra.mxu0 %v2123
      %v2125 = vand.u32 %v357, 4294901760
      %2126 = vmatpush.msra.mxu0 %v2125
      %v2127 = vand.u32 %v355, 4294901760
      %2128 = vmatpush.msra.mxu0 %v2127
      %v2129 = vand.u32 %v353, 4294901760
      %2130 = vmatpush.msra.mxu0 %v2129
      %v2131 = vand.u32 %v351, 4294901760
      %2132 = vmatpush.msra.mxu0 %v2131
      %v2133 = vand.u32 %v349, 4294901760
      %2134 = vmatpush.msra.mxu0 %v2133
      %v2135 = vand.u32 %v347, 4294901760
      %2136 = vmatpush.msra.mxu0 %v2135
      %v2137 = vand.u32 %v345, 4294901760
      %2138 = vmatpush.msra.mxu0 %v2137
      %v2139 = vand.u32 %v343, 4294901760
      %2140 = vmatpush.msra.mxu0 %v2139
      %v2141 = vand.u32 %v341, 4294901760
      %2142 = vmatpush.msra.mxu0 %v2141
      %v2143 = vand.u32 %v339, 4294901760
      %2144 = vmatpush.msra.mxu0 %v2143
      %v2145 = vand.u32 %v337, 4294901760
      %2146 = vmatpush.msra.mxu0 %v2145
      %v2147 = vand.u32 %v335, 4294901760
      %2148 = vmatpush.msra.mxu0 %v2147
      %v2149 = vand.u32 %v333, 4294901760
      %2150 = vmatpush.msra.mxu0 %v2149
      %v2151 = vand.u32 %v376, 4294901760
      %v2152 = vsub.f32 %v376, %v2151
      %v2153 = vand.u32 %v2152, 4294901760
      %v2154 = vsub.f32 %v2152, %v2153
      %v2155 = vand.u32 %v2154, 4294901760
      %2156 = vmatmul.f32.gmra.mxu0 %v2155
      %v2157 = vpop.f32.mrf.mxu0
      %v2158 = vadd.f32 %v2089, %v2157
      %v2159 = vand.u32 %v381, 4294901760
      %v2160 = vsub.f32 %v381, %v2159
      %v2161 = vand.u32 %v2160, 4294901760
      %v2162 = vsub.f32 %v2160, %v2161
      %v2163 = vand.u32 %v2162, 4294901760
      %2164 = vmatmul.f32.gmra.mxu0 %v2163
      %v2165 = vpop.f32.mrf.mxu0
      %v2166 = vadd.f32 %v2093, %v2165
      %v2167 = vand.u32 %v386, 4294901760
      %v2168 = vsub.f32 %v386, %v2167
      %v2169 = vand.u32 %v2168, 4294901760
      %v2170 = vsub.f32 %v2168, %v2169
      %v2171 = vand.u32 %v2170, 4294901760
      %2172 = vmatmul.f32.gmra.mxu0 %v2171
      %v2173 = vpop.f32.mrf.mxu0
      %v2174 = vadd.f32 %v2097, %v2173
      %v2175 = vand.u32 %v391, 4294901760
      %v2176 = vsub.f32 %v391, %v2175
      %v2177 = vand.u32 %v2176, 4294901760
      %v2178 = vsub.f32 %v2176, %v2177
      %v2179 = vand.u32 %v2178, 4294901760
      %2180 = vmatmul.f32.gmra.mxu0 %v2179
      %v2181 = vpop.f32.mrf.mxu0
      %v2182 = vadd.f32 %v2101, %v2181
      %v2183 = vand.u32 %v396, 4294901760
      %v2184 = vsub.f32 %v396, %v2183
      %v2185 = vand.u32 %v2184, 4294901760
      %v2186 = vsub.f32 %v2184, %v2185
      %v2187 = vand.u32 %v2186, 4294901760
      %2188 = vmatmul.f32.gmra.mxu0 %v2187
      %v2189 = vpop.f32.mrf.mxu0
      %v2190 = vadd.f32 %v2105, %v2189
      %v2191 = vand.u32 %v401, 4294901760
      %v2192 = vsub.f32 %v401, %v2191
      %v2193 = vand.u32 %v2192, 4294901760
      %v2194 = vsub.f32 %v2192, %v2193
      %v2195 = vand.u32 %v2194, 4294901760
      %2196 = vmatmul.f32.gmra.mxu0 %v2195
      %v2197 = vpop.f32.mrf.mxu0
      %v2198 = vadd.f32 %v2109, %v2197
      %v2199 = vand.u32 %v406, 4294901760
      %v2200 = vsub.f32 %v406, %v2199
      %v2201 = vand.u32 %v2200, 4294901760
      %v2202 = vsub.f32 %v2200, %v2201
      %v2203 = vand.u32 %v2202, 4294901760
      %2204 = vmatmul.f32.gmra.mxu0 %v2203
      %v2205 = vpop.f32.mrf.mxu0
      %v2206 = vadd.f32 %v2113, %v2205
      %v2207 = vand.u32 %v411, 4294901760
      %v2208 = vsub.f32 %v411, %v2207
      %v2209 = vand.u32 %v2208, 4294901760
      %v2210 = vsub.f32 %v2208, %v2209
      %v2211 = vand.u32 %v2210, 4294901760
      %2212 = vmatmul.f32.gmra.mxu0 %v2211
      %v2213 = vpop.f32.mrf.mxu0
      %v2214 = vadd.f32 %v2117, %v2213
      %2215 = vdwg.mxu0
      %v2216 = vand.u32 %v363, 4294901760
      %v2217 = vsub.f32 %v363, %v2216
      %v2218 = vand.u32 %v2217, 4294901760
      %v2219 = vsub.f32 %v2217, %v2218
      %v2220 = vand.u32 %v2219, 4294901760
      %2221 = vmatpush.msra.mxu0 %v2220
      %v2222 = vand.u32 %v361, 4294901760
      %v2223 = vsub.f32 %v361, %v2222
      %v2224 = vand.u32 %v2223, 4294901760
      %v2225 = vsub.f32 %v2223, %v2224
      %v2226 = vand.u32 %v2225, 4294901760
      %2227 = vmatpush.msra.mxu0 %v2226
      %v2228 = vand.u32 %v359, 4294901760
      %v2229 = vsub.f32 %v359, %v2228
      %v2230 = vand.u32 %v2229, 4294901760
      %v2231 = vsub.f32 %v2229, %v2230
      %v2232 = vand.u32 %v2231, 4294901760
      %2233 = vmatpush.msra.mxu0 %v2232
      %v2234 = vand.u32 %v357, 4294901760
      %v2235 = vsub.f32 %v357, %v2234
      %v2236 = vand.u32 %v2235, 4294901760
      %v2237 = vsub.f32 %v2235, %v2236
      %v2238 = vand.u32 %v2237, 4294901760
      %2239 = vmatpush.msra.mxu0 %v2238
      %v2240 = vand.u32 %v355, 4294901760
      %v2241 = vsub.f32 %v355, %v2240
      %v2242 = vand.u32 %v2241, 4294901760
      %v2243 = vsub.f32 %v2241, %v2242
      %v2244 = vand.u32 %v2243, 4294901760
      %2245 = vmatpush.msra.mxu0 %v2244
      %v2246 = vand.u32 %v353, 4294901760
      %v2247 = vsub.f32 %v353, %v2246
      %v2248 = vand.u32 %v2247, 4294901760
      %v2249 = vsub.f32 %v2247, %v2248
      %v2250 = vand.u32 %v2249, 4294901760
      %2251 = vmatpush.msra.mxu0 %v2250
      %v2252 = vand.u32 %v351, 4294901760
      %v2253 = vsub.f32 %v351, %v2252
      %v2254 = vand.u32 %v2253, 4294901760
      %v2255 = vsub.f32 %v2253, %v2254
      %v2256 = vand.u32 %v2255, 4294901760
      %2257 = vmatpush.msra.mxu0 %v2256
      %v2258 = vand.u32 %v349, 4294901760
      %v2259 = vsub.f32 %v349, %v2258
      %v2260 = vand.u32 %v2259, 4294901760
      %v2261 = vsub.f32 %v2259, %v2260
      %v2262 = vand.u32 %v2261, 4294901760
      %2263 = vmatpush.msra.mxu0 %v2262
      %v2264 = vand.u32 %v347, 4294901760
      %v2265 = vsub.f32 %v347, %v2264
      %v2266 = vand.u32 %v2265, 4294901760
      %v2267 = vsub.f32 %v2265, %v2266
      %v2268 = vand.u32 %v2267, 4294901760
      %2269 = vmatpush.msra.mxu0 %v2268
      %v2270 = vand.u32 %v345, 4294901760
      %v2271 = vsub.f32 %v345, %v2270
      %v2272 = vand.u32 %v2271, 4294901760
      %v2273 = vsub.f32 %v2271, %v2272
      %v2274 = vand.u32 %v2273, 4294901760
      %2275 = vmatpush.msra.mxu0 %v2274
      %v2276 = vand.u32 %v343, 4294901760
      %v2277 = vsub.f32 %v343, %v2276
      %v2278 = vand.u32 %v2277, 4294901760
      %v2279 = vsub.f32 %v2277, %v2278
      %v2280 = vand.u32 %v2279, 4294901760
      %2281 = vmatpush.msra.mxu0 %v2280
      %v2282 = vand.u32 %v341, 4294901760
      %v2283 = vsub.f32 %v341, %v2282
      %v2284 = vand.u32 %v2283, 4294901760
      %v2285 = vsub.f32 %v2283, %v2284
      %v2286 = vand.u32 %v2285, 4294901760
      %2287 = vmatpush.msra.mxu0 %v2286
      %v2288 = vand.u32 %v339, 4294901760
      %v2289 = vsub.f32 %v339, %v2288
      %v2290 = vand.u32 %v2289, 4294901760
      %v2291 = vsub.f32 %v2289, %v2290
      %v2292 = vand.u32 %v2291, 4294901760
      %2293 = vmatpush.msra.mxu0 %v2292
      %v2294 = vand.u32 %v337, 4294901760
      %v2295 = vsub.f32 %v337, %v2294
      %v2296 = vand.u32 %v2295, 4294901760
      %v2297 = vsub.f32 %v2295, %v2296
      %v2298 = vand.u32 %v2297, 4294901760
      %2299 = vmatpush.msra.mxu0 %v2298
      %v2300 = vand.u32 %v335, 4294901760
      %v2301 = vsub.f32 %v335, %v2300
      %v2302 = vand.u32 %v2301, 4294901760
      %v2303 = vsub.f32 %v2301, %v2302
      %v2304 = vand.u32 %v2303, 4294901760
      %2305 = vmatpush.msra.mxu0 %v2304
      %v2306 = vand.u32 %v333, 4294901760
      %v2307 = vsub.f32 %v333, %v2306
      %v2308 = vand.u32 %v2307, 4294901760
      %v2309 = vsub.f32 %v2307, %v2308
      %v2310 = vand.u32 %v2309, 4294901760
      %2311 = vmatpush.msra.mxu0 %v2310
      %v2312 = vand.u32 %v376, 4294901760
      %2313 = vmatmul.f32.gmra.mxu0 %v2312
      %v2314 = vpop.f32.mrf.mxu0
      %v2315 = vadd.f32 %v2158, %v2314
      %v2316 = vand.u32 %v381, 4294901760
      %2317 = vmatmul.f32.gmra.mxu0 %v2316
      %v2318 = vpop.f32.mrf.mxu0
      %v2319 = vadd.f32 %v2166, %v2318
      %v2320 = vand.u32 %v386, 4294901760
      %2321 = vmatmul.f32.gmra.mxu0 %v2320
      %v2322 = vpop.f32.mrf.mxu0
      %v2323 = vadd.f32 %v2174, %v2322
      %v2324 = vand.u32 %v391, 4294901760
      %2325 = vmatmul.f32.gmra.mxu0 %v2324
      %v2326 = vpop.f32.mrf.mxu0
      %v2327 = vadd.f32 %v2182, %v2326
      %v2328 = vand.u32 %v396, 4294901760
      %2329 = vmatmul.f32.gmra.mxu0 %v2328
      %v2330 = vpop.f32.mrf.mxu0
      %v2331 = vadd.f32 %v2190, %v2330
      %v2332 = vand.u32 %v401, 4294901760
      %2333 = vmatmul.f32.gmra.mxu0 %v2332
      %v2334 = vpop.f32.mrf.mxu0
      %v2335 = vadd.f32 %v2198, %v2334
      %v2336 = vand.u32 %v406, 4294901760
      %2337 = vmatmul.f32.gmra.mxu0 %v2336
      %v2338 = vpop.f32.mrf.mxu0
      %v2339 = vadd.f32 %v2206, %v2338
      %v2340 = vand.u32 %v411, 4294901760
      %2341 = vmatmul.f32.gmra.mxu0 %v2340
      %v2342 = vpop.f32.mrf.mxu0
      %v2343 = vadd.f32 %v2214, %v2342
      %2344 = vdwg.mxu0
      %v2345 = vand.u32 %v363, 4294901760
      %v2346 = vsub.f32 %v363, %v2345
      %2347 = vmatpush.msra.mxu0 %v2346
      %v2348 = vand.u32 %v361, 4294901760
      %v2349 = vsub.f32 %v361, %v2348
      %2350 = vmatpush.msra.mxu0 %v2349
      %v2351 = vand.u32 %v359, 4294901760
      %v2352 = vsub.f32 %v359, %v2351
      %2353 = vmatpush.msra.mxu0 %v2352
      %v2354 = vand.u32 %v357, 4294901760
      %v2355 = vsub.f32 %v357, %v2354
      %2356 = vmatpush.msra.mxu0 %v2355
      %v2357 = vand.u32 %v355, 4294901760
      %v2358 = vsub.f32 %v355, %v2357
      %2359 = vmatpush.msra.mxu0 %v2358
      %v2360 = vand.u32 %v353, 4294901760
      %v2361 = vsub.f32 %v353, %v2360
      %2362 = vmatpush.msra.mxu0 %v2361
      %v2363 = vand.u32 %v351, 4294901760
      %v2364 = vsub.f32 %v351, %v2363
      %2365 = vmatpush.msra.mxu0 %v2364
      %v2366 = vand.u32 %v349, 4294901760
      %v2367 = vsub.f32 %v349, %v2366
      %2368 = vmatpush.msra.mxu0 %v2367
      %v2369 = vand.u32 %v347, 4294901760
      %v2370 = vsub.f32 %v347, %v2369
      %2371 = vmatpush.msra.mxu0 %v2370
      %v2372 = vand.u32 %v345, 4294901760
      %v2373 = vsub.f32 %v345, %v2372
      %2374 = vmatpush.msra.mxu0 %v2373
      %v2375 = vand.u32 %v343, 4294901760
      %v2376 = vsub.f32 %v343, %v2375
      %2377 = vmatpush.msra.mxu0 %v2376
      %v2378 = vand.u32 %v341, 4294901760
      %v2379 = vsub.f32 %v341, %v2378
      %2380 = vmatpush.msra.mxu0 %v2379
      %v2381 = vand.u32 %v339, 4294901760
      %v2382 = vsub.f32 %v339, %v2381
      %2383 = vmatpush.msra.mxu0 %v2382
      %v2384 = vand.u32 %v337, 4294901760
      %v2385 = vsub.f32 %v337, %v2384
      %2386 = vmatpush.msra.mxu0 %v2385
      %v2387 = vand.u32 %v335, 4294901760
      %v2388 = vsub.f32 %v335, %v2387
      %2389 = vmatpush.msra.mxu0 %v2388
      %v2390 = vand.u32 %v333, 4294901760
      %v2391 = vsub.f32 %v333, %v2390
      %2392 = vmatpush.msra.mxu0 %v2391
      %v2393 = vand.u32 %v376, 4294901760
      %v2394 = vsub.f32 %v376, %v2393
      %2395 = vmatmul.f32.gmra.mxu0 %v2394
      %v2396 = vpop.f32.mrf.mxu0
      %v2397 = vadd.f32 %v2315, %v2396
      %v2398 = vand.u32 %v381, 4294901760
      %v2399 = vsub.f32 %v381, %v2398
      %2400 = vmatmul.f32.gmra.mxu0 %v2399
      %v2401 = vpop.f32.mrf.mxu0
      %v2402 = vadd.f32 %v2319, %v2401
      %v2403 = vand.u32 %v386, 4294901760
      %v2404 = vsub.f32 %v386, %v2403
      %2405 = vmatmul.f32.gmra.mxu0 %v2404
      %v2406 = vpop.f32.mrf.mxu0
      %v2407 = vadd.f32 %v2323, %v2406
      %v2408 = vand.u32 %v391, 4294901760
      %v2409 = vsub.f32 %v391, %v2408
      %2410 = vmatmul.f32.gmra.mxu0 %v2409
      %v2411 = vpop.f32.mrf.mxu0
      %v2412 = vadd.f32 %v2327, %v2411
      %v2413 = vand.u32 %v396, 4294901760
      %v2414 = vsub.f32 %v396, %v2413
      %2415 = vmatmul.f32.gmra.mxu0 %v2414
      %v2416 = vpop.f32.mrf.mxu0
      %v2417 = vadd.f32 %v2331, %v2416
      %v2418 = vand.u32 %v401, 4294901760
      %v2419 = vsub.f32 %v401, %v2418
      %2420 = vmatmul.f32.gmra.mxu0 %v2419
      %v2421 = vpop.f32.mrf.mxu0
      %v2422 = vadd.f32 %v2335, %v2421
      %v2423 = vand.u32 %v406, 4294901760
      %v2424 = vsub.f32 %v406, %v2423
      %2425 = vmatmul.f32.gmra.mxu0 %v2424
      %v2426 = vpop.f32.mrf.mxu0
      %v2427 = vadd.f32 %v2339, %v2426
      %v2428 = vand.u32 %v411, 4294901760
      %v2429 = vsub.f32 %v411, %v2428
      %2430 = vmatmul.f32.gmra.mxu0 %v2429
      %v2431 = vpop.f32.mrf.mxu0
      %v2432 = vadd.f32 %v2343, %v2431
      %2433 = vdwg.mxu0
      %v2434 = vand.u32 %v363, 4294901760
      %2435 = vmatpush.msra.mxu0 %v2434
      %v2436 = vand.u32 %v361, 4294901760
      %2437 = vmatpush.msra.mxu0 %v2436
      %v2438 = vand.u32 %v359, 4294901760
      %2439 = vmatpush.msra.mxu0 %v2438
      %v2440 = vand.u32 %v357, 4294901760
      %2441 = vmatpush.msra.mxu0 %v2440
      %v2442 = vand.u32 %v355, 4294901760
      %2443 = vmatpush.msra.mxu0 %v2442
      %v2444 = vand.u32 %v353, 4294901760
      %2445 = vmatpush.msra.mxu0 %v2444
      %v2446 = vand.u32 %v351, 4294901760
      %2447 = vmatpush.msra.mxu0 %v2446
      %v2448 = vand.u32 %v349, 4294901760
      %2449 = vmatpush.msra.mxu0 %v2448
      %v2450 = vand.u32 %v347, 4294901760
      %2451 = vmatpush.msra.mxu0 %v2450
      %v2452 = vand.u32 %v345, 4294901760
      %2453 = vmatpush.msra.mxu0 %v2452
      %v2454 = vand.u32 %v343, 4294901760
      %2455 = vmatpush.msra.mxu0 %v2454
      %v2456 = vand.u32 %v341, 4294901760
      %2457 = vmatpush.msra.mxu0 %v2456
      %v2458 = vand.u32 %v339, 4294901760
      %2459 = vmatpush.msra.mxu0 %v2458
      %v2460 = vand.u32 %v337, 4294901760
      %2461 = vmatpush.msra.mxu0 %v2460
      %v2462 = vand.u32 %v335, 4294901760
      %2463 = vmatpush.msra.mxu0 %v2462
      %v2464 = vand.u32 %v333, 4294901760
      %2465 = vmatpush.msra.mxu0 %v2464
      %v2466 = vand.u32 %v376, 4294901760
      %v2467 = vsub.f32 %v376, %v2466
      %v2468 = vand.u32 %v2467, 4294901760
      %2469 = vmatmul.f32.gmra.mxu0 %v2468
      %v2470 = vpop.f32.mrf.mxu0
      %v2471 = vadd.f32 %v2397, %v2470
      %v2472 = vand.u32 %v381, 4294901760
      %v2473 = vsub.f32 %v381, %v2472
      %v2474 = vand.u32 %v2473, 4294901760
      %2475 = vmatmul.f32.gmra.mxu0 %v2474
      %v2476 = vpop.f32.mrf.mxu0
      %v2477 = vadd.f32 %v2402, %v2476
      %v2478 = vand.u32 %v386, 4294901760
      %v2479 = vsub.f32 %v386, %v2478
      %v2480 = vand.u32 %v2479, 4294901760
      %2481 = vmatmul.f32.gmra.mxu0 %v2480
      %v2482 = vpop.f32.mrf.mxu0
      %v2483 = vadd.f32 %v2407, %v2482
      %v2484 = vand.u32 %v391, 4294901760
      %v2485 = vsub.f32 %v391, %v2484
      %v2486 = vand.u32 %v2485, 4294901760
      %2487 = vmatmul.f32.gmra.mxu0 %v2486
      %v2488 = vpop.f32.mrf.mxu0
      %v2489 = vadd.f32 %v2412, %v2488
      %v2490 = vand.u32 %v396, 4294901760
      %v2491 = vsub.f32 %v396, %v2490
      %v2492 = vand.u32 %v2491, 4294901760
      %2493 = vmatmul.f32.gmra.mxu0 %v2492
      %v2494 = vpop.f32.mrf.mxu0
      %v2495 = vadd.f32 %v2417, %v2494
      %v2496 = vand.u32 %v401, 4294901760
      %v2497 = vsub.f32 %v401, %v2496
      %v2498 = vand.u32 %v2497, 4294901760
      %2499 = vmatmul.f32.gmra.mxu0 %v2498
      %v2500 = vpop.f32.mrf.mxu0
      %v2501 = vadd.f32 %v2422, %v2500
      %v2502 = vand.u32 %v406, 4294901760
      %v2503 = vsub.f32 %v406, %v2502
      %v2504 = vand.u32 %v2503, 4294901760
      %2505 = vmatmul.f32.gmra.mxu0 %v2504
      %v2506 = vpop.f32.mrf.mxu0
      %v2507 = vadd.f32 %v2427, %v2506
      %v2508 = vand.u32 %v411, 4294901760
      %v2509 = vsub.f32 %v411, %v2508
      %v2510 = vand.u32 %v2509, 4294901760
      %2511 = vmatmul.f32.gmra.mxu0 %v2510
      %v2512 = vpop.f32.mrf.mxu0
      %v2513 = vadd.f32 %v2432, %v2512
      %2514 = vdwg.mxu0
      %v2515 = vand.u32 %v363, 4294901760
      %v2516 = vsub.f32 %v363, %v2515
      %v2517 = vand.u32 %v2516, 4294901760
      %2518 = vmatpush.msra.mxu0 %v2517
      %v2519 = vand.u32 %v361, 4294901760
      %v2520 = vsub.f32 %v361, %v2519
      %v2521 = vand.u32 %v2520, 4294901760
      %2522 = vmatpush.msra.mxu0 %v2521
      %v2523 = vand.u32 %v359, 4294901760
      %v2524 = vsub.f32 %v359, %v2523
      %v2525 = vand.u32 %v2524, 4294901760
      %2526 = vmatpush.msra.mxu0 %v2525
      %v2527 = vand.u32 %v357, 4294901760
      %v2528 = vsub.f32 %v357, %v2527
      %v2529 = vand.u32 %v2528, 4294901760
      %2530 = vmatpush.msra.mxu0 %v2529
      %v2531 = vand.u32 %v355, 4294901760
      %v2532 = vsub.f32 %v355, %v2531
      %v2533 = vand.u32 %v2532, 4294901760
      %2534 = vmatpush.msra.mxu0 %v2533
      %v2535 = vand.u32 %v353, 4294901760
      %v2536 = vsub.f32 %v353, %v2535
      %v2537 = vand.u32 %v2536, 4294901760
      %2538 = vmatpush.msra.mxu0 %v2537
      %v2539 = vand.u32 %v351, 4294901760
      %v2540 = vsub.f32 %v351, %v2539
      %v2541 = vand.u32 %v2540, 4294901760
      %2542 = vmatpush.msra.mxu0 %v2541
      %v2543 = vand.u32 %v349, 4294901760
      %v2544 = vsub.f32 %v349, %v2543
      %v2545 = vand.u32 %v2544, 4294901760
      %2546 = vmatpush.msra.mxu0 %v2545
      %v2547 = vand.u32 %v347, 4294901760
      %v2548 = vsub.f32 %v347, %v2547
      %v2549 = vand.u32 %v2548, 4294901760
      %2550 = vmatpush.msra.mxu0 %v2549
      %v2551 = vand.u32 %v345, 4294901760
      %v2552 = vsub.f32 %v345, %v2551
      %v2553 = vand.u32 %v2552, 4294901760
      %2554 = vmatpush.msra.mxu0 %v2553
      %v2555 = vand.u32 %v343, 4294901760
      %v2556 = vsub.f32 %v343, %v2555
      %v2557 = vand.u32 %v2556, 4294901760
      %2558 = vmatpush.msra.mxu0 %v2557
      %v2559 = vand.u32 %v341, 4294901760
      %v2560 = vsub.f32 %v341, %v2559
      %v2561 = vand.u32 %v2560, 4294901760
      %2562 = vmatpush.msra.mxu0 %v2561
      %v2563 = vand.u32 %v339, 4294901760
      %v2564 = vsub.f32 %v339, %v2563
      %v2565 = vand.u32 %v2564, 4294901760
      %2566 = vmatpush.msra.mxu0 %v2565
      %v2567 = vand.u32 %v337, 4294901760
      %v2568 = vsub.f32 %v337, %v2567
      %v2569 = vand.u32 %v2568, 4294901760
      %2570 = vmatpush.msra.mxu0 %v2569
      %v2571 = vand.u32 %v335, 4294901760
      %v2572 = vsub.f32 %v335, %v2571
      %v2573 = vand.u32 %v2572, 4294901760
      %2574 = vmatpush.msra.mxu0 %v2573
      %v2575 = vand.u32 %v333, 4294901760
      %v2576 = vsub.f32 %v333, %v2575
      %v2577 = vand.u32 %v2576, 4294901760
      %2578 = vmatpush.msra.mxu0 %v2577
      %v2579 = vand.u32 %v376, 4294901760
      %2580 = vmatmul.f32.gmra.mxu0 %v2579
      %v2581 = vpop.f32.mrf.mxu0
      %v2582 = vadd.f32 %v2471, %v2581
      %v2583 = vand.u32 %v381, 4294901760
      %2584 = vmatmul.f32.gmra.mxu0 %v2583
      %v2585 = vpop.f32.mrf.mxu0
      %v2586 = vadd.f32 %v2477, %v2585
      %v2587 = vand.u32 %v386, 4294901760
      %2588 = vmatmul.f32.gmra.mxu0 %v2587
      %v2589 = vpop.f32.mrf.mxu0
      %v2590 = vadd.f32 %v2483, %v2589
      %v2591 = vand.u32 %v391, 4294901760
      %2592 = vmatmul.f32.gmra.mxu0 %v2591
      %v2593 = vpop.f32.mrf.mxu0
      %v2594 = vadd.f32 %v2489, %v2593
      %v2595 = vand.u32 %v396, 4294901760
      %2596 = vmatmul.f32.gmra.mxu0 %v2595
      %v2597 = vpop.f32.mrf.mxu0
      %v2598 = vadd.f32 %v2495, %v2597
      %v2599 = vand.u32 %v401, 4294901760
      %2600 = vmatmul.f32.gmra.mxu0 %v2599
      %v2601 = vpop.f32.mrf.mxu0
      %v2602 = vadd.f32 %v2501, %v2601
      %v2603 = vand.u32 %v406, 4294901760
      %2604 = vmatmul.f32.gmra.mxu0 %v2603
      %v2605 = vpop.f32.mrf.mxu0
      %v2606 = vadd.f32 %v2507, %v2605
      %v2607 = vand.u32 %v411, 4294901760
      %2608 = vmatmul.f32.gmra.mxu0 %v2607
      %v2609 = vpop.f32.mrf.mxu0
      %v2610 = vadd.f32 %v2513, %v2609
      %2611 = vdwg.mxu0
      %v2612 = vand.u32 %v363, 4294901760
      %2613 = vmatpush.msra.mxu0 %v2612
      %v2614 = vand.u32 %v361, 4294901760
      %2615 = vmatpush.msra.mxu0 %v2614
      %v2616 = vand.u32 %v359, 4294901760
      %2617 = vmatpush.msra.mxu0 %v2616
      %v2618 = vand.u32 %v357, 4294901760
      %2619 = vmatpush.msra.mxu0 %v2618
      %v2620 = vand.u32 %v355, 4294901760
      %2621 = vmatpush.msra.mxu0 %v2620
      %v2622 = vand.u32 %v353, 4294901760
      %2623 = vmatpush.msra.mxu0 %v2622
      %v2624 = vand.u32 %v351, 4294901760
      %2625 = vmatpush.msra.mxu0 %v2624
      %v2626 = vand.u32 %v349, 4294901760
      %2627 = vmatpush.msra.mxu0 %v2626
      %v2628 = vand.u32 %v347, 4294901760
      %2629 = vmatpush.msra.mxu0 %v2628
      %v2630 = vand.u32 %v345, 4294901760
      %2631 = vmatpush.msra.mxu0 %v2630
      %v2632 = vand.u32 %v343, 4294901760
      %2633 = vmatpush.msra.mxu0 %v2632
      %v2634 = vand.u32 %v341, 4294901760
      %2635 = vmatpush.msra.mxu0 %v2634
      %v2636 = vand.u32 %v339, 4294901760
      %2637 = vmatpush.msra.mxu0 %v2636
      %v2638 = vand.u32 %v337, 4294901760
      %2639 = vmatpush.msra.mxu0 %v2638
      %v2640 = vand.u32 %v335, 4294901760
      %2641 = vmatpush.msra.mxu0 %v2640
      %v2642 = vand.u32 %v333, 4294901760
      %2643 = vmatpush.msra.mxu0 %v2642
      %v2644 = vand.u32 %v376, 4294901760
      %2645 = vmatmul.f32.gmra.mxu0 %v2644
      %v2646 = vpop.f32.mrf.mxu0
      %v2647 = vadd.f32 %v2582, %v2646
      %v2648 = vand.u32 %v381, 4294901760
      %2649 = vmatmul.f32.gmra.mxu0 %v2648
      %v2650 = vpop.f32.mrf.mxu0
      %v2651 = vadd.f32 %v2586, %v2650
      %v2652 = vand.u32 %v386, 4294901760
      %2653 = vmatmul.f32.gmra.mxu0 %v2652
      %v2654 = vpop.f32.mrf.mxu0
      %v2655 = vadd.f32 %v2590, %v2654
      %v2656 = vand.u32 %v391, 4294901760
      %2657 = vmatmul.f32.gmra.mxu0 %v2656
      %v2658 = vpop.f32.mrf.mxu0
      %v2659 = vadd.f32 %v2594, %v2658
      %v2660 = vand.u32 %v396, 4294901760
      %2661 = vmatmul.f32.gmra.mxu0 %v2660
      %v2662 = vpop.f32.mrf.mxu0
      %v2663 = vadd.f32 %v2598, %v2662
      %v2664 = vand.u32 %v401, 4294901760
      %2665 = vmatmul.f32.gmra.mxu0 %v2664
      %v2666 = vpop.f32.mrf.mxu0
      %v2667 = vadd.f32 %v2602, %v2666
      %v2668 = vand.u32 %v406, 4294901760
      %2669 = vmatmul.f32.gmra.mxu0 %v2668
      %v2670 = vpop.f32.mrf.mxu0
      %v2671 = vadd.f32 %v2606, %v2670
      %v2672 = vand.u32 %v411, 4294901760
      %2673 = vmatmul.f32.gmra.mxu0 %v2672
      %v2674 = vpop.f32.mrf.mxu0
      %v2675 = vadd.f32 %v2610, %v2674
      %2676 = vdwg.mxu0
      %2677 = vmatpush.msra.mxu0 0.0
      %2678 = vmatpush.msra.mxu0 0.0
      %2679 = vmatpush.msra.mxu0 0.0
      %2680 = vmatpush.msra.mxu0 0.0
      %2681 = vmatpush.msra.mxu0 0.0
      %2682 = vmatpush.msra.mxu0 0.0
      %2683 = vmatpush.msra.mxu0 0.0
      %2684 = vmatpush.msra.mxu0 0.0
      %2685 = vmatpush.msra.mxu0 0.0
      %2686 = vmatpush.msra.mxu0 0.0
      %2687 = vmatpush.msra.mxu0 0.0
      %2688 = vmatpush.msra.mxu0 0.0
      %v2689 = vand.u32 %v440, 4294901760
      %2690 = vmatpush.msra.mxu0 %v2689
      %v2691 = vand.u32 %v369, 4294901760
      %2692 = vmatpush.msra.mxu0 %v2691
      %v2693 = vand.u32 %v367, 4294901760
      %2694 = vmatpush.msra.mxu0 %v2693
      %v2695 = vand.u32 %v365, 4294901760
      %2696 = vmatpush.msra.mxu0 %v2695
      %v2697 = vand.u32 %v415, 4294901760
      %v2698 = vsub.f32 %v415, %v2697
      %v2699 = vand.u32 %v2698, 4294901760
      %v2700 = vsub.f32 %v2698, %v2699
      %v2701 = vand.u32 %v2700, 4294901760
      %2702 = vmatmul.f32.gmra.mxu0 %v2701
      %v2703 = vpop.f32.mrf.mxu0
      %v2704 = vadd.f32 %v2647, %v2703
      %v2705 = vand.u32 %v418, 4294901760
      %v2706 = vsub.f32 %v418, %v2705
      %v2707 = vand.u32 %v2706, 4294901760
      %v2708 = vsub.f32 %v2706, %v2707
      %v2709 = vand.u32 %v2708, 4294901760
      %2710 = vmatmul.f32.gmra.mxu0 %v2709
      %v2711 = vpop.f32.mrf.mxu0
      %v2712 = vadd.f32 %v2651, %v2711
      %v2713 = vand.u32 %v421, 4294901760
      %v2714 = vsub.f32 %v421, %v2713
      %v2715 = vand.u32 %v2714, 4294901760
      %v2716 = vsub.f32 %v2714, %v2715
      %v2717 = vand.u32 %v2716, 4294901760
      %2718 = vmatmul.f32.gmra.mxu0 %v2717
      %v2719 = vpop.f32.mrf.mxu0
      %v2720 = vadd.f32 %v2655, %v2719
      %v2721 = vand.u32 %v424, 4294901760
      %v2722 = vsub.f32 %v424, %v2721
      %v2723 = vand.u32 %v2722, 4294901760
      %v2724 = vsub.f32 %v2722, %v2723
      %v2725 = vand.u32 %v2724, 4294901760
      %2726 = vmatmul.f32.gmra.mxu0 %v2725
      %v2727 = vpop.f32.mrf.mxu0
      %v2728 = vadd.f32 %v2659, %v2727
      %v2729 = vand.u32 %v427, 4294901760
      %v2730 = vsub.f32 %v427, %v2729
      %v2731 = vand.u32 %v2730, 4294901760
      %v2732 = vsub.f32 %v2730, %v2731
      %v2733 = vand.u32 %v2732, 4294901760
      %2734 = vmatmul.f32.gmra.mxu0 %v2733
      %v2735 = vpop.f32.mrf.mxu0
      %v2736 = vadd.f32 %v2663, %v2735
      %v2737 = vand.u32 %v430, 4294901760
      %v2738 = vsub.f32 %v430, %v2737
      %v2739 = vand.u32 %v2738, 4294901760
      %v2740 = vsub.f32 %v2738, %v2739
      %v2741 = vand.u32 %v2740, 4294901760
      %2742 = vmatmul.f32.gmra.mxu0 %v2741
      %v2743 = vpop.f32.mrf.mxu0
      %v2744 = vadd.f32 %v2667, %v2743
      %v2745 = vand.u32 %v433, 4294901760
      %v2746 = vsub.f32 %v433, %v2745
      %v2747 = vand.u32 %v2746, 4294901760
      %v2748 = vsub.f32 %v2746, %v2747
      %v2749 = vand.u32 %v2748, 4294901760
      %2750 = vmatmul.f32.gmra.mxu0 %v2749
      %v2751 = vpop.f32.mrf.mxu0
      %v2752 = vadd.f32 %v2671, %v2751
      %v2753 = vand.u32 %v436, 4294901760
      %v2754 = vsub.f32 %v436, %v2753
      %v2755 = vand.u32 %v2754, 4294901760
      %v2756 = vsub.f32 %v2754, %v2755
      %v2757 = vand.u32 %v2756, 4294901760
      %2758 = vmatmul.f32.gmra.mxu0 %v2757
      %v2759 = vpop.f32.mrf.mxu0
      %v2760 = vadd.f32 %v2675, %v2759
      %2761 = vdwg.mxu0
      %2762 = vmatpush.msra.mxu0 0.0
      %2763 = vmatpush.msra.mxu0 0.0
      %2764 = vmatpush.msra.mxu0 0.0
      %2765 = vmatpush.msra.mxu0 0.0
      %2766 = vmatpush.msra.mxu0 0.0
      %2767 = vmatpush.msra.mxu0 0.0
      %2768 = vmatpush.msra.mxu0 0.0
      %2769 = vmatpush.msra.mxu0 0.0
      %2770 = vmatpush.msra.mxu0 0.0
      %2771 = vmatpush.msra.mxu0 0.0
      %2772 = vmatpush.msra.mxu0 0.0
      %2773 = vmatpush.msra.mxu0 0.0
      %v2774 = vand.u32 %v440, 4294901760
      %v2775 = vsub.f32 %v440, %v2774
      %v2776 = vand.u32 %v2775, 4294901760
      %v2777 = vsub.f32 %v2775, %v2776
      %v2778 = vand.u32 %v2777, 4294901760
      %2779 = vmatpush.msra.mxu0 %v2778
      %v2780 = vand.u32 %v369, 4294901760
      %v2781 = vsub.f32 %v369, %v2780
      %v2782 = vand.u32 %v2781, 4294901760
      %v2783 = vsub.f32 %v2781, %v2782
      %v2784 = vand.u32 %v2783, 4294901760
      %2785 = vmatpush.msra.mxu0 %v2784
      %v2786 = vand.u32 %v367, 4294901760
      %v2787 = vsub.f32 %v367, %v2786
      %v2788 = vand.u32 %v2787, 4294901760
      %v2789 = vsub.f32 %v2787, %v2788
      %v2790 = vand.u32 %v2789, 4294901760
      %2791 = vmatpush.msra.mxu0 %v2790
      %v2792 = vand.u32 %v365, 4294901760
      %v2793 = vsub.f32 %v365, %v2792
      %v2794 = vand.u32 %v2793, 4294901760
      %v2795 = vsub.f32 %v2793, %v2794
      %v2796 = vand.u32 %v2795, 4294901760
      %2797 = vmatpush.msra.mxu0 %v2796
      %v2798 = vand.u32 %v415, 4294901760
      %2799 = vmatmul.f32.gmra.mxu0 %v2798
      %v2800 = vpop.f32.mrf.mxu0
      %v2801 = vadd.f32 %v2704, %v2800
      %v2802 = vand.u32 %v418, 4294901760
      %2803 = vmatmul.f32.gmra.mxu0 %v2802
      %v2804 = vpop.f32.mrf.mxu0
      %v2805 = vadd.f32 %v2712, %v2804
      %v2806 = vand.u32 %v421, 4294901760
      %2807 = vmatmul.f32.gmra.mxu0 %v2806
      %v2808 = vpop.f32.mrf.mxu0
      %v2809 = vadd.f32 %v2720, %v2808
      %v2810 = vand.u32 %v424, 4294901760
      %2811 = vmatmul.f32.gmra.mxu0 %v2810
      %v2812 = vpop.f32.mrf.mxu0
      %v2813 = vadd.f32 %v2728, %v2812
      %v2814 = vand.u32 %v427, 4294901760
      %2815 = vmatmul.f32.gmra.mxu0 %v2814
      %v2816 = vpop.f32.mrf.mxu0
      %v2817 = vadd.f32 %v2736, %v2816
      %v2818 = vand.u32 %v430, 4294901760
      %2819 = vmatmul.f32.gmra.mxu0 %v2818
      %v2820 = vpop.f32.mrf.mxu0
      %v2821 = vadd.f32 %v2744, %v2820
      %v2822 = vand.u32 %v433, 4294901760
      %2823 = vmatmul.f32.gmra.mxu0 %v2822
      %v2824 = vpop.f32.mrf.mxu0
      %v2825 = vadd.f32 %v2752, %v2824
      %v2826 = vand.u32 %v436, 4294901760
      %2827 = vmatmul.f32.gmra.mxu0 %v2826
      %v2828 = vpop.f32.mrf.mxu0
      %v2829 = vadd.f32 %v2760, %v2828
      %2830 = vdwg.mxu0
      %2831 = vmatpush.msra.mxu0 0.0
      %2832 = vmatpush.msra.mxu0 0.0
      %2833 = vmatpush.msra.mxu0 0.0
      %2834 = vmatpush.msra.mxu0 0.0
      %2835 = vmatpush.msra.mxu0 0.0
      %2836 = vmatpush.msra.mxu0 0.0
      %2837 = vmatpush.msra.mxu0 0.0
      %2838 = vmatpush.msra.mxu0 0.0
      %2839 = vmatpush.msra.mxu0 0.0
      %2840 = vmatpush.msra.mxu0 0.0
      %2841 = vmatpush.msra.mxu0 0.0
      %2842 = vmatpush.msra.mxu0 0.0
      %v2843 = vand.u32 %v440, 4294901760
      %v2844 = vsub.f32 %v440, %v2843
      %2845 = vmatpush.msra.mxu0 %v2844
      %v2846 = vand.u32 %v369, 4294901760
      %v2847 = vsub.f32 %v369, %v2846
      %2848 = vmatpush.msra.mxu0 %v2847
      %v2849 = vand.u32 %v367, 4294901760
      %v2850 = vsub.f32 %v367, %v2849
      %2851 = vmatpush.msra.mxu0 %v2850
      %v2852 = vand.u32 %v365, 4294901760
      %v2853 = vsub.f32 %v365, %v2852
      %2854 = vmatpush.msra.mxu0 %v2853
      %v2855 = vand.u32 %v415, 4294901760
      %v2856 = vsub.f32 %v415, %v2855
      %2857 = vmatmul.f32.gmra.mxu0 %v2856
      %v2858 = vpop.f32.mrf.mxu0
      %v2859 = vadd.f32 %v2801, %v2858
      %v2860 = vand.u32 %v418, 4294901760
      %v2861 = vsub.f32 %v418, %v2860
      %2862 = vmatmul.f32.gmra.mxu0 %v2861
      %v2863 = vpop.f32.mrf.mxu0
      %v2864 = vadd.f32 %v2805, %v2863
      %v2865 = vand.u32 %v421, 4294901760
      %v2866 = vsub.f32 %v421, %v2865
      %2867 = vmatmul.f32.gmra.mxu0 %v2866
      %v2868 = vpop.f32.mrf.mxu0
      %v2869 = vadd.f32 %v2809, %v2868
      %v2870 = vand.u32 %v424, 4294901760
      %v2871 = vsub.f32 %v424, %v2870
      %2872 = vmatmul.f32.gmra.mxu0 %v2871
      %v2873 = vpop.f32.mrf.mxu0
      %v2874 = vadd.f32 %v2813, %v2873
      %v2875 = vand.u32 %v427, 4294901760
      %v2876 = vsub.f32 %v427, %v2875
      %2877 = vmatmul.f32.gmra.mxu0 %v2876
      %v2878 = vpop.f32.mrf.mxu0
      %v2879 = vadd.f32 %v2817, %v2878
      %v2880 = vand.u32 %v430, 4294901760
      %v2881 = vsub.f32 %v430, %v2880
      %2882 = vmatmul.f32.gmra.mxu0 %v2881
      %v2883 = vpop.f32.mrf.mxu0
      %v2884 = vadd.f32 %v2821, %v2883
      %v2885 = vand.u32 %v433, 4294901760
      %v2886 = vsub.f32 %v433, %v2885
      %2887 = vmatmul.f32.gmra.mxu0 %v2886
      %v2888 = vpop.f32.mrf.mxu0
      %v2889 = vadd.f32 %v2825, %v2888
      %v2890 = vand.u32 %v436, 4294901760
      %v2891 = vsub.f32 %v436, %v2890
      %2892 = vmatmul.f32.gmra.mxu0 %v2891
      %v2893 = vpop.f32.mrf.mxu0
      %v2894 = vadd.f32 %v2829, %v2893
      %2895 = vdwg.mxu0
      %2896 = vmatpush.msra.mxu0 0.0
      %2897 = vmatpush.msra.mxu0 0.0
      %2898 = vmatpush.msra.mxu0 0.0
      %2899 = vmatpush.msra.mxu0 0.0
      %2900 = vmatpush.msra.mxu0 0.0
      %2901 = vmatpush.msra.mxu0 0.0
      %2902 = vmatpush.msra.mxu0 0.0
      %2903 = vmatpush.msra.mxu0 0.0
      %2904 = vmatpush.msra.mxu0 0.0
      %2905 = vmatpush.msra.mxu0 0.0
      %2906 = vmatpush.msra.mxu0 0.0
      %2907 = vmatpush.msra.mxu0 0.0
      %v2908 = vand.u32 %v440, 4294901760
      %2909 = vmatpush.msra.mxu0 %v2908
      %v2910 = vand.u32 %v369, 4294901760
      %2911 = vmatpush.msra.mxu0 %v2910
      %v2912 = vand.u32 %v367, 4294901760
      %2913 = vmatpush.msra.mxu0 %v2912
      %v2914 = vand.u32 %v365, 4294901760
      %2915 = vmatpush.msra.mxu0 %v2914
      %v2916 = vand.u32 %v415, 4294901760
      %v2917 = vsub.f32 %v415, %v2916
      %v2918 = vand.u32 %v2917, 4294901760
      %2919 = vmatmul.f32.gmra.mxu0 %v2918
      %v2920 = vpop.f32.mrf.mxu0
      %v2921 = vadd.f32 %v2859, %v2920
      %v2922 = vand.u32 %v418, 4294901760
      %v2923 = vsub.f32 %v418, %v2922
      %v2924 = vand.u32 %v2923, 4294901760
      %2925 = vmatmul.f32.gmra.mxu0 %v2924
      %v2926 = vpop.f32.mrf.mxu0
      %v2927 = vadd.f32 %v2864, %v2926
      %v2928 = vand.u32 %v421, 4294901760
      %v2929 = vsub.f32 %v421, %v2928
      %v2930 = vand.u32 %v2929, 4294901760
      %2931 = vmatmul.f32.gmra.mxu0 %v2930
      %v2932 = vpop.f32.mrf.mxu0
      %v2933 = vadd.f32 %v2869, %v2932
      %v2934 = vand.u32 %v424, 4294901760
      %v2935 = vsub.f32 %v424, %v2934
      %v2936 = vand.u32 %v2935, 4294901760
      %2937 = vmatmul.f32.gmra.mxu0 %v2936
      %v2938 = vpop.f32.mrf.mxu0
      %v2939 = vadd.f32 %v2874, %v2938
      %v2940 = vand.u32 %v427, 4294901760
      %v2941 = vsub.f32 %v427, %v2940
      %v2942 = vand.u32 %v2941, 4294901760
      %2943 = vmatmul.f32.gmra.mxu0 %v2942
      %v2944 = vpop.f32.mrf.mxu0
      %v2945 = vadd.f32 %v2879, %v2944
      %v2946 = vand.u32 %v430, 4294901760
      %v2947 = vsub.f32 %v430, %v2946
      %v2948 = vand.u32 %v2947, 4294901760
      %2949 = vmatmul.f32.gmra.mxu0 %v2948
      %v2950 = vpop.f32.mrf.mxu0
      %v2951 = vadd.f32 %v2884, %v2950
      %v2952 = vand.u32 %v433, 4294901760
      %v2953 = vsub.f32 %v433, %v2952
      %v2954 = vand.u32 %v2953, 4294901760
      %2955 = vmatmul.f32.gmra.mxu0 %v2954
      %v2956 = vpop.f32.mrf.mxu0
      %v2957 = vadd.f32 %v2889, %v2956
      %v2958 = vand.u32 %v436, 4294901760
      %v2959 = vsub.f32 %v436, %v2958
      %v2960 = vand.u32 %v2959, 4294901760
      %2961 = vmatmul.f32.gmra.mxu0 %v2960
      %v2962 = vpop.f32.mrf.mxu0
      %v2963 = vadd.f32 %v2894, %v2962
      %2964 = vdwg.mxu0
      %2965 = vmatpush.msra.mxu0 0.0
      %2966 = vmatpush.msra.mxu0 0.0
      %2967 = vmatpush.msra.mxu0 0.0
      %2968 = vmatpush.msra.mxu0 0.0
      %2969 = vmatpush.msra.mxu0 0.0
      %2970 = vmatpush.msra.mxu0 0.0
      %2971 = vmatpush.msra.mxu0 0.0
      %2972 = vmatpush.msra.mxu0 0.0
      %2973 = vmatpush.msra.mxu0 0.0
      %2974 = vmatpush.msra.mxu0 0.0
      %2975 = vmatpush.msra.mxu0 0.0
      %2976 = vmatpush.msra.mxu0 0.0
      %v2977 = vand.u32 %v440, 4294901760
      %v2978 = vsub.f32 %v440, %v2977
      %v2979 = vand.u32 %v2978, 4294901760
      %2980 = vmatpush.msra.mxu0 %v2979
      %v2981 = vand.u32 %v369, 4294901760
      %v2982 = vsub.f32 %v369, %v2981
      %v2983 = vand.u32 %v2982, 4294901760
      %2984 = vmatpush.msra.mxu0 %v2983
      %v2985 = vand.u32 %v367, 4294901760
      %v2986 = vsub.f32 %v367, %v2985
      %v2987 = vand.u32 %v2986, 4294901760
      %2988 = vmatpush.msra.mxu0 %v2987
      %v2989 = vand.u32 %v365, 4294901760
      %v2990 = vsub.f32 %v365, %v2989
      %v2991 = vand.u32 %v2990, 4294901760
      %2992 = vmatpush.msra.mxu0 %v2991
      %v2993 = vand.u32 %v415, 4294901760
      %2994 = vmatmul.f32.gmra.mxu0 %v2993
      %v2995 = vpop.f32.mrf.mxu0
      %v2996 = vadd.f32 %v2921, %v2995
      %v2997 = vand.u32 %v418, 4294901760
      %2998 = vmatmul.f32.gmra.mxu0 %v2997
      %v2999 = vpop.f32.mrf.mxu0
      %v3000 = vadd.f32 %v2927, %v2999
      %v3001 = vand.u32 %v421, 4294901760
      %3002 = vmatmul.f32.gmra.mxu0 %v3001
      %v3003 = vpop.f32.mrf.mxu0
      %v3004 = vadd.f32 %v2933, %v3003
      %v3005 = vand.u32 %v424, 4294901760
      %3006 = vmatmul.f32.gmra.mxu0 %v3005
      %v3007 = vpop.f32.mrf.mxu0
      %v3008 = vadd.f32 %v2939, %v3007
      %v3009 = vand.u32 %v427, 4294901760
      %3010 = vmatmul.f32.gmra.mxu0 %v3009
      %v3011 = vpop.f32.mrf.mxu0
      %v3012 = vadd.f32 %v2945, %v3011
      %v3013 = vand.u32 %v430, 4294901760
      %3014 = vmatmul.f32.gmra.mxu0 %v3013
      %v3015 = vpop.f32.mrf.mxu0
      %v3016 = vadd.f32 %v2951, %v3015
      %v3017 = vand.u32 %v433, 4294901760
      %3018 = vmatmul.f32.gmra.mxu0 %v3017
      %v3019 = vpop.f32.mrf.mxu0
      %v3020 = vadd.f32 %v2957, %v3019
      %v3021 = vand.u32 %v436, 4294901760
      %3022 = vmatmul.f32.gmra.mxu0 %v3021
      %v3023 = vpop.f32.mrf.mxu0
      %v3024 = vadd.f32 %v2963, %v3023
      %3025 = vdwg.mxu0
      %3026 = vmatpush.msra.mxu0 0.0
      %3027 = vmatpush.msra.mxu0 0.0
      %3028 = vmatpush.msra.mxu0 0.0
      %3029 = vmatpush.msra.mxu0 0.0
      %3030 = vmatpush.msra.mxu0 0.0
      %3031 = vmatpush.msra.mxu0 0.0
      %3032 = vmatpush.msra.mxu0 0.0
      %3033 = vmatpush.msra.mxu0 0.0
      %3034 = vmatpush.msra.mxu0 0.0
      %3035 = vmatpush.msra.mxu0 0.0
      %3036 = vmatpush.msra.mxu0 0.0
      %3037 = vmatpush.msra.mxu0 0.0
      %v3038 = vand.u32 %v440, 4294901760
      %3039 = vmatpush.msra.mxu0 %v3038
      %v3040 = vand.u32 %v369, 4294901760
      %3041 = vmatpush.msra.mxu0 %v3040
      %v3042 = vand.u32 %v367, 4294901760
      %3043 = vmatpush.msra.mxu0 %v3042
      %v3044 = vand.u32 %v365, 4294901760
      %3045 = vmatpush.msra.mxu0 %v3044
      %v3046 = vand.u32 %v415, 4294901760
      %3047 = vmatmul.f32.gmra.mxu0 %v3046
      %v3048 = vpop.f32.mrf.mxu0
      %v3049 = vadd.f32 %v2996, %v3048
      %v3050 = vand.u32 %v418, 4294901760
      %3051 = vmatmul.f32.gmra.mxu0 %v3050
      %v3052 = vpop.f32.mrf.mxu0
      %v3053 = vadd.f32 %v3000, %v3052
      %v3054 = vand.u32 %v421, 4294901760
      %3055 = vmatmul.f32.gmra.mxu0 %v3054
      %v3056 = vpop.f32.mrf.mxu0
      %v3057 = vadd.f32 %v3004, %v3056
      %v3058 = vand.u32 %v424, 4294901760
      %3059 = vmatmul.f32.gmra.mxu0 %v3058
      %v3060 = vpop.f32.mrf.mxu0
      %v3061 = vadd.f32 %v3008, %v3060
      %v3062 = vand.u32 %v427, 4294901760
      %3063 = vmatmul.f32.gmra.mxu0 %v3062
      %v3064 = vpop.f32.mrf.mxu0
      %v3065 = vadd.f32 %v3012, %v3064
      %v3066 = vand.u32 %v430, 4294901760
      %3067 = vmatmul.f32.gmra.mxu0 %v3066
      %v3068 = vpop.f32.mrf.mxu0
      %v3069 = vadd.f32 %v3016, %v3068
      %v3070 = vand.u32 %v433, 4294901760
      %3071 = vmatmul.f32.gmra.mxu0 %v3070
      %v3072 = vpop.f32.mrf.mxu0
      %v3073 = vadd.f32 %v3020, %v3072
      %v3074 = vand.u32 %v436, 4294901760
      %3075 = vmatmul.f32.gmra.mxu0 %v3074
      %v3076 = vpop.f32.mrf.mxu0
      %v3077 = vadd.f32 %v3024, %v3076
      %3078 = vdwg.mxu0
      %v3079 = vand.u32 %v268, 4294901760
      %3080 = vmatpush.msra.mxu0 %v3079
      %v3081 = vand.u32 %v266, 4294901760
      %3082 = vmatpush.msra.mxu0 %v3081
      %v3083 = vand.u32 %v264, 4294901760
      %3084 = vmatpush.msra.mxu0 %v3083
      %v3085 = vand.u32 %v262, 4294901760
      %3086 = vmatpush.msra.mxu0 %v3085
      %v3087 = vand.u32 %v260, 4294901760
      %3088 = vmatpush.msra.mxu0 %v3087
      %v3089 = vand.u32 %v258, 4294901760
      %3090 = vmatpush.msra.mxu0 %v3089
      %v3091 = vand.u32 %v256, 4294901760
      %3092 = vmatpush.msra.mxu0 %v3091
      %v3093 = vand.u32 %v254, 4294901760
      %3094 = vmatpush.msra.mxu0 %v3093
      %v3095 = vand.u32 %v252, 4294901760
      %3096 = vmatpush.msra.mxu0 %v3095
      %v3097 = vand.u32 %v250, 4294901760
      %3098 = vmatpush.msra.mxu0 %v3097
      %v3099 = vand.u32 %v248, 4294901760
      %3100 = vmatpush.msra.mxu0 %v3099
      %v3101 = vand.u32 %v246, 4294901760
      %3102 = vmatpush.msra.mxu0 %v3101
      %v3103 = vand.u32 %v244, 4294901760
      %3104 = vmatpush.msra.mxu0 %v3103
      %v3105 = vand.u32 %v242, 4294901760
      %3106 = vmatpush.msra.mxu0 %v3105
      %v3107 = vand.u32 %v240, 4294901760
      %3108 = vmatpush.msra.mxu0 %v3107
      %v3109 = vand.u32 %v238, 4294901760
      %3110 = vmatpush.msra.mxu0 %v3109
      %v3111 = vand.u32 %v373, 4294901760
      %v3112 = vsub.f32 %v373, %v3111
      %v3113 = vand.u32 %v3112, 4294901760
      %v3114 = vsub.f32 %v3112, %v3113
      %v3115 = vand.u32 %v3114, 4294901760
      %3116 = vmatmul.f32.gmra.mxu0 %v3115
      %v3117 = vpop.f32.mrf.mxu0
      %v3118 = vadd.f32 0.0, %v3117
      %v3119 = vand.u32 %v378, 4294901760
      %v3120 = vsub.f32 %v378, %v3119
      %v3121 = vand.u32 %v3120, 4294901760
      %v3122 = vsub.f32 %v3120, %v3121
      %v3123 = vand.u32 %v3122, 4294901760
      %3124 = vmatmul.f32.gmra.mxu0 %v3123
      %v3125 = vpop.f32.mrf.mxu0
      %v3126 = vadd.f32 0.0, %v3125
      %v3127 = vand.u32 %v383, 4294901760
      %v3128 = vsub.f32 %v383, %v3127
      %v3129 = vand.u32 %v3128, 4294901760
      %v3130 = vsub.f32 %v3128, %v3129
      %v3131 = vand.u32 %v3130, 4294901760
      %3132 = vmatmul.f32.gmra.mxu0 %v3131
      %v3133 = vpop.f32.mrf.mxu0
      %v3134 = vadd.f32 0.0, %v3133
      %v3135 = vand.u32 %v388, 4294901760
      %v3136 = vsub.f32 %v388, %v3135
      %v3137 = vand.u32 %v3136, 4294901760
      %v3138 = vsub.f32 %v3136, %v3137
      %v3139 = vand.u32 %v3138, 4294901760
      %3140 = vmatmul.f32.gmra.mxu0 %v3139
      %v3141 = vpop.f32.mrf.mxu0
      %v3142 = vadd.f32 0.0, %v3141
      %v3143 = vand.u32 %v393, 4294901760
      %v3144 = vsub.f32 %v393, %v3143
      %v3145 = vand.u32 %v3144, 4294901760
      %v3146 = vsub.f32 %v3144, %v3145
      %v3147 = vand.u32 %v3146, 4294901760
      %3148 = vmatmul.f32.gmra.mxu0 %v3147
      %v3149 = vpop.f32.mrf.mxu0
      %v3150 = vadd.f32 0.0, %v3149
      %v3151 = vand.u32 %v398, 4294901760
      %v3152 = vsub.f32 %v398, %v3151
      %v3153 = vand.u32 %v3152, 4294901760
      %v3154 = vsub.f32 %v3152, %v3153
      %v3155 = vand.u32 %v3154, 4294901760
      %3156 = vmatmul.f32.gmra.mxu0 %v3155
      %v3157 = vpop.f32.mrf.mxu0
      %v3158 = vadd.f32 0.0, %v3157
      %v3159 = vand.u32 %v403, 4294901760
      %v3160 = vsub.f32 %v403, %v3159
      %v3161 = vand.u32 %v3160, 4294901760
      %v3162 = vsub.f32 %v3160, %v3161
      %v3163 = vand.u32 %v3162, 4294901760
      %3164 = vmatmul.f32.gmra.mxu0 %v3163
      %v3165 = vpop.f32.mrf.mxu0
      %v3166 = vadd.f32 0.0, %v3165
      %v3167 = vand.u32 %v408, 4294901760
      %v3168 = vsub.f32 %v408, %v3167
      %v3169 = vand.u32 %v3168, 4294901760
      %v3170 = vsub.f32 %v3168, %v3169
      %v3171 = vand.u32 %v3170, 4294901760
      %3172 = vmatmul.f32.gmra.mxu0 %v3171
      %v3173 = vpop.f32.mrf.mxu0
      %v3174 = vadd.f32 0.0, %v3173
      %3175 = vdwg.mxu0
      %v3176 = vand.u32 %v268, 4294901760
      %v3177 = vsub.f32 %v268, %v3176
      %v3178 = vand.u32 %v3177, 4294901760
      %v3179 = vsub.f32 %v3177, %v3178
      %v3180 = vand.u32 %v3179, 4294901760
      %3181 = vmatpush.msra.mxu0 %v3180
      %v3182 = vand.u32 %v266, 4294901760
      %v3183 = vsub.f32 %v266, %v3182
      %v3184 = vand.u32 %v3183, 4294901760
      %v3185 = vsub.f32 %v3183, %v3184
      %v3186 = vand.u32 %v3185, 4294901760
      %3187 = vmatpush.msra.mxu0 %v3186
      %v3188 = vand.u32 %v264, 4294901760
      %v3189 = vsub.f32 %v264, %v3188
      %v3190 = vand.u32 %v3189, 4294901760
      %v3191 = vsub.f32 %v3189, %v3190
      %v3192 = vand.u32 %v3191, 4294901760
      %3193 = vmatpush.msra.mxu0 %v3192
      %v3194 = vand.u32 %v262, 4294901760
      %v3195 = vsub.f32 %v262, %v3194
      %v3196 = vand.u32 %v3195, 4294901760
      %v3197 = vsub.f32 %v3195, %v3196
      %v3198 = vand.u32 %v3197, 4294901760
      %3199 = vmatpush.msra.mxu0 %v3198
      %v3200 = vand.u32 %v260, 4294901760
      %v3201 = vsub.f32 %v260, %v3200
      %v3202 = vand.u32 %v3201, 4294901760
      %v3203 = vsub.f32 %v3201, %v3202
      %v3204 = vand.u32 %v3203, 4294901760
      %3205 = vmatpush.msra.mxu0 %v3204
      %v3206 = vand.u32 %v258, 4294901760
      %v3207 = vsub.f32 %v258, %v3206
      %v3208 = vand.u32 %v3207, 4294901760
      %v3209 = vsub.f32 %v3207, %v3208
      %v3210 = vand.u32 %v3209, 4294901760
      %3211 = vmatpush.msra.mxu0 %v3210
      %v3212 = vand.u32 %v256, 4294901760
      %v3213 = vsub.f32 %v256, %v3212
      %v3214 = vand.u32 %v3213, 4294901760
      %v3215 = vsub.f32 %v3213, %v3214
      %v3216 = vand.u32 %v3215, 4294901760
      %3217 = vmatpush.msra.mxu0 %v3216
      %v3218 = vand.u32 %v254, 4294901760
      %v3219 = vsub.f32 %v254, %v3218
      %v3220 = vand.u32 %v3219, 4294901760
      %v3221 = vsub.f32 %v3219, %v3220
      %v3222 = vand.u32 %v3221, 4294901760
      %3223 = vmatpush.msra.mxu0 %v3222
      %v3224 = vand.u32 %v252, 4294901760
      %v3225 = vsub.f32 %v252, %v3224
      %v3226 = vand.u32 %v3225, 4294901760
      %v3227 = vsub.f32 %v3225, %v3226
      %v3228 = vand.u32 %v3227, 4294901760
      %3229 = vmatpush.msra.mxu0 %v3228
      %v3230 = vand.u32 %v250, 4294901760
      %v3231 = vsub.f32 %v250, %v3230
      %v3232 = vand.u32 %v3231, 4294901760
      %v3233 = vsub.f32 %v3231, %v3232
      %v3234 = vand.u32 %v3233, 4294901760
      %3235 = vmatpush.msra.mxu0 %v3234
      %v3236 = vand.u32 %v248, 4294901760
      %v3237 = vsub.f32 %v248, %v3236
      %v3238 = vand.u32 %v3237, 4294901760
      %v3239 = vsub.f32 %v3237, %v3238
      %v3240 = vand.u32 %v3239, 4294901760
      %3241 = vmatpush.msra.mxu0 %v3240
      %v3242 = vand.u32 %v246, 4294901760
      %v3243 = vsub.f32 %v246, %v3242
      %v3244 = vand.u32 %v3243, 4294901760
      %v3245 = vsub.f32 %v3243, %v3244
      %v3246 = vand.u32 %v3245, 4294901760
      %3247 = vmatpush.msra.mxu0 %v3246
      %v3248 = vand.u32 %v244, 4294901760
      %v3249 = vsub.f32 %v244, %v3248
      %v3250 = vand.u32 %v3249, 4294901760
      %v3251 = vsub.f32 %v3249, %v3250
      %v3252 = vand.u32 %v3251, 4294901760
      %3253 = vmatpush.msra.mxu0 %v3252
      %v3254 = vand.u32 %v242, 4294901760
      %v3255 = vsub.f32 %v242, %v3254
      %v3256 = vand.u32 %v3255, 4294901760
      %v3257 = vsub.f32 %v3255, %v3256
      %v3258 = vand.u32 %v3257, 4294901760
      %3259 = vmatpush.msra.mxu0 %v3258
      %v3260 = vand.u32 %v240, 4294901760
      %v3261 = vsub.f32 %v240, %v3260
      %v3262 = vand.u32 %v3261, 4294901760
      %v3263 = vsub.f32 %v3261, %v3262
      %v3264 = vand.u32 %v3263, 4294901760
      %3265 = vmatpush.msra.mxu0 %v3264
      %v3266 = vand.u32 %v238, 4294901760
      %v3267 = vsub.f32 %v238, %v3266
      %v3268 = vand.u32 %v3267, 4294901760
      %v3269 = vsub.f32 %v3267, %v3268
      %v3270 = vand.u32 %v3269, 4294901760
      %3271 = vmatpush.msra.mxu0 %v3270
      %v3272 = vand.u32 %v373, 4294901760
      %3273 = vmatmul.f32.gmra.mxu0 %v3272
      %v3274 = vpop.f32.mrf.mxu0
      %v3275 = vadd.f32 %v3118, %v3274
      %v3276 = vand.u32 %v378, 4294901760
      %3277 = vmatmul.f32.gmra.mxu0 %v3276
      %v3278 = vpop.f32.mrf.mxu0
      %v3279 = vadd.f32 %v3126, %v3278
      %v3280 = vand.u32 %v383, 4294901760
      %3281 = vmatmul.f32.gmra.mxu0 %v3280
      %v3282 = vpop.f32.mrf.mxu0
      %v3283 = vadd.f32 %v3134, %v3282
      %v3284 = vand.u32 %v388, 4294901760
      %3285 = vmatmul.f32.gmra.mxu0 %v3284
      %v3286 = vpop.f32.mrf.mxu0
      %v3287 = vadd.f32 %v3142, %v3286
      %v3288 = vand.u32 %v393, 4294901760
      %3289 = vmatmul.f32.gmra.mxu0 %v3288
      %v3290 = vpop.f32.mrf.mxu0
      %v3291 = vadd.f32 %v3150, %v3290
      %v3292 = vand.u32 %v398, 4294901760
      %3293 = vmatmul.f32.gmra.mxu0 %v3292
      %v3294 = vpop.f32.mrf.mxu0
      %v3295 = vadd.f32 %v3158, %v3294
      %v3296 = vand.u32 %v403, 4294901760
      %3297 = vmatmul.f32.gmra.mxu0 %v3296
      %v3298 = vpop.f32.mrf.mxu0
      %v3299 = vadd.f32 %v3166, %v3298
      %v3300 = vand.u32 %v408, 4294901760
      %3301 = vmatmul.f32.gmra.mxu0 %v3300
      %v3302 = vpop.f32.mrf.mxu0
      %v3303 = vadd.f32 %v3174, %v3302
      %3304 = vdwg.mxu0
      %v3305 = vand.u32 %v268, 4294901760
      %v3306 = vsub.f32 %v268, %v3305
      %3307 = vmatpush.msra.mxu0 %v3306
      %v3308 = vand.u32 %v266, 4294901760
      %v3309 = vsub.f32 %v266, %v3308
      %3310 = vmatpush.msra.mxu0 %v3309
      %v3311 = vand.u32 %v264, 4294901760
      %v3312 = vsub.f32 %v264, %v3311
      %3313 = vmatpush.msra.mxu0 %v3312
      %v3314 = vand.u32 %v262, 4294901760
      %v3315 = vsub.f32 %v262, %v3314
      %3316 = vmatpush.msra.mxu0 %v3315
      %v3317 = vand.u32 %v260, 4294901760
      %v3318 = vsub.f32 %v260, %v3317
      %3319 = vmatpush.msra.mxu0 %v3318
      %v3320 = vand.u32 %v258, 4294901760
      %v3321 = vsub.f32 %v258, %v3320
      %3322 = vmatpush.msra.mxu0 %v3321
      %v3323 = vand.u32 %v256, 4294901760
      %v3324 = vsub.f32 %v256, %v3323
      %3325 = vmatpush.msra.mxu0 %v3324
      %v3326 = vand.u32 %v254, 4294901760
      %v3327 = vsub.f32 %v254, %v3326
      %3328 = vmatpush.msra.mxu0 %v3327
      %v3329 = vand.u32 %v252, 4294901760
      %v3330 = vsub.f32 %v252, %v3329
      %3331 = vmatpush.msra.mxu0 %v3330
      %v3332 = vand.u32 %v250, 4294901760
      %v3333 = vsub.f32 %v250, %v3332
      %3334 = vmatpush.msra.mxu0 %v3333
      %v3335 = vand.u32 %v248, 4294901760
      %v3336 = vsub.f32 %v248, %v3335
      %3337 = vmatpush.msra.mxu0 %v3336
      %v3338 = vand.u32 %v246, 4294901760
      %v3339 = vsub.f32 %v246, %v3338
      %3340 = vmatpush.msra.mxu0 %v3339
      %v3341 = vand.u32 %v244, 4294901760
      %v3342 = vsub.f32 %v244, %v3341
      %3343 = vmatpush.msra.mxu0 %v3342
      %v3344 = vand.u32 %v242, 4294901760
      %v3345 = vsub.f32 %v242, %v3344
      %3346 = vmatpush.msra.mxu0 %v3345
      %v3347 = vand.u32 %v240, 4294901760
      %v3348 = vsub.f32 %v240, %v3347
      %3349 = vmatpush.msra.mxu0 %v3348
      %v3350 = vand.u32 %v238, 4294901760
      %v3351 = vsub.f32 %v238, %v3350
      %3352 = vmatpush.msra.mxu0 %v3351
      %v3353 = vand.u32 %v373, 4294901760
      %v3354 = vsub.f32 %v373, %v3353
      %3355 = vmatmul.f32.gmra.mxu0 %v3354
      %v3356 = vpop.f32.mrf.mxu0
      %v3357 = vadd.f32 %v3275, %v3356
      %v3358 = vand.u32 %v378, 4294901760
      %v3359 = vsub.f32 %v378, %v3358
      %3360 = vmatmul.f32.gmra.mxu0 %v3359
      %v3361 = vpop.f32.mrf.mxu0
      %v3362 = vadd.f32 %v3279, %v3361
      %v3363 = vand.u32 %v383, 4294901760
      %v3364 = vsub.f32 %v383, %v3363
      %3365 = vmatmul.f32.gmra.mxu0 %v3364
      %v3366 = vpop.f32.mrf.mxu0
      %v3367 = vadd.f32 %v3283, %v3366
      %v3368 = vand.u32 %v388, 4294901760
      %v3369 = vsub.f32 %v388, %v3368
      %3370 = vmatmul.f32.gmra.mxu0 %v3369
      %v3371 = vpop.f32.mrf.mxu0
      %v3372 = vadd.f32 %v3287, %v3371
      %v3373 = vand.u32 %v393, 4294901760
      %v3374 = vsub.f32 %v393, %v3373
      %3375 = vmatmul.f32.gmra.mxu0 %v3374
      %v3376 = vpop.f32.mrf.mxu0
      %v3377 = vadd.f32 %v3291, %v3376
      %v3378 = vand.u32 %v398, 4294901760
      %v3379 = vsub.f32 %v398, %v3378
      %3380 = vmatmul.f32.gmra.mxu0 %v3379
      %v3381 = vpop.f32.mrf.mxu0
      %v3382 = vadd.f32 %v3295, %v3381
      %v3383 = vand.u32 %v403, 4294901760
      %v3384 = vsub.f32 %v403, %v3383
      %3385 = vmatmul.f32.gmra.mxu0 %v3384
      %v3386 = vpop.f32.mrf.mxu0
      %v3387 = vadd.f32 %v3299, %v3386
      %v3388 = vand.u32 %v408, 4294901760
      %v3389 = vsub.f32 %v408, %v3388
      %3390 = vmatmul.f32.gmra.mxu0 %v3389
      %v3391 = vpop.f32.mrf.mxu0
      %v3392 = vadd.f32 %v3303, %v3391
      %3393 = vdwg.mxu0
      %v3394 = vand.u32 %v268, 4294901760
      %3395 = vmatpush.msra.mxu0 %v3394
      %v3396 = vand.u32 %v266, 4294901760
      %3397 = vmatpush.msra.mxu0 %v3396
      %v3398 = vand.u32 %v264, 4294901760
      %3399 = vmatpush.msra.mxu0 %v3398
      %v3400 = vand.u32 %v262, 4294901760
      %3401 = vmatpush.msra.mxu0 %v3400
      %v3402 = vand.u32 %v260, 4294901760
      %3403 = vmatpush.msra.mxu0 %v3402
      %v3404 = vand.u32 %v258, 4294901760
      %3405 = vmatpush.msra.mxu0 %v3404
      %v3406 = vand.u32 %v256, 4294901760
      %3407 = vmatpush.msra.mxu0 %v3406
      %v3408 = vand.u32 %v254, 4294901760
      %3409 = vmatpush.msra.mxu0 %v3408
      %v3410 = vand.u32 %v252, 4294901760
      %3411 = vmatpush.msra.mxu0 %v3410
      %v3412 = vand.u32 %v250, 4294901760
      %3413 = vmatpush.msra.mxu0 %v3412
      %v3414 = vand.u32 %v248, 4294901760
      %3415 = vmatpush.msra.mxu0 %v3414
      %v3416 = vand.u32 %v246, 4294901760
      %3417 = vmatpush.msra.mxu0 %v3416
      %v3418 = vand.u32 %v244, 4294901760
      %3419 = vmatpush.msra.mxu0 %v3418
      %v3420 = vand.u32 %v242, 4294901760
      %3421 = vmatpush.msra.mxu0 %v3420
      %v3422 = vand.u32 %v240, 4294901760
      %3423 = vmatpush.msra.mxu0 %v3422
      %v3424 = vand.u32 %v238, 4294901760
      %3425 = vmatpush.msra.mxu0 %v3424
      %v3426 = vand.u32 %v373, 4294901760
      %v3427 = vsub.f32 %v373, %v3426
      %v3428 = vand.u32 %v3427, 4294901760
      %3429 = vmatmul.f32.gmra.mxu0 %v3428
      %v3430 = vpop.f32.mrf.mxu0
      %v3431 = vadd.f32 %v3357, %v3430
      %v3432 = vand.u32 %v378, 4294901760
      %v3433 = vsub.f32 %v378, %v3432
      %v3434 = vand.u32 %v3433, 4294901760
      %3435 = vmatmul.f32.gmra.mxu0 %v3434
      %v3436 = vpop.f32.mrf.mxu0
      %v3437 = vadd.f32 %v3362, %v3436
      %v3438 = vand.u32 %v383, 4294901760
      %v3439 = vsub.f32 %v383, %v3438
      %v3440 = vand.u32 %v3439, 4294901760
      %3441 = vmatmul.f32.gmra.mxu0 %v3440
      %v3442 = vpop.f32.mrf.mxu0
      %v3443 = vadd.f32 %v3367, %v3442
      %v3444 = vand.u32 %v388, 4294901760
      %v3445 = vsub.f32 %v388, %v3444
      %v3446 = vand.u32 %v3445, 4294901760
      %3447 = vmatmul.f32.gmra.mxu0 %v3446
      %v3448 = vpop.f32.mrf.mxu0
      %v3449 = vadd.f32 %v3372, %v3448
      %v3450 = vand.u32 %v393, 4294901760
      %v3451 = vsub.f32 %v393, %v3450
      %v3452 = vand.u32 %v3451, 4294901760
      %3453 = vmatmul.f32.gmra.mxu0 %v3452
      %v3454 = vpop.f32.mrf.mxu0
      %v3455 = vadd.f32 %v3377, %v3454
      %v3456 = vand.u32 %v398, 4294901760
      %v3457 = vsub.f32 %v398, %v3456
      %v3458 = vand.u32 %v3457, 4294901760
      %3459 = vmatmul.f32.gmra.mxu0 %v3458
      %v3460 = vpop.f32.mrf.mxu0
      %v3461 = vadd.f32 %v3382, %v3460
      %v3462 = vand.u32 %v403, 4294901760
      %v3463 = vsub.f32 %v403, %v3462
      %v3464 = vand.u32 %v3463, 4294901760
      %3465 = vmatmul.f32.gmra.mxu0 %v3464
      %v3466 = vpop.f32.mrf.mxu0
      %v3467 = vadd.f32 %v3387, %v3466
      %v3468 = vand.u32 %v408, 4294901760
      %v3469 = vsub.f32 %v408, %v3468
      %v3470 = vand.u32 %v3469, 4294901760
      %3471 = vmatmul.f32.gmra.mxu0 %v3470
      %v3472 = vpop.f32.mrf.mxu0
      %v3473 = vadd.f32 %v3392, %v3472
      %3474 = vdwg.mxu0
      %v3475 = vand.u32 %v268, 4294901760
      %v3476 = vsub.f32 %v268, %v3475
      %v3477 = vand.u32 %v3476, 4294901760
      %3478 = vmatpush.msra.mxu0 %v3477
      %v3479 = vand.u32 %v266, 4294901760
      %v3480 = vsub.f32 %v266, %v3479
      %v3481 = vand.u32 %v3480, 4294901760
      %3482 = vmatpush.msra.mxu0 %v3481
      %v3483 = vand.u32 %v264, 4294901760
      %v3484 = vsub.f32 %v264, %v3483
      %v3485 = vand.u32 %v3484, 4294901760
      %3486 = vmatpush.msra.mxu0 %v3485
      %v3487 = vand.u32 %v262, 4294901760
      %v3488 = vsub.f32 %v262, %v3487
      %v3489 = vand.u32 %v3488, 4294901760
      %3490 = vmatpush.msra.mxu0 %v3489
      %v3491 = vand.u32 %v260, 4294901760
      %v3492 = vsub.f32 %v260, %v3491
      %v3493 = vand.u32 %v3492, 4294901760
      %3494 = vmatpush.msra.mxu0 %v3493
      %v3495 = vand.u32 %v258, 4294901760
      %v3496 = vsub.f32 %v258, %v3495
      %v3497 = vand.u32 %v3496, 4294901760
      %3498 = vmatpush.msra.mxu0 %v3497
      %v3499 = vand.u32 %v256, 4294901760
      %v3500 = vsub.f32 %v256, %v3499
      %v3501 = vand.u32 %v3500, 4294901760
      %3502 = vmatpush.msra.mxu0 %v3501
      %v3503 = vand.u32 %v254, 4294901760
      %v3504 = vsub.f32 %v254, %v3503
      %v3505 = vand.u32 %v3504, 4294901760
      %3506 = vmatpush.msra.mxu0 %v3505
      %v3507 = vand.u32 %v252, 4294901760
      %v3508 = vsub.f32 %v252, %v3507
      %v3509 = vand.u32 %v3508, 4294901760
      %3510 = vmatpush.msra.mxu0 %v3509
      %v3511 = vand.u32 %v250, 4294901760
      %v3512 = vsub.f32 %v250, %v3511
      %v3513 = vand.u32 %v3512, 4294901760
      %3514 = vmatpush.msra.mxu0 %v3513
      %v3515 = vand.u32 %v248, 4294901760
      %v3516 = vsub.f32 %v248, %v3515
      %v3517 = vand.u32 %v3516, 4294901760
      %3518 = vmatpush.msra.mxu0 %v3517
      %v3519 = vand.u32 %v246, 4294901760
      %v3520 = vsub.f32 %v246, %v3519
      %v3521 = vand.u32 %v3520, 4294901760
      %3522 = vmatpush.msra.mxu0 %v3521
      %v3523 = vand.u32 %v244, 4294901760
      %v3524 = vsub.f32 %v244, %v3523
      %v3525 = vand.u32 %v3524, 4294901760
      %3526 = vmatpush.msra.mxu0 %v3525
      %v3527 = vand.u32 %v242, 4294901760
      %v3528 = vsub.f32 %v242, %v3527
      %v3529 = vand.u32 %v3528, 4294901760
      %3530 = vmatpush.msra.mxu0 %v3529
      %v3531 = vand.u32 %v240, 4294901760
      %v3532 = vsub.f32 %v240, %v3531
      %v3533 = vand.u32 %v3532, 4294901760
      %3534 = vmatpush.msra.mxu0 %v3533
      %v3535 = vand.u32 %v238, 4294901760
      %v3536 = vsub.f32 %v238, %v3535
      %v3537 = vand.u32 %v3536, 4294901760
      %3538 = vmatpush.msra.mxu0 %v3537
      %v3539 = vand.u32 %v373, 4294901760
      %3540 = vmatmul.f32.gmra.mxu0 %v3539
      %v3541 = vpop.f32.mrf.mxu0
      %v3542 = vadd.f32 %v3431, %v3541
      %v3543 = vand.u32 %v378, 4294901760
      %3544 = vmatmul.f32.gmra.mxu0 %v3543
      %v3545 = vpop.f32.mrf.mxu0
      %v3546 = vadd.f32 %v3437, %v3545
      %v3547 = vand.u32 %v383, 4294901760
      %3548 = vmatmul.f32.gmra.mxu0 %v3547
      %v3549 = vpop.f32.mrf.mxu0
      %v3550 = vadd.f32 %v3443, %v3549
      %v3551 = vand.u32 %v388, 4294901760
      %3552 = vmatmul.f32.gmra.mxu0 %v3551
      %v3553 = vpop.f32.mrf.mxu0
      %v3554 = vadd.f32 %v3449, %v3553
      %v3555 = vand.u32 %v393, 4294901760
      %3556 = vmatmul.f32.gmra.mxu0 %v3555
      %v3557 = vpop.f32.mrf.mxu0
      %v3558 = vadd.f32 %v3455, %v3557
      %v3559 = vand.u32 %v398, 4294901760
      %3560 = vmatmul.f32.gmra.mxu0 %v3559
      %v3561 = vpop.f32.mrf.mxu0
      %v3562 = vadd.f32 %v3461, %v3561
      %v3563 = vand.u32 %v403, 4294901760
      %3564 = vmatmul.f32.gmra.mxu0 %v3563
      %v3565 = vpop.f32.mrf.mxu0
      %v3566 = vadd.f32 %v3467, %v3565
      %v3567 = vand.u32 %v408, 4294901760
      %3568 = vmatmul.f32.gmra.mxu0 %v3567
      %v3569 = vpop.f32.mrf.mxu0
      %v3570 = vadd.f32 %v3473, %v3569
      %3571 = vdwg.mxu0
      %v3572 = vand.u32 %v268, 4294901760
      %3573 = vmatpush.msra.mxu0 %v3572
      %v3574 = vand.u32 %v266, 4294901760
      %3575 = vmatpush.msra.mxu0 %v3574
      %v3576 = vand.u32 %v264, 4294901760
      %3577 = vmatpush.msra.mxu0 %v3576
      %v3578 = vand.u32 %v262, 4294901760
      %3579 = vmatpush.msra.mxu0 %v3578
      %v3580 = vand.u32 %v260, 4294901760
      %3581 = vmatpush.msra.mxu0 %v3580
      %v3582 = vand.u32 %v258, 4294901760
      %3583 = vmatpush.msra.mxu0 %v3582
      %v3584 = vand.u32 %v256, 4294901760
      %3585 = vmatpush.msra.mxu0 %v3584
      %v3586 = vand.u32 %v254, 4294901760
      %3587 = vmatpush.msra.mxu0 %v3586
      %v3588 = vand.u32 %v252, 4294901760
      %3589 = vmatpush.msra.mxu0 %v3588
      %v3590 = vand.u32 %v250, 4294901760
      %3591 = vmatpush.msra.mxu0 %v3590
      %v3592 = vand.u32 %v248, 4294901760
      %3593 = vmatpush.msra.mxu0 %v3592
      %v3594 = vand.u32 %v246, 4294901760
      %3595 = vmatpush.msra.mxu0 %v3594
      %v3596 = vand.u32 %v244, 4294901760
      %3597 = vmatpush.msra.mxu0 %v3596
      %v3598 = vand.u32 %v242, 4294901760
      %3599 = vmatpush.msra.mxu0 %v3598
      %v3600 = vand.u32 %v240, 4294901760
      %3601 = vmatpush.msra.mxu0 %v3600
      %v3602 = vand.u32 %v238, 4294901760
      %3603 = vmatpush.msra.mxu0 %v3602
      %v3604 = vand.u32 %v373, 4294901760
      %3605 = vmatmul.f32.gmra.mxu0 %v3604
      %v3606 = vpop.f32.mrf.mxu0
      %v3607 = vadd.f32 %v3542, %v3606
      %v3608 = vand.u32 %v378, 4294901760
      %3609 = vmatmul.f32.gmra.mxu0 %v3608
      %v3610 = vpop.f32.mrf.mxu0
      %v3611 = vadd.f32 %v3546, %v3610
      %v3612 = vand.u32 %v383, 4294901760
      %3613 = vmatmul.f32.gmra.mxu0 %v3612
      %v3614 = vpop.f32.mrf.mxu0
      %v3615 = vadd.f32 %v3550, %v3614
      %v3616 = vand.u32 %v388, 4294901760
      %3617 = vmatmul.f32.gmra.mxu0 %v3616
      %v3618 = vpop.f32.mrf.mxu0
      %v3619 = vadd.f32 %v3554, %v3618
      %v3620 = vand.u32 %v393, 4294901760
      %3621 = vmatmul.f32.gmra.mxu0 %v3620
      %v3622 = vpop.f32.mrf.mxu0
      %v3623 = vadd.f32 %v3558, %v3622
      %v3624 = vand.u32 %v398, 4294901760
      %3625 = vmatmul.f32.gmra.mxu0 %v3624
      %v3626 = vpop.f32.mrf.mxu0
      %v3627 = vadd.f32 %v3562, %v3626
      %v3628 = vand.u32 %v403, 4294901760
      %3629 = vmatmul.f32.gmra.mxu0 %v3628
      %v3630 = vpop.f32.mrf.mxu0
      %v3631 = vadd.f32 %v3566, %v3630
      %v3632 = vand.u32 %v408, 4294901760
      %3633 = vmatmul.f32.gmra.mxu0 %v3632
      %v3634 = vpop.f32.mrf.mxu0
      %v3635 = vadd.f32 %v3570, %v3634
      %3636 = vdwg.mxu0
      %v3637 = vand.u32 %v300, 4294901760
      %3638 = vmatpush.msra.mxu0 %v3637
      %v3639 = vand.u32 %v298, 4294901760
      %3640 = vmatpush.msra.mxu0 %v3639
      %v3641 = vand.u32 %v296, 4294901760
      %3642 = vmatpush.msra.mxu0 %v3641
      %v3643 = vand.u32 %v294, 4294901760
      %3644 = vmatpush.msra.mxu0 %v3643
      %v3645 = vand.u32 %v292, 4294901760
      %3646 = vmatpush.msra.mxu0 %v3645
      %v3647 = vand.u32 %v290, 4294901760
      %3648 = vmatpush.msra.mxu0 %v3647
      %v3649 = vand.u32 %v288, 4294901760
      %3650 = vmatpush.msra.mxu0 %v3649
      %v3651 = vand.u32 %v286, 4294901760
      %3652 = vmatpush.msra.mxu0 %v3651
      %v3653 = vand.u32 %v284, 4294901760
      %3654 = vmatpush.msra.mxu0 %v3653
      %v3655 = vand.u32 %v282, 4294901760
      %3656 = vmatpush.msra.mxu0 %v3655
      %v3657 = vand.u32 %v280, 4294901760
      %3658 = vmatpush.msra.mxu0 %v3657
      %v3659 = vand.u32 %v278, 4294901760
      %3660 = vmatpush.msra.mxu0 %v3659
      %v3661 = vand.u32 %v276, 4294901760
      %3662 = vmatpush.msra.mxu0 %v3661
      %v3663 = vand.u32 %v274, 4294901760
      %3664 = vmatpush.msra.mxu0 %v3663
      %v3665 = vand.u32 %v272, 4294901760
      %3666 = vmatpush.msra.mxu0 %v3665
      %v3667 = vand.u32 %v270, 4294901760
      %3668 = vmatpush.msra.mxu0 %v3667
      %v3669 = vand.u32 %v374, 4294901760
      %v3670 = vsub.f32 %v374, %v3669
      %v3671 = vand.u32 %v3670, 4294901760
      %v3672 = vsub.f32 %v3670, %v3671
      %v3673 = vand.u32 %v3672, 4294901760
      %3674 = vmatmul.f32.gmra.mxu0 %v3673
      %v3675 = vpop.f32.mrf.mxu0
      %v3676 = vadd.f32 %v3607, %v3675
      %v3677 = vand.u32 %v379, 4294901760
      %v3678 = vsub.f32 %v379, %v3677
      %v3679 = vand.u32 %v3678, 4294901760
      %v3680 = vsub.f32 %v3678, %v3679
      %v3681 = vand.u32 %v3680, 4294901760
      %3682 = vmatmul.f32.gmra.mxu0 %v3681
      %v3683 = vpop.f32.mrf.mxu0
      %v3684 = vadd.f32 %v3611, %v3683
      %v3685 = vand.u32 %v384, 4294901760
      %v3686 = vsub.f32 %v384, %v3685
      %v3687 = vand.u32 %v3686, 4294901760
      %v3688 = vsub.f32 %v3686, %v3687
      %v3689 = vand.u32 %v3688, 4294901760
      %3690 = vmatmul.f32.gmra.mxu0 %v3689
      %v3691 = vpop.f32.mrf.mxu0
      %v3692 = vadd.f32 %v3615, %v3691
      %v3693 = vand.u32 %v389, 4294901760
      %v3694 = vsub.f32 %v389, %v3693
      %v3695 = vand.u32 %v3694, 4294901760
      %v3696 = vsub.f32 %v3694, %v3695
      %v3697 = vand.u32 %v3696, 4294901760
      %3698 = vmatmul.f32.gmra.mxu0 %v3697
      %v3699 = vpop.f32.mrf.mxu0
      %v3700 = vadd.f32 %v3619, %v3699
      %v3701 = vand.u32 %v394, 4294901760
      %v3702 = vsub.f32 %v394, %v3701
      %v3703 = vand.u32 %v3702, 4294901760
      %v3704 = vsub.f32 %v3702, %v3703
      %v3705 = vand.u32 %v3704, 4294901760
      %3706 = vmatmul.f32.gmra.mxu0 %v3705
      %v3707 = vpop.f32.mrf.mxu0
      %v3708 = vadd.f32 %v3623, %v3707
      %v3709 = vand.u32 %v399, 4294901760
      %v3710 = vsub.f32 %v399, %v3709
      %v3711 = vand.u32 %v3710, 4294901760
      %v3712 = vsub.f32 %v3710, %v3711
      %v3713 = vand.u32 %v3712, 4294901760
      %3714 = vmatmul.f32.gmra.mxu0 %v3713
      %v3715 = vpop.f32.mrf.mxu0
      %v3716 = vadd.f32 %v3627, %v3715
      %v3717 = vand.u32 %v404, 4294901760
      %v3718 = vsub.f32 %v404, %v3717
      %v3719 = vand.u32 %v3718, 4294901760
      %v3720 = vsub.f32 %v3718, %v3719
      %v3721 = vand.u32 %v3720, 4294901760
      %3722 = vmatmul.f32.gmra.mxu0 %v3721
      %v3723 = vpop.f32.mrf.mxu0
      %v3724 = vadd.f32 %v3631, %v3723
      %v3725 = vand.u32 %v409, 4294901760
      %v3726 = vsub.f32 %v409, %v3725
      %v3727 = vand.u32 %v3726, 4294901760
      %v3728 = vsub.f32 %v3726, %v3727
      %v3729 = vand.u32 %v3728, 4294901760
      %3730 = vmatmul.f32.gmra.mxu0 %v3729
      %v3731 = vpop.f32.mrf.mxu0
      %v3732 = vadd.f32 %v3635, %v3731
      %3733 = vdwg.mxu0
      %v3734 = vand.u32 %v300, 4294901760
      %v3735 = vsub.f32 %v300, %v3734
      %v3736 = vand.u32 %v3735, 4294901760
      %v3737 = vsub.f32 %v3735, %v3736
      %v3738 = vand.u32 %v3737, 4294901760
      %3739 = vmatpush.msra.mxu0 %v3738
      %v3740 = vand.u32 %v298, 4294901760
      %v3741 = vsub.f32 %v298, %v3740
      %v3742 = vand.u32 %v3741, 4294901760
      %v3743 = vsub.f32 %v3741, %v3742
      %v3744 = vand.u32 %v3743, 4294901760
      %3745 = vmatpush.msra.mxu0 %v3744
      %v3746 = vand.u32 %v296, 4294901760
      %v3747 = vsub.f32 %v296, %v3746
      %v3748 = vand.u32 %v3747, 4294901760
      %v3749 = vsub.f32 %v3747, %v3748
      %v3750 = vand.u32 %v3749, 4294901760
      %3751 = vmatpush.msra.mxu0 %v3750
      %v3752 = vand.u32 %v294, 4294901760
      %v3753 = vsub.f32 %v294, %v3752
      %v3754 = vand.u32 %v3753, 4294901760
      %v3755 = vsub.f32 %v3753, %v3754
      %v3756 = vand.u32 %v3755, 4294901760
      %3757 = vmatpush.msra.mxu0 %v3756
      %v3758 = vand.u32 %v292, 4294901760
      %v3759 = vsub.f32 %v292, %v3758
      %v3760 = vand.u32 %v3759, 4294901760
      %v3761 = vsub.f32 %v3759, %v3760
      %v3762 = vand.u32 %v3761, 4294901760
      %3763 = vmatpush.msra.mxu0 %v3762
      %v3764 = vand.u32 %v290, 4294901760
      %v3765 = vsub.f32 %v290, %v3764
      %v3766 = vand.u32 %v3765, 4294901760
      %v3767 = vsub.f32 %v3765, %v3766
      %v3768 = vand.u32 %v3767, 4294901760
      %3769 = vmatpush.msra.mxu0 %v3768
      %v3770 = vand.u32 %v288, 4294901760
      %v3771 = vsub.f32 %v288, %v3770
      %v3772 = vand.u32 %v3771, 4294901760
      %v3773 = vsub.f32 %v3771, %v3772
      %v3774 = vand.u32 %v3773, 4294901760
      %3775 = vmatpush.msra.mxu0 %v3774
      %v3776 = vand.u32 %v286, 4294901760
      %v3777 = vsub.f32 %v286, %v3776
      %v3778 = vand.u32 %v3777, 4294901760
      %v3779 = vsub.f32 %v3777, %v3778
      %v3780 = vand.u32 %v3779, 4294901760
      %3781 = vmatpush.msra.mxu0 %v3780
      %v3782 = vand.u32 %v284, 4294901760
      %v3783 = vsub.f32 %v284, %v3782
      %v3784 = vand.u32 %v3783, 4294901760
      %v3785 = vsub.f32 %v3783, %v3784
      %v3786 = vand.u32 %v3785, 4294901760
      %3787 = vmatpush.msra.mxu0 %v3786
      %v3788 = vand.u32 %v282, 4294901760
      %v3789 = vsub.f32 %v282, %v3788
      %v3790 = vand.u32 %v3789, 4294901760
      %v3791 = vsub.f32 %v3789, %v3790
      %v3792 = vand.u32 %v3791, 4294901760
      %3793 = vmatpush.msra.mxu0 %v3792
      %v3794 = vand.u32 %v280, 4294901760
      %v3795 = vsub.f32 %v280, %v3794
      %v3796 = vand.u32 %v3795, 4294901760
      %v3797 = vsub.f32 %v3795, %v3796
      %v3798 = vand.u32 %v3797, 4294901760
      %3799 = vmatpush.msra.mxu0 %v3798
      %v3800 = vand.u32 %v278, 4294901760
      %v3801 = vsub.f32 %v278, %v3800
      %v3802 = vand.u32 %v3801, 4294901760
      %v3803 = vsub.f32 %v3801, %v3802
      %v3804 = vand.u32 %v3803, 4294901760
      %3805 = vmatpush.msra.mxu0 %v3804
      %v3806 = vand.u32 %v276, 4294901760
      %v3807 = vsub.f32 %v276, %v3806
      %v3808 = vand.u32 %v3807, 4294901760
      %v3809 = vsub.f32 %v3807, %v3808
      %v3810 = vand.u32 %v3809, 4294901760
      %3811 = vmatpush.msra.mxu0 %v3810
      %v3812 = vand.u32 %v274, 4294901760
      %v3813 = vsub.f32 %v274, %v3812
      %v3814 = vand.u32 %v3813, 4294901760
      %v3815 = vsub.f32 %v3813, %v3814
      %v3816 = vand.u32 %v3815, 4294901760
      %3817 = vmatpush.msra.mxu0 %v3816
      %v3818 = vand.u32 %v272, 4294901760
      %v3819 = vsub.f32 %v272, %v3818
      %v3820 = vand.u32 %v3819, 4294901760
      %v3821 = vsub.f32 %v3819, %v3820
      %v3822 = vand.u32 %v3821, 4294901760
      %3823 = vmatpush.msra.mxu0 %v3822
      %v3824 = vand.u32 %v270, 4294901760
      %v3825 = vsub.f32 %v270, %v3824
      %v3826 = vand.u32 %v3825, 4294901760
      %v3827 = vsub.f32 %v3825, %v3826
      %v3828 = vand.u32 %v3827, 4294901760
      %3829 = vmatpush.msra.mxu0 %v3828
      %v3830 = vand.u32 %v374, 4294901760
      %3831 = vmatmul.f32.gmra.mxu0 %v3830
      %v3832 = vpop.f32.mrf.mxu0
      %v3833 = vadd.f32 %v3676, %v3832
      %v3834 = vand.u32 %v379, 4294901760
      %3835 = vmatmul.f32.gmra.mxu0 %v3834
      %v3836 = vpop.f32.mrf.mxu0
      %v3837 = vadd.f32 %v3684, %v3836
      %v3838 = vand.u32 %v384, 4294901760
      %3839 = vmatmul.f32.gmra.mxu0 %v3838
      %v3840 = vpop.f32.mrf.mxu0
      %v3841 = vadd.f32 %v3692, %v3840
      %v3842 = vand.u32 %v389, 4294901760
      %3843 = vmatmul.f32.gmra.mxu0 %v3842
      %v3844 = vpop.f32.mrf.mxu0
      %v3845 = vadd.f32 %v3700, %v3844
      %v3846 = vand.u32 %v394, 4294901760
      %3847 = vmatmul.f32.gmra.mxu0 %v3846
      %v3848 = vpop.f32.mrf.mxu0
      %v3849 = vadd.f32 %v3708, %v3848
      %v3850 = vand.u32 %v399, 4294901760
      %3851 = vmatmul.f32.gmra.mxu0 %v3850
      %v3852 = vpop.f32.mrf.mxu0
      %v3853 = vadd.f32 %v3716, %v3852
      %v3854 = vand.u32 %v404, 4294901760
      %3855 = vmatmul.f32.gmra.mxu0 %v3854
      %v3856 = vpop.f32.mrf.mxu0
      %v3857 = vadd.f32 %v3724, %v3856
      %v3858 = vand.u32 %v409, 4294901760
      %3859 = vmatmul.f32.gmra.mxu0 %v3858
      %v3860 = vpop.f32.mrf.mxu0
      %v3861 = vadd.f32 %v3732, %v3860
      %3862 = vdwg.mxu0
      %v3863 = vand.u32 %v300, 4294901760
      %v3864 = vsub.f32 %v300, %v3863
      %3865 = vmatpush.msra.mxu0 %v3864
      %v3866 = vand.u32 %v298, 4294901760
      %v3867 = vsub.f32 %v298, %v3866
      %3868 = vmatpush.msra.mxu0 %v3867
      %v3869 = vand.u32 %v296, 4294901760
      %v3870 = vsub.f32 %v296, %v3869
      %3871 = vmatpush.msra.mxu0 %v3870
      %v3872 = vand.u32 %v294, 4294901760
      %v3873 = vsub.f32 %v294, %v3872
      %3874 = vmatpush.msra.mxu0 %v3873
      %v3875 = vand.u32 %v292, 4294901760
      %v3876 = vsub.f32 %v292, %v3875
      %3877 = vmatpush.msra.mxu0 %v3876
      %v3878 = vand.u32 %v290, 4294901760
      %v3879 = vsub.f32 %v290, %v3878
      %3880 = vmatpush.msra.mxu0 %v3879
      %v3881 = vand.u32 %v288, 4294901760
      %v3882 = vsub.f32 %v288, %v3881
      %3883 = vmatpush.msra.mxu0 %v3882
      %v3884 = vand.u32 %v286, 4294901760
      %v3885 = vsub.f32 %v286, %v3884
      %3886 = vmatpush.msra.mxu0 %v3885
      %v3887 = vand.u32 %v284, 4294901760
      %v3888 = vsub.f32 %v284, %v3887
      %3889 = vmatpush.msra.mxu0 %v3888
      %v3890 = vand.u32 %v282, 4294901760
      %v3891 = vsub.f32 %v282, %v3890
      %3892 = vmatpush.msra.mxu0 %v3891
      %v3893 = vand.u32 %v280, 4294901760
      %v3894 = vsub.f32 %v280, %v3893
      %3895 = vmatpush.msra.mxu0 %v3894
      %v3896 = vand.u32 %v278, 4294901760
      %v3897 = vsub.f32 %v278, %v3896
      %3898 = vmatpush.msra.mxu0 %v3897
      %v3899 = vand.u32 %v276, 4294901760
      %v3900 = vsub.f32 %v276, %v3899
      %3901 = vmatpush.msra.mxu0 %v3900
      %v3902 = vand.u32 %v274, 4294901760
      %v3903 = vsub.f32 %v274, %v3902
      %3904 = vmatpush.msra.mxu0 %v3903
      %v3905 = vand.u32 %v272, 4294901760
      %v3906 = vsub.f32 %v272, %v3905
      %3907 = vmatpush.msra.mxu0 %v3906
      %v3908 = vand.u32 %v270, 4294901760
      %v3909 = vsub.f32 %v270, %v3908
      %3910 = vmatpush.msra.mxu0 %v3909
      %v3911 = vand.u32 %v374, 4294901760
      %v3912 = vsub.f32 %v374, %v3911
      %3913 = vmatmul.f32.gmra.mxu0 %v3912
      %v3914 = vpop.f32.mrf.mxu0
      %v3915 = vadd.f32 %v3833, %v3914
      %v3916 = vand.u32 %v379, 4294901760
      %v3917 = vsub.f32 %v379, %v3916
      %3918 = vmatmul.f32.gmra.mxu0 %v3917
      %v3919 = vpop.f32.mrf.mxu0
      %v3920 = vadd.f32 %v3837, %v3919
      %v3921 = vand.u32 %v384, 4294901760
      %v3922 = vsub.f32 %v384, %v3921
      %3923 = vmatmul.f32.gmra.mxu0 %v3922
      %v3924 = vpop.f32.mrf.mxu0
      %v3925 = vadd.f32 %v3841, %v3924
      %v3926 = vand.u32 %v389, 4294901760
      %v3927 = vsub.f32 %v389, %v3926
      %3928 = vmatmul.f32.gmra.mxu0 %v3927
      %v3929 = vpop.f32.mrf.mxu0
      %v3930 = vadd.f32 %v3845, %v3929
      %v3931 = vand.u32 %v394, 4294901760
      %v3932 = vsub.f32 %v394, %v3931
      %3933 = vmatmul.f32.gmra.mxu0 %v3932
      %v3934 = vpop.f32.mrf.mxu0
      %v3935 = vadd.f32 %v3849, %v3934
      %v3936 = vand.u32 %v399, 4294901760
      %v3937 = vsub.f32 %v399, %v3936
      %3938 = vmatmul.f32.gmra.mxu0 %v3937
      %v3939 = vpop.f32.mrf.mxu0
      %v3940 = vadd.f32 %v3853, %v3939
      %v3941 = vand.u32 %v404, 4294901760
      %v3942 = vsub.f32 %v404, %v3941
      %3943 = vmatmul.f32.gmra.mxu0 %v3942
      %v3944 = vpop.f32.mrf.mxu0
      %v3945 = vadd.f32 %v3857, %v3944
      %v3946 = vand.u32 %v409, 4294901760
      %v3947 = vsub.f32 %v409, %v3946
      %3948 = vmatmul.f32.gmra.mxu0 %v3947
      %v3949 = vpop.f32.mrf.mxu0
      %v3950 = vadd.f32 %v3861, %v3949
      %3951 = vdwg.mxu0
      %v3952 = vand.u32 %v300, 4294901760
      %3953 = vmatpush.msra.mxu0 %v3952
      %v3954 = vand.u32 %v298, 4294901760
      %3955 = vmatpush.msra.mxu0 %v3954
      %v3956 = vand.u32 %v296, 4294901760
      %3957 = vmatpush.msra.mxu0 %v3956
      %v3958 = vand.u32 %v294, 4294901760
      %3959 = vmatpush.msra.mxu0 %v3958
      %v3960 = vand.u32 %v292, 4294901760
      %3961 = vmatpush.msra.mxu0 %v3960
      %v3962 = vand.u32 %v290, 4294901760
      %3963 = vmatpush.msra.mxu0 %v3962
      %v3964 = vand.u32 %v288, 4294901760
      %3965 = vmatpush.msra.mxu0 %v3964
      %v3966 = vand.u32 %v286, 4294901760
      %3967 = vmatpush.msra.mxu0 %v3966
      %v3968 = vand.u32 %v284, 4294901760
      %3969 = vmatpush.msra.mxu0 %v3968
      %v3970 = vand.u32 %v282, 4294901760
      %3971 = vmatpush.msra.mxu0 %v3970
      %v3972 = vand.u32 %v280, 4294901760
      %3973 = vmatpush.msra.mxu0 %v3972
      %v3974 = vand.u32 %v278, 4294901760
      %3975 = vmatpush.msra.mxu0 %v3974
      %v3976 = vand.u32 %v276, 4294901760
      %3977 = vmatpush.msra.mxu0 %v3976
      %v3978 = vand.u32 %v274, 4294901760
      %3979 = vmatpush.msra.mxu0 %v3978
      %v3980 = vand.u32 %v272, 4294901760
      %3981 = vmatpush.msra.mxu0 %v3980
      %v3982 = vand.u32 %v270, 4294901760
      %3983 = vmatpush.msra.mxu0 %v3982
      %v3984 = vand.u32 %v374, 4294901760
      %v3985 = vsub.f32 %v374, %v3984
      %v3986 = vand.u32 %v3985, 4294901760
      %3987 = vmatmul.f32.gmra.mxu0 %v3986
      %v3988 = vpop.f32.mrf.mxu0
      %v3989 = vadd.f32 %v3915, %v3988
      %v3990 = vand.u32 %v379, 4294901760
      %v3991 = vsub.f32 %v379, %v3990
      %v3992 = vand.u32 %v3991, 4294901760
      %3993 = vmatmul.f32.gmra.mxu0 %v3992
      %v3994 = vpop.f32.mrf.mxu0
      %v3995 = vadd.f32 %v3920, %v3994
      %v3996 = vand.u32 %v384, 4294901760
      %v3997 = vsub.f32 %v384, %v3996
      %v3998 = vand.u32 %v3997, 4294901760
      %3999 = vmatmul.f32.gmra.mxu0 %v3998
      %v4000 = vpop.f32.mrf.mxu0
      %v4001 = vadd.f32 %v3925, %v4000
      %v4002 = vand.u32 %v389, 4294901760
      %v4003 = vsub.f32 %v389, %v4002
      %v4004 = vand.u32 %v4003, 4294901760
      %4005 = vmatmul.f32.gmra.mxu0 %v4004
      %v4006 = vpop.f32.mrf.mxu0
      %v4007 = vadd.f32 %v3930, %v4006
      %v4008 = vand.u32 %v394, 4294901760
      %v4009 = vsub.f32 %v394, %v4008
      %v4010 = vand.u32 %v4009, 4294901760
      %4011 = vmatmul.f32.gmra.mxu0 %v4010
      %v4012 = vpop.f32.mrf.mxu0
      %v4013 = vadd.f32 %v3935, %v4012
      %v4014 = vand.u32 %v399, 4294901760
      %v4015 = vsub.f32 %v399, %v4014
      %v4016 = vand.u32 %v4015, 4294901760
      %4017 = vmatmul.f32.gmra.mxu0 %v4016
      %v4018 = vpop.f32.mrf.mxu0
      %v4019 = vadd.f32 %v3940, %v4018
      %v4020 = vand.u32 %v404, 4294901760
      %v4021 = vsub.f32 %v404, %v4020
      %v4022 = vand.u32 %v4021, 4294901760
      %4023 = vmatmul.f32.gmra.mxu0 %v4022
      %v4024 = vpop.f32.mrf.mxu0
      %v4025 = vadd.f32 %v3945, %v4024
      %v4026 = vand.u32 %v409, 4294901760
      %v4027 = vsub.f32 %v409, %v4026
      %v4028 = vand.u32 %v4027, 4294901760
      %4029 = vmatmul.f32.gmra.mxu0 %v4028
      %v4030 = vpop.f32.mrf.mxu0
      %v4031 = vadd.f32 %v3950, %v4030
      %4032 = vdwg.mxu0
      %v4033 = vand.u32 %v300, 4294901760
      %v4034 = vsub.f32 %v300, %v4033
      %v4035 = vand.u32 %v4034, 4294901760
      %4036 = vmatpush.msra.mxu0 %v4035
      %v4037 = vand.u32 %v298, 4294901760
      %v4038 = vsub.f32 %v298, %v4037
      %v4039 = vand.u32 %v4038, 4294901760
      %4040 = vmatpush.msra.mxu0 %v4039
      %v4041 = vand.u32 %v296, 4294901760
      %v4042 = vsub.f32 %v296, %v4041
      %v4043 = vand.u32 %v4042, 4294901760
      %4044 = vmatpush.msra.mxu0 %v4043
      %v4045 = vand.u32 %v294, 4294901760
      %v4046 = vsub.f32 %v294, %v4045
      %v4047 = vand.u32 %v4046, 4294901760
      %4048 = vmatpush.msra.mxu0 %v4047
      %v4049 = vand.u32 %v292, 4294901760
      %v4050 = vsub.f32 %v292, %v4049
      %v4051 = vand.u32 %v4050, 4294901760
      %4052 = vmatpush.msra.mxu0 %v4051
      %v4053 = vand.u32 %v290, 4294901760
      %v4054 = vsub.f32 %v290, %v4053
      %v4055 = vand.u32 %v4054, 4294901760
      %4056 = vmatpush.msra.mxu0 %v4055
      %v4057 = vand.u32 %v288, 4294901760
      %v4058 = vsub.f32 %v288, %v4057
      %v4059 = vand.u32 %v4058, 4294901760
      %4060 = vmatpush.msra.mxu0 %v4059
      %v4061 = vand.u32 %v286, 4294901760
      %v4062 = vsub.f32 %v286, %v4061
      %v4063 = vand.u32 %v4062, 4294901760
      %4064 = vmatpush.msra.mxu0 %v4063
      %v4065 = vand.u32 %v284, 4294901760
      %v4066 = vsub.f32 %v284, %v4065
      %v4067 = vand.u32 %v4066, 4294901760
      %4068 = vmatpush.msra.mxu0 %v4067
      %v4069 = vand.u32 %v282, 4294901760
      %v4070 = vsub.f32 %v282, %v4069
      %v4071 = vand.u32 %v4070, 4294901760
      %4072 = vmatpush.msra.mxu0 %v4071
      %v4073 = vand.u32 %v280, 4294901760
      %v4074 = vsub.f32 %v280, %v4073
      %v4075 = vand.u32 %v4074, 4294901760
      %4076 = vmatpush.msra.mxu0 %v4075
      %v4077 = vand.u32 %v278, 4294901760
      %v4078 = vsub.f32 %v278, %v4077
      %v4079 = vand.u32 %v4078, 4294901760
      %4080 = vmatpush.msra.mxu0 %v4079
      %v4081 = vand.u32 %v276, 4294901760
      %v4082 = vsub.f32 %v276, %v4081
      %v4083 = vand.u32 %v4082, 4294901760
      %4084 = vmatpush.msra.mxu0 %v4083
      %v4085 = vand.u32 %v274, 4294901760
      %v4086 = vsub.f32 %v274, %v4085
      %v4087 = vand.u32 %v4086, 4294901760
      %4088 = vmatpush.msra.mxu0 %v4087
      %v4089 = vand.u32 %v272, 4294901760
      %v4090 = vsub.f32 %v272, %v4089
      %v4091 = vand.u32 %v4090, 4294901760
      %4092 = vmatpush.msra.mxu0 %v4091
      %v4093 = vand.u32 %v270, 4294901760
      %v4094 = vsub.f32 %v270, %v4093
      %v4095 = vand.u32 %v4094, 4294901760
      %4096 = vmatpush.msra.mxu0 %v4095
      %v4097 = vand.u32 %v374, 4294901760
      %4098 = vmatmul.f32.gmra.mxu0 %v4097
      %v4099 = vpop.f32.mrf.mxu0
      %v4100 = vadd.f32 %v3989, %v4099
      %v4101 = vand.u32 %v379, 4294901760
      %4102 = vmatmul.f32.gmra.mxu0 %v4101
      %v4103 = vpop.f32.mrf.mxu0
      %v4104 = vadd.f32 %v3995, %v4103
      %v4105 = vand.u32 %v384, 4294901760
      %4106 = vmatmul.f32.gmra.mxu0 %v4105
      %v4107 = vpop.f32.mrf.mxu0
      %v4108 = vadd.f32 %v4001, %v4107
      %v4109 = vand.u32 %v389, 4294901760
      %4110 = vmatmul.f32.gmra.mxu0 %v4109
      %v4111 = vpop.f32.mrf.mxu0
      %v4112 = vadd.f32 %v4007, %v4111
      %v4113 = vand.u32 %v394, 4294901760
      %4114 = vmatmul.f32.gmra.mxu0 %v4113
      %v4115 = vpop.f32.mrf.mxu0
      %v4116 = vadd.f32 %v4013, %v4115
      %v4117 = vand.u32 %v399, 4294901760
      %4118 = vmatmul.f32.gmra.mxu0 %v4117
      %v4119 = vpop.f32.mrf.mxu0
      %v4120 = vadd.f32 %v4019, %v4119
      %v4121 = vand.u32 %v404, 4294901760
      %4122 = vmatmul.f32.gmra.mxu0 %v4121
      %v4123 = vpop.f32.mrf.mxu0
      %v4124 = vadd.f32 %v4025, %v4123
      %v4125 = vand.u32 %v409, 4294901760
      %4126 = vmatmul.f32.gmra.mxu0 %v4125
      %v4127 = vpop.f32.mrf.mxu0
      %v4128 = vadd.f32 %v4031, %v4127
      %4129 = vdwg.mxu0
      %v4130 = vand.u32 %v300, 4294901760
      %4131 = vmatpush.msra.mxu0 %v4130
      %v4132 = vand.u32 %v298, 4294901760
      %4133 = vmatpush.msra.mxu0 %v4132
      %v4134 = vand.u32 %v296, 4294901760
      %4135 = vmatpush.msra.mxu0 %v4134
      %v4136 = vand.u32 %v294, 4294901760
      %4137 = vmatpush.msra.mxu0 %v4136
      %v4138 = vand.u32 %v292, 4294901760
      %4139 = vmatpush.msra.mxu0 %v4138
      %v4140 = vand.u32 %v290, 4294901760
      %4141 = vmatpush.msra.mxu0 %v4140
      %v4142 = vand.u32 %v288, 4294901760
      %4143 = vmatpush.msra.mxu0 %v4142
      %v4144 = vand.u32 %v286, 4294901760
      %4145 = vmatpush.msra.mxu0 %v4144
      %v4146 = vand.u32 %v284, 4294901760
      %4147 = vmatpush.msra.mxu0 %v4146
      %v4148 = vand.u32 %v282, 4294901760
      %4149 = vmatpush.msra.mxu0 %v4148
      %v4150 = vand.u32 %v280, 4294901760
      %4151 = vmatpush.msra.mxu0 %v4150
      %v4152 = vand.u32 %v278, 4294901760
      %4153 = vmatpush.msra.mxu0 %v4152
      %v4154 = vand.u32 %v276, 4294901760
      %4155 = vmatpush.msra.mxu0 %v4154
      %v4156 = vand.u32 %v274, 4294901760
      %4157 = vmatpush.msra.mxu0 %v4156
      %v4158 = vand.u32 %v272, 4294901760
      %4159 = vmatpush.msra.mxu0 %v4158
      %v4160 = vand.u32 %v270, 4294901760
      %4161 = vmatpush.msra.mxu0 %v4160
      %v4162 = vand.u32 %v374, 4294901760
      %4163 = vmatmul.f32.gmra.mxu0 %v4162
      %v4164 = vpop.f32.mrf.mxu0
      %v4165 = vadd.f32 %v4100, %v4164
      %v4166 = vand.u32 %v379, 4294901760
      %4167 = vmatmul.f32.gmra.mxu0 %v4166
      %v4168 = vpop.f32.mrf.mxu0
      %v4169 = vadd.f32 %v4104, %v4168
      %v4170 = vand.u32 %v384, 4294901760
      %4171 = vmatmul.f32.gmra.mxu0 %v4170
      %v4172 = vpop.f32.mrf.mxu0
      %v4173 = vadd.f32 %v4108, %v4172
      %v4174 = vand.u32 %v389, 4294901760
      %4175 = vmatmul.f32.gmra.mxu0 %v4174
      %v4176 = vpop.f32.mrf.mxu0
      %v4177 = vadd.f32 %v4112, %v4176
      %v4178 = vand.u32 %v394, 4294901760
      %4179 = vmatmul.f32.gmra.mxu0 %v4178
      %v4180 = vpop.f32.mrf.mxu0
      %v4181 = vadd.f32 %v4116, %v4180
      %v4182 = vand.u32 %v399, 4294901760
      %4183 = vmatmul.f32.gmra.mxu0 %v4182
      %v4184 = vpop.f32.mrf.mxu0
      %v4185 = vadd.f32 %v4120, %v4184
      %v4186 = vand.u32 %v404, 4294901760
      %4187 = vmatmul.f32.gmra.mxu0 %v4186
      %v4188 = vpop.f32.mrf.mxu0
      %v4189 = vadd.f32 %v4124, %v4188
      %v4190 = vand.u32 %v409, 4294901760
      %4191 = vmatmul.f32.gmra.mxu0 %v4190
      %v4192 = vpop.f32.mrf.mxu0
      %v4193 = vadd.f32 %v4128, %v4192
      %4194 = vdwg.mxu0
      %v4195 = vand.u32 %v332, 4294901760
      %4196 = vmatpush.msra.mxu0 %v4195
      %v4197 = vand.u32 %v330, 4294901760
      %4198 = vmatpush.msra.mxu0 %v4197
      %v4199 = vand.u32 %v328, 4294901760
      %4200 = vmatpush.msra.mxu0 %v4199
      %v4201 = vand.u32 %v326, 4294901760
      %4202 = vmatpush.msra.mxu0 %v4201
      %v4203 = vand.u32 %v324, 4294901760
      %4204 = vmatpush.msra.mxu0 %v4203
      %v4205 = vand.u32 %v322, 4294901760
      %4206 = vmatpush.msra.mxu0 %v4205
      %v4207 = vand.u32 %v320, 4294901760
      %4208 = vmatpush.msra.mxu0 %v4207
      %v4209 = vand.u32 %v318, 4294901760
      %4210 = vmatpush.msra.mxu0 %v4209
      %v4211 = vand.u32 %v316, 4294901760
      %4212 = vmatpush.msra.mxu0 %v4211
      %v4213 = vand.u32 %v314, 4294901760
      %4214 = vmatpush.msra.mxu0 %v4213
      %v4215 = vand.u32 %v312, 4294901760
      %4216 = vmatpush.msra.mxu0 %v4215
      %v4217 = vand.u32 %v310, 4294901760
      %4218 = vmatpush.msra.mxu0 %v4217
      %v4219 = vand.u32 %v308, 4294901760
      %4220 = vmatpush.msra.mxu0 %v4219
      %v4221 = vand.u32 %v306, 4294901760
      %4222 = vmatpush.msra.mxu0 %v4221
      %v4223 = vand.u32 %v304, 4294901760
      %4224 = vmatpush.msra.mxu0 %v4223
      %v4225 = vand.u32 %v302, 4294901760
      %4226 = vmatpush.msra.mxu0 %v4225
      %v4227 = vand.u32 %v375, 4294901760
      %v4228 = vsub.f32 %v375, %v4227
      %v4229 = vand.u32 %v4228, 4294901760
      %v4230 = vsub.f32 %v4228, %v4229
      %v4231 = vand.u32 %v4230, 4294901760
      %4232 = vmatmul.f32.gmra.mxu0 %v4231
      %v4233 = vpop.f32.mrf.mxu0
      %v4234 = vadd.f32 %v4165, %v4233
      %v4235 = vand.u32 %v380, 4294901760
      %v4236 = vsub.f32 %v380, %v4235
      %v4237 = vand.u32 %v4236, 4294901760
      %v4238 = vsub.f32 %v4236, %v4237
      %v4239 = vand.u32 %v4238, 4294901760
      %4240 = vmatmul.f32.gmra.mxu0 %v4239
      %v4241 = vpop.f32.mrf.mxu0
      %v4242 = vadd.f32 %v4169, %v4241
      %v4243 = vand.u32 %v385, 4294901760
      %v4244 = vsub.f32 %v385, %v4243
      %v4245 = vand.u32 %v4244, 4294901760
      %v4246 = vsub.f32 %v4244, %v4245
      %v4247 = vand.u32 %v4246, 4294901760
      %4248 = vmatmul.f32.gmra.mxu0 %v4247
      %v4249 = vpop.f32.mrf.mxu0
      %v4250 = vadd.f32 %v4173, %v4249
      %v4251 = vand.u32 %v390, 4294901760
      %v4252 = vsub.f32 %v390, %v4251
      %v4253 = vand.u32 %v4252, 4294901760
      %v4254 = vsub.f32 %v4252, %v4253
      %v4255 = vand.u32 %v4254, 4294901760
      %4256 = vmatmul.f32.gmra.mxu0 %v4255
      %v4257 = vpop.f32.mrf.mxu0
      %v4258 = vadd.f32 %v4177, %v4257
      %v4259 = vand.u32 %v395, 4294901760
      %v4260 = vsub.f32 %v395, %v4259
      %v4261 = vand.u32 %v4260, 4294901760
      %v4262 = vsub.f32 %v4260, %v4261
      %v4263 = vand.u32 %v4262, 4294901760
      %4264 = vmatmul.f32.gmra.mxu0 %v4263
      %v4265 = vpop.f32.mrf.mxu0
      %v4266 = vadd.f32 %v4181, %v4265
      %v4267 = vand.u32 %v400, 4294901760
      %v4268 = vsub.f32 %v400, %v4267
      %v4269 = vand.u32 %v4268, 4294901760
      %v4270 = vsub.f32 %v4268, %v4269
      %v4271 = vand.u32 %v4270, 4294901760
      %4272 = vmatmul.f32.gmra.mxu0 %v4271
      %v4273 = vpop.f32.mrf.mxu0
      %v4274 = vadd.f32 %v4185, %v4273
      %v4275 = vand.u32 %v405, 4294901760
      %v4276 = vsub.f32 %v405, %v4275
      %v4277 = vand.u32 %v4276, 4294901760
      %v4278 = vsub.f32 %v4276, %v4277
      %v4279 = vand.u32 %v4278, 4294901760
      %4280 = vmatmul.f32.gmra.mxu0 %v4279
      %v4281 = vpop.f32.mrf.mxu0
      %v4282 = vadd.f32 %v4189, %v4281
      %v4283 = vand.u32 %v410, 4294901760
      %v4284 = vsub.f32 %v410, %v4283
      %v4285 = vand.u32 %v4284, 4294901760
      %v4286 = vsub.f32 %v4284, %v4285
      %v4287 = vand.u32 %v4286, 4294901760
      %4288 = vmatmul.f32.gmra.mxu0 %v4287
      %v4289 = vpop.f32.mrf.mxu0
      %v4290 = vadd.f32 %v4193, %v4289
      %4291 = vdwg.mxu0
      %v4292 = vand.u32 %v332, 4294901760
      %v4293 = vsub.f32 %v332, %v4292
      %v4294 = vand.u32 %v4293, 4294901760
      %v4295 = vsub.f32 %v4293, %v4294
      %v4296 = vand.u32 %v4295, 4294901760
      %4297 = vmatpush.msra.mxu0 %v4296
      %v4298 = vand.u32 %v330, 4294901760
      %v4299 = vsub.f32 %v330, %v4298
      %v4300 = vand.u32 %v4299, 4294901760
      %v4301 = vsub.f32 %v4299, %v4300
      %v4302 = vand.u32 %v4301, 4294901760
      %4303 = vmatpush.msra.mxu0 %v4302
      %v4304 = vand.u32 %v328, 4294901760
      %v4305 = vsub.f32 %v328, %v4304
      %v4306 = vand.u32 %v4305, 4294901760
      %v4307 = vsub.f32 %v4305, %v4306
      %v4308 = vand.u32 %v4307, 4294901760
      %4309 = vmatpush.msra.mxu0 %v4308
      %v4310 = vand.u32 %v326, 4294901760
      %v4311 = vsub.f32 %v326, %v4310
      %v4312 = vand.u32 %v4311, 4294901760
      %v4313 = vsub.f32 %v4311, %v4312
      %v4314 = vand.u32 %v4313, 4294901760
      %4315 = vmatpush.msra.mxu0 %v4314
      %v4316 = vand.u32 %v324, 4294901760
      %v4317 = vsub.f32 %v324, %v4316
      %v4318 = vand.u32 %v4317, 4294901760
      %v4319 = vsub.f32 %v4317, %v4318
      %v4320 = vand.u32 %v4319, 4294901760
      %4321 = vmatpush.msra.mxu0 %v4320
      %v4322 = vand.u32 %v322, 4294901760
      %v4323 = vsub.f32 %v322, %v4322
      %v4324 = vand.u32 %v4323, 4294901760
      %v4325 = vsub.f32 %v4323, %v4324
      %v4326 = vand.u32 %v4325, 4294901760
      %4327 = vmatpush.msra.mxu0 %v4326
      %v4328 = vand.u32 %v320, 4294901760
      %v4329 = vsub.f32 %v320, %v4328
      %v4330 = vand.u32 %v4329, 4294901760
      %v4331 = vsub.f32 %v4329, %v4330
      %v4332 = vand.u32 %v4331, 4294901760
      %4333 = vmatpush.msra.mxu0 %v4332
      %v4334 = vand.u32 %v318, 4294901760
      %v4335 = vsub.f32 %v318, %v4334
      %v4336 = vand.u32 %v4335, 4294901760
      %v4337 = vsub.f32 %v4335, %v4336
      %v4338 = vand.u32 %v4337, 4294901760
      %4339 = vmatpush.msra.mxu0 %v4338
      %v4340 = vand.u32 %v316, 4294901760
      %v4341 = vsub.f32 %v316, %v4340
      %v4342 = vand.u32 %v4341, 4294901760
      %v4343 = vsub.f32 %v4341, %v4342
      %v4344 = vand.u32 %v4343, 4294901760
      %4345 = vmatpush.msra.mxu0 %v4344
      %v4346 = vand.u32 %v314, 4294901760
      %v4347 = vsub.f32 %v314, %v4346
      %v4348 = vand.u32 %v4347, 4294901760
      %v4349 = vsub.f32 %v4347, %v4348
      %v4350 = vand.u32 %v4349, 4294901760
      %4351 = vmatpush.msra.mxu0 %v4350
      %v4352 = vand.u32 %v312, 4294901760
      %v4353 = vsub.f32 %v312, %v4352
      %v4354 = vand.u32 %v4353, 4294901760
      %v4355 = vsub.f32 %v4353, %v4354
      %v4356 = vand.u32 %v4355, 4294901760
      %4357 = vmatpush.msra.mxu0 %v4356
      %v4358 = vand.u32 %v310, 4294901760
      %v4359 = vsub.f32 %v310, %v4358
      %v4360 = vand.u32 %v4359, 4294901760
      %v4361 = vsub.f32 %v4359, %v4360
      %v4362 = vand.u32 %v4361, 4294901760
      %4363 = vmatpush.msra.mxu0 %v4362
      %v4364 = vand.u32 %v308, 4294901760
      %v4365 = vsub.f32 %v308, %v4364
      %v4366 = vand.u32 %v4365, 4294901760
      %v4367 = vsub.f32 %v4365, %v4366
      %v4368 = vand.u32 %v4367, 4294901760
      %4369 = vmatpush.msra.mxu0 %v4368
      %v4370 = vand.u32 %v306, 4294901760
      %v4371 = vsub.f32 %v306, %v4370
      %v4372 = vand.u32 %v4371, 4294901760
      %v4373 = vsub.f32 %v4371, %v4372
      %v4374 = vand.u32 %v4373, 4294901760
      %4375 = vmatpush.msra.mxu0 %v4374
      %v4376 = vand.u32 %v304, 4294901760
      %v4377 = vsub.f32 %v304, %v4376
      %v4378 = vand.u32 %v4377, 4294901760
      %v4379 = vsub.f32 %v4377, %v4378
      %v4380 = vand.u32 %v4379, 4294901760
      %4381 = vmatpush.msra.mxu0 %v4380
      %v4382 = vand.u32 %v302, 4294901760
      %v4383 = vsub.f32 %v302, %v4382
      %v4384 = vand.u32 %v4383, 4294901760
      %v4385 = vsub.f32 %v4383, %v4384
      %v4386 = vand.u32 %v4385, 4294901760
      %4387 = vmatpush.msra.mxu0 %v4386
      %v4388 = vand.u32 %v375, 4294901760
      %4389 = vmatmul.f32.gmra.mxu0 %v4388
      %v4390 = vpop.f32.mrf.mxu0
      %v4391 = vadd.f32 %v4234, %v4390
      %v4392 = vand.u32 %v380, 4294901760
      %4393 = vmatmul.f32.gmra.mxu0 %v4392
      %v4394 = vpop.f32.mrf.mxu0
      %v4395 = vadd.f32 %v4242, %v4394
      %v4396 = vand.u32 %v385, 4294901760
      %4397 = vmatmul.f32.gmra.mxu0 %v4396
      %v4398 = vpop.f32.mrf.mxu0
      %v4399 = vadd.f32 %v4250, %v4398
      %v4400 = vand.u32 %v390, 4294901760
      %4401 = vmatmul.f32.gmra.mxu0 %v4400
      %v4402 = vpop.f32.mrf.mxu0
      %v4403 = vadd.f32 %v4258, %v4402
      %v4404 = vand.u32 %v395, 4294901760
      %4405 = vmatmul.f32.gmra.mxu0 %v4404
      %v4406 = vpop.f32.mrf.mxu0
      %v4407 = vadd.f32 %v4266, %v4406
      %v4408 = vand.u32 %v400, 4294901760
      %4409 = vmatmul.f32.gmra.mxu0 %v4408
      %v4410 = vpop.f32.mrf.mxu0
      %v4411 = vadd.f32 %v4274, %v4410
      %v4412 = vand.u32 %v405, 4294901760
      %4413 = vmatmul.f32.gmra.mxu0 %v4412
      %v4414 = vpop.f32.mrf.mxu0
      %v4415 = vadd.f32 %v4282, %v4414
      %v4416 = vand.u32 %v410, 4294901760
      %4417 = vmatmul.f32.gmra.mxu0 %v4416
      %v4418 = vpop.f32.mrf.mxu0
      %v4419 = vadd.f32 %v4290, %v4418
      %4420 = vdwg.mxu0
      %v4421 = vand.u32 %v332, 4294901760
      %v4422 = vsub.f32 %v332, %v4421
      %4423 = vmatpush.msra.mxu0 %v4422
      %v4424 = vand.u32 %v330, 4294901760
      %v4425 = vsub.f32 %v330, %v4424
      %4426 = vmatpush.msra.mxu0 %v4425
      %v4427 = vand.u32 %v328, 4294901760
      %v4428 = vsub.f32 %v328, %v4427
      %4429 = vmatpush.msra.mxu0 %v4428
      %v4430 = vand.u32 %v326, 4294901760
      %v4431 = vsub.f32 %v326, %v4430
      %4432 = vmatpush.msra.mxu0 %v4431
      %v4433 = vand.u32 %v324, 4294901760
      %v4434 = vsub.f32 %v324, %v4433
      %4435 = vmatpush.msra.mxu0 %v4434
      %v4436 = vand.u32 %v322, 4294901760
      %v4437 = vsub.f32 %v322, %v4436
      %4438 = vmatpush.msra.mxu0 %v4437
      %v4439 = vand.u32 %v320, 4294901760
      %v4440 = vsub.f32 %v320, %v4439
      %4441 = vmatpush.msra.mxu0 %v4440
      %v4442 = vand.u32 %v318, 4294901760
      %v4443 = vsub.f32 %v318, %v4442
      %4444 = vmatpush.msra.mxu0 %v4443
      %v4445 = vand.u32 %v316, 4294901760
      %v4446 = vsub.f32 %v316, %v4445
      %4447 = vmatpush.msra.mxu0 %v4446
      %v4448 = vand.u32 %v314, 4294901760
      %v4449 = vsub.f32 %v314, %v4448
      %4450 = vmatpush.msra.mxu0 %v4449
      %v4451 = vand.u32 %v312, 4294901760
      %v4452 = vsub.f32 %v312, %v4451
      %4453 = vmatpush.msra.mxu0 %v4452
      %v4454 = vand.u32 %v310, 4294901760
      %v4455 = vsub.f32 %v310, %v4454
      %4456 = vmatpush.msra.mxu0 %v4455
      %v4457 = vand.u32 %v308, 4294901760
      %v4458 = vsub.f32 %v308, %v4457
      %4459 = vmatpush.msra.mxu0 %v4458
      %v4460 = vand.u32 %v306, 4294901760
      %v4461 = vsub.f32 %v306, %v4460
      %4462 = vmatpush.msra.mxu0 %v4461
      %v4463 = vand.u32 %v304, 4294901760
      %v4464 = vsub.f32 %v304, %v4463
      %4465 = vmatpush.msra.mxu0 %v4464
      %v4466 = vand.u32 %v302, 4294901760
      %v4467 = vsub.f32 %v302, %v4466
      %4468 = vmatpush.msra.mxu0 %v4467
      %v4469 = vand.u32 %v375, 4294901760
      %v4470 = vsub.f32 %v375, %v4469
      %4471 = vmatmul.f32.gmra.mxu0 %v4470
      %v4472 = vpop.f32.mrf.mxu0
      %v4473 = vadd.f32 %v4391, %v4472
      %v4474 = vand.u32 %v380, 4294901760
      %v4475 = vsub.f32 %v380, %v4474
      %4476 = vmatmul.f32.gmra.mxu0 %v4475
      %v4477 = vpop.f32.mrf.mxu0
      %v4478 = vadd.f32 %v4395, %v4477
      %v4479 = vand.u32 %v385, 4294901760
      %v4480 = vsub.f32 %v385, %v4479
      %4481 = vmatmul.f32.gmra.mxu0 %v4480
      %v4482 = vpop.f32.mrf.mxu0
      %v4483 = vadd.f32 %v4399, %v4482
      %v4484 = vand.u32 %v390, 4294901760
      %v4485 = vsub.f32 %v390, %v4484
      %4486 = vmatmul.f32.gmra.mxu0 %v4485
      %v4487 = vpop.f32.mrf.mxu0
      %v4488 = vadd.f32 %v4403, %v4487
      %v4489 = vand.u32 %v395, 4294901760
      %v4490 = vsub.f32 %v395, %v4489
      %4491 = vmatmul.f32.gmra.mxu0 %v4490
      %v4492 = vpop.f32.mrf.mxu0
      %v4493 = vadd.f32 %v4407, %v4492
      %v4494 = vand.u32 %v400, 4294901760
      %v4495 = vsub.f32 %v400, %v4494
      %4496 = vmatmul.f32.gmra.mxu0 %v4495
      %v4497 = vpop.f32.mrf.mxu0
      %v4498 = vadd.f32 %v4411, %v4497
      %v4499 = vand.u32 %v405, 4294901760
      %v4500 = vsub.f32 %v405, %v4499
      %4501 = vmatmul.f32.gmra.mxu0 %v4500
      %v4502 = vpop.f32.mrf.mxu0
      %v4503 = vadd.f32 %v4415, %v4502
      %v4504 = vand.u32 %v410, 4294901760
      %v4505 = vsub.f32 %v410, %v4504
      %4506 = vmatmul.f32.gmra.mxu0 %v4505
      %v4507 = vpop.f32.mrf.mxu0
      %v4508 = vadd.f32 %v4419, %v4507
      %4509 = vdwg.mxu0
      %v4510 = vand.u32 %v332, 4294901760
      %4511 = vmatpush.msra.mxu0 %v4510
      %v4512 = vand.u32 %v330, 4294901760
      %4513 = vmatpush.msra.mxu0 %v4512
      %v4514 = vand.u32 %v328, 4294901760
      %4515 = vmatpush.msra.mxu0 %v4514
      %v4516 = vand.u32 %v326, 4294901760
      %4517 = vmatpush.msra.mxu0 %v4516
      %v4518 = vand.u32 %v324, 4294901760
      %4519 = vmatpush.msra.mxu0 %v4518
      %v4520 = vand.u32 %v322, 4294901760
      %4521 = vmatpush.msra.mxu0 %v4520
      %v4522 = vand.u32 %v320, 4294901760
      %4523 = vmatpush.msra.mxu0 %v4522
      %v4524 = vand.u32 %v318, 4294901760
      %4525 = vmatpush.msra.mxu0 %v4524
      %v4526 = vand.u32 %v316, 4294901760
      %4527 = vmatpush.msra.mxu0 %v4526
      %v4528 = vand.u32 %v314, 4294901760
      %4529 = vmatpush.msra.mxu0 %v4528
      %v4530 = vand.u32 %v312, 4294901760
      %4531 = vmatpush.msra.mxu0 %v4530
      %v4532 = vand.u32 %v310, 4294901760
      %4533 = vmatpush.msra.mxu0 %v4532
      %v4534 = vand.u32 %v308, 4294901760
      %4535 = vmatpush.msra.mxu0 %v4534
      %v4536 = vand.u32 %v306, 4294901760
      %4537 = vmatpush.msra.mxu0 %v4536
      %v4538 = vand.u32 %v304, 4294901760
      %4539 = vmatpush.msra.mxu0 %v4538
      %v4540 = vand.u32 %v302, 4294901760
      %4541 = vmatpush.msra.mxu0 %v4540
      %v4542 = vand.u32 %v375, 4294901760
      %v4543 = vsub.f32 %v375, %v4542
      %v4544 = vand.u32 %v4543, 4294901760
      %4545 = vmatmul.f32.gmra.mxu0 %v4544
      %v4546 = vpop.f32.mrf.mxu0
      %v4547 = vadd.f32 %v4473, %v4546
      %v4548 = vand.u32 %v380, 4294901760
      %v4549 = vsub.f32 %v380, %v4548
      %v4550 = vand.u32 %v4549, 4294901760
      %4551 = vmatmul.f32.gmra.mxu0 %v4550
      %v4552 = vpop.f32.mrf.mxu0
      %v4553 = vadd.f32 %v4478, %v4552
      %v4554 = vand.u32 %v385, 4294901760
      %v4555 = vsub.f32 %v385, %v4554
      %v4556 = vand.u32 %v4555, 4294901760
      %4557 = vmatmul.f32.gmra.mxu0 %v4556
      %v4558 = vpop.f32.mrf.mxu0
      %v4559 = vadd.f32 %v4483, %v4558
      %v4560 = vand.u32 %v390, 4294901760
      %v4561 = vsub.f32 %v390, %v4560
      %v4562 = vand.u32 %v4561, 4294901760
      %4563 = vmatmul.f32.gmra.mxu0 %v4562
      %v4564 = vpop.f32.mrf.mxu0
      %v4565 = vadd.f32 %v4488, %v4564
      %v4566 = vand.u32 %v395, 4294901760
      %v4567 = vsub.f32 %v395, %v4566
      %v4568 = vand.u32 %v4567, 4294901760
      %4569 = vmatmul.f32.gmra.mxu0 %v4568
      %v4570 = vpop.f32.mrf.mxu0
      %v4571 = vadd.f32 %v4493, %v4570
      %v4572 = vand.u32 %v400, 4294901760
      %v4573 = vsub.f32 %v400, %v4572
      %v4574 = vand.u32 %v4573, 4294901760
      %4575 = vmatmul.f32.gmra.mxu0 %v4574
      %v4576 = vpop.f32.mrf.mxu0
      %v4577 = vadd.f32 %v4498, %v4576
      %v4578 = vand.u32 %v405, 4294901760
      %v4579 = vsub.f32 %v405, %v4578
      %v4580 = vand.u32 %v4579, 4294901760
      %4581 = vmatmul.f32.gmra.mxu0 %v4580
      %v4582 = vpop.f32.mrf.mxu0
      %v4583 = vadd.f32 %v4503, %v4582
      %v4584 = vand.u32 %v410, 4294901760
      %v4585 = vsub.f32 %v410, %v4584
      %v4586 = vand.u32 %v4585, 4294901760
      %4587 = vmatmul.f32.gmra.mxu0 %v4586
      %v4588 = vpop.f32.mrf.mxu0
      %v4589 = vadd.f32 %v4508, %v4588
      %4590 = vdwg.mxu0
      %v4591 = vand.u32 %v332, 4294901760
      %v4592 = vsub.f32 %v332, %v4591
      %v4593 = vand.u32 %v4592, 4294901760
      %4594 = vmatpush.msra.mxu0 %v4593
      %v4595 = vand.u32 %v330, 4294901760
      %v4596 = vsub.f32 %v330, %v4595
      %v4597 = vand.u32 %v4596, 4294901760
      %4598 = vmatpush.msra.mxu0 %v4597
      %v4599 = vand.u32 %v328, 4294901760
      %v4600 = vsub.f32 %v328, %v4599
      %v4601 = vand.u32 %v4600, 4294901760
      %4602 = vmatpush.msra.mxu0 %v4601
      %v4603 = vand.u32 %v326, 4294901760
      %v4604 = vsub.f32 %v326, %v4603
      %v4605 = vand.u32 %v4604, 4294901760
      %4606 = vmatpush.msra.mxu0 %v4605
      %v4607 = vand.u32 %v324, 4294901760
      %v4608 = vsub.f32 %v324, %v4607
      %v4609 = vand.u32 %v4608, 4294901760
      %4610 = vmatpush.msra.mxu0 %v4609
      %v4611 = vand.u32 %v322, 4294901760
      %v4612 = vsub.f32 %v322, %v4611
      %v4613 = vand.u32 %v4612, 4294901760
      %4614 = vmatpush.msra.mxu0 %v4613
      %v4615 = vand.u32 %v320, 4294901760
      %v4616 = vsub.f32 %v320, %v4615
      %v4617 = vand.u32 %v4616, 4294901760
      %4618 = vmatpush.msra.mxu0 %v4617
      %v4619 = vand.u32 %v318, 4294901760
      %v4620 = vsub.f32 %v318, %v4619
      %v4621 = vand.u32 %v4620, 4294901760
      %4622 = vmatpush.msra.mxu0 %v4621
      %v4623 = vand.u32 %v316, 4294901760
      %v4624 = vsub.f32 %v316, %v4623
      %v4625 = vand.u32 %v4624, 4294901760
      %4626 = vmatpush.msra.mxu0 %v4625
      %v4627 = vand.u32 %v314, 4294901760
      %v4628 = vsub.f32 %v314, %v4627
      %v4629 = vand.u32 %v4628, 4294901760
      %4630 = vmatpush.msra.mxu0 %v4629
      %v4631 = vand.u32 %v312, 4294901760
      %v4632 = vsub.f32 %v312, %v4631
      %v4633 = vand.u32 %v4632, 4294901760
      %4634 = vmatpush.msra.mxu0 %v4633
      %v4635 = vand.u32 %v310, 4294901760
      %v4636 = vsub.f32 %v310, %v4635
      %v4637 = vand.u32 %v4636, 4294901760
      %4638 = vmatpush.msra.mxu0 %v4637
      %v4639 = vand.u32 %v308, 4294901760
      %v4640 = vsub.f32 %v308, %v4639
      %v4641 = vand.u32 %v4640, 4294901760
      %4642 = vmatpush.msra.mxu0 %v4641
      %v4643 = vand.u32 %v306, 4294901760
      %v4644 = vsub.f32 %v306, %v4643
      %v4645 = vand.u32 %v4644, 4294901760
      %4646 = vmatpush.msra.mxu0 %v4645
      %v4647 = vand.u32 %v304, 4294901760
      %v4648 = vsub.f32 %v304, %v4647
      %v4649 = vand.u32 %v4648, 4294901760
      %4650 = vmatpush.msra.mxu0 %v4649
      %v4651 = vand.u32 %v302, 4294901760
      %v4652 = vsub.f32 %v302, %v4651
      %v4653 = vand.u32 %v4652, 4294901760
      %4654 = vmatpush.msra.mxu0 %v4653
      %v4655 = vand.u32 %v375, 4294901760
      %4656 = vmatmul.f32.gmra.mxu0 %v4655
      %v4657 = vpop.f32.mrf.mxu0
      %v4658 = vadd.f32 %v4547, %v4657
      %v4659 = vand.u32 %v380, 4294901760
      %4660 = vmatmul.f32.gmra.mxu0 %v4659
      %v4661 = vpop.f32.mrf.mxu0
      %v4662 = vadd.f32 %v4553, %v4661
      %v4663 = vand.u32 %v385, 4294901760
      %4664 = vmatmul.f32.gmra.mxu0 %v4663
      %v4665 = vpop.f32.mrf.mxu0
      %v4666 = vadd.f32 %v4559, %v4665
      %v4667 = vand.u32 %v390, 4294901760
      %4668 = vmatmul.f32.gmra.mxu0 %v4667
      %v4669 = vpop.f32.mrf.mxu0
      %v4670 = vadd.f32 %v4565, %v4669
      %v4671 = vand.u32 %v395, 4294901760
      %4672 = vmatmul.f32.gmra.mxu0 %v4671
      %v4673 = vpop.f32.mrf.mxu0
      %v4674 = vadd.f32 %v4571, %v4673
      %v4675 = vand.u32 %v400, 4294901760
      %4676 = vmatmul.f32.gmra.mxu0 %v4675
      %v4677 = vpop.f32.mrf.mxu0
      %v4678 = vadd.f32 %v4577, %v4677
      %v4679 = vand.u32 %v405, 4294901760
      %4680 = vmatmul.f32.gmra.mxu0 %v4679
      %v4681 = vpop.f32.mrf.mxu0
      %v4682 = vadd.f32 %v4583, %v4681
      %v4683 = vand.u32 %v410, 4294901760
      %4684 = vmatmul.f32.gmra.mxu0 %v4683
      %v4685 = vpop.f32.mrf.mxu0
      %v4686 = vadd.f32 %v4589, %v4685
      %4687 = vdwg.mxu0
      %v4688 = vand.u32 %v332, 4294901760
      %4689 = vmatpush.msra.mxu0 %v4688
      %v4690 = vand.u32 %v330, 4294901760
      %4691 = vmatpush.msra.mxu0 %v4690
      %v4692 = vand.u32 %v328, 4294901760
      %4693 = vmatpush.msra.mxu0 %v4692
      %v4694 = vand.u32 %v326, 4294901760
      %4695 = vmatpush.msra.mxu0 %v4694
      %v4696 = vand.u32 %v324, 4294901760
      %4697 = vmatpush.msra.mxu0 %v4696
      %v4698 = vand.u32 %v322, 4294901760
      %4699 = vmatpush.msra.mxu0 %v4698
      %v4700 = vand.u32 %v320, 4294901760
      %4701 = vmatpush.msra.mxu0 %v4700
      %v4702 = vand.u32 %v318, 4294901760
      %4703 = vmatpush.msra.mxu0 %v4702
      %v4704 = vand.u32 %v316, 4294901760
      %4705 = vmatpush.msra.mxu0 %v4704
      %v4706 = vand.u32 %v314, 4294901760
      %4707 = vmatpush.msra.mxu0 %v4706
      %v4708 = vand.u32 %v312, 4294901760
      %4709 = vmatpush.msra.mxu0 %v4708
      %v4710 = vand.u32 %v310, 4294901760
      %4711 = vmatpush.msra.mxu0 %v4710
      %v4712 = vand.u32 %v308, 4294901760
      %4713 = vmatpush.msra.mxu0 %v4712
      %v4714 = vand.u32 %v306, 4294901760
      %4715 = vmatpush.msra.mxu0 %v4714
      %v4716 = vand.u32 %v304, 4294901760
      %4717 = vmatpush.msra.mxu0 %v4716
      %v4718 = vand.u32 %v302, 4294901760
      %4719 = vmatpush.msra.mxu0 %v4718
      %v4720 = vand.u32 %v375, 4294901760
      %4721 = vmatmul.f32.gmra.mxu0 %v4720
      %v4722 = vpop.f32.mrf.mxu0
      %v4723 = vadd.f32 %v4658, %v4722
      %v4724 = vand.u32 %v380, 4294901760
      %4725 = vmatmul.f32.gmra.mxu0 %v4724
      %v4726 = vpop.f32.mrf.mxu0
      %v4727 = vadd.f32 %v4662, %v4726
      %v4728 = vand.u32 %v385, 4294901760
      %4729 = vmatmul.f32.gmra.mxu0 %v4728
      %v4730 = vpop.f32.mrf.mxu0
      %v4731 = vadd.f32 %v4666, %v4730
      %v4732 = vand.u32 %v390, 4294901760
      %4733 = vmatmul.f32.gmra.mxu0 %v4732
      %v4734 = vpop.f32.mrf.mxu0
      %v4735 = vadd.f32 %v4670, %v4734
      %v4736 = vand.u32 %v395, 4294901760
      %4737 = vmatmul.f32.gmra.mxu0 %v4736
      %v4738 = vpop.f32.mrf.mxu0
      %v4739 = vadd.f32 %v4674, %v4738
      %v4740 = vand.u32 %v400, 4294901760
      %4741 = vmatmul.f32.gmra.mxu0 %v4740
      %v4742 = vpop.f32.mrf.mxu0
      %v4743 = vadd.f32 %v4678, %v4742
      %v4744 = vand.u32 %v405, 4294901760
      %4745 = vmatmul.f32.gmra.mxu0 %v4744
      %v4746 = vpop.f32.mrf.mxu0
      %v4747 = vadd.f32 %v4682, %v4746
      %v4748 = vand.u32 %v410, 4294901760
      %4749 = vmatmul.f32.gmra.mxu0 %v4748
      %v4750 = vpop.f32.mrf.mxu0
      %v4751 = vadd.f32 %v4686, %v4750
      %4752 = vdwg.mxu0
      %v4753 = vand.u32 %v364, 4294901760
      %4754 = vmatpush.msra.mxu0 %v4753
      %v4755 = vand.u32 %v362, 4294901760
      %4756 = vmatpush.msra.mxu0 %v4755
      %v4757 = vand.u32 %v360, 4294901760
      %4758 = vmatpush.msra.mxu0 %v4757
      %v4759 = vand.u32 %v358, 4294901760
      %4760 = vmatpush.msra.mxu0 %v4759
      %v4761 = vand.u32 %v356, 4294901760
      %4762 = vmatpush.msra.mxu0 %v4761
      %v4763 = vand.u32 %v354, 4294901760
      %4764 = vmatpush.msra.mxu0 %v4763
      %v4765 = vand.u32 %v352, 4294901760
      %4766 = vmatpush.msra.mxu0 %v4765
      %v4767 = vand.u32 %v350, 4294901760
      %4768 = vmatpush.msra.mxu0 %v4767
      %v4769 = vand.u32 %v348, 4294901760
      %4770 = vmatpush.msra.mxu0 %v4769
      %v4771 = vand.u32 %v346, 4294901760
      %4772 = vmatpush.msra.mxu0 %v4771
      %v4773 = vand.u32 %v344, 4294901760
      %4774 = vmatpush.msra.mxu0 %v4773
      %v4775 = vand.u32 %v342, 4294901760
      %4776 = vmatpush.msra.mxu0 %v4775
      %v4777 = vand.u32 %v340, 4294901760
      %4778 = vmatpush.msra.mxu0 %v4777
      %v4779 = vand.u32 %v338, 4294901760
      %4780 = vmatpush.msra.mxu0 %v4779
      %v4781 = vand.u32 %v336, 4294901760
      %4782 = vmatpush.msra.mxu0 %v4781
      %v4783 = vand.u32 %v334, 4294901760
      %4784 = vmatpush.msra.mxu0 %v4783
      %v4785 = vand.u32 %v376, 4294901760
      %v4786 = vsub.f32 %v376, %v4785
      %v4787 = vand.u32 %v4786, 4294901760
      %v4788 = vsub.f32 %v4786, %v4787
      %v4789 = vand.u32 %v4788, 4294901760
      %4790 = vmatmul.f32.gmra.mxu0 %v4789
      %v4791 = vpop.f32.mrf.mxu0
      %v4792 = vadd.f32 %v4723, %v4791
      %v4793 = vand.u32 %v381, 4294901760
      %v4794 = vsub.f32 %v381, %v4793
      %v4795 = vand.u32 %v4794, 4294901760
      %v4796 = vsub.f32 %v4794, %v4795
      %v4797 = vand.u32 %v4796, 4294901760
      %4798 = vmatmul.f32.gmra.mxu0 %v4797
      %v4799 = vpop.f32.mrf.mxu0
      %v4800 = vadd.f32 %v4727, %v4799
      %v4801 = vand.u32 %v386, 4294901760
      %v4802 = vsub.f32 %v386, %v4801
      %v4803 = vand.u32 %v4802, 4294901760
      %v4804 = vsub.f32 %v4802, %v4803
      %v4805 = vand.u32 %v4804, 4294901760
      %4806 = vmatmul.f32.gmra.mxu0 %v4805
      %v4807 = vpop.f32.mrf.mxu0
      %v4808 = vadd.f32 %v4731, %v4807
      %v4809 = vand.u32 %v391, 4294901760
      %v4810 = vsub.f32 %v391, %v4809
      %v4811 = vand.u32 %v4810, 4294901760
      %v4812 = vsub.f32 %v4810, %v4811
      %v4813 = vand.u32 %v4812, 4294901760
      %4814 = vmatmul.f32.gmra.mxu0 %v4813
      %v4815 = vpop.f32.mrf.mxu0
      %v4816 = vadd.f32 %v4735, %v4815
      %v4817 = vand.u32 %v396, 4294901760
      %v4818 = vsub.f32 %v396, %v4817
      %v4819 = vand.u32 %v4818, 4294901760
      %v4820 = vsub.f32 %v4818, %v4819
      %v4821 = vand.u32 %v4820, 4294901760
      %4822 = vmatmul.f32.gmra.mxu0 %v4821
      %v4823 = vpop.f32.mrf.mxu0
      %v4824 = vadd.f32 %v4739, %v4823
      %v4825 = vand.u32 %v401, 4294901760
      %v4826 = vsub.f32 %v401, %v4825
      %v4827 = vand.u32 %v4826, 4294901760
      %v4828 = vsub.f32 %v4826, %v4827
      %v4829 = vand.u32 %v4828, 4294901760
      %4830 = vmatmul.f32.gmra.mxu0 %v4829
      %v4831 = vpop.f32.mrf.mxu0
      %v4832 = vadd.f32 %v4743, %v4831
      %v4833 = vand.u32 %v406, 4294901760
      %v4834 = vsub.f32 %v406, %v4833
      %v4835 = vand.u32 %v4834, 4294901760
      %v4836 = vsub.f32 %v4834, %v4835
      %v4837 = vand.u32 %v4836, 4294901760
      %4838 = vmatmul.f32.gmra.mxu0 %v4837
      %v4839 = vpop.f32.mrf.mxu0
      %v4840 = vadd.f32 %v4747, %v4839
      %v4841 = vand.u32 %v411, 4294901760
      %v4842 = vsub.f32 %v411, %v4841
      %v4843 = vand.u32 %v4842, 4294901760
      %v4844 = vsub.f32 %v4842, %v4843
      %v4845 = vand.u32 %v4844, 4294901760
      %4846 = vmatmul.f32.gmra.mxu0 %v4845
      %v4847 = vpop.f32.mrf.mxu0
      %v4848 = vadd.f32 %v4751, %v4847
      %4849 = vdwg.mxu0
      %v4850 = vand.u32 %v364, 4294901760
      %v4851 = vsub.f32 %v364, %v4850
      %v4852 = vand.u32 %v4851, 4294901760
      %v4853 = vsub.f32 %v4851, %v4852
      %v4854 = vand.u32 %v4853, 4294901760
      %4855 = vmatpush.msra.mxu0 %v4854
      %v4856 = vand.u32 %v362, 4294901760
      %v4857 = vsub.f32 %v362, %v4856
      %v4858 = vand.u32 %v4857, 4294901760
      %v4859 = vsub.f32 %v4857, %v4858
      %v4860 = vand.u32 %v4859, 4294901760
      %4861 = vmatpush.msra.mxu0 %v4860
      %v4862 = vand.u32 %v360, 4294901760
      %v4863 = vsub.f32 %v360, %v4862
      %v4864 = vand.u32 %v4863, 4294901760
      %v4865 = vsub.f32 %v4863, %v4864
      %v4866 = vand.u32 %v4865, 4294901760
      %4867 = vmatpush.msra.mxu0 %v4866
      %v4868 = vand.u32 %v358, 4294901760
      %v4869 = vsub.f32 %v358, %v4868
      %v4870 = vand.u32 %v4869, 4294901760
      %v4871 = vsub.f32 %v4869, %v4870
      %v4872 = vand.u32 %v4871, 4294901760
      %4873 = vmatpush.msra.mxu0 %v4872
      %v4874 = vand.u32 %v356, 4294901760
      %v4875 = vsub.f32 %v356, %v4874
      %v4876 = vand.u32 %v4875, 4294901760
      %v4877 = vsub.f32 %v4875, %v4876
      %v4878 = vand.u32 %v4877, 4294901760
      %4879 = vmatpush.msra.mxu0 %v4878
      %v4880 = vand.u32 %v354, 4294901760
      %v4881 = vsub.f32 %v354, %v4880
      %v4882 = vand.u32 %v4881, 4294901760
      %v4883 = vsub.f32 %v4881, %v4882
      %v4884 = vand.u32 %v4883, 4294901760
      %4885 = vmatpush.msra.mxu0 %v4884
      %v4886 = vand.u32 %v352, 4294901760
      %v4887 = vsub.f32 %v352, %v4886
      %v4888 = vand.u32 %v4887, 4294901760
      %v4889 = vsub.f32 %v4887, %v4888
      %v4890 = vand.u32 %v4889, 4294901760
      %4891 = vmatpush.msra.mxu0 %v4890
      %v4892 = vand.u32 %v350, 4294901760
      %v4893 = vsub.f32 %v350, %v4892
      %v4894 = vand.u32 %v4893, 4294901760
      %v4895 = vsub.f32 %v4893, %v4894
      %v4896 = vand.u32 %v4895, 4294901760
      %4897 = vmatpush.msra.mxu0 %v4896
      %v4898 = vand.u32 %v348, 4294901760
      %v4899 = vsub.f32 %v348, %v4898
      %v4900 = vand.u32 %v4899, 4294901760
      %v4901 = vsub.f32 %v4899, %v4900
      %v4902 = vand.u32 %v4901, 4294901760
      %4903 = vmatpush.msra.mxu0 %v4902
      %v4904 = vand.u32 %v346, 4294901760
      %v4905 = vsub.f32 %v346, %v4904
      %v4906 = vand.u32 %v4905, 4294901760
      %v4907 = vsub.f32 %v4905, %v4906
      %v4908 = vand.u32 %v4907, 4294901760
      %4909 = vmatpush.msra.mxu0 %v4908
      %v4910 = vand.u32 %v344, 4294901760
      %v4911 = vsub.f32 %v344, %v4910
      %v4912 = vand.u32 %v4911, 4294901760
      %v4913 = vsub.f32 %v4911, %v4912
      %v4914 = vand.u32 %v4913, 4294901760
      %4915 = vmatpush.msra.mxu0 %v4914
      %v4916 = vand.u32 %v342, 4294901760
      %v4917 = vsub.f32 %v342, %v4916
      %v4918 = vand.u32 %v4917, 4294901760
      %v4919 = vsub.f32 %v4917, %v4918
      %v4920 = vand.u32 %v4919, 4294901760
      %4921 = vmatpush.msra.mxu0 %v4920
      %v4922 = vand.u32 %v340, 4294901760
      %v4923 = vsub.f32 %v340, %v4922
      %v4924 = vand.u32 %v4923, 4294901760
      %v4925 = vsub.f32 %v4923, %v4924
      %v4926 = vand.u32 %v4925, 4294901760
      %4927 = vmatpush.msra.mxu0 %v4926
      %v4928 = vand.u32 %v338, 4294901760
      %v4929 = vsub.f32 %v338, %v4928
      %v4930 = vand.u32 %v4929, 4294901760
      %v4931 = vsub.f32 %v4929, %v4930
      %v4932 = vand.u32 %v4931, 4294901760
      %4933 = vmatpush.msra.mxu0 %v4932
      %v4934 = vand.u32 %v336, 4294901760
      %v4935 = vsub.f32 %v336, %v4934
      %v4936 = vand.u32 %v4935, 4294901760
      %v4937 = vsub.f32 %v4935, %v4936
      %v4938 = vand.u32 %v4937, 4294901760
      %4939 = vmatpush.msra.mxu0 %v4938
      %v4940 = vand.u32 %v334, 4294901760
      %v4941 = vsub.f32 %v334, %v4940
      %v4942 = vand.u32 %v4941, 4294901760
      %v4943 = vsub.f32 %v4941, %v4942
      %v4944 = vand.u32 %v4943, 4294901760
      %4945 = vmatpush.msra.mxu0 %v4944
      %v4946 = vand.u32 %v376, 4294901760
      %4947 = vmatmul.f32.gmra.mxu0 %v4946
      %v4948 = vpop.f32.mrf.mxu0
      %v4949 = vadd.f32 %v4792, %v4948
      %v4950 = vand.u32 %v381, 4294901760
      %4951 = vmatmul.f32.gmra.mxu0 %v4950
      %v4952 = vpop.f32.mrf.mxu0
      %v4953 = vadd.f32 %v4800, %v4952
      %v4954 = vand.u32 %v386, 4294901760
      %4955 = vmatmul.f32.gmra.mxu0 %v4954
      %v4956 = vpop.f32.mrf.mxu0
      %v4957 = vadd.f32 %v4808, %v4956
      %v4958 = vand.u32 %v391, 4294901760
      %4959 = vmatmul.f32.gmra.mxu0 %v4958
      %v4960 = vpop.f32.mrf.mxu0
      %v4961 = vadd.f32 %v4816, %v4960
      %v4962 = vand.u32 %v396, 4294901760
      %4963 = vmatmul.f32.gmra.mxu0 %v4962
      %v4964 = vpop.f32.mrf.mxu0
      %v4965 = vadd.f32 %v4824, %v4964
      %v4966 = vand.u32 %v401, 4294901760
      %4967 = vmatmul.f32.gmra.mxu0 %v4966
      %v4968 = vpop.f32.mrf.mxu0
      %v4969 = vadd.f32 %v4832, %v4968
      %v4970 = vand.u32 %v406, 4294901760
      %4971 = vmatmul.f32.gmra.mxu0 %v4970
      %v4972 = vpop.f32.mrf.mxu0
      %v4973 = vadd.f32 %v4840, %v4972
      %v4974 = vand.u32 %v411, 4294901760
      %4975 = vmatmul.f32.gmra.mxu0 %v4974
      %v4976 = vpop.f32.mrf.mxu0
      %v4977 = vadd.f32 %v4848, %v4976
      %4978 = vdwg.mxu0
      %v4979 = vand.u32 %v364, 4294901760
      %v4980 = vsub.f32 %v364, %v4979
      %4981 = vmatpush.msra.mxu0 %v4980
      %v4982 = vand.u32 %v362, 4294901760
      %v4983 = vsub.f32 %v362, %v4982
      %4984 = vmatpush.msra.mxu0 %v4983
      %v4985 = vand.u32 %v360, 4294901760
      %v4986 = vsub.f32 %v360, %v4985
      %4987 = vmatpush.msra.mxu0 %v4986
      %v4988 = vand.u32 %v358, 4294901760
      %v4989 = vsub.f32 %v358, %v4988
      %4990 = vmatpush.msra.mxu0 %v4989
      %v4991 = vand.u32 %v356, 4294901760
      %v4992 = vsub.f32 %v356, %v4991
      %4993 = vmatpush.msra.mxu0 %v4992
      %v4994 = vand.u32 %v354, 4294901760
      %v4995 = vsub.f32 %v354, %v4994
      %4996 = vmatpush.msra.mxu0 %v4995
      %v4997 = vand.u32 %v352, 4294901760
      %v4998 = vsub.f32 %v352, %v4997
      %4999 = vmatpush.msra.mxu0 %v4998
      %v5000 = vand.u32 %v350, 4294901760
      %v5001 = vsub.f32 %v350, %v5000
      %5002 = vmatpush.msra.mxu0 %v5001
      %v5003 = vand.u32 %v348, 4294901760
      %v5004 = vsub.f32 %v348, %v5003
      %5005 = vmatpush.msra.mxu0 %v5004
      %v5006 = vand.u32 %v346, 4294901760
      %v5007 = vsub.f32 %v346, %v5006
      %5008 = vmatpush.msra.mxu0 %v5007
      %v5009 = vand.u32 %v344, 4294901760
      %v5010 = vsub.f32 %v344, %v5009
      %5011 = vmatpush.msra.mxu0 %v5010
      %v5012 = vand.u32 %v342, 4294901760
      %v5013 = vsub.f32 %v342, %v5012
      %5014 = vmatpush.msra.mxu0 %v5013
      %v5015 = vand.u32 %v340, 4294901760
      %v5016 = vsub.f32 %v340, %v5015
      %5017 = vmatpush.msra.mxu0 %v5016
      %v5018 = vand.u32 %v338, 4294901760
      %v5019 = vsub.f32 %v338, %v5018
      %5020 = vmatpush.msra.mxu0 %v5019
      %v5021 = vand.u32 %v336, 4294901760
      %v5022 = vsub.f32 %v336, %v5021
      %5023 = vmatpush.msra.mxu0 %v5022
      %v5024 = vand.u32 %v334, 4294901760
      %v5025 = vsub.f32 %v334, %v5024
      %5026 = vmatpush.msra.mxu0 %v5025
      %v5027 = vand.u32 %v376, 4294901760
      %v5028 = vsub.f32 %v376, %v5027
      %5029 = vmatmul.f32.gmra.mxu0 %v5028
      %v5030 = vpop.f32.mrf.mxu0
      %v5031 = vadd.f32 %v4949, %v5030
      %v5032 = vand.u32 %v381, 4294901760
      %v5033 = vsub.f32 %v381, %v5032
      %5034 = vmatmul.f32.gmra.mxu0 %v5033
      %v5035 = vpop.f32.mrf.mxu0
      %v5036 = vadd.f32 %v4953, %v5035
      %v5037 = vand.u32 %v386, 4294901760
      %v5038 = vsub.f32 %v386, %v5037
      %5039 = vmatmul.f32.gmra.mxu0 %v5038
      %v5040 = vpop.f32.mrf.mxu0
      %v5041 = vadd.f32 %v4957, %v5040
      %v5042 = vand.u32 %v391, 4294901760
      %v5043 = vsub.f32 %v391, %v5042
      %5044 = vmatmul.f32.gmra.mxu0 %v5043
      %v5045 = vpop.f32.mrf.mxu0
      %v5046 = vadd.f32 %v4961, %v5045
      %v5047 = vand.u32 %v396, 4294901760
      %v5048 = vsub.f32 %v396, %v5047
      %5049 = vmatmul.f32.gmra.mxu0 %v5048
      %v5050 = vpop.f32.mrf.mxu0
      %v5051 = vadd.f32 %v4965, %v5050
      %v5052 = vand.u32 %v401, 4294901760
      %v5053 = vsub.f32 %v401, %v5052
      %5054 = vmatmul.f32.gmra.mxu0 %v5053
      %v5055 = vpop.f32.mrf.mxu0
      %v5056 = vadd.f32 %v4969, %v5055
      %v5057 = vand.u32 %v406, 4294901760
      %v5058 = vsub.f32 %v406, %v5057
      %5059 = vmatmul.f32.gmra.mxu0 %v5058
      %v5060 = vpop.f32.mrf.mxu0
      %v5061 = vadd.f32 %v4973, %v5060
      %v5062 = vand.u32 %v411, 4294901760
      %v5063 = vsub.f32 %v411, %v5062
      %5064 = vmatmul.f32.gmra.mxu0 %v5063
      %v5065 = vpop.f32.mrf.mxu0
      %v5066 = vadd.f32 %v4977, %v5065
      %5067 = vdwg.mxu0
      %v5068 = vand.u32 %v364, 4294901760
      %5069 = vmatpush.msra.mxu0 %v5068
      %v5070 = vand.u32 %v362, 4294901760
      %5071 = vmatpush.msra.mxu0 %v5070
      %v5072 = vand.u32 %v360, 4294901760
      %5073 = vmatpush.msra.mxu0 %v5072
      %v5074 = vand.u32 %v358, 4294901760
      %5075 = vmatpush.msra.mxu0 %v5074
      %v5076 = vand.u32 %v356, 4294901760
      %5077 = vmatpush.msra.mxu0 %v5076
      %v5078 = vand.u32 %v354, 4294901760
      %5079 = vmatpush.msra.mxu0 %v5078
      %v5080 = vand.u32 %v352, 4294901760
      %5081 = vmatpush.msra.mxu0 %v5080
      %v5082 = vand.u32 %v350, 4294901760
      %5083 = vmatpush.msra.mxu0 %v5082
      %v5084 = vand.u32 %v348, 4294901760
      %5085 = vmatpush.msra.mxu0 %v5084
      %v5086 = vand.u32 %v346, 4294901760
      %5087 = vmatpush.msra.mxu0 %v5086
      %v5088 = vand.u32 %v344, 4294901760
      %5089 = vmatpush.msra.mxu0 %v5088
      %v5090 = vand.u32 %v342, 4294901760
      %5091 = vmatpush.msra.mxu0 %v5090
      %v5092 = vand.u32 %v340, 4294901760
      %5093 = vmatpush.msra.mxu0 %v5092
      %v5094 = vand.u32 %v338, 4294901760
      %5095 = vmatpush.msra.mxu0 %v5094
      %v5096 = vand.u32 %v336, 4294901760
      %5097 = vmatpush.msra.mxu0 %v5096
      %v5098 = vand.u32 %v334, 4294901760
      %5099 = vmatpush.msra.mxu0 %v5098
      %v5100 = vand.u32 %v376, 4294901760
      %v5101 = vsub.f32 %v376, %v5100
      %v5102 = vand.u32 %v5101, 4294901760
      %5103 = vmatmul.f32.gmra.mxu0 %v5102
      %v5104 = vpop.f32.mrf.mxu0
      %v5105 = vadd.f32 %v5031, %v5104
      %v5106 = vand.u32 %v381, 4294901760
      %v5107 = vsub.f32 %v381, %v5106
      %v5108 = vand.u32 %v5107, 4294901760
      %5109 = vmatmul.f32.gmra.mxu0 %v5108
      %v5110 = vpop.f32.mrf.mxu0
      %v5111 = vadd.f32 %v5036, %v5110
      %v5112 = vand.u32 %v386, 4294901760
      %v5113 = vsub.f32 %v386, %v5112
      %v5114 = vand.u32 %v5113, 4294901760
      %5115 = vmatmul.f32.gmra.mxu0 %v5114
      %v5116 = vpop.f32.mrf.mxu0
      %v5117 = vadd.f32 %v5041, %v5116
      %v5118 = vand.u32 %v391, 4294901760
      %v5119 = vsub.f32 %v391, %v5118
      %v5120 = vand.u32 %v5119, 4294901760
      %5121 = vmatmul.f32.gmra.mxu0 %v5120
      %v5122 = vpop.f32.mrf.mxu0
      %v5123 = vadd.f32 %v5046, %v5122
      %v5124 = vand.u32 %v396, 4294901760
      %v5125 = vsub.f32 %v396, %v5124
      %v5126 = vand.u32 %v5125, 4294901760
      %5127 = vmatmul.f32.gmra.mxu0 %v5126
      %v5128 = vpop.f32.mrf.mxu0
      %v5129 = vadd.f32 %v5051, %v5128
      %v5130 = vand.u32 %v401, 4294901760
      %v5131 = vsub.f32 %v401, %v5130
      %v5132 = vand.u32 %v5131, 4294901760
      %5133 = vmatmul.f32.gmra.mxu0 %v5132
      %v5134 = vpop.f32.mrf.mxu0
      %v5135 = vadd.f32 %v5056, %v5134
      %v5136 = vand.u32 %v406, 4294901760
      %v5137 = vsub.f32 %v406, %v5136
      %v5138 = vand.u32 %v5137, 4294901760
      %5139 = vmatmul.f32.gmra.mxu0 %v5138
      %v5140 = vpop.f32.mrf.mxu0
      %v5141 = vadd.f32 %v5061, %v5140
      %v5142 = vand.u32 %v411, 4294901760
      %v5143 = vsub.f32 %v411, %v5142
      %v5144 = vand.u32 %v5143, 4294901760
      %5145 = vmatmul.f32.gmra.mxu0 %v5144
      %v5146 = vpop.f32.mrf.mxu0
      %v5147 = vadd.f32 %v5066, %v5146
      %5148 = vdwg.mxu0
      %v5149 = vand.u32 %v364, 4294901760
      %v5150 = vsub.f32 %v364, %v5149
      %v5151 = vand.u32 %v5150, 4294901760
      %5152 = vmatpush.msra.mxu0 %v5151
      %v5153 = vand.u32 %v362, 4294901760
      %v5154 = vsub.f32 %v362, %v5153
      %v5155 = vand.u32 %v5154, 4294901760
      %5156 = vmatpush.msra.mxu0 %v5155
      %v5157 = vand.u32 %v360, 4294901760
      %v5158 = vsub.f32 %v360, %v5157
      %v5159 = vand.u32 %v5158, 4294901760
      %5160 = vmatpush.msra.mxu0 %v5159
      %v5161 = vand.u32 %v358, 4294901760
      %v5162 = vsub.f32 %v358, %v5161
      %v5163 = vand.u32 %v5162, 4294901760
      %5164 = vmatpush.msra.mxu0 %v5163
      %v5165 = vand.u32 %v356, 4294901760
      %v5166 = vsub.f32 %v356, %v5165
      %v5167 = vand.u32 %v5166, 4294901760
      %5168 = vmatpush.msra.mxu0 %v5167
      %v5169 = vand.u32 %v354, 4294901760
      %v5170 = vsub.f32 %v354, %v5169
      %v5171 = vand.u32 %v5170, 4294901760
      %5172 = vmatpush.msra.mxu0 %v5171
      %v5173 = vand.u32 %v352, 4294901760
      %v5174 = vsub.f32 %v352, %v5173
      %v5175 = vand.u32 %v5174, 4294901760
      %5176 = vmatpush.msra.mxu0 %v5175
      %v5177 = vand.u32 %v350, 4294901760
      %v5178 = vsub.f32 %v350, %v5177
      %v5179 = vand.u32 %v5178, 4294901760
      %5180 = vmatpush.msra.mxu0 %v5179
      %v5181 = vand.u32 %v348, 4294901760
      %v5182 = vsub.f32 %v348, %v5181
      %v5183 = vand.u32 %v5182, 4294901760
      %5184 = vmatpush.msra.mxu0 %v5183
      %v5185 = vand.u32 %v346, 4294901760
      %v5186 = vsub.f32 %v346, %v5185
      %v5187 = vand.u32 %v5186, 4294901760
      %5188 = vmatpush.msra.mxu0 %v5187
      %v5189 = vand.u32 %v344, 4294901760
      %v5190 = vsub.f32 %v344, %v5189
      %v5191 = vand.u32 %v5190, 4294901760
      %5192 = vmatpush.msra.mxu0 %v5191
      %v5193 = vand.u32 %v342, 4294901760
      %v5194 = vsub.f32 %v342, %v5193
      %v5195 = vand.u32 %v5194, 4294901760
      %5196 = vmatpush.msra.mxu0 %v5195
      %v5197 = vand.u32 %v340, 4294901760
      %v5198 = vsub.f32 %v340, %v5197
      %v5199 = vand.u32 %v5198, 4294901760
      %5200 = vmatpush.msra.mxu0 %v5199
      %v5201 = vand.u32 %v338, 4294901760
      %v5202 = vsub.f32 %v338, %v5201
      %v5203 = vand.u32 %v5202, 4294901760
      %5204 = vmatpush.msra.mxu0 %v5203
      %v5205 = vand.u32 %v336, 4294901760
      %v5206 = vsub.f32 %v336, %v5205
      %v5207 = vand.u32 %v5206, 4294901760
      %5208 = vmatpush.msra.mxu0 %v5207
      %v5209 = vand.u32 %v334, 4294901760
      %v5210 = vsub.f32 %v334, %v5209
      %v5211 = vand.u32 %v5210, 4294901760
      %5212 = vmatpush.msra.mxu0 %v5211
      %v5213 = vand.u32 %v376, 4294901760
      %5214 = vmatmul.f32.gmra.mxu0 %v5213
      %v5215 = vpop.f32.mrf.mxu0
      %v5216 = vadd.f32 %v5105, %v5215
      %v5217 = vand.u32 %v381, 4294901760
      %5218 = vmatmul.f32.gmra.mxu0 %v5217
      %v5219 = vpop.f32.mrf.mxu0
      %v5220 = vadd.f32 %v5111, %v5219
      %v5221 = vand.u32 %v386, 4294901760
      %5222 = vmatmul.f32.gmra.mxu0 %v5221
      %v5223 = vpop.f32.mrf.mxu0
      %v5224 = vadd.f32 %v5117, %v5223
      %v5225 = vand.u32 %v391, 4294901760
      %5226 = vmatmul.f32.gmra.mxu0 %v5225
      %v5227 = vpop.f32.mrf.mxu0
      %v5228 = vadd.f32 %v5123, %v5227
      %v5229 = vand.u32 %v396, 4294901760
      %5230 = vmatmul.f32.gmra.mxu0 %v5229
      %v5231 = vpop.f32.mrf.mxu0
      %v5232 = vadd.f32 %v5129, %v5231
      %v5233 = vand.u32 %v401, 4294901760
      %5234 = vmatmul.f32.gmra.mxu0 %v5233
      %v5235 = vpop.f32.mrf.mxu0
      %v5236 = vadd.f32 %v5135, %v5235
      %v5237 = vand.u32 %v406, 4294901760
      %5238 = vmatmul.f32.gmra.mxu0 %v5237
      %v5239 = vpop.f32.mrf.mxu0
      %v5240 = vadd.f32 %v5141, %v5239
      %v5241 = vand.u32 %v411, 4294901760
      %5242 = vmatmul.f32.gmra.mxu0 %v5241
      %v5243 = vpop.f32.mrf.mxu0
      %v5244 = vadd.f32 %v5147, %v5243
      %5245 = vdwg.mxu0
      %v5246 = vand.u32 %v364, 4294901760
      %5247 = vmatpush.msra.mxu0 %v5246
      %v5248 = vand.u32 %v362, 4294901760
      %5249 = vmatpush.msra.mxu0 %v5248
      %v5250 = vand.u32 %v360, 4294901760
      %5251 = vmatpush.msra.mxu0 %v5250
      %v5252 = vand.u32 %v358, 4294901760
      %5253 = vmatpush.msra.mxu0 %v5252
      %v5254 = vand.u32 %v356, 4294901760
      %5255 = vmatpush.msra.mxu0 %v5254
      %v5256 = vand.u32 %v354, 4294901760
      %5257 = vmatpush.msra.mxu0 %v5256
      %v5258 = vand.u32 %v352, 4294901760
      %5259 = vmatpush.msra.mxu0 %v5258
      %v5260 = vand.u32 %v350, 4294901760
      %5261 = vmatpush.msra.mxu0 %v5260
      %v5262 = vand.u32 %v348, 4294901760
      %5263 = vmatpush.msra.mxu0 %v5262
      %v5264 = vand.u32 %v346, 4294901760
      %5265 = vmatpush.msra.mxu0 %v5264
      %v5266 = vand.u32 %v344, 4294901760
      %5267 = vmatpush.msra.mxu0 %v5266
      %v5268 = vand.u32 %v342, 4294901760
      %5269 = vmatpush.msra.mxu0 %v5268
      %v5270 = vand.u32 %v340, 4294901760
      %5271 = vmatpush.msra.mxu0 %v5270
      %v5272 = vand.u32 %v338, 4294901760
      %5273 = vmatpush.msra.mxu0 %v5272
      %v5274 = vand.u32 %v336, 4294901760
      %5275 = vmatpush.msra.mxu0 %v5274
      %v5276 = vand.u32 %v334, 4294901760
      %5277 = vmatpush.msra.mxu0 %v5276
      %v5278 = vand.u32 %v376, 4294901760
      %5279 = vmatmul.f32.gmra.mxu0 %v5278
      %v5280 = vpop.f32.mrf.mxu0
      %v5281 = vadd.f32 %v5216, %v5280
      %v5282 = vand.u32 %v381, 4294901760
      %5283 = vmatmul.f32.gmra.mxu0 %v5282
      %v5284 = vpop.f32.mrf.mxu0
      %v5285 = vadd.f32 %v5220, %v5284
      %v5286 = vand.u32 %v386, 4294901760
      %5287 = vmatmul.f32.gmra.mxu0 %v5286
      %v5288 = vpop.f32.mrf.mxu0
      %v5289 = vadd.f32 %v5224, %v5288
      %v5290 = vand.u32 %v391, 4294901760
      %5291 = vmatmul.f32.gmra.mxu0 %v5290
      %v5292 = vpop.f32.mrf.mxu0
      %v5293 = vadd.f32 %v5228, %v5292
      %v5294 = vand.u32 %v396, 4294901760
      %5295 = vmatmul.f32.gmra.mxu0 %v5294
      %v5296 = vpop.f32.mrf.mxu0
      %v5297 = vadd.f32 %v5232, %v5296
      %v5298 = vand.u32 %v401, 4294901760
      %5299 = vmatmul.f32.gmra.mxu0 %v5298
      %v5300 = vpop.f32.mrf.mxu0
      %v5301 = vadd.f32 %v5236, %v5300
      %v5302 = vand.u32 %v406, 4294901760
      %5303 = vmatmul.f32.gmra.mxu0 %v5302
      %v5304 = vpop.f32.mrf.mxu0
      %v5305 = vadd.f32 %v5240, %v5304
      %v5306 = vand.u32 %v411, 4294901760
      %5307 = vmatmul.f32.gmra.mxu0 %v5306
      %v5308 = vpop.f32.mrf.mxu0
      %v5309 = vadd.f32 %v5244, %v5308
      %5310 = vdwg.mxu0
      %5311 = vmatpush.msra.mxu0 0.0
      %5312 = vmatpush.msra.mxu0 0.0
      %5313 = vmatpush.msra.mxu0 0.0
      %5314 = vmatpush.msra.mxu0 0.0
      %5315 = vmatpush.msra.mxu0 0.0
      %5316 = vmatpush.msra.mxu0 0.0
      %5317 = vmatpush.msra.mxu0 0.0
      %5318 = vmatpush.msra.mxu0 0.0
      %5319 = vmatpush.msra.mxu0 0.0
      %5320 = vmatpush.msra.mxu0 0.0
      %5321 = vmatpush.msra.mxu0 0.0
      %5322 = vmatpush.msra.mxu0 0.0
      %v5323 = vand.u32 %v443, 4294901760
      %5324 = vmatpush.msra.mxu0 %v5323
      %v5325 = vand.u32 %v370, 4294901760
      %5326 = vmatpush.msra.mxu0 %v5325
      %v5327 = vand.u32 %v368, 4294901760
      %5328 = vmatpush.msra.mxu0 %v5327
      %v5329 = vand.u32 %v366, 4294901760
      %5330 = vmatpush.msra.mxu0 %v5329
      %v5331 = vand.u32 %v415, 4294901760
      %v5332 = vsub.f32 %v415, %v5331
      %v5333 = vand.u32 %v5332, 4294901760
      %v5334 = vsub.f32 %v5332, %v5333
      %v5335 = vand.u32 %v5334, 4294901760
      %5336 = vmatmul.f32.gmra.mxu0 %v5335
      %v5337 = vpop.f32.mrf.mxu0
      %v5338 = vadd.f32 %v5281, %v5337
      %v5339 = vand.u32 %v418, 4294901760
      %v5340 = vsub.f32 %v418, %v5339
      %v5341 = vand.u32 %v5340, 4294901760
      %v5342 = vsub.f32 %v5340, %v5341
      %v5343 = vand.u32 %v5342, 4294901760
      %5344 = vmatmul.f32.gmra.mxu0 %v5343
      %v5345 = vpop.f32.mrf.mxu0
      %v5346 = vadd.f32 %v5285, %v5345
      %v5347 = vand.u32 %v421, 4294901760
      %v5348 = vsub.f32 %v421, %v5347
      %v5349 = vand.u32 %v5348, 4294901760
      %v5350 = vsub.f32 %v5348, %v5349
      %v5351 = vand.u32 %v5350, 4294901760
      %5352 = vmatmul.f32.gmra.mxu0 %v5351
      %v5353 = vpop.f32.mrf.mxu0
      %v5354 = vadd.f32 %v5289, %v5353
      %v5355 = vand.u32 %v424, 4294901760
      %v5356 = vsub.f32 %v424, %v5355
      %v5357 = vand.u32 %v5356, 4294901760
      %v5358 = vsub.f32 %v5356, %v5357
      %v5359 = vand.u32 %v5358, 4294901760
      %5360 = vmatmul.f32.gmra.mxu0 %v5359
      %v5361 = vpop.f32.mrf.mxu0
      %v5362 = vadd.f32 %v5293, %v5361
      %v5363 = vand.u32 %v427, 4294901760
      %v5364 = vsub.f32 %v427, %v5363
      %v5365 = vand.u32 %v5364, 4294901760
      %v5366 = vsub.f32 %v5364, %v5365
      %v5367 = vand.u32 %v5366, 4294901760
      %5368 = vmatmul.f32.gmra.mxu0 %v5367
      %v5369 = vpop.f32.mrf.mxu0
      %v5370 = vadd.f32 %v5297, %v5369
      %v5371 = vand.u32 %v430, 4294901760
      %v5372 = vsub.f32 %v430, %v5371
      %v5373 = vand.u32 %v5372, 4294901760
      %v5374 = vsub.f32 %v5372, %v5373
      %v5375 = vand.u32 %v5374, 4294901760
      %5376 = vmatmul.f32.gmra.mxu0 %v5375
      %v5377 = vpop.f32.mrf.mxu0
      %v5378 = vadd.f32 %v5301, %v5377
      %v5379 = vand.u32 %v433, 4294901760
      %v5380 = vsub.f32 %v433, %v5379
      %v5381 = vand.u32 %v5380, 4294901760
      %v5382 = vsub.f32 %v5380, %v5381
      %v5383 = vand.u32 %v5382, 4294901760
      %5384 = vmatmul.f32.gmra.mxu0 %v5383
      %v5385 = vpop.f32.mrf.mxu0
      %v5386 = vadd.f32 %v5305, %v5385
      %v5387 = vand.u32 %v436, 4294901760
      %v5388 = vsub.f32 %v436, %v5387
      %v5389 = vand.u32 %v5388, 4294901760
      %v5390 = vsub.f32 %v5388, %v5389
      %v5391 = vand.u32 %v5390, 4294901760
      %5392 = vmatmul.f32.gmra.mxu0 %v5391
      %v5393 = vpop.f32.mrf.mxu0
      %v5394 = vadd.f32 %v5309, %v5393
      %5395 = vdwg.mxu0
      %5396 = vmatpush.msra.mxu0 0.0
      %5397 = vmatpush.msra.mxu0 0.0
      %5398 = vmatpush.msra.mxu0 0.0
      %5399 = vmatpush.msra.mxu0 0.0
      %5400 = vmatpush.msra.mxu0 0.0
      %5401 = vmatpush.msra.mxu0 0.0
      %5402 = vmatpush.msra.mxu0 0.0
      %5403 = vmatpush.msra.mxu0 0.0
      %5404 = vmatpush.msra.mxu0 0.0
      %5405 = vmatpush.msra.mxu0 0.0
      %5406 = vmatpush.msra.mxu0 0.0
      %5407 = vmatpush.msra.mxu0 0.0
      %v5408 = vand.u32 %v443, 4294901760
      %v5409 = vsub.f32 %v443, %v5408
      %v5410 = vand.u32 %v5409, 4294901760
      %v5411 = vsub.f32 %v5409, %v5410
      %v5412 = vand.u32 %v5411, 4294901760
      %5413 = vmatpush.msra.mxu0 %v5412
      %v5414 = vand.u32 %v370, 4294901760
      %v5415 = vsub.f32 %v370, %v5414
      %v5416 = vand.u32 %v5415, 4294901760
      %v5417 = vsub.f32 %v5415, %v5416
      %v5418 = vand.u32 %v5417, 4294901760
      %5419 = vmatpush.msra.mxu0 %v5418
      %v5420 = vand.u32 %v368, 4294901760
      %v5421 = vsub.f32 %v368, %v5420
      %v5422 = vand.u32 %v5421, 4294901760
      %v5423 = vsub.f32 %v5421, %v5422
      %v5424 = vand.u32 %v5423, 4294901760
      %5425 = vmatpush.msra.mxu0 %v5424
      %v5426 = vand.u32 %v366, 4294901760
      %v5427 = vsub.f32 %v366, %v5426
      %v5428 = vand.u32 %v5427, 4294901760
      %v5429 = vsub.f32 %v5427, %v5428
      %v5430 = vand.u32 %v5429, 4294901760
      %5431 = vmatpush.msra.mxu0 %v5430
      %v5432 = vand.u32 %v415, 4294901760
      %5433 = vmatmul.f32.gmra.mxu0 %v5432
      %v5434 = vpop.f32.mrf.mxu0
      %v5435 = vadd.f32 %v5338, %v5434
      %v5436 = vand.u32 %v418, 4294901760
      %5437 = vmatmul.f32.gmra.mxu0 %v5436
      %v5438 = vpop.f32.mrf.mxu0
      %v5439 = vadd.f32 %v5346, %v5438
      %v5440 = vand.u32 %v421, 4294901760
      %5441 = vmatmul.f32.gmra.mxu0 %v5440
      %v5442 = vpop.f32.mrf.mxu0
      %v5443 = vadd.f32 %v5354, %v5442
      %v5444 = vand.u32 %v424, 4294901760
      %5445 = vmatmul.f32.gmra.mxu0 %v5444
      %v5446 = vpop.f32.mrf.mxu0
      %v5447 = vadd.f32 %v5362, %v5446
      %v5448 = vand.u32 %v427, 4294901760
      %5449 = vmatmul.f32.gmra.mxu0 %v5448
      %v5450 = vpop.f32.mrf.mxu0
      %v5451 = vadd.f32 %v5370, %v5450
      %v5452 = vand.u32 %v430, 4294901760
      %5453 = vmatmul.f32.gmra.mxu0 %v5452
      %v5454 = vpop.f32.mrf.mxu0
      %v5455 = vadd.f32 %v5378, %v5454
      %v5456 = vand.u32 %v433, 4294901760
      %5457 = vmatmul.f32.gmra.mxu0 %v5456
      %v5458 = vpop.f32.mrf.mxu0
      %v5459 = vadd.f32 %v5386, %v5458
      %v5460 = vand.u32 %v436, 4294901760
      %5461 = vmatmul.f32.gmra.mxu0 %v5460
      %v5462 = vpop.f32.mrf.mxu0
      %v5463 = vadd.f32 %v5394, %v5462
      %5464 = vdwg.mxu0
      %5465 = vmatpush.msra.mxu0 0.0
      %5466 = vmatpush.msra.mxu0 0.0
      %5467 = vmatpush.msra.mxu0 0.0
      %5468 = vmatpush.msra.mxu0 0.0
      %5469 = vmatpush.msra.mxu0 0.0
      %5470 = vmatpush.msra.mxu0 0.0
      %5471 = vmatpush.msra.mxu0 0.0
      %5472 = vmatpush.msra.mxu0 0.0
      %5473 = vmatpush.msra.mxu0 0.0
      %5474 = vmatpush.msra.mxu0 0.0
      %5475 = vmatpush.msra.mxu0 0.0
      %5476 = vmatpush.msra.mxu0 0.0
      %v5477 = vand.u32 %v443, 4294901760
      %v5478 = vsub.f32 %v443, %v5477
      %5479 = vmatpush.msra.mxu0 %v5478
      %v5480 = vand.u32 %v370, 4294901760
      %v5481 = vsub.f32 %v370, %v5480
      %5482 = vmatpush.msra.mxu0 %v5481
      %v5483 = vand.u32 %v368, 4294901760
      %v5484 = vsub.f32 %v368, %v5483
      %5485 = vmatpush.msra.mxu0 %v5484
      %v5486 = vand.u32 %v366, 4294901760
      %v5487 = vsub.f32 %v366, %v5486
      %5488 = vmatpush.msra.mxu0 %v5487
      %v5489 = vand.u32 %v415, 4294901760
      %v5490 = vsub.f32 %v415, %v5489
      %5491 = vmatmul.f32.gmra.mxu0 %v5490
      %v5492 = vpop.f32.mrf.mxu0
      %v5493 = vadd.f32 %v5435, %v5492
      %v5494 = vand.u32 %v418, 4294901760
      %v5495 = vsub.f32 %v418, %v5494
      %5496 = vmatmul.f32.gmra.mxu0 %v5495
      %v5497 = vpop.f32.mrf.mxu0
      %v5498 = vadd.f32 %v5439, %v5497
      %v5499 = vand.u32 %v421, 4294901760
      %v5500 = vsub.f32 %v421, %v5499
      %5501 = vmatmul.f32.gmra.mxu0 %v5500
      %v5502 = vpop.f32.mrf.mxu0
      %v5503 = vadd.f32 %v5443, %v5502
      %v5504 = vand.u32 %v424, 4294901760
      %v5505 = vsub.f32 %v424, %v5504
      %5506 = vmatmul.f32.gmra.mxu0 %v5505
      %v5507 = vpop.f32.mrf.mxu0
      %v5508 = vadd.f32 %v5447, %v5507
      %v5509 = vand.u32 %v427, 4294901760
      %v5510 = vsub.f32 %v427, %v5509
      %5511 = vmatmul.f32.gmra.mxu0 %v5510
      %v5512 = vpop.f32.mrf.mxu0
      %v5513 = vadd.f32 %v5451, %v5512
      %v5514 = vand.u32 %v430, 4294901760
      %v5515 = vsub.f32 %v430, %v5514
      %5516 = vmatmul.f32.gmra.mxu0 %v5515
      %v5517 = vpop.f32.mrf.mxu0
      %v5518 = vadd.f32 %v5455, %v5517
      %v5519 = vand.u32 %v433, 4294901760
      %v5520 = vsub.f32 %v433, %v5519
      %5521 = vmatmul.f32.gmra.mxu0 %v5520
      %v5522 = vpop.f32.mrf.mxu0
      %v5523 = vadd.f32 %v5459, %v5522
      %v5524 = vand.u32 %v436, 4294901760
      %v5525 = vsub.f32 %v436, %v5524
      %5526 = vmatmul.f32.gmra.mxu0 %v5525
      %v5527 = vpop.f32.mrf.mxu0
      %v5528 = vadd.f32 %v5463, %v5527
      %5529 = vdwg.mxu0
      %5530 = vmatpush.msra.mxu0 0.0
      %5531 = vmatpush.msra.mxu0 0.0
      %5532 = vmatpush.msra.mxu0 0.0
      %5533 = vmatpush.msra.mxu0 0.0
      %5534 = vmatpush.msra.mxu0 0.0
      %5535 = vmatpush.msra.mxu0 0.0
      %5536 = vmatpush.msra.mxu0 0.0
      %5537 = vmatpush.msra.mxu0 0.0
      %5538 = vmatpush.msra.mxu0 0.0
      %5539 = vmatpush.msra.mxu0 0.0
      %5540 = vmatpush.msra.mxu0 0.0
      %5541 = vmatpush.msra.mxu0 0.0
      %v5542 = vand.u32 %v443, 4294901760
      %5543 = vmatpush.msra.mxu0 %v5542
      %v5544 = vand.u32 %v370, 4294901760
      %5545 = vmatpush.msra.mxu0 %v5544
      %v5546 = vand.u32 %v368, 4294901760
      %5547 = vmatpush.msra.mxu0 %v5546
      %v5548 = vand.u32 %v366, 4294901760
      %5549 = vmatpush.msra.mxu0 %v5548
      %v5550 = vand.u32 %v415, 4294901760
      %v5551 = vsub.f32 %v415, %v5550
      %v5552 = vand.u32 %v5551, 4294901760
      %5553 = vmatmul.f32.gmra.mxu0 %v5552
      %v5554 = vpop.f32.mrf.mxu0
      %v5555 = vadd.f32 %v5493, %v5554
      %v5556 = vand.u32 %v418, 4294901760
      %v5557 = vsub.f32 %v418, %v5556
      %v5558 = vand.u32 %v5557, 4294901760
      %5559 = vmatmul.f32.gmra.mxu0 %v5558
      %v5560 = vpop.f32.mrf.mxu0
      %v5561 = vadd.f32 %v5498, %v5560
      %v5562 = vand.u32 %v421, 4294901760
      %v5563 = vsub.f32 %v421, %v5562
      %v5564 = vand.u32 %v5563, 4294901760
      %5565 = vmatmul.f32.gmra.mxu0 %v5564
      %v5566 = vpop.f32.mrf.mxu0
      %v5567 = vadd.f32 %v5503, %v5566
      %v5568 = vand.u32 %v424, 4294901760
      %v5569 = vsub.f32 %v424, %v5568
      %v5570 = vand.u32 %v5569, 4294901760
      %5571 = vmatmul.f32.gmra.mxu0 %v5570
      %v5572 = vpop.f32.mrf.mxu0
      %v5573 = vadd.f32 %v5508, %v5572
      %v5574 = vand.u32 %v427, 4294901760
      %v5575 = vsub.f32 %v427, %v5574
      %v5576 = vand.u32 %v5575, 4294901760
      %5577 = vmatmul.f32.gmra.mxu0 %v5576
      %v5578 = vpop.f32.mrf.mxu0
      %v5579 = vadd.f32 %v5513, %v5578
      %v5580 = vand.u32 %v430, 4294901760
      %v5581 = vsub.f32 %v430, %v5580
      %v5582 = vand.u32 %v5581, 4294901760
      %5583 = vmatmul.f32.gmra.mxu0 %v5582
      %v5584 = vpop.f32.mrf.mxu0
      %v5585 = vadd.f32 %v5518, %v5584
      %v5586 = vand.u32 %v433, 4294901760
      %v5587 = vsub.f32 %v433, %v5586
      %v5588 = vand.u32 %v5587, 4294901760
      %5589 = vmatmul.f32.gmra.mxu0 %v5588
      %v5590 = vpop.f32.mrf.mxu0
      %v5591 = vadd.f32 %v5523, %v5590
      %v5592 = vand.u32 %v436, 4294901760
      %v5593 = vsub.f32 %v436, %v5592
      %v5594 = vand.u32 %v5593, 4294901760
      %5595 = vmatmul.f32.gmra.mxu0 %v5594
      %v5596 = vpop.f32.mrf.mxu0
      %v5597 = vadd.f32 %v5528, %v5596
      %5598 = vdwg.mxu0
      %5599 = vmatpush.msra.mxu0 0.0
      %5600 = vmatpush.msra.mxu0 0.0
      %5601 = vmatpush.msra.mxu0 0.0
      %5602 = vmatpush.msra.mxu0 0.0
      %5603 = vmatpush.msra.mxu0 0.0
      %5604 = vmatpush.msra.mxu0 0.0
      %5605 = vmatpush.msra.mxu0 0.0
      %5606 = vmatpush.msra.mxu0 0.0
      %5607 = vmatpush.msra.mxu0 0.0
      %5608 = vmatpush.msra.mxu0 0.0
      %5609 = vmatpush.msra.mxu0 0.0
      %5610 = vmatpush.msra.mxu0 0.0
      %v5611 = vand.u32 %v443, 4294901760
      %v5612 = vsub.f32 %v443, %v5611
      %v5613 = vand.u32 %v5612, 4294901760
      %5614 = vmatpush.msra.mxu0 %v5613
      %v5615 = vand.u32 %v370, 4294901760
      %v5616 = vsub.f32 %v370, %v5615
      %v5617 = vand.u32 %v5616, 4294901760
      %5618 = vmatpush.msra.mxu0 %v5617
      %v5619 = vand.u32 %v368, 4294901760
      %v5620 = vsub.f32 %v368, %v5619
      %v5621 = vand.u32 %v5620, 4294901760
      %5622 = vmatpush.msra.mxu0 %v5621
      %v5623 = vand.u32 %v366, 4294901760
      %v5624 = vsub.f32 %v366, %v5623
      %v5625 = vand.u32 %v5624, 4294901760
      %5626 = vmatpush.msra.mxu0 %v5625
      %v5627 = vand.u32 %v415, 4294901760
      %5628 = vmatmul.f32.gmra.mxu0 %v5627
      %v5629 = vpop.f32.mrf.mxu0
      %v5630 = vadd.f32 %v5555, %v5629
      %v5631 = vand.u32 %v418, 4294901760
      %5632 = vmatmul.f32.gmra.mxu0 %v5631
      %v5633 = vpop.f32.mrf.mxu0
      %v5634 = vadd.f32 %v5561, %v5633
      %v5635 = vand.u32 %v421, 4294901760
      %5636 = vmatmul.f32.gmra.mxu0 %v5635
      %v5637 = vpop.f32.mrf.mxu0
      %v5638 = vadd.f32 %v5567, %v5637
      %v5639 = vand.u32 %v424, 4294901760
      %5640 = vmatmul.f32.gmra.mxu0 %v5639
      %v5641 = vpop.f32.mrf.mxu0
      %v5642 = vadd.f32 %v5573, %v5641
      %v5643 = vand.u32 %v427, 4294901760
      %5644 = vmatmul.f32.gmra.mxu0 %v5643
      %v5645 = vpop.f32.mrf.mxu0
      %v5646 = vadd.f32 %v5579, %v5645
      %v5647 = vand.u32 %v430, 4294901760
      %5648 = vmatmul.f32.gmra.mxu0 %v5647
      %v5649 = vpop.f32.mrf.mxu0
      %v5650 = vadd.f32 %v5585, %v5649
      %v5651 = vand.u32 %v433, 4294901760
      %5652 = vmatmul.f32.gmra.mxu0 %v5651
      %v5653 = vpop.f32.mrf.mxu0
      %v5654 = vadd.f32 %v5591, %v5653
      %v5655 = vand.u32 %v436, 4294901760
      %5656 = vmatmul.f32.gmra.mxu0 %v5655
      %v5657 = vpop.f32.mrf.mxu0
      %v5658 = vadd.f32 %v5597, %v5657
      %5659 = vdwg.mxu0
      %5660 = vmatpush.msra.mxu0 0.0
      %5661 = vmatpush.msra.mxu0 0.0
      %5662 = vmatpush.msra.mxu0 0.0
      %5663 = vmatpush.msra.mxu0 0.0
      %5664 = vmatpush.msra.mxu0 0.0
      %5665 = vmatpush.msra.mxu0 0.0
      %5666 = vmatpush.msra.mxu0 0.0
      %5667 = vmatpush.msra.mxu0 0.0
      %5668 = vmatpush.msra.mxu0 0.0
      %5669 = vmatpush.msra.mxu0 0.0
      %5670 = vmatpush.msra.mxu0 0.0
      %5671 = vmatpush.msra.mxu0 0.0
      %v5672 = vand.u32 %v443, 4294901760
      %5673 = vmatpush.msra.mxu0 %v5672
      %v5674 = vand.u32 %v370, 4294901760
      %5675 = vmatpush.msra.mxu0 %v5674
      %v5676 = vand.u32 %v368, 4294901760
      %5677 = vmatpush.msra.mxu0 %v5676
      %v5678 = vand.u32 %v366, 4294901760
      %5679 = vmatpush.msra.mxu0 %v5678
      %v5680 = vand.u32 %v415, 4294901760
      %5681 = vmatmul.f32.gmra.mxu0 %v5680
      %v5682 = vpop.f32.mrf.mxu0
      %v5683 = vadd.f32 %v5630, %v5682
      %v5684 = vand.u32 %v418, 4294901760
      %5685 = vmatmul.f32.gmra.mxu0 %v5684
      %v5686 = vpop.f32.mrf.mxu0
      %v5687 = vadd.f32 %v5634, %v5686
      %v5688 = vand.u32 %v421, 4294901760
      %5689 = vmatmul.f32.gmra.mxu0 %v5688
      %v5690 = vpop.f32.mrf.mxu0
      %v5691 = vadd.f32 %v5638, %v5690
      %v5692 = vand.u32 %v424, 4294901760
      %5693 = vmatmul.f32.gmra.mxu0 %v5692
      %v5694 = vpop.f32.mrf.mxu0
      %v5695 = vadd.f32 %v5642, %v5694
      %v5696 = vand.u32 %v427, 4294901760
      %5697 = vmatmul.f32.gmra.mxu0 %v5696
      %v5698 = vpop.f32.mrf.mxu0
      %v5699 = vadd.f32 %v5646, %v5698
      %v5700 = vand.u32 %v430, 4294901760
      %5701 = vmatmul.f32.gmra.mxu0 %v5700
      %v5702 = vpop.f32.mrf.mxu0
      %v5703 = vadd.f32 %v5650, %v5702
      %v5704 = vand.u32 %v433, 4294901760
      %5705 = vmatmul.f32.gmra.mxu0 %v5704
      %v5706 = vpop.f32.mrf.mxu0
      %v5707 = vadd.f32 %v5654, %v5706
      %v5708 = vand.u32 %v436, 4294901760
      %5709 = vmatmul.f32.gmra.mxu0 %v5708
      %v5710 = vpop.f32.mrf.mxu0
      %v5711 = vadd.f32 %v5658, %v5710
      %5712 = vdwg.mxu0
      %v5713 = vld [vmem:[%s2] sm:$0xff]
      %v5714 = vld [vmem:[%s2 + $0x8] sm:$0xff]
      %v5715 = vld [vmem:[%s2 + $0x10] sm:$0xff]
      %v5716 = vld [vmem:[%s2 + $0x18] sm:$0xff]
      %v5717 = vld [vmem:[%s2 + $0x20] sm:$0xff]
      %v5718 = vld [vmem:[%s2 + $0x28] sm:$0xff]
      %v5719 = vld [vmem:[%s2 + $0x30] sm:$0xff]
      %v5720 = vld [vmem:[%s2 + $0x38] sm:$0xf]
      %v5721 = vld [vmem:[%s3] sm:$0xff]
      %v5722 = vld [vmem:[%s3 + $0x8] sm:$0xff]
      %v5723 = vld [vmem:[%s3 + $0x10] sm:$0xff]
      %v5724 = vld [vmem:[%s3 + $0x18] sm:$0xff]
      %v5725 = vld [vmem:[%s3 + $0x20] sm:$0xff]
      %v5726 = vld [vmem:[%s3 + $0x28] sm:$0xff]
      %v5727 = vld [vmem:[%s3 + $0x30] sm:$0xff]
      %v5728 = vld [vmem:[%s3 + $0x38] sm:$0xf]
      %5730 = vset.pattern.permute.xlu0 0
      %5731 = vperm.xlu0 %5730, %v5721
      %v5732 = vpop.permute.xlu0 %5731
      %5735 = vset.pattern.permute.xlu0 0
      %5736 = vperm.xlu0 %5735, %v5722
      %v5737 = vpop.permute.xlu0 %5736
      %5740 = vset.pattern.permute.xlu0 0
      %5741 = vperm.xlu0 %5740, %v5723
      %v5742 = vpop.permute.xlu0 %5741
      %5745 = vset.pattern.permute.xlu0 0
      %5746 = vperm.xlu0 %5745, %v5724
      %v5747 = vpop.permute.xlu0 %5746
      %5750 = vset.pattern.permute.xlu0 0
      %5751 = vperm.xlu0 %5750, %v5725
      %v5752 = vpop.permute.xlu0 %5751
      %5755 = vset.pattern.permute.xlu0 0
      %5756 = vperm.xlu0 %5755, %v5726
      %v5757 = vpop.permute.xlu0 %5756
      %5760 = vset.pattern.permute.xlu0 0
      %5761 = vperm.xlu0 %5760, %v5727
      %v5762 = vpop.permute.xlu0 %5761
      %5765 = vset.pattern.permute.xlu0 0
      %5766 = vperm.xlu0 %5765, %v5728
      %v5767 = vpop.permute.xlu0 %5766
      %vm5769 = vcmask 490496
      %v5771 = vsel %vm5769, %v5713, 0
      %v5774 = vsel %vm5769, %v5714, 0
      %v5777 = vsel %vm5769, %v5715, 0
      %v5780 = vsel %vm5769, %v5716, 0
      %v5783 = vsel %vm5769, %v5717, 0
      %v5786 = vsel %vm5769, %v5718, 0
      %v5789 = vsel %vm5769, %v5719, 0
      %v5792 = vsel %vm5769, %v5720, 0
      %v5795 = vsel %vm438, %v3077, 0
      %v5798 = vsel %vm438, %v5711, 0
      %5800 = vmatpush.msra.mxu0 0.0
      %5801 = vmatpush.msra.mxu0 0.0
      %5802 = vmatpush.msra.mxu0 0.0
      %5803 = vmatpush.msra.mxu0 0.0
      %5804 = vmatpush.msra.mxu0 0.0
      %5805 = vmatpush.msra.mxu0 0.0
      %5806 = vmatpush.msra.mxu0 0.0
      %5807 = vmatpush.msra.mxu0 0.0
      %v5808 = vand.u32 %v5795, 4294901760
      %5809 = vmatpush.msra.mxu0 %v5808
      %v5810 = vand.u32 %v3073, 4294901760
      %5811 = vmatpush.msra.mxu0 %v5810
      %v5812 = vand.u32 %v3069, 4294901760
      %5813 = vmatpush.msra.mxu0 %v5812
      %v5814 = vand.u32 %v3065, 4294901760
      %5815 = vmatpush.msra.mxu0 %v5814
      %v5816 = vand.u32 %v3061, 4294901760
      %5817 = vmatpush.msra.mxu0 %v5816
      %v5818 = vand.u32 %v3057, 4294901760
      %5819 = vmatpush.msra.mxu0 %v5818
      %v5820 = vand.u32 %v3053, 4294901760
      %5821 = vmatpush.msra.mxu0 %v5820
      %v5822 = vand.u32 %v3049, 4294901760
      %5823 = vmatpush.msra.mxu0 %v5822
      %v5824 = vand.u32 %v5771, 4294901760
      %v5825 = vsub.f32 %v5771, %v5824
      %v5826 = vand.u32 %v5825, 4294901760
      %v5827 = vsub.f32 %v5825, %v5826
      %v5828 = vand.u32 %v5827, 4294901760
      %5829 = vmatmul.f32.gmra.mxu0 %v5828
      %v5830 = vpop.f32.mrf.mxu0
      %v5831 = vadd.f32 %v5732, %v5830
      %v5832 = vand.u32 %v5774, 4294901760
      %v5833 = vsub.f32 %v5774, %v5832
      %v5834 = vand.u32 %v5833, 4294901760
      %v5835 = vsub.f32 %v5833, %v5834
      %v5836 = vand.u32 %v5835, 4294901760
      %5837 = vmatmul.f32.gmra.mxu0 %v5836
      %v5838 = vpop.f32.mrf.mxu0
      %v5839 = vadd.f32 %v5737, %v5838
      %v5840 = vand.u32 %v5777, 4294901760
      %v5841 = vsub.f32 %v5777, %v5840
      %v5842 = vand.u32 %v5841, 4294901760
      %v5843 = vsub.f32 %v5841, %v5842
      %v5844 = vand.u32 %v5843, 4294901760
      %5845 = vmatmul.f32.gmra.mxu0 %v5844
      %v5846 = vpop.f32.mrf.mxu0
      %v5847 = vadd.f32 %v5742, %v5846
      %v5848 = vand.u32 %v5780, 4294901760
      %v5849 = vsub.f32 %v5780, %v5848
      %v5850 = vand.u32 %v5849, 4294901760
      %v5851 = vsub.f32 %v5849, %v5850
      %v5852 = vand.u32 %v5851, 4294901760
      %5853 = vmatmul.f32.gmra.mxu0 %v5852
      %v5854 = vpop.f32.mrf.mxu0
      %v5855 = vadd.f32 %v5747, %v5854
      %v5856 = vand.u32 %v5783, 4294901760
      %v5857 = vsub.f32 %v5783, %v5856
      %v5858 = vand.u32 %v5857, 4294901760
      %v5859 = vsub.f32 %v5857, %v5858
      %v5860 = vand.u32 %v5859, 4294901760
      %5861 = vmatmul.f32.gmra.mxu0 %v5860
      %v5862 = vpop.f32.mrf.mxu0
      %v5863 = vadd.f32 %v5752, %v5862
      %v5864 = vand.u32 %v5786, 4294901760
      %v5865 = vsub.f32 %v5786, %v5864
      %v5866 = vand.u32 %v5865, 4294901760
      %v5867 = vsub.f32 %v5865, %v5866
      %v5868 = vand.u32 %v5867, 4294901760
      %5869 = vmatmul.f32.gmra.mxu0 %v5868
      %v5870 = vpop.f32.mrf.mxu0
      %v5871 = vadd.f32 %v5757, %v5870
      %v5872 = vand.u32 %v5789, 4294901760
      %v5873 = vsub.f32 %v5789, %v5872
      %v5874 = vand.u32 %v5873, 4294901760
      %v5875 = vsub.f32 %v5873, %v5874
      %v5876 = vand.u32 %v5875, 4294901760
      %5877 = vmatmul.f32.gmra.mxu0 %v5876
      %v5878 = vpop.f32.mrf.mxu0
      %v5879 = vadd.f32 %v5762, %v5878
      %v5880 = vand.u32 %v5792, 4294901760
      %v5881 = vsub.f32 %v5792, %v5880
      %v5882 = vand.u32 %v5881, 4294901760
      %v5883 = vsub.f32 %v5881, %v5882
      %v5884 = vand.u32 %v5883, 4294901760
      %5885 = vmatmul.f32.gmra.mxu0 %v5884
      %v5886 = vpop.f32.mrf.mxu0
      %v5887 = vadd.f32 %v5767, %v5886
      %5888 = vdwg.mxu0
      %5889 = vmatpush.msra.mxu0 0.0
      %5890 = vmatpush.msra.mxu0 0.0
      %5891 = vmatpush.msra.mxu0 0.0
      %5892 = vmatpush.msra.mxu0 0.0
      %5893 = vmatpush.msra.mxu0 0.0
      %5894 = vmatpush.msra.mxu0 0.0
      %5895 = vmatpush.msra.mxu0 0.0
      %5896 = vmatpush.msra.mxu0 0.0
      %v5897 = vand.u32 %v5795, 4294901760
      %v5898 = vsub.f32 %v5795, %v5897
      %v5899 = vand.u32 %v5898, 4294901760
      %v5900 = vsub.f32 %v5898, %v5899
      %v5901 = vand.u32 %v5900, 4294901760
      %5902 = vmatpush.msra.mxu0 %v5901
      %v5903 = vand.u32 %v3073, 4294901760
      %v5904 = vsub.f32 %v3073, %v5903
      %v5905 = vand.u32 %v5904, 4294901760
      %v5906 = vsub.f32 %v5904, %v5905
      %v5907 = vand.u32 %v5906, 4294901760
      %5908 = vmatpush.msra.mxu0 %v5907
      %v5909 = vand.u32 %v3069, 4294901760
      %v5910 = vsub.f32 %v3069, %v5909
      %v5911 = vand.u32 %v5910, 4294901760
      %v5912 = vsub.f32 %v5910, %v5911
      %v5913 = vand.u32 %v5912, 4294901760
      %5914 = vmatpush.msra.mxu0 %v5913
      %v5915 = vand.u32 %v3065, 4294901760
      %v5916 = vsub.f32 %v3065, %v5915
      %v5917 = vand.u32 %v5916, 4294901760
      %v5918 = vsub.f32 %v5916, %v5917
      %v5919 = vand.u32 %v5918, 4294901760
      %5920 = vmatpush.msra.mxu0 %v5919
      %v5921 = vand.u32 %v3061, 4294901760
      %v5922 = vsub.f32 %v3061, %v5921
      %v5923 = vand.u32 %v5922, 4294901760
      %v5924 = vsub.f32 %v5922, %v5923
      %v5925 = vand.u32 %v5924, 4294901760
      %5926 = vmatpush.msra.mxu0 %v5925
      %v5927 = vand.u32 %v3057, 4294901760
      %v5928 = vsub.f32 %v3057, %v5927
      %v5929 = vand.u32 %v5928, 4294901760
      %v5930 = vsub.f32 %v5928, %v5929
      %v5931 = vand.u32 %v5930, 4294901760
      %5932 = vmatpush.msra.mxu0 %v5931
      %v5933 = vand.u32 %v3053, 4294901760
      %v5934 = vsub.f32 %v3053, %v5933
      %v5935 = vand.u32 %v5934, 4294901760
      %v5936 = vsub.f32 %v5934, %v5935
      %v5937 = vand.u32 %v5936, 4294901760
      %5938 = vmatpush.msra.mxu0 %v5937
      %v5939 = vand.u32 %v3049, 4294901760
      %v5940 = vsub.f32 %v3049, %v5939
      %v5941 = vand.u32 %v5940, 4294901760
      %v5942 = vsub.f32 %v5940, %v5941
      %v5943 = vand.u32 %v5942, 4294901760
      %5944 = vmatpush.msra.mxu0 %v5943
      %v5945 = vand.u32 %v5771, 4294901760
      %5946 = vmatmul.f32.gmra.mxu0 %v5945
      %v5947 = vpop.f32.mrf.mxu0
      %v5948 = vadd.f32 %v5831, %v5947
      %v5949 = vand.u32 %v5774, 4294901760
      %5950 = vmatmul.f32.gmra.mxu0 %v5949
      %v5951 = vpop.f32.mrf.mxu0
      %v5952 = vadd.f32 %v5839, %v5951
      %v5953 = vand.u32 %v5777, 4294901760
      %5954 = vmatmul.f32.gmra.mxu0 %v5953
      %v5955 = vpop.f32.mrf.mxu0
      %v5956 = vadd.f32 %v5847, %v5955
      %v5957 = vand.u32 %v5780, 4294901760
      %5958 = vmatmul.f32.gmra.mxu0 %v5957
      %v5959 = vpop.f32.mrf.mxu0
      %v5960 = vadd.f32 %v5855, %v5959
      %v5961 = vand.u32 %v5783, 4294901760
      %5962 = vmatmul.f32.gmra.mxu0 %v5961
      %v5963 = vpop.f32.mrf.mxu0
      %v5964 = vadd.f32 %v5863, %v5963
      %v5965 = vand.u32 %v5786, 4294901760
      %5966 = vmatmul.f32.gmra.mxu0 %v5965
      %v5967 = vpop.f32.mrf.mxu0
      %v5968 = vadd.f32 %v5871, %v5967
      %v5969 = vand.u32 %v5789, 4294901760
      %5970 = vmatmul.f32.gmra.mxu0 %v5969
      %v5971 = vpop.f32.mrf.mxu0
      %v5972 = vadd.f32 %v5879, %v5971
      %v5973 = vand.u32 %v5792, 4294901760
      %5974 = vmatmul.f32.gmra.mxu0 %v5973
      %v5975 = vpop.f32.mrf.mxu0
      %v5976 = vadd.f32 %v5887, %v5975
      %5977 = vdwg.mxu0
      %5978 = vmatpush.msra.mxu0 0.0
      %5979 = vmatpush.msra.mxu0 0.0
      %5980 = vmatpush.msra.mxu0 0.0
      %5981 = vmatpush.msra.mxu0 0.0
      %5982 = vmatpush.msra.mxu0 0.0
      %5983 = vmatpush.msra.mxu0 0.0
      %5984 = vmatpush.msra.mxu0 0.0
      %5985 = vmatpush.msra.mxu0 0.0
      %v5986 = vand.u32 %v5795, 4294901760
      %v5987 = vsub.f32 %v5795, %v5986
      %5988 = vmatpush.msra.mxu0 %v5987
      %v5989 = vand.u32 %v3073, 4294901760
      %v5990 = vsub.f32 %v3073, %v5989
      %5991 = vmatpush.msra.mxu0 %v5990
      %v5992 = vand.u32 %v3069, 4294901760
      %v5993 = vsub.f32 %v3069, %v5992
      %5994 = vmatpush.msra.mxu0 %v5993
      %v5995 = vand.u32 %v3065, 4294901760
      %v5996 = vsub.f32 %v3065, %v5995
      %5997 = vmatpush.msra.mxu0 %v5996
      %v5998 = vand.u32 %v3061, 4294901760
      %v5999 = vsub.f32 %v3061, %v5998
      %6000 = vmatpush.msra.mxu0 %v5999
      %v6001 = vand.u32 %v3057, 4294901760
      %v6002 = vsub.f32 %v3057, %v6001
      %6003 = vmatpush.msra.mxu0 %v6002
      %v6004 = vand.u32 %v3053, 4294901760
      %v6005 = vsub.f32 %v3053, %v6004
      %6006 = vmatpush.msra.mxu0 %v6005
      %v6007 = vand.u32 %v3049, 4294901760
      %v6008 = vsub.f32 %v3049, %v6007
      %6009 = vmatpush.msra.mxu0 %v6008
      %v6010 = vand.u32 %v5771, 4294901760
      %v6011 = vsub.f32 %v5771, %v6010
      %6012 = vmatmul.f32.gmra.mxu0 %v6011
      %v6013 = vpop.f32.mrf.mxu0
      %v6014 = vadd.f32 %v5948, %v6013
      %v6015 = vand.u32 %v5774, 4294901760
      %v6016 = vsub.f32 %v5774, %v6015
      %6017 = vmatmul.f32.gmra.mxu0 %v6016
      %v6018 = vpop.f32.mrf.mxu0
      %v6019 = vadd.f32 %v5952, %v6018
      %v6020 = vand.u32 %v5777, 4294901760
      %v6021 = vsub.f32 %v5777, %v6020
      %6022 = vmatmul.f32.gmra.mxu0 %v6021
      %v6023 = vpop.f32.mrf.mxu0
      %v6024 = vadd.f32 %v5956, %v6023
      %v6025 = vand.u32 %v5780, 4294901760
      %v6026 = vsub.f32 %v5780, %v6025
      %6027 = vmatmul.f32.gmra.mxu0 %v6026
      %v6028 = vpop.f32.mrf.mxu0
      %v6029 = vadd.f32 %v5960, %v6028
      %v6030 = vand.u32 %v5783, 4294901760
      %v6031 = vsub.f32 %v5783, %v6030
      %6032 = vmatmul.f32.gmra.mxu0 %v6031
      %v6033 = vpop.f32.mrf.mxu0
      %v6034 = vadd.f32 %v5964, %v6033
      %v6035 = vand.u32 %v5786, 4294901760
      %v6036 = vsub.f32 %v5786, %v6035
      %6037 = vmatmul.f32.gmra.mxu0 %v6036
      %v6038 = vpop.f32.mrf.mxu0
      %v6039 = vadd.f32 %v5968, %v6038
      %v6040 = vand.u32 %v5789, 4294901760
      %v6041 = vsub.f32 %v5789, %v6040
      %6042 = vmatmul.f32.gmra.mxu0 %v6041
      %v6043 = vpop.f32.mrf.mxu0
      %v6044 = vadd.f32 %v5972, %v6043
      %v6045 = vand.u32 %v5792, 4294901760
      %v6046 = vsub.f32 %v5792, %v6045
      %6047 = vmatmul.f32.gmra.mxu0 %v6046
      %v6048 = vpop.f32.mrf.mxu0
      %v6049 = vadd.f32 %v5976, %v6048
      %6050 = vdwg.mxu0
      %6051 = vmatpush.msra.mxu0 0.0
      %6052 = vmatpush.msra.mxu0 0.0
      %6053 = vmatpush.msra.mxu0 0.0
      %6054 = vmatpush.msra.mxu0 0.0
      %6055 = vmatpush.msra.mxu0 0.0
      %6056 = vmatpush.msra.mxu0 0.0
      %6057 = vmatpush.msra.mxu0 0.0
      %6058 = vmatpush.msra.mxu0 0.0
      %v6059 = vand.u32 %v5795, 4294901760
      %6060 = vmatpush.msra.mxu0 %v6059
      %v6061 = vand.u32 %v3073, 4294901760
      %6062 = vmatpush.msra.mxu0 %v6061
      %v6063 = vand.u32 %v3069, 4294901760
      %6064 = vmatpush.msra.mxu0 %v6063
      %v6065 = vand.u32 %v3065, 4294901760
      %6066 = vmatpush.msra.mxu0 %v6065
      %v6067 = vand.u32 %v3061, 4294901760
      %6068 = vmatpush.msra.mxu0 %v6067
      %v6069 = vand.u32 %v3057, 4294901760
      %6070 = vmatpush.msra.mxu0 %v6069
      %v6071 = vand.u32 %v3053, 4294901760
      %6072 = vmatpush.msra.mxu0 %v6071
      %v6073 = vand.u32 %v3049, 4294901760
      %6074 = vmatpush.msra.mxu0 %v6073
      %v6075 = vand.u32 %v5771, 4294901760
      %v6076 = vsub.f32 %v5771, %v6075
      %v6077 = vand.u32 %v6076, 4294901760
      %6078 = vmatmul.f32.gmra.mxu0 %v6077
      %v6079 = vpop.f32.mrf.mxu0
      %v6080 = vadd.f32 %v6014, %v6079
      %v6081 = vand.u32 %v5774, 4294901760
      %v6082 = vsub.f32 %v5774, %v6081
      %v6083 = vand.u32 %v6082, 4294901760
      %6084 = vmatmul.f32.gmra.mxu0 %v6083
      %v6085 = vpop.f32.mrf.mxu0
      %v6086 = vadd.f32 %v6019, %v6085
      %v6087 = vand.u32 %v5777, 4294901760
      %v6088 = vsub.f32 %v5777, %v6087
      %v6089 = vand.u32 %v6088, 4294901760
      %6090 = vmatmul.f32.gmra.mxu0 %v6089
      %v6091 = vpop.f32.mrf.mxu0
      %v6092 = vadd.f32 %v6024, %v6091
      %v6093 = vand.u32 %v5780, 4294901760
      %v6094 = vsub.f32 %v5780, %v6093
      %v6095 = vand.u32 %v6094, 4294901760
      %6096 = vmatmul.f32.gmra.mxu0 %v6095
      %v6097 = vpop.f32.mrf.mxu0
      %v6098 = vadd.f32 %v6029, %v6097
      %v6099 = vand.u32 %v5783, 4294901760
      %v6100 = vsub.f32 %v5783, %v6099
      %v6101 = vand.u32 %v6100, 4294901760
      %6102 = vmatmul.f32.gmra.mxu0 %v6101
      %v6103 = vpop.f32.mrf.mxu0
      %v6104 = vadd.f32 %v6034, %v6103
      %v6105 = vand.u32 %v5786, 4294901760
      %v6106 = vsub.f32 %v5786, %v6105
      %v6107 = vand.u32 %v6106, 4294901760
      %6108 = vmatmul.f32.gmra.mxu0 %v6107
      %v6109 = vpop.f32.mrf.mxu0
      %v6110 = vadd.f32 %v6039, %v6109
      %v6111 = vand.u32 %v5789, 4294901760
      %v6112 = vsub.f32 %v5789, %v6111
      %v6113 = vand.u32 %v6112, 4294901760
      %6114 = vmatmul.f32.gmra.mxu0 %v6113
      %v6115 = vpop.f32.mrf.mxu0
      %v6116 = vadd.f32 %v6044, %v6115
      %v6117 = vand.u32 %v5792, 4294901760
      %v6118 = vsub.f32 %v5792, %v6117
      %v6119 = vand.u32 %v6118, 4294901760
      %6120 = vmatmul.f32.gmra.mxu0 %v6119
      %v6121 = vpop.f32.mrf.mxu0
      %v6122 = vadd.f32 %v6049, %v6121
      %6123 = vdwg.mxu0
      %6124 = vmatpush.msra.mxu0 0.0
      %6125 = vmatpush.msra.mxu0 0.0
      %6126 = vmatpush.msra.mxu0 0.0
      %6127 = vmatpush.msra.mxu0 0.0
      %6128 = vmatpush.msra.mxu0 0.0
      %6129 = vmatpush.msra.mxu0 0.0
      %6130 = vmatpush.msra.mxu0 0.0
      %6131 = vmatpush.msra.mxu0 0.0
      %v6132 = vand.u32 %v5795, 4294901760
      %v6133 = vsub.f32 %v5795, %v6132
      %v6134 = vand.u32 %v6133, 4294901760
      %6135 = vmatpush.msra.mxu0 %v6134
      %v6136 = vand.u32 %v3073, 4294901760
      %v6137 = vsub.f32 %v3073, %v6136
      %v6138 = vand.u32 %v6137, 4294901760
      %6139 = vmatpush.msra.mxu0 %v6138
      %v6140 = vand.u32 %v3069, 4294901760
      %v6141 = vsub.f32 %v3069, %v6140
      %v6142 = vand.u32 %v6141, 4294901760
      %6143 = vmatpush.msra.mxu0 %v6142
      %v6144 = vand.u32 %v3065, 4294901760
      %v6145 = vsub.f32 %v3065, %v6144
      %v6146 = vand.u32 %v6145, 4294901760
      %6147 = vmatpush.msra.mxu0 %v6146
      %v6148 = vand.u32 %v3061, 4294901760
      %v6149 = vsub.f32 %v3061, %v6148
      %v6150 = vand.u32 %v6149, 4294901760
      %6151 = vmatpush.msra.mxu0 %v6150
      %v6152 = vand.u32 %v3057, 4294901760
      %v6153 = vsub.f32 %v3057, %v6152
      %v6154 = vand.u32 %v6153, 4294901760
      %6155 = vmatpush.msra.mxu0 %v6154
      %v6156 = vand.u32 %v3053, 4294901760
      %v6157 = vsub.f32 %v3053, %v6156
      %v6158 = vand.u32 %v6157, 4294901760
      %6159 = vmatpush.msra.mxu0 %v6158
      %v6160 = vand.u32 %v3049, 4294901760
      %v6161 = vsub.f32 %v3049, %v6160
      %v6162 = vand.u32 %v6161, 4294901760
      %6163 = vmatpush.msra.mxu0 %v6162
      %v6164 = vand.u32 %v5771, 4294901760
      %6165 = vmatmul.f32.gmra.mxu0 %v6164
      %v6166 = vpop.f32.mrf.mxu0
      %v6167 = vadd.f32 %v6080, %v6166
      %v6168 = vand.u32 %v5774, 4294901760
      %6169 = vmatmul.f32.gmra.mxu0 %v6168
      %v6170 = vpop.f32.mrf.mxu0
      %v6171 = vadd.f32 %v6086, %v6170
      %v6172 = vand.u32 %v5777, 4294901760
      %6173 = vmatmul.f32.gmra.mxu0 %v6172
      %v6174 = vpop.f32.mrf.mxu0
      %v6175 = vadd.f32 %v6092, %v6174
      %v6176 = vand.u32 %v5780, 4294901760
      %6177 = vmatmul.f32.gmra.mxu0 %v6176
      %v6178 = vpop.f32.mrf.mxu0
      %v6179 = vadd.f32 %v6098, %v6178
      %v6180 = vand.u32 %v5783, 4294901760
      %6181 = vmatmul.f32.gmra.mxu0 %v6180
      %v6182 = vpop.f32.mrf.mxu0
      %v6183 = vadd.f32 %v6104, %v6182
      %v6184 = vand.u32 %v5786, 4294901760
      %6185 = vmatmul.f32.gmra.mxu0 %v6184
      %v6186 = vpop.f32.mrf.mxu0
      %v6187 = vadd.f32 %v6110, %v6186
      %v6188 = vand.u32 %v5789, 4294901760
      %6189 = vmatmul.f32.gmra.mxu0 %v6188
      %v6190 = vpop.f32.mrf.mxu0
      %v6191 = vadd.f32 %v6116, %v6190
      %v6192 = vand.u32 %v5792, 4294901760
      %6193 = vmatmul.f32.gmra.mxu0 %v6192
      %v6194 = vpop.f32.mrf.mxu0
      %v6195 = vadd.f32 %v6122, %v6194
      %6196 = vdwg.mxu0
      %6197 = vmatpush.msra.mxu0 0.0
      %6198 = vmatpush.msra.mxu0 0.0
      %6199 = vmatpush.msra.mxu0 0.0
      %6200 = vmatpush.msra.mxu0 0.0
      %6201 = vmatpush.msra.mxu0 0.0
      %6202 = vmatpush.msra.mxu0 0.0
      %6203 = vmatpush.msra.mxu0 0.0
      %6204 = vmatpush.msra.mxu0 0.0
      %v6205 = vand.u32 %v5795, 4294901760
      %6206 = vmatpush.msra.mxu0 %v6205
      %v6207 = vand.u32 %v3073, 4294901760
      %6208 = vmatpush.msra.mxu0 %v6207
      %v6209 = vand.u32 %v3069, 4294901760
      %6210 = vmatpush.msra.mxu0 %v6209
      %v6211 = vand.u32 %v3065, 4294901760
      %6212 = vmatpush.msra.mxu0 %v6211
      %v6213 = vand.u32 %v3061, 4294901760
      %6214 = vmatpush.msra.mxu0 %v6213
      %v6215 = vand.u32 %v3057, 4294901760
      %6216 = vmatpush.msra.mxu0 %v6215
      %v6217 = vand.u32 %v3053, 4294901760
      %6218 = vmatpush.msra.mxu0 %v6217
      %v6219 = vand.u32 %v3049, 4294901760
      %6220 = vmatpush.msra.mxu0 %v6219
      %v6221 = vand.u32 %v5771, 4294901760
      %6222 = vmatmul.f32.gmra.mxu0 %v6221
      %v6223 = vpop.f32.mrf.mxu0
      %v6224 = vadd.f32 %v6167, %v6223
      %v6225 = vand.u32 %v5774, 4294901760
      %6226 = vmatmul.f32.gmra.mxu0 %v6225
      %v6227 = vpop.f32.mrf.mxu0
      %v6228 = vadd.f32 %v6171, %v6227
      %v6229 = vand.u32 %v5777, 4294901760
      %6230 = vmatmul.f32.gmra.mxu0 %v6229
      %v6231 = vpop.f32.mrf.mxu0
      %v6232 = vadd.f32 %v6175, %v6231
      %v6233 = vand.u32 %v5780, 4294901760
      %6234 = vmatmul.f32.gmra.mxu0 %v6233
      %v6235 = vpop.f32.mrf.mxu0
      %v6236 = vadd.f32 %v6179, %v6235
      %v6237 = vand.u32 %v5783, 4294901760
      %6238 = vmatmul.f32.gmra.mxu0 %v6237
      %v6239 = vpop.f32.mrf.mxu0
      %v6240 = vadd.f32 %v6183, %v6239
      %v6241 = vand.u32 %v5786, 4294901760
      %6242 = vmatmul.f32.gmra.mxu0 %v6241
      %v6243 = vpop.f32.mrf.mxu0
      %v6244 = vadd.f32 %v6187, %v6243
      %v6245 = vand.u32 %v5789, 4294901760
      %6246 = vmatmul.f32.gmra.mxu0 %v6245
      %v6247 = vpop.f32.mrf.mxu0
      %v6248 = vadd.f32 %v6191, %v6247
      %v6249 = vand.u32 %v5792, 4294901760
      %6250 = vmatmul.f32.gmra.mxu0 %v6249
      %v6251 = vpop.f32.mrf.mxu0
      %v6252 = vadd.f32 %v6195, %v6251
      %6253 = vdwg.mxu0
      %6254 = vmatpush.msra.mxu0 0.0
      %6255 = vmatpush.msra.mxu0 0.0
      %6256 = vmatpush.msra.mxu0 0.0
      %6257 = vmatpush.msra.mxu0 0.0
      %6258 = vmatpush.msra.mxu0 0.0
      %6259 = vmatpush.msra.mxu0 0.0
      %6260 = vmatpush.msra.mxu0 0.0
      %6261 = vmatpush.msra.mxu0 0.0
      %v6262 = vand.u32 %v5798, 4294901760
      %6263 = vmatpush.msra.mxu0 %v6262
      %v6264 = vand.u32 %v5707, 4294901760
      %6265 = vmatpush.msra.mxu0 %v6264
      %v6266 = vand.u32 %v5703, 4294901760
      %6267 = vmatpush.msra.mxu0 %v6266
      %v6268 = vand.u32 %v5699, 4294901760
      %6269 = vmatpush.msra.mxu0 %v6268
      %v6270 = vand.u32 %v5695, 4294901760
      %6271 = vmatpush.msra.mxu0 %v6270
      %v6272 = vand.u32 %v5691, 4294901760
      %6273 = vmatpush.msra.mxu0 %v6272
      %v6274 = vand.u32 %v5687, 4294901760
      %6275 = vmatpush.msra.mxu0 %v6274
      %v6276 = vand.u32 %v5683, 4294901760
      %6277 = vmatpush.msra.mxu0 %v6276
      %v6278 = vand.u32 %v5771, 4294901760
      %v6279 = vsub.f32 %v5771, %v6278
      %v6280 = vand.u32 %v6279, 4294901760
      %v6281 = vsub.f32 %v6279, %v6280
      %v6282 = vand.u32 %v6281, 4294901760
      %6283 = vmatmul.f32.gmra.mxu0 %v6282
      %v6284 = vpop.f32.mrf.mxu0
      %v6285 = vadd.f32 %v5732, %v6284
      %v6286 = vand.u32 %v5774, 4294901760
      %v6287 = vsub.f32 %v5774, %v6286
      %v6288 = vand.u32 %v6287, 4294901760
      %v6289 = vsub.f32 %v6287, %v6288
      %v6290 = vand.u32 %v6289, 4294901760
      %6291 = vmatmul.f32.gmra.mxu0 %v6290
      %v6292 = vpop.f32.mrf.mxu0
      %v6293 = vadd.f32 %v5737, %v6292
      %v6294 = vand.u32 %v5777, 4294901760
      %v6295 = vsub.f32 %v5777, %v6294
      %v6296 = vand.u32 %v6295, 4294901760
      %v6297 = vsub.f32 %v6295, %v6296
      %v6298 = vand.u32 %v6297, 4294901760
      %6299 = vmatmul.f32.gmra.mxu0 %v6298
      %v6300 = vpop.f32.mrf.mxu0
      %v6301 = vadd.f32 %v5742, %v6300
      %v6302 = vand.u32 %v5780, 4294901760
      %v6303 = vsub.f32 %v5780, %v6302
      %v6304 = vand.u32 %v6303, 4294901760
      %v6305 = vsub.f32 %v6303, %v6304
      %v6306 = vand.u32 %v6305, 4294901760
      %6307 = vmatmul.f32.gmra.mxu0 %v6306
      %v6308 = vpop.f32.mrf.mxu0
      %v6309 = vadd.f32 %v5747, %v6308
      %v6310 = vand.u32 %v5783, 4294901760
      %v6311 = vsub.f32 %v5783, %v6310
      %v6312 = vand.u32 %v6311, 4294901760
      %v6313 = vsub.f32 %v6311, %v6312
      %v6314 = vand.u32 %v6313, 4294901760
      %6315 = vmatmul.f32.gmra.mxu0 %v6314
      %v6316 = vpop.f32.mrf.mxu0
      %v6317 = vadd.f32 %v5752, %v6316
      %v6318 = vand.u32 %v5786, 4294901760
      %v6319 = vsub.f32 %v5786, %v6318
      %v6320 = vand.u32 %v6319, 4294901760
      %v6321 = vsub.f32 %v6319, %v6320
      %v6322 = vand.u32 %v6321, 4294901760
      %6323 = vmatmul.f32.gmra.mxu0 %v6322
      %v6324 = vpop.f32.mrf.mxu0
      %v6325 = vadd.f32 %v5757, %v6324
      %v6326 = vand.u32 %v5789, 4294901760
      %v6327 = vsub.f32 %v5789, %v6326
      %v6328 = vand.u32 %v6327, 4294901760
      %v6329 = vsub.f32 %v6327, %v6328
      %v6330 = vand.u32 %v6329, 4294901760
      %6331 = vmatmul.f32.gmra.mxu0 %v6330
      %v6332 = vpop.f32.mrf.mxu0
      %v6333 = vadd.f32 %v5762, %v6332
      %v6334 = vand.u32 %v5792, 4294901760
      %v6335 = vsub.f32 %v5792, %v6334
      %v6336 = vand.u32 %v6335, 4294901760
      %v6337 = vsub.f32 %v6335, %v6336
      %v6338 = vand.u32 %v6337, 4294901760
      %6339 = vmatmul.f32.gmra.mxu0 %v6338
      %v6340 = vpop.f32.mrf.mxu0
      %v6341 = vadd.f32 %v5767, %v6340
      %6342 = vdwg.mxu0
      %6343 = vmatpush.msra.mxu0 0.0
      %6344 = vmatpush.msra.mxu0 0.0
      %6345 = vmatpush.msra.mxu0 0.0
      %6346 = vmatpush.msra.mxu0 0.0
      %6347 = vmatpush.msra.mxu0 0.0
      %6348 = vmatpush.msra.mxu0 0.0
      %6349 = vmatpush.msra.mxu0 0.0
      %6350 = vmatpush.msra.mxu0 0.0
      %v6351 = vand.u32 %v5798, 4294901760
      %v6352 = vsub.f32 %v5798, %v6351
      %v6353 = vand.u32 %v6352, 4294901760
      %v6354 = vsub.f32 %v6352, %v6353
      %v6355 = vand.u32 %v6354, 4294901760
      %6356 = vmatpush.msra.mxu0 %v6355
      %v6357 = vand.u32 %v5707, 4294901760
      %v6358 = vsub.f32 %v5707, %v6357
      %v6359 = vand.u32 %v6358, 4294901760
      %v6360 = vsub.f32 %v6358, %v6359
      %v6361 = vand.u32 %v6360, 4294901760
      %6362 = vmatpush.msra.mxu0 %v6361
      %v6363 = vand.u32 %v5703, 4294901760
      %v6364 = vsub.f32 %v5703, %v6363
      %v6365 = vand.u32 %v6364, 4294901760
      %v6366 = vsub.f32 %v6364, %v6365
      %v6367 = vand.u32 %v6366, 4294901760
      %6368 = vmatpush.msra.mxu0 %v6367
      %v6369 = vand.u32 %v5699, 4294901760
      %v6370 = vsub.f32 %v5699, %v6369
      %v6371 = vand.u32 %v6370, 4294901760
      %v6372 = vsub.f32 %v6370, %v6371
      %v6373 = vand.u32 %v6372, 4294901760
      %6374 = vmatpush.msra.mxu0 %v6373
      %v6375 = vand.u32 %v5695, 4294901760
      %v6376 = vsub.f32 %v5695, %v6375
      %v6377 = vand.u32 %v6376, 4294901760
      %v6378 = vsub.f32 %v6376, %v6377
      %v6379 = vand.u32 %v6378, 4294901760
      %6380 = vmatpush.msra.mxu0 %v6379
      %v6381 = vand.u32 %v5691, 4294901760
      %v6382 = vsub.f32 %v5691, %v6381
      %v6383 = vand.u32 %v6382, 4294901760
      %v6384 = vsub.f32 %v6382, %v6383
      %v6385 = vand.u32 %v6384, 4294901760
      %6386 = vmatpush.msra.mxu0 %v6385
      %v6387 = vand.u32 %v5687, 4294901760
      %v6388 = vsub.f32 %v5687, %v6387
      %v6389 = vand.u32 %v6388, 4294901760
      %v6390 = vsub.f32 %v6388, %v6389
      %v6391 = vand.u32 %v6390, 4294901760
      %6392 = vmatpush.msra.mxu0 %v6391
      %v6393 = vand.u32 %v5683, 4294901760
      %v6394 = vsub.f32 %v5683, %v6393
      %v6395 = vand.u32 %v6394, 4294901760
      %v6396 = vsub.f32 %v6394, %v6395
      %v6397 = vand.u32 %v6396, 4294901760
      %6398 = vmatpush.msra.mxu0 %v6397
      %v6399 = vand.u32 %v5771, 4294901760
      %6400 = vmatmul.f32.gmra.mxu0 %v6399
      %v6401 = vpop.f32.mrf.mxu0
      %v6402 = vadd.f32 %v6285, %v6401
      %v6403 = vand.u32 %v5774, 4294901760
      %6404 = vmatmul.f32.gmra.mxu0 %v6403
      %v6405 = vpop.f32.mrf.mxu0
      %v6406 = vadd.f32 %v6293, %v6405
      %v6407 = vand.u32 %v5777, 4294901760
      %6408 = vmatmul.f32.gmra.mxu0 %v6407
      %v6409 = vpop.f32.mrf.mxu0
      %v6410 = vadd.f32 %v6301, %v6409
      %v6411 = vand.u32 %v5780, 4294901760
      %6412 = vmatmul.f32.gmra.mxu0 %v6411
      %v6413 = vpop.f32.mrf.mxu0
      %v6414 = vadd.f32 %v6309, %v6413
      %v6415 = vand.u32 %v5783, 4294901760
      %6416 = vmatmul.f32.gmra.mxu0 %v6415
      %v6417 = vpop.f32.mrf.mxu0
      %v6418 = vadd.f32 %v6317, %v6417
      %v6419 = vand.u32 %v5786, 4294901760
      %6420 = vmatmul.f32.gmra.mxu0 %v6419
      %v6421 = vpop.f32.mrf.mxu0
      %v6422 = vadd.f32 %v6325, %v6421
      %v6423 = vand.u32 %v5789, 4294901760
      %6424 = vmatmul.f32.gmra.mxu0 %v6423
      %v6425 = vpop.f32.mrf.mxu0
      %v6426 = vadd.f32 %v6333, %v6425
      %v6427 = vand.u32 %v5792, 4294901760
      %6428 = vmatmul.f32.gmra.mxu0 %v6427
      %v6429 = vpop.f32.mrf.mxu0
      %v6430 = vadd.f32 %v6341, %v6429
      %6431 = vdwg.mxu0
      %6432 = vmatpush.msra.mxu0 0.0
      %6433 = vmatpush.msra.mxu0 0.0
      %6434 = vmatpush.msra.mxu0 0.0
      %6435 = vmatpush.msra.mxu0 0.0
      %6436 = vmatpush.msra.mxu0 0.0
      %6437 = vmatpush.msra.mxu0 0.0
      %6438 = vmatpush.msra.mxu0 0.0
      %6439 = vmatpush.msra.mxu0 0.0
      %v6440 = vand.u32 %v5798, 4294901760
      %v6441 = vsub.f32 %v5798, %v6440
      %6442 = vmatpush.msra.mxu0 %v6441
      %v6443 = vand.u32 %v5707, 4294901760
      %v6444 = vsub.f32 %v5707, %v6443
      %6445 = vmatpush.msra.mxu0 %v6444
      %v6446 = vand.u32 %v5703, 4294901760
      %v6447 = vsub.f32 %v5703, %v6446
      %6448 = vmatpush.msra.mxu0 %v6447
      %v6449 = vand.u32 %v5699, 4294901760
      %v6450 = vsub.f32 %v5699, %v6449
      %6451 = vmatpush.msra.mxu0 %v6450
      %v6452 = vand.u32 %v5695, 4294901760
      %v6453 = vsub.f32 %v5695, %v6452
      %6454 = vmatpush.msra.mxu0 %v6453
      %v6455 = vand.u32 %v5691, 4294901760
      %v6456 = vsub.f32 %v5691, %v6455
      %6457 = vmatpush.msra.mxu0 %v6456
      %v6458 = vand.u32 %v5687, 4294901760
      %v6459 = vsub.f32 %v5687, %v6458
      %6460 = vmatpush.msra.mxu0 %v6459
      %v6461 = vand.u32 %v5683, 4294901760
      %v6462 = vsub.f32 %v5683, %v6461
      %6463 = vmatpush.msra.mxu0 %v6462
      %v6464 = vand.u32 %v5771, 4294901760
      %v6465 = vsub.f32 %v5771, %v6464
      %6466 = vmatmul.f32.gmra.mxu0 %v6465
      %v6467 = vpop.f32.mrf.mxu0
      %v6468 = vadd.f32 %v6402, %v6467
      %v6469 = vand.u32 %v5774, 4294901760
      %v6470 = vsub.f32 %v5774, %v6469
      %6471 = vmatmul.f32.gmra.mxu0 %v6470
      %v6472 = vpop.f32.mrf.mxu0
      %v6473 = vadd.f32 %v6406, %v6472
      %v6474 = vand.u32 %v5777, 4294901760
      %v6475 = vsub.f32 %v5777, %v6474
      %6476 = vmatmul.f32.gmra.mxu0 %v6475
      %v6477 = vpop.f32.mrf.mxu0
      %v6478 = vadd.f32 %v6410, %v6477
      %v6479 = vand.u32 %v5780, 4294901760
      %v6480 = vsub.f32 %v5780, %v6479
      %6481 = vmatmul.f32.gmra.mxu0 %v6480
      %v6482 = vpop.f32.mrf.mxu0
      %v6483 = vadd.f32 %v6414, %v6482
      %v6484 = vand.u32 %v5783, 4294901760
      %v6485 = vsub.f32 %v5783, %v6484
      %6486 = vmatmul.f32.gmra.mxu0 %v6485
      %v6487 = vpop.f32.mrf.mxu0
      %v6488 = vadd.f32 %v6418, %v6487
      %v6489 = vand.u32 %v5786, 4294901760
      %v6490 = vsub.f32 %v5786, %v6489
      %6491 = vmatmul.f32.gmra.mxu0 %v6490
      %v6492 = vpop.f32.mrf.mxu0
      %v6493 = vadd.f32 %v6422, %v6492
      %v6494 = vand.u32 %v5789, 4294901760
      %v6495 = vsub.f32 %v5789, %v6494
      %6496 = vmatmul.f32.gmra.mxu0 %v6495
      %v6497 = vpop.f32.mrf.mxu0
      %v6498 = vadd.f32 %v6426, %v6497
      %v6499 = vand.u32 %v5792, 4294901760
      %v6500 = vsub.f32 %v5792, %v6499
      %6501 = vmatmul.f32.gmra.mxu0 %v6500
      %v6502 = vpop.f32.mrf.mxu0
      %v6503 = vadd.f32 %v6430, %v6502
      %6504 = vdwg.mxu0
      %6505 = vmatpush.msra.mxu0 0.0
      %6506 = vmatpush.msra.mxu0 0.0
      %6507 = vmatpush.msra.mxu0 0.0
      %6508 = vmatpush.msra.mxu0 0.0
      %6509 = vmatpush.msra.mxu0 0.0
      %6510 = vmatpush.msra.mxu0 0.0
      %6511 = vmatpush.msra.mxu0 0.0
      %6512 = vmatpush.msra.mxu0 0.0
      %v6513 = vand.u32 %v5798, 4294901760
      %6514 = vmatpush.msra.mxu0 %v6513
      %v6515 = vand.u32 %v5707, 4294901760
      %6516 = vmatpush.msra.mxu0 %v6515
      %v6517 = vand.u32 %v5703, 4294901760
      %6518 = vmatpush.msra.mxu0 %v6517
      %v6519 = vand.u32 %v5699, 4294901760
      %6520 = vmatpush.msra.mxu0 %v6519
      %v6521 = vand.u32 %v5695, 4294901760
      %6522 = vmatpush.msra.mxu0 %v6521
      %v6523 = vand.u32 %v5691, 4294901760
      %6524 = vmatpush.msra.mxu0 %v6523
      %v6525 = vand.u32 %v5687, 4294901760
      %6526 = vmatpush.msra.mxu0 %v6525
      %v6527 = vand.u32 %v5683, 4294901760
      %6528 = vmatpush.msra.mxu0 %v6527
      %v6529 = vand.u32 %v5771, 4294901760
      %v6530 = vsub.f32 %v5771, %v6529
      %v6531 = vand.u32 %v6530, 4294901760
      %6532 = vmatmul.f32.gmra.mxu0 %v6531
      %v6533 = vpop.f32.mrf.mxu0
      %v6534 = vadd.f32 %v6468, %v6533
      %v6535 = vand.u32 %v5774, 4294901760
      %v6536 = vsub.f32 %v5774, %v6535
      %v6537 = vand.u32 %v6536, 4294901760
      %6538 = vmatmul.f32.gmra.mxu0 %v6537
      %v6539 = vpop.f32.mrf.mxu0
      %v6540 = vadd.f32 %v6473, %v6539
      %v6541 = vand.u32 %v5777, 4294901760
      %v6542 = vsub.f32 %v5777, %v6541
      %v6543 = vand.u32 %v6542, 4294901760
      %6544 = vmatmul.f32.gmra.mxu0 %v6543
      %v6545 = vpop.f32.mrf.mxu0
      %v6546 = vadd.f32 %v6478, %v6545
      %v6547 = vand.u32 %v5780, 4294901760
      %v6548 = vsub.f32 %v5780, %v6547
      %v6549 = vand.u32 %v6548, 4294901760
      %6550 = vmatmul.f32.gmra.mxu0 %v6549
      %v6551 = vpop.f32.mrf.mxu0
      %v6552 = vadd.f32 %v6483, %v6551
      %v6553 = vand.u32 %v5783, 4294901760
      %v6554 = vsub.f32 %v5783, %v6553
      %v6555 = vand.u32 %v6554, 4294901760
      %6556 = vmatmul.f32.gmra.mxu0 %v6555
      %v6557 = vpop.f32.mrf.mxu0
      %v6558 = vadd.f32 %v6488, %v6557
      %v6559 = vand.u32 %v5786, 4294901760
      %v6560 = vsub.f32 %v5786, %v6559
      %v6561 = vand.u32 %v6560, 4294901760
      %6562 = vmatmul.f32.gmra.mxu0 %v6561
      %v6563 = vpop.f32.mrf.mxu0
      %v6564 = vadd.f32 %v6493, %v6563
      %v6565 = vand.u32 %v5789, 4294901760
      %v6566 = vsub.f32 %v5789, %v6565
      %v6567 = vand.u32 %v6566, 4294901760
      %6568 = vmatmul.f32.gmra.mxu0 %v6567
      %v6569 = vpop.f32.mrf.mxu0
      %v6570 = vadd.f32 %v6498, %v6569
      %v6571 = vand.u32 %v5792, 4294901760
      %v6572 = vsub.f32 %v5792, %v6571
      %v6573 = vand.u32 %v6572, 4294901760
      %6574 = vmatmul.f32.gmra.mxu0 %v6573
      %v6575 = vpop.f32.mrf.mxu0
      %v6576 = vadd.f32 %v6503, %v6575
      %6577 = vdwg.mxu0
      %6578 = vmatpush.msra.mxu0 0.0
      %6579 = vmatpush.msra.mxu0 0.0
      %6580 = vmatpush.msra.mxu0 0.0
      %6581 = vmatpush.msra.mxu0 0.0
      %6582 = vmatpush.msra.mxu0 0.0
      %6583 = vmatpush.msra.mxu0 0.0
      %6584 = vmatpush.msra.mxu0 0.0
      %6585 = vmatpush.msra.mxu0 0.0
      %v6586 = vand.u32 %v5798, 4294901760
      %v6587 = vsub.f32 %v5798, %v6586
      %v6588 = vand.u32 %v6587, 4294901760
      %6589 = vmatpush.msra.mxu0 %v6588
      %v6590 = vand.u32 %v5707, 4294901760
      %v6591 = vsub.f32 %v5707, %v6590
      %v6592 = vand.u32 %v6591, 4294901760
      %6593 = vmatpush.msra.mxu0 %v6592
      %v6594 = vand.u32 %v5703, 4294901760
      %v6595 = vsub.f32 %v5703, %v6594
      %v6596 = vand.u32 %v6595, 4294901760
      %6597 = vmatpush.msra.mxu0 %v6596
      %v6598 = vand.u32 %v5699, 4294901760
      %v6599 = vsub.f32 %v5699, %v6598
      %v6600 = vand.u32 %v6599, 4294901760
      %6601 = vmatpush.msra.mxu0 %v6600
      %v6602 = vand.u32 %v5695, 4294901760
      %v6603 = vsub.f32 %v5695, %v6602
      %v6604 = vand.u32 %v6603, 4294901760
      %6605 = vmatpush.msra.mxu0 %v6604
      %v6606 = vand.u32 %v5691, 4294901760
      %v6607 = vsub.f32 %v5691, %v6606
      %v6608 = vand.u32 %v6607, 4294901760
      %6609 = vmatpush.msra.mxu0 %v6608
      %v6610 = vand.u32 %v5687, 4294901760
      %v6611 = vsub.f32 %v5687, %v6610
      %v6612 = vand.u32 %v6611, 4294901760
      %6613 = vmatpush.msra.mxu0 %v6612
      %v6614 = vand.u32 %v5683, 4294901760
      %v6615 = vsub.f32 %v5683, %v6614
      %v6616 = vand.u32 %v6615, 4294901760
      %6617 = vmatpush.msra.mxu0 %v6616
      %v6618 = vand.u32 %v5771, 4294901760
      %6619 = vmatmul.f32.gmra.mxu0 %v6618
      %v6620 = vpop.f32.mrf.mxu0
      %v6621 = vadd.f32 %v6534, %v6620
      %v6622 = vand.u32 %v5774, 4294901760
      %6623 = vmatmul.f32.gmra.mxu0 %v6622
      %v6624 = vpop.f32.mrf.mxu0
      %v6625 = vadd.f32 %v6540, %v6624
      %v6626 = vand.u32 %v5777, 4294901760
      %6627 = vmatmul.f32.gmra.mxu0 %v6626
      %v6628 = vpop.f32.mrf.mxu0
      %v6629 = vadd.f32 %v6546, %v6628
      %v6630 = vand.u32 %v5780, 4294901760
      %6631 = vmatmul.f32.gmra.mxu0 %v6630
      %v6632 = vpop.f32.mrf.mxu0
      %v6633 = vadd.f32 %v6552, %v6632
      %v6634 = vand.u32 %v5783, 4294901760
      %6635 = vmatmul.f32.gmra.mxu0 %v6634
      %v6636 = vpop.f32.mrf.mxu0
      %v6637 = vadd.f32 %v6558, %v6636
      %v6638 = vand.u32 %v5786, 4294901760
      %6639 = vmatmul.f32.gmra.mxu0 %v6638
      %v6640 = vpop.f32.mrf.mxu0
      %v6641 = vadd.f32 %v6564, %v6640
      %v6642 = vand.u32 %v5789, 4294901760
      %6643 = vmatmul.f32.gmra.mxu0 %v6642
      %v6644 = vpop.f32.mrf.mxu0
      %v6645 = vadd.f32 %v6570, %v6644
      %v6646 = vand.u32 %v5792, 4294901760
      %6647 = vmatmul.f32.gmra.mxu0 %v6646
      %v6648 = vpop.f32.mrf.mxu0
      %v6649 = vadd.f32 %v6576, %v6648
      %6650 = vdwg.mxu0
      %6651 = vmatpush.msra.mxu0 0.0
      %6652 = vmatpush.msra.mxu0 0.0
      %6653 = vmatpush.msra.mxu0 0.0
      %6654 = vmatpush.msra.mxu0 0.0
      %6655 = vmatpush.msra.mxu0 0.0
      %6656 = vmatpush.msra.mxu0 0.0
      %6657 = vmatpush.msra.mxu0 0.0
      %6658 = vmatpush.msra.mxu0 0.0
      %v6659 = vand.u32 %v5798, 4294901760
      %6660 = vmatpush.msra.mxu0 %v6659
      %v6661 = vand.u32 %v5707, 4294901760
      %6662 = vmatpush.msra.mxu0 %v6661
      %v6663 = vand.u32 %v5703, 4294901760
      %6664 = vmatpush.msra.mxu0 %v6663
      %v6665 = vand.u32 %v5699, 4294901760
      %6666 = vmatpush.msra.mxu0 %v6665
      %v6667 = vand.u32 %v5695, 4294901760
      %6668 = vmatpush.msra.mxu0 %v6667
      %v6669 = vand.u32 %v5691, 4294901760
      %6670 = vmatpush.msra.mxu0 %v6669
      %v6671 = vand.u32 %v5687, 4294901760
      %6672 = vmatpush.msra.mxu0 %v6671
      %v6673 = vand.u32 %v5683, 4294901760
      %6674 = vmatpush.msra.mxu0 %v6673
      %v6675 = vand.u32 %v5771, 4294901760
      %6676 = vmatmul.f32.gmra.mxu0 %v6675
      %v6677 = vpop.f32.mrf.mxu0
      %v6678 = vadd.f32 %v6621, %v6677
      %v6679 = vand.u32 %v5774, 4294901760
      %6680 = vmatmul.f32.gmra.mxu0 %v6679
      %v6681 = vpop.f32.mrf.mxu0
      %v6682 = vadd.f32 %v6625, %v6681
      %v6683 = vand.u32 %v5777, 4294901760
      %6684 = vmatmul.f32.gmra.mxu0 %v6683
      %v6685 = vpop.f32.mrf.mxu0
      %v6686 = vadd.f32 %v6629, %v6685
      %v6687 = vand.u32 %v5780, 4294901760
      %6688 = vmatmul.f32.gmra.mxu0 %v6687
      %v6689 = vpop.f32.mrf.mxu0
      %v6690 = vadd.f32 %v6633, %v6689
      %v6691 = vand.u32 %v5783, 4294901760
      %6692 = vmatmul.f32.gmra.mxu0 %v6691
      %v6693 = vpop.f32.mrf.mxu0
      %v6694 = vadd.f32 %v6637, %v6693
      %v6695 = vand.u32 %v5786, 4294901760
      %6696 = vmatmul.f32.gmra.mxu0 %v6695
      %v6697 = vpop.f32.mrf.mxu0
      %v6698 = vadd.f32 %v6641, %v6697
      %v6699 = vand.u32 %v5789, 4294901760
      %6700 = vmatmul.f32.gmra.mxu0 %v6699
      %v6701 = vpop.f32.mrf.mxu0
      %v6702 = vadd.f32 %v6645, %v6701
      %v6703 = vand.u32 %v5792, 4294901760
      %6704 = vmatmul.f32.gmra.mxu0 %v6703
      %v6705 = vpop.f32.mrf.mxu0
      %v6706 = vadd.f32 %v6649, %v6705
      %6707 = vdwg.mxu0
      %6708 = vst [vmem:[%s235] sm:$0xff] %v6224
      %6709 = vst [vmem:[%s235 + $0x8] sm:$0xff] %v6678
      %6710 = vst [vmem:[%s235 + $0x10] sm:$0xff] %v6228
      %6711 = vst [vmem:[%s235 + $0x18] sm:$0xff] %v6682
      %6712 = vst [vmem:[%s235 + $0x20] sm:$0xff] %v6232
      %6713 = vst [vmem:[%s235 + $0x28] sm:$0xff] %v6686
      %6714 = vst [vmem:[%s235 + $0x30] sm:$0xff] %v6236
      %6715 = vst [vmem:[%s235 + $0x38] sm:$0xff] %v6690
      %6716 = vst [vmem:[%s235 + $0x40] sm:$0xff] %v6240
      %6717 = vst [vmem:[%s235 + $0x48] sm:$0xff] %v6694
      %6718 = vst [vmem:[%s235 + $0x50] sm:$0xff] %v6244
      %6719 = vst [vmem:[%s235 + $0x58] sm:$0xff] %v6698
      %6720 = vst [vmem:[%s235 + $0x60] sm:$0xff] %v6248
      %6721 = vst [vmem:[%s235 + $0x68] sm:$0xff] %v6702
      %6722 = vst [vmem:[%s235 + $0x70] sm:$0xf] %v6252
      %6723 = vst [vmem:[%s235 + $0x78] sm:$0xf] %v6706
      %s6724 = smul.u32 2, %s20
      %p6725 = scmp.lt.s32.totalorder %s19, 19
      %s6726 = scalar_select %p6725, %s19, 19
      %p6727 = scmp.lt.s32.totalorder %s6724, 1
      %s6728 = scalar_select %p6727, %s6724, 1
      %s6729 = smul.addr %s6726, 16
      %s6730 = sadd.s32 %s6728, %s6729
      %s6731 = smul.addr %s6730, 8
      %s6732 = scalar_lea.vmem %s4, %s6731
      // Predicated region
      $region37: #{sam_forward.1} parent=35 // pred_check
        %p6733 = pneg %p138
      $region38: #{sam_forward.1} parent=35 // pred_check_branch
        %6735 = sbr.rel (%p6733) target = $region40
      $region39: #{sam_forward.1} parent=35 // pred_region
        %s6736 = smul.u32 2, %s20
      $region40: #{sam_forward.1} parent=35 // pred_fallthru
        _
    $region36: #{sam_forward.1} parent=5 // pred_fallthru
      _
    %p6737 = scmp.le.s32.totalorder 2, %s10
    // Predicated region
    $region41: #{sam_forward.1} parent=5 // pred_check
      %p6738 = pneg %p6737
    $region42: #{sam_forward.1} parent=5 // pred_check_branch
      %6740 = sbr.rel (%p6738) target = $region44
    $region43: #{sam_forward.1} parent=5 // pred_region
      %s6741 = ssub.s32 %s10, 2
      // Predicated region
      $region45: #{sam_forward.1} parent=43 // pred_check
        %p6742 = pneg %p144
      $region46: #{sam_forward.1} parent=43 // pred_check_branch
        %6744 = sbr.rel (%p6742) target = $region48
      $region47: #{sam_forward.1} parent=43 // pred_region
        %s6745 = smul.u32 2, %s22
        %p6746 = scmp.lt.s32.totalorder %s21, 19
        %s6747 = scalar_select %p6746, %s21, 19
        %p6748 = scmp.lt.s32.totalorder %s6745, 1
        %s6749 = scalar_select %p6748, %s6745, 1
        %s6750 = smul.addr %s6747, 16
        %s6751 = sadd.s32 %s6749, %s6750
        %s6752 = smul.addr %s6751, 8
        %s6753 = scalar_lea.vmem %s4, %s6752
      $region48: #{sam_forward.1} parent=43 // pred_fallthru
        _
    $region44: #{sam_forward.1} parent=5 // pred_fallthru
      _
  $region6: #{sam_forward.1} parent=0 // loop_footer
    %s14 = sadd.s32 1, %s10
  $region7: #{sam_forward.1} parent=0 // loop_footer_branch
    %9 = sbr.rel target = $region3
  $region8: #{sam_forward.1} parent=0 // loop_exit
    _

</llo_original>
